<compile_context>
chip_gen: v6e
topology: v6e:2x2x1
jax: 0.10.0
libtpu: 0.0.40
codegen_flags: <defaults>
</compile_context>

<pallas_src>
import functools

import jax
import jax.numpy as jnp
from jax.experimental import pallas as pl
from jax.experimental.pallas import tpu as pltpu

EPS = 1e-5  # torch.nn.LayerNorm default

# Slots in the packed square-weight tensor (all stored pre-transposed: (in, out)).
W_LM, W_OUT, W_LMLP, W_M1, W_M2 = range(5)
# Slots in the packed vector tensor.
(B_LM, G_NM, BE_NM, B_Q, B_K, B_V, B_OUT,
 B_LMLP, G_NMLP, BE_NMLP, B_M1, B_M2) = range(12)


def _layernorm(h, gamma, beta):
    mu = jnp.mean(h, axis=-1, keepdims=True)
    var = jnp.mean((h - mu) ** 2, axis=-1, keepdims=True)
    return (h - mu) * jax.lax.rsqrt(var + EPS) * gamma + beta


# ---------------------------------------------------------------------------
# Pallas kernel: the full SwingBlock stack for one batch element.
# ---------------------------------------------------------------------------
def swing_stack_kernel(x_ref, wqkv_ref, wsq_ref, vec_ref, o_ref, *,
                       n_blocks, n_heads, n_windows):
    _, N, D = x_ref.shape
    Wn = N // n_windows
    hd = D // n_heads
    scale = 1.0 / (float(hd) ** 0.5)
    half = Wn // 2

    # Activation stays VMEM-resident (as an f32 value) across the whole stack.
    x = x_ref[0].astype(jnp.float32)  # (N, D)

    for blk in range(n_blocks):                       # static unrolled loop
        shifted = (blk % 2 == 0)                      # SwingBlockStack: shift on even blocks
        if shifted:
            # roll tokens by -half (== +(N-half)); hoisting the roll around the
            # whole block is exact since all non-attention ops are per-token.
            x = pltpu.roll(x, N - half, axis=0)

        vecs = vec_ref[blk]                           # (12, D)

        def vrow(i, _v=vecs):
            return _v[i:i + 1, :]                     # (1, D) broadcast row

        # ---- linear_msa -> LayerNorm (all N tokens at once) ----------------
        h = jnp.dot(x, wsq_ref[blk, W_LM],
                    preferred_element_type=jnp.float32) + vrow(B_LM)
        h = _layernorm(h, vrow(G_NM), vrow(BE_NM))

        # ---- window multi-head self-attention -------------------------------
        # Fused QKV projection: one (N, D) x (D, 3D) MXU pass.
        qkv = jnp.dot(h, wqkv_ref[blk], preferred_element_type=jnp.float32)
        q = (qkv[:, 0:D] + vrow(B_Q)) * scale
        k = qkv[:, D:2 * D] + vrow(B_K)
        v = qkv[:, 2 * D:3 * D] + vrow(B_V)

        # Windowing = sublane-split reshape (Wn is a multiple of 8 here).
        qw = q.reshape(n_windows, Wn, D)
        kw = k.reshape(n_windows, Wn, D)
        vw = v.reshape(n_windows, Wn, D)

        w_out = wsq_ref[blk, W_OUT]                   # (D, D), (in, out)
        attn = jnp.zeros((N, D), jnp.float32)
        for hi in range(n_heads):                     # static, small head loop
            s = hi * hd
            qh = qw[:, :, s:s + hd]                   # (W, Wn, hd)
            kh = kw[:, :, s:s + hd]
            vh = vw[:, :, s:s + hd]
            # Batched over all windows in one contraction (flash-style pattern).
            logits = jnp.einsum("wqd,wkd->wqk", qh, kh,
                                preferred_element_type=jnp.float32)
            logits = logits - jnp.max(logits, axis=-1, keepdims=True)
            p = jnp.exp(logits)
            p = p / jnp.sum(p, axis=-1, keepdims=True)
            oh = jnp.einsum("wqk,wkd->wqd", p, vh,
                            preferred_element_type=jnp.float32)  # (W, Wn, hd)
            # Accumulate the out-projection per head (no lane concat needed).
            attn = attn + jnp.dot(oh.reshape(N, hd), w_out[s:s + hd, :],
                                  preferred_element_type=jnp.float32)
        attn = attn + vrow(B_OUT)

        x = x + attn                                  # residual

        # ---- linear_mlp -> LayerNorm -> MLP (linear, relu, linear) ----------
        h2 = jnp.dot(x, wsq_ref[blk, W_LMLP],
                     preferred_element_type=jnp.float32) + vrow(B_LMLP)
        h2 = _layernorm(h2, vrow(G_NMLP), vrow(BE_NMLP))
        m = jnp.dot(h2, wsq_ref[blk, W_M1],
                    preferred_element_type=jnp.float32) + vrow(B_M1)
        m = jnp.maximum(m, 0.0)
        m = jnp.dot(m, wsq_ref[blk, W_M2],
                    preferred_element_type=jnp.float32) + vrow(B_M2)
        x = x + m                                     # residual

        if shifted:
            x = pltpu.roll(x, half, axis=0)           # undo the shift

    o_ref[0] = x.astype(o_ref.dtype)


# ---------------------------------------------------------------------------
# Parameter packing (pre-transpose all weights to (in, out)).
# ---------------------------------------------------------------------------
def pack_block_params(block_params):
    wqkv = jnp.stack([
        jnp.concatenate([p["w_q"], p["w_k"], p["w_v"]], axis=0).T   # (D, 3D)
        for p in block_params
    ])                                                              # (nb, D, 3D)
    wsq = jnp.stack([
        jnp.stack([p["w_lm"].T, p["w_out"].T, p["w_lmlp"].T,
                   p["w_m1"].T, p["w_m2"].T])
        for p in block_params
    ])                                                              # (nb, 5, D, D)
    vecs = jnp.stack([
        jnp.stack([p["b_lm"][0], p["g_nm"][0], p["be_nm"][0],
                   p["b_q"][0], p["b_k"][0], p["b_v"][0],
                   p["b_out"][0],
                   p["b_lmlp"][0], p["g_nmlp"][0], p["be_nmlp"][0],
                   p["b_m1"][0], p["b_m2"][0]])
        for p in block_params
    ])                                                              # (nb, 12, D)
    return wqkv, wsq, vecs


# ---------------------------------------------------------------------------
# Wrapper: one pallas_call for the whole stack, grid over batch only.
# ---------------------------------------------------------------------------
def swing_block_stack_forward(x_bdn, block_params, *, n_heads, n_windows=4):
    """x_bdn: (B, dim, N) — PyTorch-style layout (features on axis 1)."""
    B, D, N = x_bdn.shape
    n_blocks = len(block_params)
    assert N % n_windows == 0 and (N // n_windows) % 2 == 0
    assert D % n_heads == 0
    # NOTE: with block == full array dims the (8,128) divisibility rule is
    # satisfied; other N / n_windows choices should be padded wrapper-side.

    x = jnp.transpose(x_bdn, (0, 2, 1))          # (B, N, D)
    wqkv, wsq, vecs = pack_block_params(block_params)

    kernel = functools.partial(swing_stack_kernel, n_blocks=n_blocks,
                               n_heads=n_heads, n_windows=n_windows)

    out = pl.pallas_call(
        kernel,
        out_shape=jax.ShapeDtypeStruct((B, N, D), x.dtype),
        grid=(B,),
        in_specs=[
            pl.BlockSpec((1, N, D), lambda b: (b, 0, 0)),
            pl.BlockSpec(wqkv.shape, lambda b: (0, 0, 0)),     # constant-index params:
            pl.BlockSpec(wsq.shape, lambda b: (0, 0, 0, 0)),   # DMA'd once, stay in VMEM
            pl.BlockSpec(vecs.shape, lambda b: (0, 0, 0)),
        ],
        out_specs=pl.BlockSpec((1, N, D), lambda b: (b, 0, 0)),
        compiler_params=pltpu.CompilerParams(
            dimension_semantics=("parallel",),        # batch axis feeds both TCs on v7x
            vmem_limit_bytes=32 * 1024 * 1024,        # explicit budget; raise for big D
        ),
    )(x, wqkv, wsq, vecs)

    return jnp.transpose(out, (0, 2, 1))              # back to (B, dim, N)


# ---------------------------------------------------------------------------
# Deterministic parameter init (shapes follow the PyTorch module __init__).
# ---------------------------------------------------------------------------
def init_block_params(key, dim):
    ks = jax.random.split(key, 16)
    n = lambda k, shape, s=0.05: (jax.random.normal(k, shape, jnp.float32) * s)
    # MHA packed in_proj (3*dim, dim) split into q/k/v — same math as torch.
    w_in = n(ks[4], (3 * dim, dim))
    b_in = n(ks[5], (1, 3 * dim))
    return {
        "w_lm": n(ks[0], (dim, dim)), "b_lm": n(ks[1], (1, dim)),
        "g_nm": jnp.ones((1, dim), jnp.float32), "be_nm": jnp.zeros((1, dim), jnp.float32),
        "w_q": w_in[0:dim], "b_q": b_in[:, 0:dim],
        "w_k": w_in[dim:2 * dim], "b_k": b_in[:, dim:2 * dim],
        "w_v": w_in[2 * dim:3 * dim], "b_v": b_in[:, 2 * dim:3 * dim],
        "w_out": n(ks[6], (dim, dim)), "b_out": n(ks[7], (1, dim)),
        "w_lmlp": n(ks[8], (dim, dim)), "b_lmlp": n(ks[9], (1, dim)),
        "g_nmlp": jnp.ones((1, dim), jnp.float32), "be_nmlp": jnp.zeros((1, dim), jnp.float32),
        "w_m1": n(ks[10], (dim, dim)), "b_m1": n(ks[11], (1, dim)),
        "w_m2": n(ks[12], (dim, dim)), "b_m2": n(ks[13], (1, dim)),
    }


# ---------------------------------------------------------------------------
# Pure-JAX reference (same math, vectorized) for a correctness check.
# ---------------------------------------------------------------------------
def _ref_block(x, p, *, shift, n_windows, n_heads):
    B, N, D = x.shape
    Wn = N // n_windows
    hd = D // n_heads
    if shift:
        x = jnp.roll(x, -(Wn // 2), axis=1)
    x0 = x
    h = x0 @ p["w_lm"].T + p["b_lm"]
    h = _layernorm(h, p["g_nm"], p["be_nm"])
    hw = h.reshape(B, n_windows, Wn, D)
    q = (hw @ p["w_q"].T + p["b_q"]).reshape(B, n_windows, Wn, n_heads, hd)
    k = (hw @ p["w_k"].T + p["b_k"]).reshape(B, n_windows, Wn, n_heads, hd)
    v = (hw @ p["w_v"].T + p["b_v"]).reshape(B, n_windows, Wn, n_heads, hd)
    logits = jnp.einsum("bwqhd,bwkhd->bwhqk", q, k) / jnp.sqrt(float(hd))
    a = jax.nn.softmax(logits, axis=-1)
    o = jnp.einsum("bwhqk,bwkhd->bwqhd", a, v).reshape(B, n_windows, Wn, D)
    attn = (o @ p["w_out"].T + p["b_out"]).reshape(B, N, D)
    x1 = x0 + attn
    h2 = _layernorm(x1 @ p["w_lmlp"].T + p["b_lmlp"], p["g_nmlp"], p["be_nmlp"])
    m = jnp.maximum(h2 @ p["w_m1"].T + p["b_m1"], 0.0) @ p["w_m2"].T + p["b_m2"]
    out = x1 + m
    if shift:
        out = jnp.roll(out, Wn // 2, axis=1)
    return out


def _ref_stack(x_bdn, block_params, *, n_heads, n_windows=4):
    x = jnp.transpose(x_bdn, (0, 2, 1))
    for i, p in enumerate(block_params):
        x = _ref_block(x, p, shift=(i % 2 == 0), n_windows=n_windows, n_heads=n_heads)
    return jnp.transpose(x, (0, 2, 1))


if __name__ == "__main__":
    # Small shapes consistent with the module: dim divisible by n_heads,
    # tokens divisible by n_windows=4 (and window size divisible by 2).
    B, dim, N = 2, 24, 32
    n_heads, n_blocks = 3, 2

    key = jax.random.PRNGKey(0)
    kx, kp = jax.random.split(key)
    x = jax.random.normal(kx, (B, dim, N), jnp.float32)  # PyTorch-style (B, dim, N)

    block_params = [init_block_params(k, dim) for k in jax.random.split(kp, n_blocks)]

    out = swing_block_stack_forward(x, block_params, n_heads=n_heads, n_windows=4)
    out = jax.block_until_ready(out)

    ref = jax.block_until_ready(_ref_stack(x, block_params, n_heads=n_heads, n_windows=4))
    assert out.shape == (B, dim, N)
    assert jnp.allclose(out, ref, rtol=1e-4, atol=1e-4), "kernel/ref mismatch"

    print("KERNEL_OK")
</pallas_src>

<mosaic_0001>
module attributes {stable_mosaic.version = 11 : i64} {
  func.func @swing_stack_kernel(%arg0: i32, %arg1: memref<1x32x24xf32, #tpu.memory_space<vmem>>, %arg2: memref<2x24x72xf32, #tpu.memory_space<vmem>>, %arg3: memref<2x5x24x24xf32, #tpu.memory_space<vmem>>, %arg4: memref<2x12x24xf32, #tpu.memory_space<vmem>>, %arg5: memref<1x32x24xf32, #tpu.memory_space<vmem>>) attributes {dimension_semantics = [#tpu.dimension_semantics<parallel>], iteration_bounds = array<i64: 2>, scalar_prefetch = 0 : i64, scratch_operands = 0 : i64, tpu.core_type = #tpu.core_type<tc>, window_params = [{transform_indices = @transform_0, window_bounds = array<i64: 1, 32, 24>}, {pipeline_mode = #tpu.pipeline_mode<synchronous>, transform_indices = @transform_1, window_bounds = array<i64: 2, 24, 72>}, {pipeline_mode = #tpu.pipeline_mode<synchronous>, transform_indices = @transform_2, window_bounds = array<i64: 2, 5, 24, 24>}, {pipeline_mode = #tpu.pipeline_mode<synchronous>, transform_indices = @transform_3, window_bounds = array<i64: 2, 12, 24>}, {transform_indices = @transform_4, window_bounds = array<i64: 1, 32, 24>}]} {
    %c0 = arith.constant 0 : index
    %c0_0 = arith.constant 0 : index
    %c0_1 = arith.constant 0 : index
    %0 = vector.load %arg1[%c0, %c0_0, %c0_1] : memref<1x32x24xf32, #tpu.memory_space<vmem>>, vector<1x32x24xf32>
    %1 = vector.shape_cast %0 : vector<1x32x24xf32> to vector<32x24xf32>
    %c28_i32 = arith.constant 28 : i32
    %2 = tpu.dynamic_rotate %1 by %c28_i32 dim 0 : vector<32x24xf32>, i32 -> vector<32x24xf32>
    %c0_2 = arith.constant 0 : index
    %c0_3 = arith.constant 0 : index
    %c0_4 = arith.constant 0 : index
    %3 = vector.load %arg4[%c0_2, %c0_3, %c0_4] : memref<2x12x24xf32, #tpu.memory_space<vmem>>, vector<1x12x24xf32>
    %4 = vector.shape_cast %3 : vector<1x12x24xf32> to vector<12x24xf32>
    %c0_5 = arith.constant 0 : index
    %c0_6 = arith.constant 0 : index
    %c0_7 = arith.constant 0 : index
    %c0_8 = arith.constant 0 : index
    %5 = vector.load %arg3[%c0_5, %c0_6, %c0_7, %c0_8] : memref<2x5x24x24xf32, #tpu.memory_space<vmem>>, vector<1x1x24x24xf32>
    %6 = vector.shape_cast %5 : vector<1x1x24x24xf32> to vector<24x24xf32>
    %cst = arith.constant dense<0.000000e+00> : vector<32x24xf32>
    %7 = tpu.matmul %2, %6, %cst {dimension_numbers = #tpu.dot_dimension_numbers<[1], [0], [0], [1], [0, 0, 1, 1], [], []>} : vector<32x24xf32>, vector<24x24xf32>, vector<32x24xf32> -> vector<32x24xf32>
    %8 = vector.extract_strided_slice %4 {offsets = [0, 0], sizes = [1, 24], strides = [1, 1]} : vector<12x24xf32> to vector<1x24xf32>
    %9 = vector.broadcast %8 : vector<1x24xf32> to vector<32x24xf32>
    %10 = arith.addf %7, %9 : vector<32x24xf32>
    %11 = vector.extract_strided_slice %4 {offsets = [1, 0], sizes = [1, 24], strides = [1, 1]} : vector<12x24xf32> to vector<1x24xf32>
    %12 = vector.extract_strided_slice %4 {offsets = [2, 0], sizes = [1, 24], strides = [1, 1]} : vector<12x24xf32> to vector<1x24xf32>
    %cst_9 = arith.constant dense<0.000000e+00> : vector<32xf32>
    %13 = vector.multi_reduction <add>, %10, %cst_9 [1] : vector<32x24xf32> to vector<32xf32>
    %14 = vector.shape_cast %13 : vector<32xf32> to vector<32x1xf32>
    %cst_10 = arith.constant 2.400000e+01 : f32
    %15 = vector.broadcast %cst_10 : f32 to vector<32x1xf32>
    %16 = arith.divf %14, %15 : vector<32x1xf32>
    %17 = vector.broadcast %16 : vector<32x1xf32> to vector<32x24xf32>
    %18 = arith.subf %10, %17 : vector<32x24xf32>
    %19 = arith.mulf %18, %18 : vector<32x24xf32>
    %cst_11 = arith.constant dense<0.000000e+00> : vector<32xf32>
    %20 = vector.multi_reduction <add>, %19, %cst_11 [1] : vector<32x24xf32> to vector<32xf32>
    %21 = vector.shape_cast %20 : vector<32xf32> to vector<32x1xf32>
    %cst_12 = arith.constant 2.400000e+01 : f32
    %22 = vector.broadcast %cst_12 : f32 to vector<32x1xf32>
    %23 = arith.divf %21, %22 : vector<32x1xf32>
    %24 = vector.broadcast %16 : vector<32x1xf32> to vector<32x24xf32>
    %25 = arith.subf %10, %24 : vector<32x24xf32>
    %cst_13 = arith.constant 9.99999974E-6 : f32
    %26 = vector.broadcast %cst_13 : f32 to vector<32x1xf32>
    %27 = arith.addf %23, %26 : vector<32x1xf32>
    %28 = math.rsqrt %27 : vector<32x1xf32>
    %29 = vector.broadcast %28 : vector<32x1xf32> to vector<32x24xf32>
    %30 = arith.mulf %25, %29 : vector<32x24xf32>
    %31 = vector.broadcast %11 : vector<1x24xf32> to vector<32x24xf32>
    %32 = arith.mulf %30, %31 : vector<32x24xf32>
    %33 = vector.broadcast %12 : vector<1x24xf32> to vector<32x24xf32>
    %34 = arith.addf %32, %33 : vector<32x24xf32>
    %c0_14 = arith.constant 0 : index
    %c0_15 = arith.constant 0 : index
    %c0_16 = arith.constant 0 : index
    %35 = vector.load %arg2[%c0_14, %c0_15, %c0_16] : memref<2x24x72xf32, #tpu.memory_space<vmem>>, vector<1x24x72xf32>
    %36 = vector.shape_cast %35 : vector<1x24x72xf32> to vector<24x72xf32>
    %cst_17 = arith.constant dense<0.000000e+00> : vector<32x72xf32>
    %37 = tpu.matmul %34, %36, %cst_17 {dimension_numbers = #tpu.dot_dimension_numbers<[1], [0], [0], [1], [0, 0, 1, 1], [], []>} : vector<32x24xf32>, vector<24x72xf32>, vector<32x72xf32> -> vector<32x72xf32>
    %38 = vector.extract_strided_slice %37 {offsets = [0, 0], sizes = [32, 24], strides = [1, 1]} : vector<32x72xf32> to vector<32x24xf32>
    %39 = vector.extract_strided_slice %4 {offsets = [3, 0], sizes = [1, 24], strides = [1, 1]} : vector<12x24xf32> to vector<1x24xf32>
    %40 = vector.broadcast %39 : vector<1x24xf32> to vector<32x24xf32>
    %41 = arith.addf %38, %40 : vector<32x24xf32>
    %cst_18 = arith.constant 0.353553385 : f32
    %42 = vector.broadcast %cst_18 : f32 to vector<32x24xf32>
    %43 = arith.mulf %41, %42 : vector<32x24xf32>
    %44 = vector.extract_strided_slice %37 {offsets = [0, 24], sizes = [32, 24], strides = [1, 1]} : vector<32x72xf32> to vector<32x24xf32>
    %45 = vector.extract_strided_slice %4 {offsets = [4, 0], sizes = [1, 24], strides = [1, 1]} : vector<12x24xf32> to vector<1x24xf32>
    %46 = vector.broadcast %45 : vector<1x24xf32> to vector<32x24xf32>
    %47 = arith.addf %44, %46 : vector<32x24xf32>
    %48 = vector.extract_strided_slice %37 {offsets = [0, 48], sizes = [32, 24], strides = [1, 1]} : vector<32x72xf32> to vector<32x24xf32>
    %49 = vector.extract_strided_slice %4 {offsets = [5, 0], sizes = [1, 24], strides = [1, 1]} : vector<12x24xf32> to vector<1x24xf32>
    %50 = vector.broadcast %49 : vector<1x24xf32> to vector<32x24xf32>
    %51 = arith.addf %48, %50 : vector<32x24xf32>
    %52 = vector.shape_cast %43 : vector<32x24xf32> to vector<4x8x24xf32>
    %53 = vector.shape_cast %47 : vector<32x24xf32> to vector<4x8x24xf32>
    %54 = vector.shape_cast %51 : vector<32x24xf32> to vector<4x8x24xf32>
    %c0_19 = arith.constant 0 : index
    %c1 = arith.constant 1 : index
    %c0_20 = arith.constant 0 : index
    %c0_21 = arith.constant 0 : index
    %55 = vector.load %arg3[%c0_19, %c1, %c0_20, %c0_21] : memref<2x5x24x24xf32, #tpu.memory_space<vmem>>, vector<1x1x24x24xf32>
    %56 = vector.shape_cast %55 : vector<1x1x24x24xf32> to vector<24x24xf32>
    %cst_22 = arith.constant 0.000000e+00 : f32
    %57 = vector.broadcast %cst_22 : f32 to vector<32x24xf32>
    %58 = vector.extract_strided_slice %52 {offsets = [0, 0, 0], sizes = [4, 8, 8], strides = [1, 1, 1]} : vector<4x8x24xf32> to vector<4x8x8xf32>
    %59 = vector.extract_strided_slice %53 {offsets = [0, 0, 0], sizes = [4, 8, 8], strides = [1, 1, 1]} : vector<4x8x24xf32> to vector<4x8x8xf32>
    %60 = vector.extract_strided_slice %54 {offsets = [0, 0, 0], sizes = [4, 8, 8], strides = [1, 1, 1]} : vector<4x8x24xf32> to vector<4x8x8xf32>
    "tpu.trace_start"() <{level = 10 : i32, message = "wqd,wkd->wqk"}> : () -> ()
    %cst_23 = arith.constant dense<0.000000e+00> : vector<4x8x8xf32>
    %61 = tpu.matmul %58, %59, %cst_23 {dimension_numbers = #tpu.dot_dimension_numbers<[2], [2], [1], [1], [0, 0, 0, 1, 1, 1], [0], [0]>} : vector<4x8x8xf32>, vector<4x8x8xf32>, vector<4x8x8xf32> -> vector<4x8x8xf32>
    "tpu.trace_stop"() : () -> ()
    %cst_24 = arith.constant dense<0xFF800000> : vector<4x8xf32>
    %62 = vector.multi_reduction <maximumf>, %61, %cst_24 [2] : vector<4x8x8xf32> to vector<4x8xf32>
    %63 = vector.shape_cast %62 : vector<4x8xf32> to vector<4x8x1xf32>
    %64 = vector.broadcast %63 : vector<4x8x1xf32> to vector<4x8x8xf32>
    %65 = arith.subf %61, %64 : vector<4x8x8xf32>
    %66 = math.exp %65 : vector<4x8x8xf32>
    %cst_25 = arith.constant dense<0.000000e+00> : vector<4x8xf32>
    %67 = vector.multi_reduction <add>, %66, %cst_25 [2] : vector<4x8x8xf32> to vector<4x8xf32>
    %68 = vector.shape_cast %67 : vector<4x8xf32> to vector<4x8x1xf32>
    %69 = vector.broadcast %68 : vector<4x8x1xf32> to vector<4x8x8xf32>
    %70 = arith.divf %66, %69 : vector<4x8x8xf32>
    "tpu.trace_start"() <{level = 10 : i32, message = "wqk,wkd->wqd"}> : () -> ()
    %cst_26 = arith.constant dense<0.000000e+00> : vector<4x8x8xf32>
    %71 = tpu.matmul %70, %60, %cst_26 {dimension_numbers = #tpu.dot_dimension_numbers<[2], [1], [1], [2], [0, 0, 0, 1, 1, 2], [0], [0]>} : vector<4x8x8xf32>, vector<4x8x8xf32>, vector<4x8x8xf32> -> vector<4x8x8xf32>
    "tpu.trace_stop"() : () -> ()
    %72 = vector.shape_cast %71 : vector<4x8x8xf32> to vector<32x8xf32>
    %73 = vector.extract_strided_slice %56 {offsets = [0, 0], sizes = [8, 24], strides = [1, 1]} : vector<24x24xf32> to vector<8x24xf32>
    %cst_27 = arith.constant dense<0.000000e+00> : vector<32x24xf32>
    %74 = tpu.matmul %72, %73, %cst_27 {dimension_numbers = #tpu.dot_dimension_numbers<[1], [0], [0], [1], [0, 0, 1, 1], [], []>} : vector<32x8xf32>, vector<8x24xf32>, vector<32x24xf32> -> vector<32x24xf32>
    %75 = arith.addf %57, %74 : vector<32x24xf32>
    %76 = vector.extract_strided_slice %52 {offsets = [0, 0, 8], sizes = [4, 8, 8], strides = [1, 1, 1]} : vector<4x8x24xf32> to vector<4x8x8xf32>
    %77 = vector.extract_strided_slice %53 {offsets = [0, 0, 8], sizes = [4, 8, 8], strides = [1, 1, 1]} : vector<4x8x24xf32> to vector<4x8x8xf32>
    %78 = vector.extract_strided_slice %54 {offsets = [0, 0, 8], sizes = [4, 8, 8], strides = [1, 1, 1]} : vector<4x8x24xf32> to vector<4x8x8xf32>
    "tpu.trace_start"() <{level = 10 : i32, message = "wqd,wkd->wqk"}> : () -> ()
    %cst_28 = arith.constant dense<0.000000e+00> : vector<4x8x8xf32>
    %79 = tpu.matmul %76, %77, %cst_28 {dimension_numbers = #tpu.dot_dimension_numbers<[2], [2], [1], [1], [0, 0, 0, 1, 1, 1], [0], [0]>} : vector<4x8x8xf32>, vector<4x8x8xf32>, vector<4x8x8xf32> -> vector<4x8x8xf32>
    "tpu.trace_stop"() : () -> ()
    %cst_29 = arith.constant dense<0xFF800000> : vector<4x8xf32>
    %80 = vector.multi_reduction <maximumf>, %79, %cst_29 [2] : vector<4x8x8xf32> to vector<4x8xf32>
    %81 = vector.shape_cast %80 : vector<4x8xf32> to vector<4x8x1xf32>
    %82 = vector.broadcast %81 : vector<4x8x1xf32> to vector<4x8x8xf32>
    %83 = arith.subf %79, %82 : vector<4x8x8xf32>
    %84 = math.exp %83 : vector<4x8x8xf32>
    %cst_30 = arith.constant dense<0.000000e+00> : vector<4x8xf32>
    %85 = vector.multi_reduction <add>, %84, %cst_30 [2] : vector<4x8x8xf32> to vector<4x8xf32>
    %86 = vector.shape_cast %85 : vector<4x8xf32> to vector<4x8x1xf32>
    %87 = vector.broadcast %86 : vector<4x8x1xf32> to vector<4x8x8xf32>
    %88 = arith.divf %84, %87 : vector<4x8x8xf32>
    "tpu.trace_start"() <{level = 10 : i32, message = "wqk,wkd->wqd"}> : () -> ()
    %cst_31 = arith.constant dense<0.000000e+00> : vector<4x8x8xf32>
    %89 = tpu.matmul %88, %78, %cst_31 {dimension_numbers = #tpu.dot_dimension_numbers<[2], [1], [1], [2], [0, 0, 0, 1, 1, 2], [0], [0]>} : vector<4x8x8xf32>, vector<4x8x8xf32>, vector<4x8x8xf32> -> vector<4x8x8xf32>
    "tpu.trace_stop"() : () -> ()
    %90 = vector.shape_cast %89 : vector<4x8x8xf32> to vector<32x8xf32>
    %91 = vector.extract_strided_slice %56 {offsets = [8, 0], sizes = [8, 24], strides = [1, 1]} : vector<24x24xf32> to vector<8x24xf32>
    %cst_32 = arith.constant dense<0.000000e+00> : vector<32x24xf32>
    %92 = tpu.matmul %90, %91, %cst_32 {dimension_numbers = #tpu.dot_dimension_numbers<[1], [0], [0], [1], [0, 0, 1, 1], [], []>} : vector<32x8xf32>, vector<8x24xf32>, vector<32x24xf32> -> vector<32x24xf32>
    %93 = arith.addf %75, %92 : vector<32x24xf32>
    %94 = vector.extract_strided_slice %52 {offsets = [0, 0, 16], sizes = [4, 8, 8], strides = [1, 1, 1]} : vector<4x8x24xf32> to vector<4x8x8xf32>
    %95 = vector.extract_strided_slice %53 {offsets = [0, 0, 16], sizes = [4, 8, 8], strides = [1, 1, 1]} : vector<4x8x24xf32> to vector<4x8x8xf32>
    %96 = vector.extract_strided_slice %54 {offsets = [0, 0, 16], sizes = [4, 8, 8], strides = [1, 1, 1]} : vector<4x8x24xf32> to vector<4x8x8xf32>
    "tpu.trace_start"() <{level = 10 : i32, message = "wqd,wkd->wqk"}> : () -> ()
    %cst_33 = arith.constant dense<0.000000e+00> : vector<4x8x8xf32>
    %97 = tpu.matmul %94, %95, %cst_33 {dimension_numbers = #tpu.dot_dimension_numbers<[2], [2], [1], [1], [0, 0, 0, 1, 1, 1], [0], [0]>} : vector<4x8x8xf32>, vector<4x8x8xf32>, vector<4x8x8xf32> -> vector<4x8x8xf32>
    "tpu.trace_stop"() : () -> ()
    %cst_34 = arith.constant dense<0xFF800000> : vector<4x8xf32>
    %98 = vector.multi_reduction <maximumf>, %97, %cst_34 [2] : vector<4x8x8xf32> to vector<4x8xf32>
    %99 = vector.shape_cast %98 : vector<4x8xf32> to vector<4x8x1xf32>
    %100 = vector.broadcast %99 : vector<4x8x1xf32> to vector<4x8x8xf32>
    %101 = arith.subf %97, %100 : vector<4x8x8xf32>
    %102 = math.exp %101 : vector<4x8x8xf32>
    %cst_35 = arith.constant dense<0.000000e+00> : vector<4x8xf32>
    %103 = vector.multi_reduction <add>, %102, %cst_35 [2] : vector<4x8x8xf32> to vector<4x8xf32>
    %104 = vector.shape_cast %103 : vector<4x8xf32> to vector<4x8x1xf32>
    %105 = vector.broadcast %104 : vector<4x8x1xf32> to vector<4x8x8xf32>
    %106 = arith.divf %102, %105 : vector<4x8x8xf32>
    "tpu.trace_start"() <{level = 10 : i32, message = "wqk,wkd->wqd"}> : () -> ()
    %cst_36 = arith.constant dense<0.000000e+00> : vector<4x8x8xf32>
    %107 = tpu.matmul %106, %96, %cst_36 {dimension_numbers = #tpu.dot_dimension_numbers<[2], [1], [1], [2], [0, 0, 0, 1, 1, 2], [0], [0]>} : vector<4x8x8xf32>, vector<4x8x8xf32>, vector<4x8x8xf32> -> vector<4x8x8xf32>
    "tpu.trace_stop"() : () -> ()
    %108 = vector.shape_cast %107 : vector<4x8x8xf32> to vector<32x8xf32>
    %109 = vector.extract_strided_slice %56 {offsets = [16, 0], sizes = [8, 24], strides = [1, 1]} : vector<24x24xf32> to vector<8x24xf32>
    %cst_37 = arith.constant dense<0.000000e+00> : vector<32x24xf32>
    %110 = tpu.matmul %108, %109, %cst_37 {dimension_numbers = #tpu.dot_dimension_numbers<[1], [0], [0], [1], [0, 0, 1, 1], [], []>} : vector<32x8xf32>, vector<8x24xf32>, vector<32x24xf32> -> vector<32x24xf32>
    %111 = arith.addf %93, %110 : vector<32x24xf32>
    %112 = vector.extract_strided_slice %4 {offsets = [6, 0], sizes = [1, 24], strides = [1, 1]} : vector<12x24xf32> to vector<1x24xf32>
    %113 = vector.broadcast %112 : vector<1x24xf32> to vector<32x24xf32>
    %114 = arith.addf %111, %113 : vector<32x24xf32>
    %115 = arith.addf %2, %114 : vector<32x24xf32>
    %c0_38 = arith.constant 0 : index
    %c2 = arith.constant 2 : index
    %c0_39 = arith.constant 0 : index
    %c0_40 = arith.constant 0 : index
    %116 = vector.load %arg3[%c0_38, %c2, %c0_39, %c0_40] : memref<2x5x24x24xf32, #tpu.memory_space<vmem>>, vector<1x1x24x24xf32>
    %117 = vector.shape_cast %116 : vector<1x1x24x24xf32> to vector<24x24xf32>
    %cst_41 = arith.constant dense<0.000000e+00> : vector<32x24xf32>
    %118 = tpu.matmul %115, %117, %cst_41 {dimension_numbers = #tpu.dot_dimension_numbers<[1], [0], [0], [1], [0, 0, 1, 1], [], []>} : vector<32x24xf32>, vector<24x24xf32>, vector<32x24xf32> -> vector<32x24xf32>
    %119 = vector.extract_strided_slice %4 {offsets = [7, 0], sizes = [1, 24], strides = [1, 1]} : vector<12x24xf32> to vector<1x24xf32>
    %120 = vector.broadcast %119 : vector<1x24xf32> to vector<32x24xf32>
    %121 = arith.addf %118, %120 : vector<32x24xf32>
    %122 = vector.extract_strided_slice %4 {offsets = [8, 0], sizes = [1, 24], strides = [1, 1]} : vector<12x24xf32> to vector<1x24xf32>
    %123 = vector.extract_strided_slice %4 {offsets = [9, 0], sizes = [1, 24], strides = [1, 1]} : vector<12x24xf32> to vector<1x24xf32>
    %cst_42 = arith.constant dense<0.000000e+00> : vector<32xf32>
    %124 = vector.multi_reduction <add>, %121, %cst_42 [1] : vector<32x24xf32> to vector<32xf32>
    %125 = vector.shape_cast %124 : vector<32xf32> to vector<32x1xf32>
    %cst_43 = arith.constant 2.400000e+01 : f32
    %126 = vector.broadcast %cst_43 : f32 to vector<32x1xf32>
    %127 = arith.divf %125, %126 : vector<32x1xf32>
    %128 = vector.broadcast %127 : vector<32x1xf32> to vector<32x24xf32>
    %129 = arith.subf %121, %128 : vector<32x24xf32>
    %130 = arith.mulf %129, %129 : vector<32x24xf32>
    %cst_44 = arith.constant dense<0.000000e+00> : vector<32xf32>
    %131 = vector.multi_reduction <add>, %130, %cst_44 [1] : vector<32x24xf32> to vector<32xf32>
    %132 = vector.shape_cast %131 : vector<32xf32> to vector<32x1xf32>
    %cst_45 = arith.constant 2.400000e+01 : f32
    %133 = vector.broadcast %cst_45 : f32 to vector<32x1xf32>
    %134 = arith.divf %132, %133 : vector<32x1xf32>
    %135 = vector.broadcast %127 : vector<32x1xf32> to vector<32x24xf32>
    %136 = arith.subf %121, %135 : vector<32x24xf32>
    %cst_46 = arith.constant 9.99999974E-6 : f32
    %137 = vector.broadcast %cst_46 : f32 to vector<32x1xf32>
    %138 = arith.addf %134, %137 : vector<32x1xf32>
    %139 = math.rsqrt %138 : vector<32x1xf32>
    %140 = vector.broadcast %139 : vector<32x1xf32> to vector<32x24xf32>
    %141 = arith.mulf %136, %140 : vector<32x24xf32>
    %142 = vector.broadcast %122 : vector<1x24xf32> to vector<32x24xf32>
    %143 = arith.mulf %141, %142 : vector<32x24xf32>
    %144 = vector.broadcast %123 : vector<1x24xf32> to vector<32x24xf32>
    %145 = arith.addf %143, %144 : vector<32x24xf32>
    %c0_47 = arith.constant 0 : index
    %c3 = arith.constant 3 : index
    %c0_48 = arith.constant 0 : index
    %c0_49 = arith.constant 0 : index
    %146 = vector.load %arg3[%c0_47, %c3, %c0_48, %c0_49] : memref<2x5x24x24xf32, #tpu.memory_space<vmem>>, vector<1x1x24x24xf32>
    %147 = vector.shape_cast %146 : vector<1x1x24x24xf32> to vector<24x24xf32>
    %cst_50 = arith.constant dense<0.000000e+00> : vector<32x24xf32>
    %148 = tpu.matmul %145, %147, %cst_50 {dimension_numbers = #tpu.dot_dimension_numbers<[1], [0], [0], [1], [0, 0, 1, 1], [], []>} : vector<32x24xf32>, vector<24x24xf32>, vector<32x24xf32> -> vector<32x24xf32>
    %149 = vector.extract_strided_slice %4 {offsets = [10, 0], sizes = [1, 24], strides = [1, 1]} : vector<12x24xf32> to vector<1x24xf32>
    %150 = vector.broadcast %149 : vector<1x24xf32> to vector<32x24xf32>
    %151 = arith.addf %148, %150 : vector<32x24xf32>
    %cst_51 = arith.constant 0.000000e+00 : f32
    %152 = vector.broadcast %cst_51 : f32 to vector<32x24xf32>
    %153 = arith.maximumf %151, %152 : vector<32x24xf32>
    %c0_52 = arith.constant 0 : index
    %c4 = arith.constant 4 : index
    %c0_53 = arith.constant 0 : index
    %c0_54 = arith.constant 0 : index
    %154 = vector.load %arg3[%c0_52, %c4, %c0_53, %c0_54] : memref<2x5x24x24xf32, #tpu.memory_space<vmem>>, vector<1x1x24x24xf32>
    %155 = vector.shape_cast %154 : vector<1x1x24x24xf32> to vector<24x24xf32>
    %cst_55 = arith.constant dense<0.000000e+00> : vector<32x24xf32>
    %156 = tpu.matmul %153, %155, %cst_55 {dimension_numbers = #tpu.dot_dimension_numbers<[1], [0], [0], [1], [0, 0, 1, 1], [], []>} : vector<32x24xf32>, vector<24x24xf32>, vector<32x24xf32> -> vector<32x24xf32>
    %157 = vector.extract_strided_slice %4 {offsets = [11, 0], sizes = [1, 24], strides = [1, 1]} : vector<12x24xf32> to vector<1x24xf32>
    %158 = vector.broadcast %157 : vector<1x24xf32> to vector<32x24xf32>
    %159 = arith.addf %156, %158 : vector<32x24xf32>
    %160 = arith.addf %115, %159 : vector<32x24xf32>
    %c4_i32 = arith.constant 4 : i32
    %161 = tpu.dynamic_rotate %160 by %c4_i32 dim 0 : vector<32x24xf32>, i32 -> vector<32x24xf32>
    %c1_56 = arith.constant 1 : index
    %c0_57 = arith.constant 0 : index
    %c0_58 = arith.constant 0 : index
    %162 = vector.load %arg4[%c1_56, %c0_57, %c0_58] : memref<2x12x24xf32, #tpu.memory_space<vmem>>, vector<1x12x24xf32>
    %163 = vector.shape_cast %162 : vector<1x12x24xf32> to vector<12x24xf32>
    %c1_59 = arith.constant 1 : index
    %c0_60 = arith.constant 0 : index
    %c0_61 = arith.constant 0 : index
    %c0_62 = arith.constant 0 : index
    %164 = vector.load %arg3[%c1_59, %c0_60, %c0_61, %c0_62] : memref<2x5x24x24xf32, #tpu.memory_space<vmem>>, vector<1x1x24x24xf32>
    %165 = vector.shape_cast %164 : vector<1x1x24x24xf32> to vector<24x24xf32>
    %cst_63 = arith.constant dense<0.000000e+00> : vector<32x24xf32>
    %166 = tpu.matmul %161, %165, %cst_63 {dimension_numbers = #tpu.dot_dimension_numbers<[1], [0], [0], [1], [0, 0, 1, 1], [], []>} : vector<32x24xf32>, vector<24x24xf32>, vector<32x24xf32> -> vector<32x24xf32>
    %167 = vector.extract_strided_slice %163 {offsets = [0, 0], sizes = [1, 24], strides = [1, 1]} : vector<12x24xf32> to vector<1x24xf32>
    %168 = vector.broadcast %167 : vector<1x24xf32> to vector<32x24xf32>
    %169 = arith.addf %166, %168 : vector<32x24xf32>
    %170 = vector.extract_strided_slice %163 {offsets = [1, 0], sizes = [1, 24], strides = [1, 1]} : vector<12x24xf32> to vector<1x24xf32>
    %171 = vector.extract_strided_slice %163 {offsets = [2, 0], sizes = [1, 24], strides = [1, 1]} : vector<12x24xf32> to vector<1x24xf32>
    %cst_64 = arith.constant dense<0.000000e+00> : vector<32xf32>
    %172 = vector.multi_reduction <add>, %169, %cst_64 [1] : vector<32x24xf32> to vector<32xf32>
    %173 = vector.shape_cast %172 : vector<32xf32> to vector<32x1xf32>
    %cst_65 = arith.constant 2.400000e+01 : f32
    %174 = vector.broadcast %cst_65 : f32 to vector<32x1xf32>
    %175 = arith.divf %173, %174 : vector<32x1xf32>
    %176 = vector.broadcast %175 : vector<32x1xf32> to vector<32x24xf32>
    %177 = arith.subf %169, %176 : vector<32x24xf32>
    %178 = arith.mulf %177, %177 : vector<32x24xf32>
    %cst_66 = arith.constant dense<0.000000e+00> : vector<32xf32>
    %179 = vector.multi_reduction <add>, %178, %cst_66 [1] : vector<32x24xf32> to vector<32xf32>
    %180 = vector.shape_cast %179 : vector<32xf32> to vector<32x1xf32>
    %cst_67 = arith.constant 2.400000e+01 : f32
    %181 = vector.broadcast %cst_67 : f32 to vector<32x1xf32>
    %182 = arith.divf %180, %181 : vector<32x1xf32>
    %183 = vector.broadcast %175 : vector<32x1xf32> to vector<32x24xf32>
    %184 = arith.subf %169, %183 : vector<32x24xf32>
    %cst_68 = arith.constant 9.99999974E-6 : f32
    %185 = vector.broadcast %cst_68 : f32 to vector<32x1xf32>
    %186 = arith.addf %182, %185 : vector<32x1xf32>
    %187 = math.rsqrt %186 : vector<32x1xf32>
    %188 = vector.broadcast %187 : vector<32x1xf32> to vector<32x24xf32>
    %189 = arith.mulf %184, %188 : vector<32x24xf32>
    %190 = vector.broadcast %170 : vector<1x24xf32> to vector<32x24xf32>
    %191 = arith.mulf %189, %190 : vector<32x24xf32>
    %192 = vector.broadcast %171 : vector<1x24xf32> to vector<32x24xf32>
    %193 = arith.addf %191, %192 : vector<32x24xf32>
    %c1_69 = arith.constant 1 : index
    %c0_70 = arith.constant 0 : index
    %c0_71 = arith.constant 0 : index
    %194 = vector.load %arg2[%c1_69, %c0_70, %c0_71] : memref<2x24x72xf32, #tpu.memory_space<vmem>>, vector<1x24x72xf32>
    %195 = vector.shape_cast %194 : vector<1x24x72xf32> to vector<24x72xf32>
    %cst_72 = arith.constant dense<0.000000e+00> : vector<32x72xf32>
    %196 = tpu.matmul %193, %195, %cst_72 {dimension_numbers = #tpu.dot_dimension_numbers<[1], [0], [0], [1], [0, 0, 1, 1], [], []>} : vector<32x24xf32>, vector<24x72xf32>, vector<32x72xf32> -> vector<32x72xf32>
    %197 = vector.extract_strided_slice %196 {offsets = [0, 0], sizes = [32, 24], strides = [1, 1]} : vector<32x72xf32> to vector<32x24xf32>
    %198 = vector.extract_strided_slice %163 {offsets = [3, 0], sizes = [1, 24], strides = [1, 1]} : vector<12x24xf32> to vector<1x24xf32>
    %199 = vector.broadcast %198 : vector<1x24xf32> to vector<32x24xf32>
    %200 = arith.addf %197, %199 : vector<32x24xf32>
    %cst_73 = arith.constant 0.353553385 : f32
    %201 = vector.broadcast %cst_73 : f32 to vector<32x24xf32>
    %202 = arith.mulf %200, %201 : vector<32x24xf32>
    %203 = vector.extract_strided_slice %196 {offsets = [0, 24], sizes = [32, 24], strides = [1, 1]} : vector<32x72xf32> to vector<32x24xf32>
    %204 = vector.extract_strided_slice %163 {offsets = [4, 0], sizes = [1, 24], strides = [1, 1]} : vector<12x24xf32> to vector<1x24xf32>
    %205 = vector.broadcast %204 : vector<1x24xf32> to vector<32x24xf32>
    %206 = arith.addf %203, %205 : vector<32x24xf32>
    %207 = vector.extract_strided_slice %196 {offsets = [0, 48], sizes = [32, 24], strides = [1, 1]} : vector<32x72xf32> to vector<32x24xf32>
    %208 = vector.extract_strided_slice %163 {offsets = [5, 0], sizes = [1, 24], strides = [1, 1]} : vector<12x24xf32> to vector<1x24xf32>
    %209 = vector.broadcast %208 : vector<1x24xf32> to vector<32x24xf32>
    %210 = arith.addf %207, %209 : vector<32x24xf32>
    %211 = vector.shape_cast %202 : vector<32x24xf32> to vector<4x8x24xf32>
    %212 = vector.shape_cast %206 : vector<32x24xf32> to vector<4x8x24xf32>
    %213 = vector.shape_cast %210 : vector<32x24xf32> to vector<4x8x24xf32>
    %c1_74 = arith.constant 1 : index
    %c1_75 = arith.constant 1 : index
    %c0_76 = arith.constant 0 : index
    %c0_77 = arith.constant 0 : index
    %214 = vector.load %arg3[%c1_74, %c1_75, %c0_76, %c0_77] : memref<2x5x24x24xf32, #tpu.memory_space<vmem>>, vector<1x1x24x24xf32>
    %215 = vector.shape_cast %214 : vector<1x1x24x24xf32> to vector<24x24xf32>
    %cst_78 = arith.constant 0.000000e+00 : f32
    %216 = vector.broadcast %cst_78 : f32 to vector<32x24xf32>
    %217 = vector.extract_strided_slice %211 {offsets = [0, 0, 0], sizes = [4, 8, 8], strides = [1, 1, 1]} : vector<4x8x24xf32> to vector<4x8x8xf32>
    %218 = vector.extract_strided_slice %212 {offsets = [0, 0, 0], sizes = [4, 8, 8], strides = [1, 1, 1]} : vector<4x8x24xf32> to vector<4x8x8xf32>
    %219 = vector.extract_strided_slice %213 {offsets = [0, 0, 0], sizes = [4, 8, 8], strides = [1, 1, 1]} : vector<4x8x24xf32> to vector<4x8x8xf32>
    "tpu.trace_start"() <{level = 10 : i32, message = "wqd,wkd->wqk"}> : () -> ()
    %cst_79 = arith.constant dense<0.000000e+00> : vector<4x8x8xf32>
    %220 = tpu.matmul %217, %218, %cst_79 {dimension_numbers = #tpu.dot_dimension_numbers<[2], [2], [1], [1], [0, 0, 0, 1, 1, 1], [0], [0]>} : vector<4x8x8xf32>, vector<4x8x8xf32>, vector<4x8x8xf32> -> vector<4x8x8xf32>
    "tpu.trace_stop"() : () -> ()
    %cst_80 = arith.constant dense<0xFF800000> : vector<4x8xf32>
    %221 = vector.multi_reduction <maximumf>, %220, %cst_80 [2] : vector<4x8x8xf32> to vector<4x8xf32>
    %222 = vector.shape_cast %221 : vector<4x8xf32> to vector<4x8x1xf32>
    %223 = vector.broadcast %222 : vector<4x8x1xf32> to vector<4x8x8xf32>
    %224 = arith.subf %220, %223 : vector<4x8x8xf32>
    %225 = math.exp %224 : vector<4x8x8xf32>
    %cst_81 = arith.constant dense<0.000000e+00> : vector<4x8xf32>
    %226 = vector.multi_reduction <add>, %225, %cst_81 [2] : vector<4x8x8xf32> to vector<4x8xf32>
    %227 = vector.shape_cast %226 : vector<4x8xf32> to vector<4x8x1xf32>
    %228 = vector.broadcast %227 : vector<4x8x1xf32> to vector<4x8x8xf32>
    %229 = arith.divf %225, %228 : vector<4x8x8xf32>
    "tpu.trace_start"() <{level = 10 : i32, message = "wqk,wkd->wqd"}> : () -> ()
    %cst_82 = arith.constant dense<0.000000e+00> : vector<4x8x8xf32>
    %230 = tpu.matmul %229, %219, %cst_82 {dimension_numbers = #tpu.dot_dimension_numbers<[2], [1], [1], [2], [0, 0, 0, 1, 1, 2], [0], [0]>} : vector<4x8x8xf32>, vector<4x8x8xf32>, vector<4x8x8xf32> -> vector<4x8x8xf32>
    "tpu.trace_stop"() : () -> ()
    %231 = vector.shape_cast %230 : vector<4x8x8xf32> to vector<32x8xf32>
    %232 = vector.extract_strided_slice %215 {offsets = [0, 0], sizes = [8, 24], strides = [1, 1]} : vector<24x24xf32> to vector<8x24xf32>
    %cst_83 = arith.constant dense<0.000000e+00> : vector<32x24xf32>
    %233 = tpu.matmul %231, %232, %cst_83 {dimension_numbers = #tpu.dot_dimension_numbers<[1], [0], [0], [1], [0, 0, 1, 1], [], []>} : vector<32x8xf32>, vector<8x24xf32>, vector<32x24xf32> -> vector<32x24xf32>
    %234 = arith.addf %216, %233 : vector<32x24xf32>
    %235 = vector.extract_strided_slice %211 {offsets = [0, 0, 8], sizes = [4, 8, 8], strides = [1, 1, 1]} : vector<4x8x24xf32> to vector<4x8x8xf32>
    %236 = vector.extract_strided_slice %212 {offsets = [0, 0, 8], sizes = [4, 8, 8], strides = [1, 1, 1]} : vector<4x8x24xf32> to vector<4x8x8xf32>
    %237 = vector.extract_strided_slice %213 {offsets = [0, 0, 8], sizes = [4, 8, 8], strides = [1, 1, 1]} : vector<4x8x24xf32> to vector<4x8x8xf32>
    "tpu.trace_start"() <{level = 10 : i32, message = "wqd,wkd->wqk"}> : () -> ()
    %cst_84 = arith.constant dense<0.000000e+00> : vector<4x8x8xf32>
    %238 = tpu.matmul %235, %236, %cst_84 {dimension_numbers = #tpu.dot_dimension_numbers<[2], [2], [1], [1], [0, 0, 0, 1, 1, 1], [0], [0]>} : vector<4x8x8xf32>, vector<4x8x8xf32>, vector<4x8x8xf32> -> vector<4x8x8xf32>
    "tpu.trace_stop"() : () -> ()
    %cst_85 = arith.constant dense<0xFF800000> : vector<4x8xf32>
    %239 = vector.multi_reduction <maximumf>, %238, %cst_85 [2] : vector<4x8x8xf32> to vector<4x8xf32>
    %240 = vector.shape_cast %239 : vector<4x8xf32> to vector<4x8x1xf32>
    %241 = vector.broadcast %240 : vector<4x8x1xf32> to vector<4x8x8xf32>
    %242 = arith.subf %238, %241 : vector<4x8x8xf32>
    %243 = math.exp %242 : vector<4x8x8xf32>
    %cst_86 = arith.constant dense<0.000000e+00> : vector<4x8xf32>
    %244 = vector.multi_reduction <add>, %243, %cst_86 [2] : vector<4x8x8xf32> to vector<4x8xf32>
    %245 = vector.shape_cast %244 : vector<4x8xf32> to vector<4x8x1xf32>
    %246 = vector.broadcast %245 : vector<4x8x1xf32> to vector<4x8x8xf32>
    %247 = arith.divf %243, %246 : vector<4x8x8xf32>
    "tpu.trace_start"() <{level = 10 : i32, message = "wqk,wkd->wqd"}> : () -> ()
    %cst_87 = arith.constant dense<0.000000e+00> : vector<4x8x8xf32>
    %248 = tpu.matmul %247, %237, %cst_87 {dimension_numbers = #tpu.dot_dimension_numbers<[2], [1], [1], [2], [0, 0, 0, 1, 1, 2], [0], [0]>} : vector<4x8x8xf32>, vector<4x8x8xf32>, vector<4x8x8xf32> -> vector<4x8x8xf32>
    "tpu.trace_stop"() : () -> ()
    %249 = vector.shape_cast %248 : vector<4x8x8xf32> to vector<32x8xf32>
    %250 = vector.extract_strided_slice %215 {offsets = [8, 0], sizes = [8, 24], strides = [1, 1]} : vector<24x24xf32> to vector<8x24xf32>
    %cst_88 = arith.constant dense<0.000000e+00> : vector<32x24xf32>
    %251 = tpu.matmul %249, %250, %cst_88 {dimension_numbers = #tpu.dot_dimension_numbers<[1], [0], [0], [1], [0, 0, 1, 1], [], []>} : vector<32x8xf32>, vector<8x24xf32>, vector<32x24xf32> -> vector<32x24xf32>
    %252 = arith.addf %234, %251 : vector<32x24xf32>
    %253 = vector.extract_strided_slice %211 {offsets = [0, 0, 16], sizes = [4, 8, 8], strides = [1, 1, 1]} : vector<4x8x24xf32> to vector<4x8x8xf32>
    %254 = vector.extract_strided_slice %212 {offsets = [0, 0, 16], sizes = [4, 8, 8], strides = [1, 1, 1]} : vector<4x8x24xf32> to vector<4x8x8xf32>
    %255 = vector.extract_strided_slice %213 {offsets = [0, 0, 16], sizes = [4, 8, 8], strides = [1, 1, 1]} : vector<4x8x24xf32> to vector<4x8x8xf32>
    "tpu.trace_start"() <{level = 10 : i32, message = "wqd,wkd->wqk"}> : () -> ()
    %cst_89 = arith.constant dense<0.000000e+00> : vector<4x8x8xf32>
    %256 = tpu.matmul %253, %254, %cst_89 {dimension_numbers = #tpu.dot_dimension_numbers<[2], [2], [1], [1], [0, 0, 0, 1, 1, 1], [0], [0]>} : vector<4x8x8xf32>, vector<4x8x8xf32>, vector<4x8x8xf32> -> vector<4x8x8xf32>
    "tpu.trace_stop"() : () -> ()
    %cst_90 = arith.constant dense<0xFF800000> : vector<4x8xf32>
    %257 = vector.multi_reduction <maximumf>, %256, %cst_90 [2] : vector<4x8x8xf32> to vector<4x8xf32>
    %258 = vector.shape_cast %257 : vector<4x8xf32> to vector<4x8x1xf32>
    %259 = vector.broadcast %258 : vector<4x8x1xf32> to vector<4x8x8xf32>
    %260 = arith.subf %256, %259 : vector<4x8x8xf32>
    %261 = math.exp %260 : vector<4x8x8xf32>
    %cst_91 = arith.constant dense<0.000000e+00> : vector<4x8xf32>
    %262 = vector.multi_reduction <add>, %261, %cst_91 [2] : vector<4x8x8xf32> to vector<4x8xf32>
    %263 = vector.shape_cast %262 : vector<4x8xf32> to vector<4x8x1xf32>
    %264 = vector.broadcast %263 : vector<4x8x1xf32> to vector<4x8x8xf32>
    %265 = arith.divf %261, %264 : vector<4x8x8xf32>
    "tpu.trace_start"() <{level = 10 : i32, message = "wqk,wkd->wqd"}> : () -> ()
    %cst_92 = arith.constant dense<0.000000e+00> : vector<4x8x8xf32>
    %266 = tpu.matmul %265, %255, %cst_92 {dimension_numbers = #tpu.dot_dimension_numbers<[2], [1], [1], [2], [0, 0, 0, 1, 1, 2], [0], [0]>} : vector<4x8x8xf32>, vector<4x8x8xf32>, vector<4x8x8xf32> -> vector<4x8x8xf32>
    "tpu.trace_stop"() : () -> ()
    %267 = vector.shape_cast %266 : vector<4x8x8xf32> to vector<32x8xf32>
    %268 = vector.extract_strided_slice %215 {offsets = [16, 0], sizes = [8, 24], strides = [1, 1]} : vector<24x24xf32> to vector<8x24xf32>
    %cst_93 = arith.constant dense<0.000000e+00> : vector<32x24xf32>
    %269 = tpu.matmul %267, %268, %cst_93 {dimension_numbers = #tpu.dot_dimension_numbers<[1], [0], [0], [1], [0, 0, 1, 1], [], []>} : vector<32x8xf32>, vector<8x24xf32>, vector<32x24xf32> -> vector<32x24xf32>
    %270 = arith.addf %252, %269 : vector<32x24xf32>
    %271 = vector.extract_strided_slice %163 {offsets = [6, 0], sizes = [1, 24], strides = [1, 1]} : vector<12x24xf32> to vector<1x24xf32>
    %272 = vector.broadcast %271 : vector<1x24xf32> to vector<32x24xf32>
    %273 = arith.addf %270, %272 : vector<32x24xf32>
    %274 = arith.addf %161, %273 : vector<32x24xf32>
    %c1_94 = arith.constant 1 : index
    %c2_95 = arith.constant 2 : index
    %c0_96 = arith.constant 0 : index
    %c0_97 = arith.constant 0 : index
    %275 = vector.load %arg3[%c1_94, %c2_95, %c0_96, %c0_97] : memref<2x5x24x24xf32, #tpu.memory_space<vmem>>, vector<1x1x24x24xf32>
    %276 = vector.shape_cast %275 : vector<1x1x24x24xf32> to vector<24x24xf32>
    %cst_98 = arith.constant dense<0.000000e+00> : vector<32x24xf32>
    %277 = tpu.matmul %274, %276, %cst_98 {dimension_numbers = #tpu.dot_dimension_numbers<[1], [0], [0], [1], [0, 0, 1, 1], [], []>} : vector<32x24xf32>, vector<24x24xf32>, vector<32x24xf32> -> vector<32x24xf32>
    %278 = vector.extract_strided_slice %163 {offsets = [7, 0], sizes = [1, 24], strides = [1, 1]} : vector<12x24xf32> to vector<1x24xf32>
    %279 = vector.broadcast %278 : vector<1x24xf32> to vector<32x24xf32>
    %280 = arith.addf %277, %279 : vector<32x24xf32>
    %281 = vector.extract_strided_slice %163 {offsets = [8, 0], sizes = [1, 24], strides = [1, 1]} : vector<12x24xf32> to vector<1x24xf32>
    %282 = vector.extract_strided_slice %163 {offsets = [9, 0], sizes = [1, 24], strides = [1, 1]} : vector<12x24xf32> to vector<1x24xf32>
    %cst_99 = arith.constant dense<0.000000e+00> : vector<32xf32>
    %283 = vector.multi_reduction <add>, %280, %cst_99 [1] : vector<32x24xf32> to vector<32xf32>
    %284 = vector.shape_cast %283 : vector<32xf32> to vector<32x1xf32>
    %cst_100 = arith.constant 2.400000e+01 : f32
    %285 = vector.broadcast %cst_100 : f32 to vector<32x1xf32>
    %286 = arith.divf %284, %285 : vector<32x1xf32>
    %287 = vector.broadcast %286 : vector<32x1xf32> to vector<32x24xf32>
    %288 = arith.subf %280, %287 : vector<32x24xf32>
    %289 = arith.mulf %288, %288 : vector<32x24xf32>
    %cst_101 = arith.constant dense<0.000000e+00> : vector<32xf32>
    %290 = vector.multi_reduction <add>, %289, %cst_101 [1] : vector<32x24xf32> to vector<32xf32>
    %291 = vector.shape_cast %290 : vector<32xf32> to vector<32x1xf32>
    %cst_102 = arith.constant 2.400000e+01 : f32
    %292 = vector.broadcast %cst_102 : f32 to vector<32x1xf32>
    %293 = arith.divf %291, %292 : vector<32x1xf32>
    %294 = vector.broadcast %286 : vector<32x1xf32> to vector<32x24xf32>
    %295 = arith.subf %280, %294 : vector<32x24xf32>
    %cst_103 = arith.constant 9.99999974E-6 : f32
    %296 = vector.broadcast %cst_103 : f32 to vector<32x1xf32>
    %297 = arith.addf %293, %296 : vector<32x1xf32>
    %298 = math.rsqrt %297 : vector<32x1xf32>
    %299 = vector.broadcast %298 : vector<32x1xf32> to vector<32x24xf32>
    %300 = arith.mulf %295, %299 : vector<32x24xf32>
    %301 = vector.broadcast %281 : vector<1x24xf32> to vector<32x24xf32>
    %302 = arith.mulf %300, %301 : vector<32x24xf32>
    %303 = vector.broadcast %282 : vector<1x24xf32> to vector<32x24xf32>
    %304 = arith.addf %302, %303 : vector<32x24xf32>
    %c1_104 = arith.constant 1 : index
    %c3_105 = arith.constant 3 : index
    %c0_106 = arith.constant 0 : index
    %c0_107 = arith.constant 0 : index
    %305 = vector.load %arg3[%c1_104, %c3_105, %c0_106, %c0_107] : memref<2x5x24x24xf32, #tpu.memory_space<vmem>>, vector<1x1x24x24xf32>
    %306 = vector.shape_cast %305 : vector<1x1x24x24xf32> to vector<24x24xf32>
    %cst_108 = arith.constant dense<0.000000e+00> : vector<32x24xf32>
    %307 = tpu.matmul %304, %306, %cst_108 {dimension_numbers = #tpu.dot_dimension_numbers<[1], [0], [0], [1], [0, 0, 1, 1], [], []>} : vector<32x24xf32>, vector<24x24xf32>, vector<32x24xf32> -> vector<32x24xf32>
    %308 = vector.extract_strided_slice %163 {offsets = [10, 0], sizes = [1, 24], strides = [1, 1]} : vector<12x24xf32> to vector<1x24xf32>
    %309 = vector.broadcast %308 : vector<1x24xf32> to vector<32x24xf32>
    %310 = arith.addf %307, %309 : vector<32x24xf32>
    %cst_109 = arith.constant 0.000000e+00 : f32
    %311 = vector.broadcast %cst_109 : f32 to vector<32x24xf32>
    %312 = arith.maximumf %310, %311 : vector<32x24xf32>
    %c1_110 = arith.constant 1 : index
    %c4_111 = arith.constant 4 : index
    %c0_112 = arith.constant 0 : index
    %c0_113 = arith.constant 0 : index
    %313 = vector.load %arg3[%c1_110, %c4_111, %c0_112, %c0_113] : memref<2x5x24x24xf32, #tpu.memory_space<vmem>>, vector<1x1x24x24xf32>
    %314 = vector.shape_cast %313 : vector<1x1x24x24xf32> to vector<24x24xf32>
    %cst_114 = arith.constant dense<0.000000e+00> : vector<32x24xf32>
    %315 = tpu.matmul %312, %314, %cst_114 {dimension_numbers = #tpu.dot_dimension_numbers<[1], [0], [0], [1], [0, 0, 1, 1], [], []>} : vector<32x24xf32>, vector<24x24xf32>, vector<32x24xf32> -> vector<32x24xf32>
    %316 = vector.extract_strided_slice %163 {offsets = [11, 0], sizes = [1, 24], strides = [1, 1]} : vector<12x24xf32> to vector<1x24xf32>
    %317 = vector.broadcast %316 : vector<1x24xf32> to vector<32x24xf32>
    %318 = arith.addf %315, %317 : vector<32x24xf32>
    %319 = arith.addf %274, %318 : vector<32x24xf32>
    %c0_115 = arith.constant 0 : index
    %c0_116 = arith.constant 0 : index
    %c0_117 = arith.constant 0 : index
    %320 = vector.load %arg5[%c0_115, %c0_116, %c0_117] : memref<1x32x24xf32, #tpu.memory_space<vmem>>, vector<1x32x24xf32>
    %321 = vector.shape_cast %320 : vector<1x32x24xf32> to vector<32x24xf32>
    %322 = vector.shape_cast %319 : vector<32x24xf32> to vector<1x32x24xf32>
    tpu.vector_store %arg5[%c0_115, %c0_116, %c0_117], %322 {strides = array<i32>} : memref<1x32x24xf32, #tpu.memory_space<vmem>>, vector<1x32x24xf32>,
    return
  }
  func.func @transform_0(%arg0: i32) -> (i32, i32, i32) {
    %c0_i32 = arith.constant 0 : i32
    %c0_i32_0 = arith.constant 0 : i32
    %c0_i32_1 = arith.constant 0 : i32
    return %arg0, %c0_i32, %c0_i32_0 : i32, i32, i32
  }
  func.func @transform_1(%arg0: i32) -> (i32, i32, i32) {
    %c0_i32 = arith.constant 0 : i32
    %c0_i32_0 = arith.constant 0 : i32
    %c0_i32_1 = arith.constant 0 : i32
    %c0_i32_2 = arith.constant 0 : i32
    return %c0_i32, %c0_i32_0, %c0_i32_1 : i32, i32, i32
  }
  func.func @transform_2(%arg0: i32) -> (i32, i32, i32, i32) {
    %c0_i32 = arith.constant 0 : i32
    %c0_i32_0 = arith.constant 0 : i32
    %c0_i32_1 = arith.constant 0 : i32
    %c0_i32_2 = arith.constant 0 : i32
    %c0_i32_3 = arith.constant 0 : i32
    return %c0_i32, %c0_i32_0, %c0_i32_1, %c0_i32_2 : i32, i32, i32, i32
  }
  func.func @transform_3(%arg0: i32) -> (i32, i32, i32) {
    %c0_i32 = arith.constant 0 : i32
    %c0_i32_0 = arith.constant 0 : i32
    %c0_i32_1 = arith.constant 0 : i32
    %c0_i32_2 = arith.constant 0 : i32
    return %c0_i32, %c0_i32_0, %c0_i32_1 : i32, i32, i32
  }
  func.func @transform_4(%arg0: i32) -> (i32, i32, i32) {
    %c0_i32 = arith.constant 0 : i32
    %c0_i32_0 = arith.constant 0 : i32
    %c0_i32_1 = arith.constant 0 : i32
    return %arg0, %c0_i32, %c0_i32_0 : i32, i32, i32
  }
}

</mosaic_0001>

<llo_original>
// kernel: tpu_custom_call.1
$region0: #{tpu_custom_call.1}
  #allocation0 [shape = 'u32[]', space=smem, size = 0x4, offset = 0x4, fixed_abs, tag = 'smem constant byte address 0x4 - core index']
  #allocation1 [shape = 'u32[144,128]{1,0:T(1,128)}', space=vmem, size = 0x12000, scoped, tag = 'internal scratch']
  %s0 = inlined_call_operand.vmem [shape: f32[2,32,24], index: 0, kind: input, shape index: {}]
  %s1 = inlined_call_operand.vmem [shape: f32[2,24,72], index: 1, kind: input, shape index: {}]
  %s2 = inlined_call_operand.hbm [shape: f32[2,5,24,24], index: 2, kind: input, shape index: {}]
  %s3 = inlined_call_operand.vmem [shape: f32[2,12,24], index: 3, kind: input, shape index: {}]
  %s4 = inlined_call_operand.vmem [shape: f32[2,32,24], index: 4, kind: output, shape index: {}]
  %s5 = sld [smem:[#allocation0]]
  $region53: #{tpu_custom_call.1} parent=0
    _
  %s7 = ssub.s32 1, %s5
  %s8 = scalar_select 0, %s7, %s5
  $region1: #{tpu_custom_call.1} parent=0
    #allocation2 [shape = 'u8[122880]{0}', space=vmem, size = 0x1e000, scoped, tag = 'input window, operand 2, single buffered']
    #allocation3 [shape = 's32[2]{0}', space=sflag, size = 0x8, scoped, tag = 'scoped memory for tpu_custom_call.1']
    %9 = vsyncpa [#allocation3], 0
    loop: start=0, step=1, limit=4
    $region2: #{tpu_custom_call.1} parent=1 // loop_pre_header
      _
    $region3: #{tpu_custom_call.1} parent=1 // loop_header
      %s11 = sphi 0, %s15
      %p12 = scmp.ge.s32.totalorder %s11, 4
      %s21 = sphi 0, %s23
      %s24 = sphi 0, %s21
      %s25 = sphi 0, %s24
      %s41 = sphi 0, %s25
      %s45 = sphi 0, %s45
      %s47 = sphi 0, %s45
      %s48 = sphi 0, %s47
      %s62 = sphi 0, %s48
      %s66 = sphi 0, %s66
      %s68 = sphi 0, %s66
      %s69 = sphi 0, %s68
      %s83 = sphi 0, %s69
      %s87 = sphi 0, %s87
      %s89 = sphi 0, %s87
      %s90 = sphi 0, %s89
      %s104 = sphi 0, %s90
      %s110 = sphi 0, %s112
      %s113 = sphi 0, %s110
      %s114 = sphi 0, %s113
      %s130 = sphi 0, %s114
    $region4: #{tpu_custom_call.1} parent=1 // loop_header_branch
      %14 = sbr.rel (%p12) target = $region8
    $region5: #{tpu_custom_call.1} parent=1 // loop_body
      %s16 = ssub.s32 %s11, 1
      %s17 = ssub.s32 %s11, 2
      %s18 = sadd.s32 %s11, 1
      %s19 = ssub.s32 %s11, %s18
      %p20 = scmp.eq.s32.totalorder %s19, 0
      %s22 = sadd.s32 %s21, 1
      %s23 = scalar_select %p20, %s21, %s22
      %p26 = pneg %p20
      %p27 = scmp.eq.s32.totalorder %s11, 1
      %p28 = por %p26, %p27
      %p29 = scmp.ne.s32.totalorder %s21, %s24
      %p30 = scmp.eq.s32.totalorder %s11, 0
      %p31 = por %p29, %p30
      %p32 = scmp.ne.s32.totalorder %s21, %s24
      %p33 = scmp.eq.s32.totalorder %s16, 1
      %p34 = por %p32, %p33
      %p35 = scmp.ne.s32.totalorder %s24, %s25
      %p36 = scmp.eq.s32.totalorder %s16, 0
      %p37 = por %p35, %p36
      %p38 = scmp.ne.s32.totalorder %s24, %s25
      %p39 = scmp.eq.s32.totalorder %s17, 1
      %p40 = por %p38, %p39
      %p42 = scmp.ne.s32.totalorder %s25, %s41
      %p43 = scmp.eq.s32.totalorder %s17, 0
      %p44 = por %p42, %p43
      %s46 = sadd.s32 %s45, 1
      %p49 = scmp.eq.s32.totalorder %s11, 1
      %p50 = scmp.ne.s32.totalorder %s45, %s47
      %p51 = scmp.eq.s32.totalorder %s11, 0
      %p52 = por %p50, %p51
      %p53 = scmp.ne.s32.totalorder %s45, %s47
      %p54 = scmp.eq.s32.totalorder %s16, 1
      %p55 = por %p53, %p54
      %p56 = scmp.ne.s32.totalorder %s47, %s48
      %p57 = scmp.eq.s32.totalorder %s16, 0
      %p58 = por %p56, %p57
      %p59 = scmp.ne.s32.totalorder %s47, %s48
      %p60 = scmp.eq.s32.totalorder %s17, 1
      %p61 = por %p59, %p60
      %p63 = scmp.ne.s32.totalorder %s48, %s62
      %p64 = scmp.eq.s32.totalorder %s17, 0
      %p65 = por %p63, %p64
      %s67 = sadd.s32 %s66, 1
      %p70 = scmp.eq.s32.totalorder %s11, 1
      %p71 = scmp.ne.s32.totalorder %s66, %s68
      %p72 = scmp.eq.s32.totalorder %s11, 0
      %p73 = por %p71, %p72
      %p74 = scmp.ne.s32.totalorder %s66, %s68
      %p75 = scmp.eq.s32.totalorder %s16, 1
      %p76 = por %p74, %p75
      %p77 = scmp.ne.s32.totalorder %s68, %s69
      %p78 = scmp.eq.s32.totalorder %s16, 0
      %p79 = por %p77, %p78
      %p80 = scmp.ne.s32.totalorder %s68, %s69
      %p81 = scmp.eq.s32.totalorder %s17, 1
      %p82 = por %p80, %p81
      %p84 = scmp.ne.s32.totalorder %s69, %s83
      %p85 = scmp.eq.s32.totalorder %s17, 0
      %p86 = por %p84, %p85
      %s88 = sadd.s32 %s87, 1
      %p91 = scmp.eq.s32.totalorder %s11, 1
      %p92 = scmp.ne.s32.totalorder %s87, %s89
      %p93 = scmp.eq.s32.totalorder %s11, 0
      %p94 = por %p92, %p93
      %p95 = scmp.ne.s32.totalorder %s87, %s89
      %p96 = scmp.eq.s32.totalorder %s16, 1
      %p97 = por %p95, %p96
      %p98 = scmp.ne.s32.totalorder %s89, %s90
      %p99 = scmp.eq.s32.totalorder %s16, 0
      %p100 = por %p98, %p99
      %p101 = scmp.ne.s32.totalorder %s89, %s90
      %p102 = scmp.eq.s32.totalorder %s17, 1
      %p103 = por %p101, %p102
      %p105 = scmp.ne.s32.totalorder %s90, %s104
      %p106 = scmp.eq.s32.totalorder %s17, 0
      %p107 = por %p105, %p106
      %s108 = ssub.s32 %s11, %s18
      %p109 = scmp.eq.s32.totalorder %s108, 0
      %s111 = sadd.s32 %s110, 1
      %s112 = scalar_select %p109, %s110, %s111
      %p115 = pneg %p109
      %p116 = scmp.eq.s32.totalorder %s11, 1
      %p117 = por %p115, %p116
      %p118 = scmp.ne.s32.totalorder %s110, %s113
      %p119 = scmp.eq.s32.totalorder %s11, 0
      %p120 = por %p118, %p119
      %p121 = scmp.ne.s32.totalorder %s110, %s113
      %p122 = scmp.eq.s32.totalorder %s16, 1
      %p123 = por %p121, %p122
      %p124 = scmp.ne.s32.totalorder %s113, %s114
      %p125 = scmp.eq.s32.totalorder %s16, 0
      %p126 = por %p124, %p125
      %p127 = scmp.ne.s32.totalorder %s113, %s114
      %p128 = scmp.eq.s32.totalorder %s17, 1
      %p129 = por %p127, %p128
      %p131 = scmp.ne.s32.totalorder %s114, %s130
      %p132 = scmp.eq.s32.totalorder %s17, 0
      %p133 = por %p131, %p132
      %p134 = scmp.le.s32.totalorder 1, %s11
      %p135 = scmp.lt.s32.totalorder %s11, 3
      %p136 = pnand %p134, %p135
      %p137 = pneg %p136
      // Predicated region
      $region9: #{tpu_custom_call.1} parent=5 // pred_check
        _
      $region10: #{tpu_custom_call.1} parent=5 // pred_check_branch
        %139 = sbr.rel (%p136) target = $region12
      $region11: #{tpu_custom_call.1} parent=5 // pred_region
        %s140 = ssub.s32 %s11, 1
        // Predicated region
        $region13: #{tpu_custom_call.1} parent=11 // pred_check
          %p141 = pneg %p58
        $region14: #{tpu_custom_call.1} parent=11 // pred_check_branch
          %143 = sbr.rel (%p141) target = $region16
        $region15: #{tpu_custom_call.1} parent=11 // pred_region
          _
        $region16: #{tpu_custom_call.1} parent=11 // pred_fallthru
          _
        // Predicated region
        $region17: #{tpu_custom_call.1} parent=11 // pred_check
          %p144 = pneg %p79
        $region18: #{tpu_custom_call.1} parent=11 // pred_check_branch
          %146 = sbr.rel (%p144) target = $region20
        $region19: #{tpu_custom_call.1} parent=11 // pred_region
          %s148 = ssub.s32 3840, 3840
          %149 = vsyncadd [#allocation3], %s148
          %s150 = sshll.u32 [#allocation2], 4
          %s151 = int_to_ptr.vmem [resolvable:$true] %s150
          %156 = dma.hbm_to_vmem [thread:$0]  %s2, 3840, %s151, [#allocation3], 128, 128, 8
        $region20: #{tpu_custom_call.1} parent=11 // pred_fallthru
          _
        // Predicated region
        $region21: #{tpu_custom_call.1} parent=11 // pred_check
          %p157 = pneg %p100
        $region22: #{tpu_custom_call.1} parent=11 // pred_check_branch
          %159 = sbr.rel (%p157) target = $region24
        $region23: #{tpu_custom_call.1} parent=11 // pred_region
          _
        $region24: #{tpu_custom_call.1} parent=11 // pred_fallthru
          _
      $region12: #{tpu_custom_call.1} parent=5 // pred_fallthru
        _
      %p160 = scmp.lt.s32.totalorder %s11, 2
      // Predicated region
      $region25: #{tpu_custom_call.1} parent=5 // pred_check
        %p161 = pneg %p160
      $region26: #{tpu_custom_call.1} parent=5 // pred_check_branch
        %163 = sbr.rel (%p161) target = $region28
      $region27: #{tpu_custom_call.1} parent=5 // pred_region
        // Predicated region
        $region29: #{tpu_custom_call.1} parent=27 // pred_check
          %p164 = pneg %p31
        $region30: #{tpu_custom_call.1} parent=27 // pred_check_branch
          %166 = sbr.rel (%p164) target = $region32
        $region31: #{tpu_custom_call.1} parent=27 // pred_region
          %p167 = scmp.lt.s32.totalorder %s11, 1
          %s168 = scalar_select %p167, %s11, 1
          %s169 = smul.addr %s168, 4
          %s170 = smul.addr %s169, 8
          %s171 = scalar_lea.vmem %s0, %s170
        $region32: #{tpu_custom_call.1} parent=27 // pred_fallthru
          _
      $region28: #{tpu_custom_call.1} parent=5 // pred_fallthru
        _
      %p172 = scmp.le.s32.totalorder 1, %s11
      %p173 = scmp.lt.s32.totalorder %s11, 3
      %p174 = pnand %p172, %p173
      %p175 = pneg %p174
      // Predicated region
      $region33: #{tpu_custom_call.1} parent=5 // pred_check
        _
      $region34: #{tpu_custom_call.1} parent=5 // pred_check_branch
        %177 = sbr.rel (%p174) target = $region36
      $region35: #{tpu_custom_call.1} parent=5 // pred_region
        %s178 = ssub.s32 %s11, 1
        // Predicated region
        $region37: #{tpu_custom_call.1} parent=35 // pred_check
          %p179 = pneg %p79
        $region38: #{tpu_custom_call.1} parent=35 // pred_check_branch
          %181 = sbr.rel (%p179) target = $region40
        $region39: #{tpu_custom_call.1} parent=35 // pred_region
          %182 = dma.done [#allocation3], 3840
        $region40: #{tpu_custom_call.1} parent=35 // pred_fallthru
          _
        %p183 = scmp.lt.s32.totalorder %s16, 1
        %s184 = scalar_select %p183, %s16, 1
        %s185 = smul.addr %s184, 4
        %s186 = smul.addr %s185, 8
        %s187 = scalar_lea.vmem %s0, %s186
        %p188 = pneg %p37
        %p189 = pneg %p34
        %p190 = pneg %p58
        %p191 = pneg %p55
        %p192 = pneg %p79
        %p193 = pneg %p76
        %p194 = pneg %p100
        %p195 = pneg %p97
        %p196 = pneg %p126
        %p197 = pneg %p123
        %p198 = scmp.lt.s32.totalorder %s16, 1
        %s199 = scalar_select %p198, %s16, 1
        %s200 = smul.addr %s199, 4
        %s201 = smul.addr %s200, 8
        %s202 = scalar_lea.vmem %s4, %s201
        %p203 = scmp.lt.s32.totalorder %s16, 1
        %s204 = scalar_select %p203, %s16, 1
        %s205 = smul.addr %s204, 4
        %s206 = smul.addr %s205, 8
        %s207 = scalar_lea.vmem %s0, %s206
        %p208 = scmp.lt.s32.totalorder %s16, 1
        %s209 = scalar_select %p208, %s16, 1
        %s210 = smul.addr %s209, 4
        %s211 = smul.addr %s210, 8
        %s212 = scalar_lea.vmem %s4, %s211
        %v213 = vld [vmem:[%s207] sm:$0xff]
        %v214 = vld [vmem:[%s207 + $0x8] sm:$0xff]
        %v215 = vld [vmem:[%s207 + $0x10] sm:$0xff]
        %v216 = vld [vmem:[%s207 + $0x18] sm:$0xff]
        %v217 = vrot.slane %v213, 4
        %v218 = vrot.slane %v214, 4
        %v219 = vrot.slane %v215, 4
        %v220 = vrot.slane %v216, 4
        %v221 = vlaneseq
        %v222 = vshrl.u32 %v221, 7
        %vm223 = vcmp.lt.s32.totalorder %v222, 4
        %v224 = vsel %vm223, %v219, %v220
        %v225 = vsel %vm223, %v218, %v219
        %v226 = vsel %vm223, %v217, %v218
        %v227 = vsel %vm223, %v220, %v217
        %v228 = vld [vmem:[%s3] sm:$0xff]
        %v229 = vld [vmem:[%s3 + $0x8] sm:$0xf]
        %v230 = vld [vmem:[#allocation2] sm:$0xff]
        %v231 = vld [vmem:[#allocation2 + $0x8] sm:$0xff]
        %v232 = vld [vmem:[#allocation2 + $0x10] sm:$0xff]
        %v233 = vlaneseq
        %v234 = vshrl.u32 %v233, 7
        %v235 = vsub.s32 0, %v234
        %v236 = vrot.slane %v228, %v235
        %vm237 = vcmask 195584
        %v239 = vsel %vm237, %v226, 0
        %v242 = vsel %vm237, %v225, 0
        %v245 = vsel %vm237, %v224, 0
        %v248 = vsel %vm237, %v227, 0
        %250 = vmatprep.subr.mxu0 0.0
        %251 = vmatpush1.msra.mxu0 0.0
        %252 = vmatprep.subr.mxu0 0.0
        %253 = vmatpush1.msra.mxu0 0.0
        %254 = vmatprep.subr.mxu0 0.0
        %255 = vmatpush1.msra.mxu0 0.0
        %256 = vmatprep.subr.mxu0 0.0
        %257 = vmatpush1.msra.mxu0 0.0
        %258 = vmatprep.subr.mxu0 0.0
        %259 = vmatpush1.msra.mxu0 0.0
        %260 = vmatprep.subr.mxu0 0.0
        %261 = vmatpush1.msra.mxu0 0.0
        %262 = vmatprep.subr.mxu0 0.0
        %263 = vmatpush1.msra.mxu0 0.0
        %264 = vmatprep.subr.mxu0 0.0
        %265 = vmatpush1.msra.mxu0 0.0
        %266 = vmatprep.subr.mxu0 0.0
        %267 = vmatpush1.msra.mxu0 0.0
        %268 = vmatprep.subr.mxu0 0.0
        %269 = vmatpush1.msra.mxu0 0.0
        %270 = vmatprep.subr.mxu0 0.0
        %271 = vmatpush1.msra.mxu0 0.0
        %272 = vmatprep.subr.mxu0 0.0
        %273 = vmatpush1.msra.mxu0 0.0
        %274 = vmatprep.subr.mxu0 0.0
        %275 = vmatpush1.msra.mxu0 0.0
        %276 = vmatprep.subr.mxu0 0.0
        %277 = vmatpush1.msra.mxu0 %v232
        %278 = vmatprep.subr.mxu0 0.0
        %279 = vmatpush1.msra.mxu0 %v231
        %280 = vmatprep.subr.mxu0 0.0
        %281 = vmatpush1.msra.mxu0 %v230
        %282 = vmatprep.subr.mxu0 0.0
        %283 = vmatpush2.msra.mxu0 0.0
        %284 = vmatprep.subr.mxu0 0.0
        %285 = vmatpush2.msra.mxu0 0.0
        %286 = vmatprep.subr.mxu0 0.0
        %287 = vmatpush2.msra.mxu0 0.0
        %288 = vmatprep.subr.mxu0 0.0
        %289 = vmatpush2.msra.mxu0 0.0
        %290 = vmatprep.subr.mxu0 0.0
        %291 = vmatpush2.msra.mxu0 0.0
        %292 = vmatprep.subr.mxu0 0.0
        %293 = vmatpush2.msra.mxu0 0.0
        %294 = vmatprep.subr.mxu0 0.0
        %295 = vmatpush2.msra.mxu0 0.0
        %296 = vmatprep.subr.mxu0 0.0
        %297 = vmatpush2.msra.mxu0 0.0
        %298 = vmatprep.subr.mxu0 0.0
        %299 = vmatpush2.msra.mxu0 0.0
        %300 = vmatprep.subr.mxu0 0.0
        %301 = vmatpush2.msra.mxu0 0.0
        %302 = vmatprep.subr.mxu0 0.0
        %303 = vmatpush2.msra.mxu0 0.0
        %304 = vmatprep.subr.mxu0 0.0
        %305 = vmatpush2.msra.mxu0 0.0
        %306 = vmatprep.subr.mxu0 0.0
        %307 = vmatpush2.msra.mxu0 0.0
        %308 = vmatprep.subr.mxu0 0.0
        %309 = vmatpush2.msra.mxu0 0.0
        %310 = vmatprep.subr.mxu0 0.0
        %311 = vmatpush2.msra.mxu0 0.0
        %312 = vmatprep.subr.mxu0 0.0
        %313 = vmatpush2.msra.mxu0 0.0
        %314 = vmatprep.mubr.f32.mxu0 0.0
        %315 = vmatmul.mubr.f32.gmra.mxu0 %v239
        %v316 = vpop.f32.mrf.mxu0
        %v317 = vadd.f32 %v236, %v316
        %v318 = vpop.f32.mrf.mxu0
        %319 = vmatprep.mubr.f32.mxu0 0.0
        %320 = vmatmul.mubr.f32.gmra.mxu0 %v242
        %v321 = vpop.f32.mrf.mxu0
        %v322 = vadd.f32 %v236, %v321
        %v323 = vpop.f32.mrf.mxu0
        %324 = vmatprep.mubr.f32.mxu0 0.0
        %325 = vmatmul.mubr.f32.gmra.mxu0 %v245
        %v326 = vpop.f32.mrf.mxu0
        %v327 = vadd.f32 %v236, %v326
        %v328 = vpop.f32.mrf.mxu0
        %329 = vmatprep.mubr.f32.mxu0 0.0
        %330 = vmatmul.mubr.f32.gmra.mxu0 %v248
        %v331 = vpop.f32.mrf.mxu0
        %v332 = vadd.f32 %v236, %v331
        %v333 = vpop.f32.mrf.mxu0
        %334 = vdwg.mxu0
        %v335 = vsel %vm237, %v317, 0.0
        %336 = vadd.xlane.f32.xlu0 %v335
        %v337 = vpop.xlane.xlu0 %336
        %v338 = vsel %vm237, %v322, 0.0
        %339 = vadd.xlane.f32.xlu0 %v338
        %v340 = vpop.xlane.xlu0 %339
        %v341 = vsel %vm237, %v327, 0.0
        %342 = vadd.xlane.f32.xlu0 %v341
        %v343 = vpop.xlane.xlu0 %342
        %v344 = vsel %vm237, %v332, 0.0
        %345 = vadd.xlane.f32.xlu0 %v344
        %v346 = vpop.xlane.xlu0 %345
        %v347 = vrcp.pop 24.0
        %v348 = vmul.f32 %v337, %v347
        %v349 = vmul.f32 %v340, %v347
        %v350 = vmul.f32 %v343, %v347
        %v351 = vmul.f32 %v346, %v347
        %v352 = vsub.f32 %v317, %v348
        %v353 = vsub.f32 %v322, %v349
        %v354 = vsub.f32 %v327, %v350
        %v355 = vsub.f32 %v332, %v351
        %v356 = vmul.f32 %v352, %v352
        %v357 = vmul.f32 %v353, %v353
        %v358 = vmul.f32 %v354, %v354
        %v359 = vmul.f32 %v355, %v355
        %v360 = vsel %vm237, %v356, 0.0
        %361 = vadd.xlane.f32.xlu0 %v360
        %v362 = vpop.xlane.xlu0 %361
        %v363 = vsel %vm237, %v357, 0.0
        %364 = vadd.xlane.f32.xlu0 %v363
        %v365 = vpop.xlane.xlu0 %364
        %v366 = vsel %vm237, %v358, 0.0
        %367 = vadd.xlane.f32.xlu0 %v366
        %v368 = vpop.xlane.xlu0 %367
        %v369 = vsel %vm237, %v359, 0.0
        %370 = vadd.xlane.f32.xlu0 %v369
        %v371 = vpop.xlane.xlu0 %370
        %v372 = vmul.f32 %v362, %v347
        %v373 = vmul.f32 %v365, %v347
        %v374 = vmul.f32 %v368, %v347
        %v375 = vmul.f32 %v371, %v347
        %v376 = vadd.f32 %v372, 1e-05
        %v377 = vadd.f32 %v373, 1e-05
        %v378 = vadd.f32 %v374, 1e-05
        %v379 = vadd.f32 %v375, 1e-05
        %v380 = vrsqrt.pop %v376
        %v381 = vrsqrt.pop %v377
        %v382 = vrsqrt.pop %v378
        %v383 = vrsqrt.pop %v379
        %v384 = vmul.f32 %v352, %v380
        %v385 = vmul.f32 %v353, %v381
        %v386 = vmul.f32 %v354, %v382
        %v387 = vmul.f32 %v355, %v383
        %v388 = vlaneseq
        %v389 = vshrl.u32 %v388, 7
        %v390 = vsub.s32 1, %v389
        %v391 = vrot.slane %v228, %v390
        %v392 = vmul.f32 %v384, %v391
        %v393 = vmul.f32 %v385, %v391
        %v394 = vmul.f32 %v386, %v391
        %v395 = vmul.f32 %v387, %v391
        %v396 = vlaneseq
        %v397 = vshrl.u32 %v396, 7
        %v398 = vsub.s32 2, %v397
        %v399 = vrot.slane %v228, %v398
        %v400 = vadd.f32 %v392, %v399
        %v401 = vadd.f32 %v393, %v399
        %v402 = vadd.f32 %v394, %v399
        %v403 = vadd.f32 %v395, %v399
        %v404 = vld [vmem:[%s1] sm:$0xff]
        %v405 = vld [vmem:[%s1 + $0x8] sm:$0xff]
        %v406 = vld [vmem:[%s1 + $0x10] sm:$0xff]
        %v408 = vsel %vm237, %v400, 0
        %v411 = vsel %vm237, %v401, 0
        %v414 = vsel %vm237, %v402, 0
        %v417 = vsel %vm237, %v403, 0
        %419 = vmatprep.subr.mxu0 0.0
        %420 = vmatpush1.msra.mxu0 0.0
        %421 = vmatprep.subr.mxu0 0.0
        %422 = vmatpush1.msra.mxu0 0.0
        %423 = vmatprep.subr.mxu0 0.0
        %424 = vmatpush1.msra.mxu0 0.0
        %425 = vmatprep.subr.mxu0 0.0
        %426 = vmatpush1.msra.mxu0 0.0
        %427 = vmatprep.subr.mxu0 0.0
        %428 = vmatpush1.msra.mxu0 0.0
        %429 = vmatprep.subr.mxu0 0.0
        %430 = vmatpush1.msra.mxu0 0.0
        %431 = vmatprep.subr.mxu0 0.0
        %432 = vmatpush1.msra.mxu0 0.0
        %433 = vmatprep.subr.mxu0 0.0
        %434 = vmatpush1.msra.mxu0 0.0
        %435 = vmatprep.subr.mxu0 0.0
        %436 = vmatpush1.msra.mxu0 0.0
        %437 = vmatprep.subr.mxu0 0.0
        %438 = vmatpush1.msra.mxu0 0.0
        %439 = vmatprep.subr.mxu0 0.0
        %440 = vmatpush1.msra.mxu0 0.0
        %441 = vmatprep.subr.mxu0 0.0
        %442 = vmatpush1.msra.mxu0 0.0
        %443 = vmatprep.subr.mxu0 0.0
        %444 = vmatpush1.msra.mxu0 0.0
        %445 = vmatprep.subr.mxu0 0.0
        %446 = vmatpush1.msra.mxu0 %v406
        %447 = vmatprep.subr.mxu0 0.0
        %448 = vmatpush1.msra.mxu0 %v405
        %449 = vmatprep.subr.mxu0 0.0
        %450 = vmatpush1.msra.mxu0 %v404
        %451 = vmatprep.subr.mxu0 0.0
        %452 = vmatpush2.msra.mxu0 0.0
        %453 = vmatprep.subr.mxu0 0.0
        %454 = vmatpush2.msra.mxu0 0.0
        %455 = vmatprep.subr.mxu0 0.0
        %456 = vmatpush2.msra.mxu0 0.0
        %457 = vmatprep.subr.mxu0 0.0
        %458 = vmatpush2.msra.mxu0 0.0
        %459 = vmatprep.subr.mxu0 0.0
        %460 = vmatpush2.msra.mxu0 0.0
        %461 = vmatprep.subr.mxu0 0.0
        %462 = vmatpush2.msra.mxu0 0.0
        %463 = vmatprep.subr.mxu0 0.0
        %464 = vmatpush2.msra.mxu0 0.0
        %465 = vmatprep.subr.mxu0 0.0
        %466 = vmatpush2.msra.mxu0 0.0
        %467 = vmatprep.subr.mxu0 0.0
        %468 = vmatpush2.msra.mxu0 0.0
        %469 = vmatprep.subr.mxu0 0.0
        %470 = vmatpush2.msra.mxu0 0.0
        %471 = vmatprep.subr.mxu0 0.0
        %472 = vmatpush2.msra.mxu0 0.0
        %473 = vmatprep.subr.mxu0 0.0
        %474 = vmatpush2.msra.mxu0 0.0
        %475 = vmatprep.subr.mxu0 0.0
        %476 = vmatpush2.msra.mxu0 0.0
        %477 = vmatprep.subr.mxu0 0.0
        %478 = vmatpush2.msra.mxu0 0.0
        %479 = vmatprep.subr.mxu0 0.0
        %480 = vmatpush2.msra.mxu0 0.0
        %481 = vmatprep.subr.mxu0 0.0
        %482 = vmatpush2.msra.mxu0 0.0
        %483 = vmatprep.mubr.f32.mxu0 0.0
        %484 = vmatmul.mubr.f32.gmra.mxu0 %v408
        %v485 = vpop.f32.mrf.mxu0
        %v486 = vadd.f32 0.0, %v485
        %v487 = vpop.f32.mrf.mxu0
        %488 = vmatprep.mubr.f32.mxu0 0.0
        %489 = vmatmul.mubr.f32.gmra.mxu0 %v411
        %v490 = vpop.f32.mrf.mxu0
        %v491 = vadd.f32 0.0, %v490
        %v492 = vpop.f32.mrf.mxu0
        %493 = vmatprep.mubr.f32.mxu0 0.0
        %494 = vmatmul.mubr.f32.gmra.mxu0 %v414
        %v495 = vpop.f32.mrf.mxu0
        %v496 = vadd.f32 0.0, %v495
        %v497 = vpop.f32.mrf.mxu0
        %498 = vmatprep.mubr.f32.mxu0 0.0
        %499 = vmatmul.mubr.f32.gmra.mxu0 %v417
        %v500 = vpop.f32.mrf.mxu0
        %v501 = vadd.f32 0.0, %v500
        %v502 = vpop.f32.mrf.mxu0
        %503 = vdwg.mxu0
        %v504 = vlaneseq
        %v505 = vshrl.u32 %v504, 7
        %v506 = vsub.s32 3, %v505
        %v507 = vrot.slane %v228, %v506
        %v508 = vadd.f32 %v486, %v507
        %v509 = vadd.f32 %v491, %v507
        %v510 = vadd.f32 %v496, %v507
        %v511 = vadd.f32 %v501, %v507
        %v512 = vmul.f32 %v508, 0.35355338
        %v513 = vmul.f32 %v509, 0.35355338
        %v514 = vmul.f32 %v510, 0.35355338
        %v515 = vmul.f32 %v511, 0.35355338
        %v516 = vlaneseq
        %v517 = vshrl.u32 %v516, 7
        %v518 = vsub.s32 4, %v517
        %v519 = vrot.slane %v228, %v518
        %521 = vrot.lane.b32.xlu0 %v519, 24
        %v522 = vpop.permute.xlu0 %521
        %v524 = vadd.f32 %v486, %v522
        %v525 = vadd.f32 %v491, %v522
        %v526 = vadd.f32 %v496, %v522
        %v527 = vadd.f32 %v501, %v522
        %v528 = vlaneseq
        %v529 = vshrl.u32 %v528, 7
        %v530 = vsub.s32 5, %v529
        %v531 = vrot.slane %v228, %v530
        %533 = vrot.lane.b32.xlu0 %v531, 48
        %v534 = vpop.permute.xlu0 %533
        %v536 = vadd.f32 %v486, %v534
        %v537 = vadd.f32 %v491, %v534
        %v538 = vadd.f32 %v496, %v534
        %v539 = vadd.f32 %v501, %v534
        %s540 = scalar_lea.vmem [#allocation2], 24
        %v541 = vld [vmem:[%s540] sm:$0xff]
        %v542 = vld [vmem:[%s540 + $0x8] sm:$0xff]
        %v543 = vld [vmem:[%s540 + $0x10] sm:$0xff]
        %545 = vrot.lane.b32.xlu0 %v524, 104
        %v546 = vpop.permute.xlu0 %545
        %vm547 = vcmask 64512
        %v549 = vsel %vm547, %v512, 0
        %v551 = vsel %vm547, %v546, 0
        %553 = vmatprep.subr.mxu0 0.0
        %554 = vmatpush1.xpose.msra.mxu0 0.0
        %555 = vmatprep.subr.mxu0 0.0
        %556 = vmatpush1.xpose.msra.mxu0 0.0
        %557 = vmatprep.subr.mxu0 0.0
        %558 = vmatpush1.xpose.msra.mxu0 0.0
        %559 = vmatprep.subr.mxu0 0.0
        %560 = vmatpush1.xpose.msra.mxu0 0.0
        %561 = vmatprep.subr.mxu0 0.0
        %562 = vmatpush1.xpose.msra.mxu0 0.0
        %563 = vmatprep.subr.mxu0 0.0
        %564 = vmatpush1.xpose.msra.mxu0 0.0
        %565 = vmatprep.subr.mxu0 0.0
        %566 = vmatpush1.xpose.msra.mxu0 0.0
        %567 = vmatprep.subr.mxu0 0.0
        %568 = vmatpush1.xpose.msra.mxu0 0.0
        %569 = vmatprep.subr.mxu0 0.0
        %570 = vmatpush1.xpose.msra.mxu0 0.0
        %571 = vmatprep.subr.mxu0 0.0
        %572 = vmatpush1.xpose.msra.mxu0 0.0
        %573 = vmatprep.subr.mxu0 0.0
        %574 = vmatpush1.xpose.msra.mxu0 0.0
        %575 = vmatprep.subr.mxu0 0.0
        %576 = vmatpush1.xpose.msra.mxu0 0.0
        %577 = vmatprep.subr.mxu0 0.0
        %578 = vmatpush1.xpose.msra.mxu0 0.0
        %579 = vmatprep.subr.mxu0 0.0
        %580 = vmatpush1.xpose.msra.mxu0 0.0
        %581 = vmatprep.subr.mxu0 0.0
        %582 = vmatpush1.xpose.msra.mxu0 0.0
        %583 = vmatprep.subr.mxu0 0.0
        %584 = vmatpush1.xpose.msra.mxu0 %v551
        %585 = vmatprep.subr.mxu0 0.0
        %586 = vmatpush2.xpose.msra.mxu0 0.0
        %587 = vmatprep.subr.mxu0 0.0
        %588 = vmatpush2.xpose.msra.mxu0 0.0
        %589 = vmatprep.subr.mxu0 0.0
        %590 = vmatpush2.xpose.msra.mxu0 0.0
        %591 = vmatprep.subr.mxu0 0.0
        %592 = vmatpush2.xpose.msra.mxu0 0.0
        %593 = vmatprep.subr.mxu0 0.0
        %594 = vmatpush2.xpose.msra.mxu0 0.0
        %595 = vmatprep.subr.mxu0 0.0
        %596 = vmatpush2.xpose.msra.mxu0 0.0
        %597 = vmatprep.subr.mxu0 0.0
        %598 = vmatpush2.xpose.msra.mxu0 0.0
        %599 = vmatprep.subr.mxu0 0.0
        %600 = vmatpush2.xpose.msra.mxu0 0.0
        %601 = vmatprep.subr.mxu0 0.0
        %602 = vmatpush2.xpose.msra.mxu0 0.0
        %603 = vmatprep.subr.mxu0 0.0
        %604 = vmatpush2.xpose.msra.mxu0 0.0
        %605 = vmatprep.subr.mxu0 0.0
        %606 = vmatpush2.xpose.msra.mxu0 0.0
        %607 = vmatprep.subr.mxu0 0.0
        %608 = vmatpush2.xpose.msra.mxu0 0.0
        %609 = vmatprep.subr.mxu0 0.0
        %610 = vmatpush2.xpose.msra.mxu0 0.0
        %611 = vmatprep.subr.mxu0 0.0
        %612 = vmatpush2.xpose.msra.mxu0 0.0
        %613 = vmatprep.subr.mxu0 0.0
        %614 = vmatpush2.xpose.msra.mxu0 0.0
        %615 = vmatprep.subr.mxu0 0.0
        %616 = vmatpush2.xpose.msra.mxu0 0.0
        %617 = vmatprep.mubr.f32.mxu0 0.0
        %618 = vmatmul.mubr.f32.gmra.mxu0 %v549
        %v619 = vpop.f32.mrf.mxu0
        %v620 = vadd.f32 0.0, %v619
        %v621 = vpop.f32.mrf.mxu0
        %622 = vdwg.mxu0
        %624 = vrot.lane.b32.xlu0 %v525, 104
        %v625 = vpop.permute.xlu0 %624
        %v627 = vsel %vm547, %v513, 0
        %v629 = vsel %vm547, %v625, 0
        %631 = vmatprep.subr.mxu0 0.0
        %632 = vmatpush1.xpose.msra.mxu0 0.0
        %633 = vmatprep.subr.mxu0 0.0
        %634 = vmatpush1.xpose.msra.mxu0 0.0
        %635 = vmatprep.subr.mxu0 0.0
        %636 = vmatpush1.xpose.msra.mxu0 0.0
        %637 = vmatprep.subr.mxu0 0.0
        %638 = vmatpush1.xpose.msra.mxu0 0.0
        %639 = vmatprep.subr.mxu0 0.0
        %640 = vmatpush1.xpose.msra.mxu0 0.0
        %641 = vmatprep.subr.mxu0 0.0
        %642 = vmatpush1.xpose.msra.mxu0 0.0
        %643 = vmatprep.subr.mxu0 0.0
        %644 = vmatpush1.xpose.msra.mxu0 0.0
        %645 = vmatprep.subr.mxu0 0.0
        %646 = vmatpush1.xpose.msra.mxu0 0.0
        %647 = vmatprep.subr.mxu0 0.0
        %648 = vmatpush1.xpose.msra.mxu0 0.0
        %649 = vmatprep.subr.mxu0 0.0
        %650 = vmatpush1.xpose.msra.mxu0 0.0
        %651 = vmatprep.subr.mxu0 0.0
        %652 = vmatpush1.xpose.msra.mxu0 0.0
        %653 = vmatprep.subr.mxu0 0.0
        %654 = vmatpush1.xpose.msra.mxu0 0.0
        %655 = vmatprep.subr.mxu0 0.0
        %656 = vmatpush1.xpose.msra.mxu0 0.0
        %657 = vmatprep.subr.mxu0 0.0
        %658 = vmatpush1.xpose.msra.mxu0 0.0
        %659 = vmatprep.subr.mxu0 0.0
        %660 = vmatpush1.xpose.msra.mxu0 0.0
        %661 = vmatprep.subr.mxu0 0.0
        %662 = vmatpush1.xpose.msra.mxu0 %v629
        %663 = vmatprep.subr.mxu0 0.0
        %664 = vmatpush2.xpose.msra.mxu0 0.0
        %665 = vmatprep.subr.mxu0 0.0
        %666 = vmatpush2.xpose.msra.mxu0 0.0
        %667 = vmatprep.subr.mxu0 0.0
        %668 = vmatpush2.xpose.msra.mxu0 0.0
        %669 = vmatprep.subr.mxu0 0.0
        %670 = vmatpush2.xpose.msra.mxu0 0.0
        %671 = vmatprep.subr.mxu0 0.0
        %672 = vmatpush2.xpose.msra.mxu0 0.0
        %673 = vmatprep.subr.mxu0 0.0
        %674 = vmatpush2.xpose.msra.mxu0 0.0
        %675 = vmatprep.subr.mxu0 0.0
        %676 = vmatpush2.xpose.msra.mxu0 0.0
        %677 = vmatprep.subr.mxu0 0.0
        %678 = vmatpush2.xpose.msra.mxu0 0.0
        %679 = vmatprep.subr.mxu0 0.0
        %680 = vmatpush2.xpose.msra.mxu0 0.0
        %681 = vmatprep.subr.mxu0 0.0
        %682 = vmatpush2.xpose.msra.mxu0 0.0
        %683 = vmatprep.subr.mxu0 0.0
        %684 = vmatpush2.xpose.msra.mxu0 0.0
        %685 = vmatprep.subr.mxu0 0.0
        %686 = vmatpush2.xpose.msra.mxu0 0.0
        %687 = vmatprep.subr.mxu0 0.0
        %688 = vmatpush2.xpose.msra.mxu0 0.0
        %689 = vmatprep.subr.mxu0 0.0
        %690 = vmatpush2.xpose.msra.mxu0 0.0
        %691 = vmatprep.subr.mxu0 0.0
        %692 = vmatpush2.xpose.msra.mxu0 0.0
        %693 = vmatprep.subr.mxu0 0.0
        %694 = vmatpush2.xpose.msra.mxu0 0.0
        %695 = vmatprep.mubr.f32.mxu0 0.0
        %696 = vmatmul.mubr.f32.gmra.mxu0 %v627
        %v697 = vpop.f32.mrf.mxu0
        %v698 = vadd.f32 0.0, %v697
        %v699 = vpop.f32.mrf.mxu0
        %700 = vdwg.mxu0
        %702 = vrot.lane.b32.xlu0 %v526, 104
        %v703 = vpop.permute.xlu0 %702
        %v705 = vsel %vm547, %v514, 0
        %v707 = vsel %vm547, %v703, 0
        %709 = vmatprep.subr.mxu0 0.0
        %710 = vmatpush1.xpose.msra.mxu0 0.0
        %711 = vmatprep.subr.mxu0 0.0
        %712 = vmatpush1.xpose.msra.mxu0 0.0
        %713 = vmatprep.subr.mxu0 0.0
        %714 = vmatpush1.xpose.msra.mxu0 0.0
        %715 = vmatprep.subr.mxu0 0.0
        %716 = vmatpush1.xpose.msra.mxu0 0.0
        %717 = vmatprep.subr.mxu0 0.0
        %718 = vmatpush1.xpose.msra.mxu0 0.0
        %719 = vmatprep.subr.mxu0 0.0
        %720 = vmatpush1.xpose.msra.mxu0 0.0
        %721 = vmatprep.subr.mxu0 0.0
        %722 = vmatpush1.xpose.msra.mxu0 0.0
        %723 = vmatprep.subr.mxu0 0.0
        %724 = vmatpush1.xpose.msra.mxu0 0.0
        %725 = vmatprep.subr.mxu0 0.0
        %726 = vmatpush1.xpose.msra.mxu0 0.0
        %727 = vmatprep.subr.mxu0 0.0
        %728 = vmatpush1.xpose.msra.mxu0 0.0
        %729 = vmatprep.subr.mxu0 0.0
        %730 = vmatpush1.xpose.msra.mxu0 0.0
        %731 = vmatprep.subr.mxu0 0.0
        %732 = vmatpush1.xpose.msra.mxu0 0.0
        %733 = vmatprep.subr.mxu0 0.0
        %734 = vmatpush1.xpose.msra.mxu0 0.0
        %735 = vmatprep.subr.mxu0 0.0
        %736 = vmatpush1.xpose.msra.mxu0 0.0
        %737 = vmatprep.subr.mxu0 0.0
        %738 = vmatpush1.xpose.msra.mxu0 0.0
        %739 = vmatprep.subr.mxu0 0.0
        %740 = vmatpush1.xpose.msra.mxu0 %v707
        %741 = vmatprep.subr.mxu0 0.0
        %742 = vmatpush2.xpose.msra.mxu0 0.0
        %743 = vmatprep.subr.mxu0 0.0
        %744 = vmatpush2.xpose.msra.mxu0 0.0
        %745 = vmatprep.subr.mxu0 0.0
        %746 = vmatpush2.xpose.msra.mxu0 0.0
        %747 = vmatprep.subr.mxu0 0.0
        %748 = vmatpush2.xpose.msra.mxu0 0.0
        %749 = vmatprep.subr.mxu0 0.0
        %750 = vmatpush2.xpose.msra.mxu0 0.0
        %751 = vmatprep.subr.mxu0 0.0
        %752 = vmatpush2.xpose.msra.mxu0 0.0
        %753 = vmatprep.subr.mxu0 0.0
        %754 = vmatpush2.xpose.msra.mxu0 0.0
        %755 = vmatprep.subr.mxu0 0.0
        %756 = vmatpush2.xpose.msra.mxu0 0.0
        %757 = vmatprep.subr.mxu0 0.0
        %758 = vmatpush2.xpose.msra.mxu0 0.0
        %759 = vmatprep.subr.mxu0 0.0
        %760 = vmatpush2.xpose.msra.mxu0 0.0
        %761 = vmatprep.subr.mxu0 0.0
        %762 = vmatpush2.xpose.msra.mxu0 0.0
        %763 = vmatprep.subr.mxu0 0.0
        %764 = vmatpush2.xpose.msra.mxu0 0.0
        %765 = vmatprep.subr.mxu0 0.0
        %766 = vmatpush2.xpose.msra.mxu0 0.0
        %767 = vmatprep.subr.mxu0 0.0
        %768 = vmatpush2.xpose.msra.mxu0 0.0
        %769 = vmatprep.subr.mxu0 0.0
        %770 = vmatpush2.xpose.msra.mxu0 0.0
        %771 = vmatprep.subr.mxu0 0.0
        %772 = vmatpush2.xpose.msra.mxu0 0.0
        %773 = vmatprep.mubr.f32.mxu0 0.0
        %774 = vmatmul.mubr.f32.gmra.mxu0 %v705
        %v775 = vpop.f32.mrf.mxu0
        %v776 = vadd.f32 0.0, %v775
        %v777 = vpop.f32.mrf.mxu0
        %778 = vdwg.mxu0
        %780 = vrot.lane.b32.xlu0 %v527, 104
        %v781 = vpop.permute.xlu0 %780
        %v783 = vsel %vm547, %v515, 0
        %v785 = vsel %vm547, %v781, 0
        %787 = vmatprep.subr.mxu0 0.0
        %788 = vmatpush1.xpose.msra.mxu0 0.0
        %789 = vmatprep.subr.mxu0 0.0
        %790 = vmatpush1.xpose.msra.mxu0 0.0
        %791 = vmatprep.subr.mxu0 0.0
        %792 = vmatpush1.xpose.msra.mxu0 0.0
        %793 = vmatprep.subr.mxu0 0.0
        %794 = vmatpush1.xpose.msra.mxu0 0.0
        %795 = vmatprep.subr.mxu0 0.0
        %796 = vmatpush1.xpose.msra.mxu0 0.0
        %797 = vmatprep.subr.mxu0 0.0
        %798 = vmatpush1.xpose.msra.mxu0 0.0
        %799 = vmatprep.subr.mxu0 0.0
        %800 = vmatpush1.xpose.msra.mxu0 0.0
        %801 = vmatprep.subr.mxu0 0.0
        %802 = vmatpush1.xpose.msra.mxu0 0.0
        %803 = vmatprep.subr.mxu0 0.0
        %804 = vmatpush1.xpose.msra.mxu0 0.0
        %805 = vmatprep.subr.mxu0 0.0
        %806 = vmatpush1.xpose.msra.mxu0 0.0
        %807 = vmatprep.subr.mxu0 0.0
        %808 = vmatpush1.xpose.msra.mxu0 0.0
        %809 = vmatprep.subr.mxu0 0.0
        %810 = vmatpush1.xpose.msra.mxu0 0.0
        %811 = vmatprep.subr.mxu0 0.0
        %812 = vmatpush1.xpose.msra.mxu0 0.0
        %813 = vmatprep.subr.mxu0 0.0
        %814 = vmatpush1.xpose.msra.mxu0 0.0
        %815 = vmatprep.subr.mxu0 0.0
        %816 = vmatpush1.xpose.msra.mxu0 0.0
        %817 = vmatprep.subr.mxu0 0.0
        %818 = vmatpush1.xpose.msra.mxu0 %v785
        %819 = vmatprep.subr.mxu0 0.0
        %820 = vmatpush2.xpose.msra.mxu0 0.0
        %821 = vmatprep.subr.mxu0 0.0
        %822 = vmatpush2.xpose.msra.mxu0 0.0
        %823 = vmatprep.subr.mxu0 0.0
        %824 = vmatpush2.xpose.msra.mxu0 0.0
        %825 = vmatprep.subr.mxu0 0.0
        %826 = vmatpush2.xpose.msra.mxu0 0.0
        %827 = vmatprep.subr.mxu0 0.0
        %828 = vmatpush2.xpose.msra.mxu0 0.0
        %829 = vmatprep.subr.mxu0 0.0
        %830 = vmatpush2.xpose.msra.mxu0 0.0
        %831 = vmatprep.subr.mxu0 0.0
        %832 = vmatpush2.xpose.msra.mxu0 0.0
        %833 = vmatprep.subr.mxu0 0.0
        %834 = vmatpush2.xpose.msra.mxu0 0.0
        %835 = vmatprep.subr.mxu0 0.0
        %836 = vmatpush2.xpose.msra.mxu0 0.0
        %837 = vmatprep.subr.mxu0 0.0
        %838 = vmatpush2.xpose.msra.mxu0 0.0
        %839 = vmatprep.subr.mxu0 0.0
        %840 = vmatpush2.xpose.msra.mxu0 0.0
        %841 = vmatprep.subr.mxu0 0.0
        %842 = vmatpush2.xpose.msra.mxu0 0.0
        %843 = vmatprep.subr.mxu0 0.0
        %844 = vmatpush2.xpose.msra.mxu0 0.0
        %845 = vmatprep.subr.mxu0 0.0
        %846 = vmatpush2.xpose.msra.mxu0 0.0
        %847 = vmatprep.subr.mxu0 0.0
        %848 = vmatpush2.xpose.msra.mxu0 0.0
        %849 = vmatprep.subr.mxu0 0.0
        %850 = vmatpush2.xpose.msra.mxu0 0.0
        %851 = vmatprep.mubr.f32.mxu0 0.0
        %852 = vmatmul.mubr.f32.gmra.mxu0 %v783
        %v853 = vpop.f32.mrf.mxu0
        %v854 = vadd.f32 0.0, %v853
        %v855 = vpop.f32.mrf.mxu0
        %856 = vdwg.mxu0
        %v857 = vsel %vm547, %v620, -inf
        %858 = vmax.xlane.f32.xlu0 %v857
        %v859 = vpop.xlane.xlu0 %858
        %v860 = vsel %vm547, %v698, -inf
        %861 = vmax.xlane.f32.xlu0 %v860
        %v862 = vpop.xlane.xlu0 %861
        %v863 = vsel %vm547, %v776, -inf
        %864 = vmax.xlane.f32.xlu0 %v863
        %v865 = vpop.xlane.xlu0 %864
        %v866 = vsel %vm547, %v854, -inf
        %867 = vmax.xlane.f32.xlu0 %v866
        %v868 = vpop.xlane.xlu0 %867
        %v869 = vsub.f32 %v620, %v859
        %v870 = vsub.f32 %v698, %v862
        %v871 = vsub.f32 %v776, %v865
        %v872 = vsub.f32 %v854, %v868
        %v873 = vmul.f32 %v869, 1.442695
        %v874 = vpow.pop %v873
        %v875 = vmul.f32 %v870, 1.442695
        %v876 = vpow.pop %v875
        %v877 = vmul.f32 %v871, 1.442695
        %v878 = vpow.pop %v877
        %v879 = vmul.f32 %v872, 1.442695
        %v880 = vpow.pop %v879
        %v881 = vsel %vm547, %v874, 0.0
        %882 = vadd.xlane.f32.xlu0 %v881
        %v883 = vpop.xlane.xlu0 %882
        %v884 = vsel %vm547, %v876, 0.0
        %885 = vadd.xlane.f32.xlu0 %v884
        %v886 = vpop.xlane.xlu0 %885
        %v887 = vsel %vm547, %v878, 0.0
        %888 = vadd.xlane.f32.xlu0 %v887
        %v889 = vpop.xlane.xlu0 %888
        %v890 = vsel %vm547, %v880, 0.0
        %891 = vadd.xlane.f32.xlu0 %v890
        %v892 = vpop.xlane.xlu0 %891
        %v893 = vrcp.pop %v883
        %v894 = vmul.f32 %v874, %v893
        %v895 = vrcp.pop %v886
        %v896 = vmul.f32 %v876, %v895
        %v897 = vrcp.pop %v889
        %v898 = vmul.f32 %v878, %v897
        %v899 = vrcp.pop %v892
        %v900 = vmul.f32 %v880, %v899
        %902 = vrot.lane.b32.xlu0 %v536, 80
        %v903 = vpop.permute.xlu0 %902
        %v906 = vsel %vm547, %v894, 0
        %908 = vmatprep.subr.mxu0 0.0
        %909 = vmatpush1.msra.mxu0 0.0
        %910 = vmatprep.subr.mxu0 0.0
        %911 = vmatpush1.msra.mxu0 0.0
        %912 = vmatprep.subr.mxu0 0.0
        %913 = vmatpush1.msra.mxu0 0.0
        %914 = vmatprep.subr.mxu0 0.0
        %915 = vmatpush1.msra.mxu0 0.0
        %916 = vmatprep.subr.mxu0 0.0
        %917 = vmatpush1.msra.mxu0 0.0
        %918 = vmatprep.subr.mxu0 0.0
        %919 = vmatpush1.msra.mxu0 0.0
        %920 = vmatprep.subr.mxu0 0.0
        %921 = vmatpush1.msra.mxu0 0.0
        %922 = vmatprep.subr.mxu0 0.0
        %923 = vmatpush1.msra.mxu0 0.0
        %924 = vmatprep.subr.mxu0 0.0
        %925 = vmatpush1.msra.mxu0 0.0
        %926 = vmatprep.subr.mxu0 0.0
        %927 = vmatpush1.msra.mxu0 0.0
        %928 = vmatprep.subr.mxu0 0.0
        %929 = vmatpush1.msra.mxu0 0.0
        %930 = vmatprep.subr.mxu0 0.0
        %931 = vmatpush1.msra.mxu0 0.0
        %932 = vmatprep.subr.mxu0 0.0
        %933 = vmatpush1.msra.mxu0 0.0
        %934 = vmatprep.subr.mxu0 0.0
        %935 = vmatpush1.msra.mxu0 0.0
        %936 = vmatprep.subr.mxu0 0.0
        %937 = vmatpush1.msra.mxu0 0.0
        %938 = vmatprep.subr.mxu0 0.0
        %939 = vmatpush1.msra.mxu0 %v903
        %940 = vmatprep.subr.mxu0 0.0
        %941 = vmatpush2.msra.mxu0 0.0
        %942 = vmatprep.subr.mxu0 0.0
        %943 = vmatpush2.msra.mxu0 0.0
        %944 = vmatprep.subr.mxu0 0.0
        %945 = vmatpush2.msra.mxu0 0.0
        %946 = vmatprep.subr.mxu0 0.0
        %947 = vmatpush2.msra.mxu0 0.0
        %948 = vmatprep.subr.mxu0 0.0
        %949 = vmatpush2.msra.mxu0 0.0
        %950 = vmatprep.subr.mxu0 0.0
        %951 = vmatpush2.msra.mxu0 0.0
        %952 = vmatprep.subr.mxu0 0.0
        %953 = vmatpush2.msra.mxu0 0.0
        %954 = vmatprep.subr.mxu0 0.0
        %955 = vmatpush2.msra.mxu0 0.0
        %956 = vmatprep.subr.mxu0 0.0
        %957 = vmatpush2.msra.mxu0 0.0
        %958 = vmatprep.subr.mxu0 0.0
        %959 = vmatpush2.msra.mxu0 0.0
        %960 = vmatprep.subr.mxu0 0.0
        %961 = vmatpush2.msra.mxu0 0.0
        %962 = vmatprep.subr.mxu0 0.0
        %963 = vmatpush2.msra.mxu0 0.0
        %964 = vmatprep.subr.mxu0 0.0
        %965 = vmatpush2.msra.mxu0 0.0
        %966 = vmatprep.subr.mxu0 0.0
        %967 = vmatpush2.msra.mxu0 0.0
        %968 = vmatprep.subr.mxu0 0.0
        %969 = vmatpush2.msra.mxu0 0.0
        %970 = vmatprep.subr.mxu0 0.0
        %971 = vmatpush2.msra.mxu0 0.0
        %972 = vmatprep.mubr.f32.mxu0 0.0
        %973 = vmatmul.mubr.f32.gmra.mxu0 %v906
        %v974 = vpop.f32.mrf.mxu0
        %v975 = vadd.f32 0.0, %v974
        %v976 = vpop.f32.mrf.mxu0
        %977 = vdwg.mxu0
        %979 = vrot.lane.b32.xlu0 %v537, 80
        %v980 = vpop.permute.xlu0 %979
        %v983 = vsel %vm547, %v896, 0
        %985 = vmatprep.subr.mxu0 0.0
        %986 = vmatpush1.msra.mxu0 0.0
        %987 = vmatprep.subr.mxu0 0.0
        %988 = vmatpush1.msra.mxu0 0.0
        %989 = vmatprep.subr.mxu0 0.0
        %990 = vmatpush1.msra.mxu0 0.0
        %991 = vmatprep.subr.mxu0 0.0
        %992 = vmatpush1.msra.mxu0 0.0
        %993 = vmatprep.subr.mxu0 0.0
        %994 = vmatpush1.msra.mxu0 0.0
        %995 = vmatprep.subr.mxu0 0.0
        %996 = vmatpush1.msra.mxu0 0.0
        %997 = vmatprep.subr.mxu0 0.0
        %998 = vmatpush1.msra.mxu0 0.0
        %999 = vmatprep.subr.mxu0 0.0
        %1000 = vmatpush1.msra.mxu0 0.0
        %1001 = vmatprep.subr.mxu0 0.0
        %1002 = vmatpush1.msra.mxu0 0.0
        %1003 = vmatprep.subr.mxu0 0.0
        %1004 = vmatpush1.msra.mxu0 0.0
        %1005 = vmatprep.subr.mxu0 0.0
        %1006 = vmatpush1.msra.mxu0 0.0
        %1007 = vmatprep.subr.mxu0 0.0
        %1008 = vmatpush1.msra.mxu0 0.0
        %1009 = vmatprep.subr.mxu0 0.0
        %1010 = vmatpush1.msra.mxu0 0.0
        %1011 = vmatprep.subr.mxu0 0.0
        %1012 = vmatpush1.msra.mxu0 0.0
        %1013 = vmatprep.subr.mxu0 0.0
        %1014 = vmatpush1.msra.mxu0 0.0
        %1015 = vmatprep.subr.mxu0 0.0
        %1016 = vmatpush1.msra.mxu0 %v980
        %1017 = vmatprep.subr.mxu0 0.0
        %1018 = vmatpush2.msra.mxu0 0.0
        %1019 = vmatprep.subr.mxu0 0.0
        %1020 = vmatpush2.msra.mxu0 0.0
        %1021 = vmatprep.subr.mxu0 0.0
        %1022 = vmatpush2.msra.mxu0 0.0
        %1023 = vmatprep.subr.mxu0 0.0
        %1024 = vmatpush2.msra.mxu0 0.0
        %1025 = vmatprep.subr.mxu0 0.0
        %1026 = vmatpush2.msra.mxu0 0.0
        %1027 = vmatprep.subr.mxu0 0.0
        %1028 = vmatpush2.msra.mxu0 0.0
        %1029 = vmatprep.subr.mxu0 0.0
        %1030 = vmatpush2.msra.mxu0 0.0
        %1031 = vmatprep.subr.mxu0 0.0
        %1032 = vmatpush2.msra.mxu0 0.0
        %1033 = vmatprep.subr.mxu0 0.0
        %1034 = vmatpush2.msra.mxu0 0.0
        %1035 = vmatprep.subr.mxu0 0.0
        %1036 = vmatpush2.msra.mxu0 0.0
        %1037 = vmatprep.subr.mxu0 0.0
        %1038 = vmatpush2.msra.mxu0 0.0
        %1039 = vmatprep.subr.mxu0 0.0
        %1040 = vmatpush2.msra.mxu0 0.0
        %1041 = vmatprep.subr.mxu0 0.0
        %1042 = vmatpush2.msra.mxu0 0.0
        %1043 = vmatprep.subr.mxu0 0.0
        %1044 = vmatpush2.msra.mxu0 0.0
        %1045 = vmatprep.subr.mxu0 0.0
        %1046 = vmatpush2.msra.mxu0 0.0
        %1047 = vmatprep.subr.mxu0 0.0
        %1048 = vmatpush2.msra.mxu0 0.0
        %1049 = vmatprep.mubr.f32.mxu0 0.0
        %1050 = vmatmul.mubr.f32.gmra.mxu0 %v983
        %v1051 = vpop.f32.mrf.mxu0
        %v1052 = vadd.f32 0.0, %v1051
        %v1053 = vpop.f32.mrf.mxu0
        %1054 = vdwg.mxu0
        %1056 = vrot.lane.b32.xlu0 %v538, 80
        %v1057 = vpop.permute.xlu0 %1056
        %v1060 = vsel %vm547, %v898, 0
        %1062 = vmatprep.subr.mxu0 0.0
        %1063 = vmatpush1.msra.mxu0 0.0
        %1064 = vmatprep.subr.mxu0 0.0
        %1065 = vmatpush1.msra.mxu0 0.0
        %1066 = vmatprep.subr.mxu0 0.0
        %1067 = vmatpush1.msra.mxu0 0.0
        %1068 = vmatprep.subr.mxu0 0.0
        %1069 = vmatpush1.msra.mxu0 0.0
        %1070 = vmatprep.subr.mxu0 0.0
        %1071 = vmatpush1.msra.mxu0 0.0
        %1072 = vmatprep.subr.mxu0 0.0
        %1073 = vmatpush1.msra.mxu0 0.0
        %1074 = vmatprep.subr.mxu0 0.0
        %1075 = vmatpush1.msra.mxu0 0.0
        %1076 = vmatprep.subr.mxu0 0.0
        %1077 = vmatpush1.msra.mxu0 0.0
        %1078 = vmatprep.subr.mxu0 0.0
        %1079 = vmatpush1.msra.mxu0 0.0
        %1080 = vmatprep.subr.mxu0 0.0
        %1081 = vmatpush1.msra.mxu0 0.0
        %1082 = vmatprep.subr.mxu0 0.0
        %1083 = vmatpush1.msra.mxu0 0.0
        %1084 = vmatprep.subr.mxu0 0.0
        %1085 = vmatpush1.msra.mxu0 0.0
        %1086 = vmatprep.subr.mxu0 0.0
        %1087 = vmatpush1.msra.mxu0 0.0
        %1088 = vmatprep.subr.mxu0 0.0
        %1089 = vmatpush1.msra.mxu0 0.0
        %1090 = vmatprep.subr.mxu0 0.0
        %1091 = vmatpush1.msra.mxu0 0.0
        %1092 = vmatprep.subr.mxu0 0.0
        %1093 = vmatpush1.msra.mxu0 %v1057
        %1094 = vmatprep.subr.mxu0 0.0
        %1095 = vmatpush2.msra.mxu0 0.0
        %1096 = vmatprep.subr.mxu0 0.0
        %1097 = vmatpush2.msra.mxu0 0.0
        %1098 = vmatprep.subr.mxu0 0.0
        %1099 = vmatpush2.msra.mxu0 0.0
        %1100 = vmatprep.subr.mxu0 0.0
        %1101 = vmatpush2.msra.mxu0 0.0
        %1102 = vmatprep.subr.mxu0 0.0
        %1103 = vmatpush2.msra.mxu0 0.0
        %1104 = vmatprep.subr.mxu0 0.0
        %1105 = vmatpush2.msra.mxu0 0.0
        %1106 = vmatprep.subr.mxu0 0.0
        %1107 = vmatpush2.msra.mxu0 0.0
        %1108 = vmatprep.subr.mxu0 0.0
        %1109 = vmatpush2.msra.mxu0 0.0
        %1110 = vmatprep.subr.mxu0 0.0
        %1111 = vmatpush2.msra.mxu0 0.0
        %1112 = vmatprep.subr.mxu0 0.0
        %1113 = vmatpush2.msra.mxu0 0.0
        %1114 = vmatprep.subr.mxu0 0.0
        %1115 = vmatpush2.msra.mxu0 0.0
        %1116 = vmatprep.subr.mxu0 0.0
        %1117 = vmatpush2.msra.mxu0 0.0
        %1118 = vmatprep.subr.mxu0 0.0
        %1119 = vmatpush2.msra.mxu0 0.0
        %1120 = vmatprep.subr.mxu0 0.0
        %1121 = vmatpush2.msra.mxu0 0.0
        %1122 = vmatprep.subr.mxu0 0.0
        %1123 = vmatpush2.msra.mxu0 0.0
        %1124 = vmatprep.subr.mxu0 0.0
        %1125 = vmatpush2.msra.mxu0 0.0
        %1126 = vmatprep.mubr.f32.mxu0 0.0
        %1127 = vmatmul.mubr.f32.gmra.mxu0 %v1060
        %v1128 = vpop.f32.mrf.mxu0
        %v1129 = vadd.f32 0.0, %v1128
        %v1130 = vpop.f32.mrf.mxu0
        %1131 = vdwg.mxu0
        %1133 = vrot.lane.b32.xlu0 %v539, 80
        %v1134 = vpop.permute.xlu0 %1133
        %v1137 = vsel %vm547, %v900, 0
        %1139 = vmatprep.subr.mxu0 0.0
        %1140 = vmatpush1.msra.mxu0 0.0
        %1141 = vmatprep.subr.mxu0 0.0
        %1142 = vmatpush1.msra.mxu0 0.0
        %1143 = vmatprep.subr.mxu0 0.0
        %1144 = vmatpush1.msra.mxu0 0.0
        %1145 = vmatprep.subr.mxu0 0.0
        %1146 = vmatpush1.msra.mxu0 0.0
        %1147 = vmatprep.subr.mxu0 0.0
        %1148 = vmatpush1.msra.mxu0 0.0
        %1149 = vmatprep.subr.mxu0 0.0
        %1150 = vmatpush1.msra.mxu0 0.0
        %1151 = vmatprep.subr.mxu0 0.0
        %1152 = vmatpush1.msra.mxu0 0.0
        %1153 = vmatprep.subr.mxu0 0.0
        %1154 = vmatpush1.msra.mxu0 0.0
        %1155 = vmatprep.subr.mxu0 0.0
        %1156 = vmatpush1.msra.mxu0 0.0
        %1157 = vmatprep.subr.mxu0 0.0
        %1158 = vmatpush1.msra.mxu0 0.0
        %1159 = vmatprep.subr.mxu0 0.0
        %1160 = vmatpush1.msra.mxu0 0.0
        %1161 = vmatprep.subr.mxu0 0.0
        %1162 = vmatpush1.msra.mxu0 0.0
        %1163 = vmatprep.subr.mxu0 0.0
        %1164 = vmatpush1.msra.mxu0 0.0
        %1165 = vmatprep.subr.mxu0 0.0
        %1166 = vmatpush1.msra.mxu0 0.0
        %1167 = vmatprep.subr.mxu0 0.0
        %1168 = vmatpush1.msra.mxu0 0.0
        %1169 = vmatprep.subr.mxu0 0.0
        %1170 = vmatpush1.msra.mxu0 %v1134
        %1171 = vmatprep.subr.mxu0 0.0
        %1172 = vmatpush2.msra.mxu0 0.0
        %1173 = vmatprep.subr.mxu0 0.0
        %1174 = vmatpush2.msra.mxu0 0.0
        %1175 = vmatprep.subr.mxu0 0.0
        %1176 = vmatpush2.msra.mxu0 0.0
        %1177 = vmatprep.subr.mxu0 0.0
        %1178 = vmatpush2.msra.mxu0 0.0
        %1179 = vmatprep.subr.mxu0 0.0
        %1180 = vmatpush2.msra.mxu0 0.0
        %1181 = vmatprep.subr.mxu0 0.0
        %1182 = vmatpush2.msra.mxu0 0.0
        %1183 = vmatprep.subr.mxu0 0.0
        %1184 = vmatpush2.msra.mxu0 0.0
        %1185 = vmatprep.subr.mxu0 0.0
        %1186 = vmatpush2.msra.mxu0 0.0
        %1187 = vmatprep.subr.mxu0 0.0
        %1188 = vmatpush2.msra.mxu0 0.0
        %1189 = vmatprep.subr.mxu0 0.0
        %1190 = vmatpush2.msra.mxu0 0.0
        %1191 = vmatprep.subr.mxu0 0.0
        %1192 = vmatpush2.msra.mxu0 0.0
        %1193 = vmatprep.subr.mxu0 0.0
        %1194 = vmatpush2.msra.mxu0 0.0
        %1195 = vmatprep.subr.mxu0 0.0
        %1196 = vmatpush2.msra.mxu0 0.0
        %1197 = vmatprep.subr.mxu0 0.0
        %1198 = vmatpush2.msra.mxu0 0.0
        %1199 = vmatprep.subr.mxu0 0.0
        %1200 = vmatpush2.msra.mxu0 0.0
        %1201 = vmatprep.subr.mxu0 0.0
        %1202 = vmatpush2.msra.mxu0 0.0
        %1203 = vmatprep.mubr.f32.mxu0 0.0
        %1204 = vmatmul.mubr.f32.gmra.mxu0 %v1137
        %v1205 = vpop.f32.mrf.mxu0
        %v1206 = vadd.f32 0.0, %v1205
        %v1207 = vpop.f32.mrf.mxu0
        %1208 = vdwg.mxu0
        %1209 = vrot.lane.b32.xlu0 %v512, 120
        %v1210 = vpop.permute.xlu0 %1209
        %1211 = vrot.lane.b32.xlu0 %v524, 96
        %v1212 = vpop.permute.xlu0 %1211
        %v1213 = vsel %vm547, %v1210, 0
        %v1215 = vsel %vm547, %v1212, 0
        %1217 = vmatprep.subr.mxu0 0.0
        %1218 = vmatpush1.xpose.msra.mxu0 0.0
        %1219 = vmatprep.subr.mxu0 0.0
        %1220 = vmatpush1.xpose.msra.mxu0 0.0
        %1221 = vmatprep.subr.mxu0 0.0
        %1222 = vmatpush1.xpose.msra.mxu0 0.0
        %1223 = vmatprep.subr.mxu0 0.0
        %1224 = vmatpush1.xpose.msra.mxu0 0.0
        %1225 = vmatprep.subr.mxu0 0.0
        %1226 = vmatpush1.xpose.msra.mxu0 0.0
        %1227 = vmatprep.subr.mxu0 0.0
        %1228 = vmatpush1.xpose.msra.mxu0 0.0
        %1229 = vmatprep.subr.mxu0 0.0
        %1230 = vmatpush1.xpose.msra.mxu0 0.0
        %1231 = vmatprep.subr.mxu0 0.0
        %1232 = vmatpush1.xpose.msra.mxu0 0.0
        %1233 = vmatprep.subr.mxu0 0.0
        %1234 = vmatpush1.xpose.msra.mxu0 0.0
        %1235 = vmatprep.subr.mxu0 0.0
        %1236 = vmatpush1.xpose.msra.mxu0 0.0
        %1237 = vmatprep.subr.mxu0 0.0
        %1238 = vmatpush1.xpose.msra.mxu0 0.0
        %1239 = vmatprep.subr.mxu0 0.0
        %1240 = vmatpush1.xpose.msra.mxu0 0.0
        %1241 = vmatprep.subr.mxu0 0.0
        %1242 = vmatpush1.xpose.msra.mxu0 0.0
        %1243 = vmatprep.subr.mxu0 0.0
        %1244 = vmatpush1.xpose.msra.mxu0 0.0
        %1245 = vmatprep.subr.mxu0 0.0
        %1246 = vmatpush1.xpose.msra.mxu0 0.0
        %1247 = vmatprep.subr.mxu0 0.0
        %1248 = vmatpush1.xpose.msra.mxu0 %v1215
        %1249 = vmatprep.subr.mxu0 0.0
        %1250 = vmatpush2.xpose.msra.mxu0 0.0
        %1251 = vmatprep.subr.mxu0 0.0
        %1252 = vmatpush2.xpose.msra.mxu0 0.0
        %1253 = vmatprep.subr.mxu0 0.0
        %1254 = vmatpush2.xpose.msra.mxu0 0.0
        %1255 = vmatprep.subr.mxu0 0.0
        %1256 = vmatpush2.xpose.msra.mxu0 0.0
        %1257 = vmatprep.subr.mxu0 0.0
        %1258 = vmatpush2.xpose.msra.mxu0 0.0
        %1259 = vmatprep.subr.mxu0 0.0
        %1260 = vmatpush2.xpose.msra.mxu0 0.0
        %1261 = vmatprep.subr.mxu0 0.0
        %1262 = vmatpush2.xpose.msra.mxu0 0.0
        %1263 = vmatprep.subr.mxu0 0.0
        %1264 = vmatpush2.xpose.msra.mxu0 0.0
        %1265 = vmatprep.subr.mxu0 0.0
        %1266 = vmatpush2.xpose.msra.mxu0 0.0
        %1267 = vmatprep.subr.mxu0 0.0
        %1268 = vmatpush2.xpose.msra.mxu0 0.0
        %1269 = vmatprep.subr.mxu0 0.0
        %1270 = vmatpush2.xpose.msra.mxu0 0.0
        %1271 = vmatprep.subr.mxu0 0.0
        %1272 = vmatpush2.xpose.msra.mxu0 0.0
        %1273 = vmatprep.subr.mxu0 0.0
        %1274 = vmatpush2.xpose.msra.mxu0 0.0
        %1275 = vmatprep.subr.mxu0 0.0
        %1276 = vmatpush2.xpose.msra.mxu0 0.0
        %1277 = vmatprep.subr.mxu0 0.0
        %1278 = vmatpush2.xpose.msra.mxu0 0.0
        %1279 = vmatprep.subr.mxu0 0.0
        %1280 = vmatpush2.xpose.msra.mxu0 0.0
        %1281 = vmatprep.mubr.f32.mxu0 0.0
        %1282 = vmatmul.mubr.f32.gmra.mxu0 %v1213
        %v1283 = vpop.f32.mrf.mxu0
        %v1284 = vadd.f32 0.0, %v1283
        %v1285 = vpop.f32.mrf.mxu0
        %1286 = vdwg.mxu0
        %1287 = vrot.lane.b32.xlu0 %v513, 120
        %v1288 = vpop.permute.xlu0 %1287
        %1289 = vrot.lane.b32.xlu0 %v525, 96
        %v1290 = vpop.permute.xlu0 %1289
        %v1291 = vsel %vm547, %v1288, 0
        %v1293 = vsel %vm547, %v1290, 0
        %1295 = vmatprep.subr.mxu0 0.0
        %1296 = vmatpush1.xpose.msra.mxu0 0.0
        %1297 = vmatprep.subr.mxu0 0.0
        %1298 = vmatpush1.xpose.msra.mxu0 0.0
        %1299 = vmatprep.subr.mxu0 0.0
        %1300 = vmatpush1.xpose.msra.mxu0 0.0
        %1301 = vmatprep.subr.mxu0 0.0
        %1302 = vmatpush1.xpose.msra.mxu0 0.0
        %1303 = vmatprep.subr.mxu0 0.0
        %1304 = vmatpush1.xpose.msra.mxu0 0.0
        %1305 = vmatprep.subr.mxu0 0.0
        %1306 = vmatpush1.xpose.msra.mxu0 0.0
        %1307 = vmatprep.subr.mxu0 0.0
        %1308 = vmatpush1.xpose.msra.mxu0 0.0
        %1309 = vmatprep.subr.mxu0 0.0
        %1310 = vmatpush1.xpose.msra.mxu0 0.0
        %1311 = vmatprep.subr.mxu0 0.0
        %1312 = vmatpush1.xpose.msra.mxu0 0.0
        %1313 = vmatprep.subr.mxu0 0.0
        %1314 = vmatpush1.xpose.msra.mxu0 0.0
        %1315 = vmatprep.subr.mxu0 0.0
        %1316 = vmatpush1.xpose.msra.mxu0 0.0
        %1317 = vmatprep.subr.mxu0 0.0
        %1318 = vmatpush1.xpose.msra.mxu0 0.0
        %1319 = vmatprep.subr.mxu0 0.0
        %1320 = vmatpush1.xpose.msra.mxu0 0.0
        %1321 = vmatprep.subr.mxu0 0.0
        %1322 = vmatpush1.xpose.msra.mxu0 0.0
        %1323 = vmatprep.subr.mxu0 0.0
        %1324 = vmatpush1.xpose.msra.mxu0 0.0
        %1325 = vmatprep.subr.mxu0 0.0
        %1326 = vmatpush1.xpose.msra.mxu0 %v1293
        %1327 = vmatprep.subr.mxu0 0.0
        %1328 = vmatpush2.xpose.msra.mxu0 0.0
        %1329 = vmatprep.subr.mxu0 0.0
        %1330 = vmatpush2.xpose.msra.mxu0 0.0
        %1331 = vmatprep.subr.mxu0 0.0
        %1332 = vmatpush2.xpose.msra.mxu0 0.0
        %1333 = vmatprep.subr.mxu0 0.0
        %1334 = vmatpush2.xpose.msra.mxu0 0.0
        %1335 = vmatprep.subr.mxu0 0.0
        %1336 = vmatpush2.xpose.msra.mxu0 0.0
        %1337 = vmatprep.subr.mxu0 0.0
        %1338 = vmatpush2.xpose.msra.mxu0 0.0
        %1339 = vmatprep.subr.mxu0 0.0
        %1340 = vmatpush2.xpose.msra.mxu0 0.0
        %1341 = vmatprep.subr.mxu0 0.0
        %1342 = vmatpush2.xpose.msra.mxu0 0.0
        %1343 = vmatprep.subr.mxu0 0.0
        %1344 = vmatpush2.xpose.msra.mxu0 0.0
        %1345 = vmatprep.subr.mxu0 0.0
        %1346 = vmatpush2.xpose.msra.mxu0 0.0
        %1347 = vmatprep.subr.mxu0 0.0
        %1348 = vmatpush2.xpose.msra.mxu0 0.0
        %1349 = vmatprep.subr.mxu0 0.0
        %1350 = vmatpush2.xpose.msra.mxu0 0.0
        %1351 = vmatprep.subr.mxu0 0.0
        %1352 = vmatpush2.xpose.msra.mxu0 0.0
        %1353 = vmatprep.subr.mxu0 0.0
        %1354 = vmatpush2.xpose.msra.mxu0 0.0
        %1355 = vmatprep.subr.mxu0 0.0
        %1356 = vmatpush2.xpose.msra.mxu0 0.0
        %1357 = vmatprep.subr.mxu0 0.0
        %1358 = vmatpush2.xpose.msra.mxu0 0.0
        %1359 = vmatprep.mubr.f32.mxu0 0.0
        %1360 = vmatmul.mubr.f32.gmra.mxu0 %v1291
        %v1361 = vpop.f32.mrf.mxu0
        %v1362 = vadd.f32 0.0, %v1361
        %v1363 = vpop.f32.mrf.mxu0
        %1364 = vdwg.mxu0
        %1365 = vrot.lane.b32.xlu0 %v514, 120
        %v1366 = vpop.permute.xlu0 %1365
        %1367 = vrot.lane.b32.xlu0 %v526, 96
        %v1368 = vpop.permute.xlu0 %1367
        %v1369 = vsel %vm547, %v1366, 0
        %v1371 = vsel %vm547, %v1368, 0
        %1373 = vmatprep.subr.mxu0 0.0
        %1374 = vmatpush1.xpose.msra.mxu0 0.0
        %1375 = vmatprep.subr.mxu0 0.0
        %1376 = vmatpush1.xpose.msra.mxu0 0.0
        %1377 = vmatprep.subr.mxu0 0.0
        %1378 = vmatpush1.xpose.msra.mxu0 0.0
        %1379 = vmatprep.subr.mxu0 0.0
        %1380 = vmatpush1.xpose.msra.mxu0 0.0
        %1381 = vmatprep.subr.mxu0 0.0
        %1382 = vmatpush1.xpose.msra.mxu0 0.0
        %1383 = vmatprep.subr.mxu0 0.0
        %1384 = vmatpush1.xpose.msra.mxu0 0.0
        %1385 = vmatprep.subr.mxu0 0.0
        %1386 = vmatpush1.xpose.msra.mxu0 0.0
        %1387 = vmatprep.subr.mxu0 0.0
        %1388 = vmatpush1.xpose.msra.mxu0 0.0
        %1389 = vmatprep.subr.mxu0 0.0
        %1390 = vmatpush1.xpose.msra.mxu0 0.0
        %1391 = vmatprep.subr.mxu0 0.0
        %1392 = vmatpush1.xpose.msra.mxu0 0.0
        %1393 = vmatprep.subr.mxu0 0.0
        %1394 = vmatpush1.xpose.msra.mxu0 0.0
        %1395 = vmatprep.subr.mxu0 0.0
        %1396 = vmatpush1.xpose.msra.mxu0 0.0
        %1397 = vmatprep.subr.mxu0 0.0
        %1398 = vmatpush1.xpose.msra.mxu0 0.0
        %1399 = vmatprep.subr.mxu0 0.0
        %1400 = vmatpush1.xpose.msra.mxu0 0.0
        %1401 = vmatprep.subr.mxu0 0.0
        %1402 = vmatpush1.xpose.msra.mxu0 0.0
        %1403 = vmatprep.subr.mxu0 0.0
        %1404 = vmatpush1.xpose.msra.mxu0 %v1371
        %1405 = vmatprep.subr.mxu0 0.0
        %1406 = vmatpush2.xpose.msra.mxu0 0.0
        %1407 = vmatprep.subr.mxu0 0.0
        %1408 = vmatpush2.xpose.msra.mxu0 0.0
        %1409 = vmatprep.subr.mxu0 0.0
        %1410 = vmatpush2.xpose.msra.mxu0 0.0
        %1411 = vmatprep.subr.mxu0 0.0
        %1412 = vmatpush2.xpose.msra.mxu0 0.0
        %1413 = vmatprep.subr.mxu0 0.0
        %1414 = vmatpush2.xpose.msra.mxu0 0.0
        %1415 = vmatprep.subr.mxu0 0.0
        %1416 = vmatpush2.xpose.msra.mxu0 0.0
        %1417 = vmatprep.subr.mxu0 0.0
        %1418 = vmatpush2.xpose.msra.mxu0 0.0
        %1419 = vmatprep.subr.mxu0 0.0
        %1420 = vmatpush2.xpose.msra.mxu0 0.0
        %1421 = vmatprep.subr.mxu0 0.0
        %1422 = vmatpush2.xpose.msra.mxu0 0.0
        %1423 = vmatprep.subr.mxu0 0.0
        %1424 = vmatpush2.xpose.msra.mxu0 0.0
        %1425 = vmatprep.subr.mxu0 0.0
        %1426 = vmatpush2.xpose.msra.mxu0 0.0
        %1427 = vmatprep.subr.mxu0 0.0
        %1428 = vmatpush2.xpose.msra.mxu0 0.0
        %1429 = vmatprep.subr.mxu0 0.0
        %1430 = vmatpush2.xpose.msra.mxu0 0.0
        %1431 = vmatprep.subr.mxu0 0.0
        %1432 = vmatpush2.xpose.msra.mxu0 0.0
        %1433 = vmatprep.subr.mxu0 0.0
        %1434 = vmatpush2.xpose.msra.mxu0 0.0
        %1435 = vmatprep.subr.mxu0 0.0
        %1436 = vmatpush2.xpose.msra.mxu0 0.0
        %1437 = vmatprep.mubr.f32.mxu0 0.0
        %1438 = vmatmul.mubr.f32.gmra.mxu0 %v1369
        %v1439 = vpop.f32.mrf.mxu0
        %v1440 = vadd.f32 0.0, %v1439
        %v1441 = vpop.f32.mrf.mxu0
        %1442 = vdwg.mxu0
        %1443 = vrot.lane.b32.xlu0 %v515, 120
        %v1444 = vpop.permute.xlu0 %1443
        %1445 = vrot.lane.b32.xlu0 %v527, 96
        %v1446 = vpop.permute.xlu0 %1445
        %v1447 = vsel %vm547, %v1444, 0
        %v1449 = vsel %vm547, %v1446, 0
        %1451 = vmatprep.subr.mxu0 0.0
        %1452 = vmatpush1.xpose.msra.mxu0 0.0
        %1453 = vmatprep.subr.mxu0 0.0
        %1454 = vmatpush1.xpose.msra.mxu0 0.0
        %1455 = vmatprep.subr.mxu0 0.0
        %1456 = vmatpush1.xpose.msra.mxu0 0.0
        %1457 = vmatprep.subr.mxu0 0.0
        %1458 = vmatpush1.xpose.msra.mxu0 0.0
        %1459 = vmatprep.subr.mxu0 0.0
        %1460 = vmatpush1.xpose.msra.mxu0 0.0
        %1461 = vmatprep.subr.mxu0 0.0
        %1462 = vmatpush1.xpose.msra.mxu0 0.0
        %1463 = vmatprep.subr.mxu0 0.0
        %1464 = vmatpush1.xpose.msra.mxu0 0.0
        %1465 = vmatprep.subr.mxu0 0.0
        %1466 = vmatpush1.xpose.msra.mxu0 0.0
        %1467 = vmatprep.subr.mxu0 0.0
        %1468 = vmatpush1.xpose.msra.mxu0 0.0
        %1469 = vmatprep.subr.mxu0 0.0
        %1470 = vmatpush1.xpose.msra.mxu0 0.0
        %1471 = vmatprep.subr.mxu0 0.0
        %1472 = vmatpush1.xpose.msra.mxu0 0.0
        %1473 = vmatprep.subr.mxu0 0.0
        %1474 = vmatpush1.xpose.msra.mxu0 0.0
        %1475 = vmatprep.subr.mxu0 0.0
        %1476 = vmatpush1.xpose.msra.mxu0 0.0
        %1477 = vmatprep.subr.mxu0 0.0
        %1478 = vmatpush1.xpose.msra.mxu0 0.0
        %1479 = vmatprep.subr.mxu0 0.0
        %1480 = vmatpush1.xpose.msra.mxu0 0.0
        %1481 = vmatprep.subr.mxu0 0.0
        %1482 = vmatpush1.xpose.msra.mxu0 %v1449
        %1483 = vmatprep.subr.mxu0 0.0
        %1484 = vmatpush2.xpose.msra.mxu0 0.0
        %1485 = vmatprep.subr.mxu0 0.0
        %1486 = vmatpush2.xpose.msra.mxu0 0.0
        %1487 = vmatprep.subr.mxu0 0.0
        %1488 = vmatpush2.xpose.msra.mxu0 0.0
        %1489 = vmatprep.subr.mxu0 0.0
        %1490 = vmatpush2.xpose.msra.mxu0 0.0
        %1491 = vmatprep.subr.mxu0 0.0
        %1492 = vmatpush2.xpose.msra.mxu0 0.0
        %1493 = vmatprep.subr.mxu0 0.0
        %1494 = vmatpush2.xpose.msra.mxu0 0.0
        %1495 = vmatprep.subr.mxu0 0.0
        %1496 = vmatpush2.xpose.msra.mxu0 0.0
        %1497 = vmatprep.subr.mxu0 0.0
        %1498 = vmatpush2.xpose.msra.mxu0 0.0
        %1499 = vmatprep.subr.mxu0 0.0
        %1500 = vmatpush2.xpose.msra.mxu0 0.0
        %1501 = vmatprep.subr.mxu0 0.0
        %1502 = vmatpush2.xpose.msra.mxu0 0.0
        %1503 = vmatprep.subr.mxu0 0.0
        %1504 = vmatpush2.xpose.msra.mxu0 0.0
        %1505 = vmatprep.subr.mxu0 0.0
        %1506 = vmatpush2.xpose.msra.mxu0 0.0
        %1507 = vmatprep.subr.mxu0 0.0
        %1508 = vmatpush2.xpose.msra.mxu0 0.0
        %1509 = vmatprep.subr.mxu0 0.0
        %1510 = vmatpush2.xpose.msra.mxu0 0.0
        %1511 = vmatprep.subr.mxu0 0.0
        %1512 = vmatpush2.xpose.msra.mxu0 0.0
        %1513 = vmatprep.subr.mxu0 0.0
        %1514 = vmatpush2.xpose.msra.mxu0 0.0
        %1515 = vmatprep.mubr.f32.mxu0 0.0
        %1516 = vmatmul.mubr.f32.gmra.mxu0 %v1447
        %v1517 = vpop.f32.mrf.mxu0
        %v1518 = vadd.f32 0.0, %v1517
        %v1519 = vpop.f32.mrf.mxu0
        %1520 = vdwg.mxu0
        %v1521 = vsel %vm547, %v1284, -inf
        %1522 = vmax.xlane.f32.xlu0 %v1521
        %v1523 = vpop.xlane.xlu0 %1522
        %v1524 = vsel %vm547, %v1362, -inf
        %1525 = vmax.xlane.f32.xlu0 %v1524
        %v1526 = vpop.xlane.xlu0 %1525
        %v1527 = vsel %vm547, %v1440, -inf
        %1528 = vmax.xlane.f32.xlu0 %v1527
        %v1529 = vpop.xlane.xlu0 %1528
        %v1530 = vsel %vm547, %v1518, -inf
        %1531 = vmax.xlane.f32.xlu0 %v1530
        %v1532 = vpop.xlane.xlu0 %1531
        %v1533 = vsub.f32 %v1284, %v1523
        %v1534 = vsub.f32 %v1362, %v1526
        %v1535 = vsub.f32 %v1440, %v1529
        %v1536 = vsub.f32 %v1518, %v1532
        %v1537 = vmul.f32 %v1533, 1.442695
        %v1538 = vpow.pop %v1537
        %v1539 = vmul.f32 %v1534, 1.442695
        %v1540 = vpow.pop %v1539
        %v1541 = vmul.f32 %v1535, 1.442695
        %v1542 = vpow.pop %v1541
        %v1543 = vmul.f32 %v1536, 1.442695
        %v1544 = vpow.pop %v1543
        %v1545 = vsel %vm547, %v1538, 0.0
        %1546 = vadd.xlane.f32.xlu0 %v1545
        %v1547 = vpop.xlane.xlu0 %1546
        %v1548 = vsel %vm547, %v1540, 0.0
        %1549 = vadd.xlane.f32.xlu0 %v1548
        %v1550 = vpop.xlane.xlu0 %1549
        %v1551 = vsel %vm547, %v1542, 0.0
        %1552 = vadd.xlane.f32.xlu0 %v1551
        %v1553 = vpop.xlane.xlu0 %1552
        %v1554 = vsel %vm547, %v1544, 0.0
        %1555 = vadd.xlane.f32.xlu0 %v1554
        %v1556 = vpop.xlane.xlu0 %1555
        %v1557 = vrcp.pop %v1547
        %v1558 = vmul.f32 %v1538, %v1557
        %v1559 = vrcp.pop %v1550
        %v1560 = vmul.f32 %v1540, %v1559
        %v1561 = vrcp.pop %v1553
        %v1562 = vmul.f32 %v1542, %v1561
        %v1563 = vrcp.pop %v1556
        %v1564 = vmul.f32 %v1544, %v1563
        %1565 = vrot.lane.b32.xlu0 %v536, 72
        %v1566 = vpop.permute.xlu0 %1565
        %v1569 = vsel %vm547, %v1558, 0
        %1571 = vmatprep.subr.mxu0 0.0
        %1572 = vmatpush1.msra.mxu0 0.0
        %1573 = vmatprep.subr.mxu0 0.0
        %1574 = vmatpush1.msra.mxu0 0.0
        %1575 = vmatprep.subr.mxu0 0.0
        %1576 = vmatpush1.msra.mxu0 0.0
        %1577 = vmatprep.subr.mxu0 0.0
        %1578 = vmatpush1.msra.mxu0 0.0
        %1579 = vmatprep.subr.mxu0 0.0
        %1580 = vmatpush1.msra.mxu0 0.0
        %1581 = vmatprep.subr.mxu0 0.0
        %1582 = vmatpush1.msra.mxu0 0.0
        %1583 = vmatprep.subr.mxu0 0.0
        %1584 = vmatpush1.msra.mxu0 0.0
        %1585 = vmatprep.subr.mxu0 0.0
        %1586 = vmatpush1.msra.mxu0 0.0
        %1587 = vmatprep.subr.mxu0 0.0
        %1588 = vmatpush1.msra.mxu0 0.0
        %1589 = vmatprep.subr.mxu0 0.0
        %1590 = vmatpush1.msra.mxu0 0.0
        %1591 = vmatprep.subr.mxu0 0.0
        %1592 = vmatpush1.msra.mxu0 0.0
        %1593 = vmatprep.subr.mxu0 0.0
        %1594 = vmatpush1.msra.mxu0 0.0
        %1595 = vmatprep.subr.mxu0 0.0
        %1596 = vmatpush1.msra.mxu0 0.0
        %1597 = vmatprep.subr.mxu0 0.0
        %1598 = vmatpush1.msra.mxu0 0.0
        %1599 = vmatprep.subr.mxu0 0.0
        %1600 = vmatpush1.msra.mxu0 0.0
        %1601 = vmatprep.subr.mxu0 0.0
        %1602 = vmatpush1.msra.mxu0 %v1566
        %1603 = vmatprep.subr.mxu0 0.0
        %1604 = vmatpush2.msra.mxu0 0.0
        %1605 = vmatprep.subr.mxu0 0.0
        %1606 = vmatpush2.msra.mxu0 0.0
        %1607 = vmatprep.subr.mxu0 0.0
        %1608 = vmatpush2.msra.mxu0 0.0
        %1609 = vmatprep.subr.mxu0 0.0
        %1610 = vmatpush2.msra.mxu0 0.0
        %1611 = vmatprep.subr.mxu0 0.0
        %1612 = vmatpush2.msra.mxu0 0.0
        %1613 = vmatprep.subr.mxu0 0.0
        %1614 = vmatpush2.msra.mxu0 0.0
        %1615 = vmatprep.subr.mxu0 0.0
        %1616 = vmatpush2.msra.mxu0 0.0
        %1617 = vmatprep.subr.mxu0 0.0
        %1618 = vmatpush2.msra.mxu0 0.0
        %1619 = vmatprep.subr.mxu0 0.0
        %1620 = vmatpush2.msra.mxu0 0.0
        %1621 = vmatprep.subr.mxu0 0.0
        %1622 = vmatpush2.msra.mxu0 0.0
        %1623 = vmatprep.subr.mxu0 0.0
        %1624 = vmatpush2.msra.mxu0 0.0
        %1625 = vmatprep.subr.mxu0 0.0
        %1626 = vmatpush2.msra.mxu0 0.0
        %1627 = vmatprep.subr.mxu0 0.0
        %1628 = vmatpush2.msra.mxu0 0.0
        %1629 = vmatprep.subr.mxu0 0.0
        %1630 = vmatpush2.msra.mxu0 0.0
        %1631 = vmatprep.subr.mxu0 0.0
        %1632 = vmatpush2.msra.mxu0 0.0
        %1633 = vmatprep.subr.mxu0 0.0
        %1634 = vmatpush2.msra.mxu0 0.0
        %1635 = vmatprep.mubr.f32.mxu0 0.0
        %1636 = vmatmul.mubr.f32.gmra.mxu0 %v1569
        %v1637 = vpop.f32.mrf.mxu0
        %v1638 = vadd.f32 0.0, %v1637
        %v1639 = vpop.f32.mrf.mxu0
        %1640 = vdwg.mxu0
        %1641 = vrot.lane.b32.xlu0 %v537, 72
        %v1642 = vpop.permute.xlu0 %1641
        %v1645 = vsel %vm547, %v1560, 0
        %1647 = vmatprep.subr.mxu0 0.0
        %1648 = vmatpush1.msra.mxu0 0.0
        %1649 = vmatprep.subr.mxu0 0.0
        %1650 = vmatpush1.msra.mxu0 0.0
        %1651 = vmatprep.subr.mxu0 0.0
        %1652 = vmatpush1.msra.mxu0 0.0
        %1653 = vmatprep.subr.mxu0 0.0
        %1654 = vmatpush1.msra.mxu0 0.0
        %1655 = vmatprep.subr.mxu0 0.0
        %1656 = vmatpush1.msra.mxu0 0.0
        %1657 = vmatprep.subr.mxu0 0.0
        %1658 = vmatpush1.msra.mxu0 0.0
        %1659 = vmatprep.subr.mxu0 0.0
        %1660 = vmatpush1.msra.mxu0 0.0
        %1661 = vmatprep.subr.mxu0 0.0
        %1662 = vmatpush1.msra.mxu0 0.0
        %1663 = vmatprep.subr.mxu0 0.0
        %1664 = vmatpush1.msra.mxu0 0.0
        %1665 = vmatprep.subr.mxu0 0.0
        %1666 = vmatpush1.msra.mxu0 0.0
        %1667 = vmatprep.subr.mxu0 0.0
        %1668 = vmatpush1.msra.mxu0 0.0
        %1669 = vmatprep.subr.mxu0 0.0
        %1670 = vmatpush1.msra.mxu0 0.0
        %1671 = vmatprep.subr.mxu0 0.0
        %1672 = vmatpush1.msra.mxu0 0.0
        %1673 = vmatprep.subr.mxu0 0.0
        %1674 = vmatpush1.msra.mxu0 0.0
        %1675 = vmatprep.subr.mxu0 0.0
        %1676 = vmatpush1.msra.mxu0 0.0
        %1677 = vmatprep.subr.mxu0 0.0
        %1678 = vmatpush1.msra.mxu0 %v1642
        %1679 = vmatprep.subr.mxu0 0.0
        %1680 = vmatpush2.msra.mxu0 0.0
        %1681 = vmatprep.subr.mxu0 0.0
        %1682 = vmatpush2.msra.mxu0 0.0
        %1683 = vmatprep.subr.mxu0 0.0
        %1684 = vmatpush2.msra.mxu0 0.0
        %1685 = vmatprep.subr.mxu0 0.0
        %1686 = vmatpush2.msra.mxu0 0.0
        %1687 = vmatprep.subr.mxu0 0.0
        %1688 = vmatpush2.msra.mxu0 0.0
        %1689 = vmatprep.subr.mxu0 0.0
        %1690 = vmatpush2.msra.mxu0 0.0
        %1691 = vmatprep.subr.mxu0 0.0
        %1692 = vmatpush2.msra.mxu0 0.0
        %1693 = vmatprep.subr.mxu0 0.0
        %1694 = vmatpush2.msra.mxu0 0.0
        %1695 = vmatprep.subr.mxu0 0.0
        %1696 = vmatpush2.msra.mxu0 0.0
        %1697 = vmatprep.subr.mxu0 0.0
        %1698 = vmatpush2.msra.mxu0 0.0
        %1699 = vmatprep.subr.mxu0 0.0
        %1700 = vmatpush2.msra.mxu0 0.0
        %1701 = vmatprep.subr.mxu0 0.0
        %1702 = vmatpush2.msra.mxu0 0.0
        %1703 = vmatprep.subr.mxu0 0.0
        %1704 = vmatpush2.msra.mxu0 0.0
        %1705 = vmatprep.subr.mxu0 0.0
        %1706 = vmatpush2.msra.mxu0 0.0
        %1707 = vmatprep.subr.mxu0 0.0
        %1708 = vmatpush2.msra.mxu0 0.0
        %1709 = vmatprep.subr.mxu0 0.0
        %1710 = vmatpush2.msra.mxu0 0.0
        %1711 = vmatprep.mubr.f32.mxu0 0.0
        %1712 = vmatmul.mubr.f32.gmra.mxu0 %v1645
        %v1713 = vpop.f32.mrf.mxu0
        %v1714 = vadd.f32 0.0, %v1713
        %v1715 = vpop.f32.mrf.mxu0
        %1716 = vdwg.mxu0
        %1717 = vrot.lane.b32.xlu0 %v538, 72
        %v1718 = vpop.permute.xlu0 %1717
        %v1721 = vsel %vm547, %v1562, 0
        %1723 = vmatprep.subr.mxu0 0.0
        %1724 = vmatpush1.msra.mxu0 0.0
        %1725 = vmatprep.subr.mxu0 0.0
        %1726 = vmatpush1.msra.mxu0 0.0
        %1727 = vmatprep.subr.mxu0 0.0
        %1728 = vmatpush1.msra.mxu0 0.0
        %1729 = vmatprep.subr.mxu0 0.0
        %1730 = vmatpush1.msra.mxu0 0.0
        %1731 = vmatprep.subr.mxu0 0.0
        %1732 = vmatpush1.msra.mxu0 0.0
        %1733 = vmatprep.subr.mxu0 0.0
        %1734 = vmatpush1.msra.mxu0 0.0
        %1735 = vmatprep.subr.mxu0 0.0
        %1736 = vmatpush1.msra.mxu0 0.0
        %1737 = vmatprep.subr.mxu0 0.0
        %1738 = vmatpush1.msra.mxu0 0.0
        %1739 = vmatprep.subr.mxu0 0.0
        %1740 = vmatpush1.msra.mxu0 0.0
        %1741 = vmatprep.subr.mxu0 0.0
        %1742 = vmatpush1.msra.mxu0 0.0
        %1743 = vmatprep.subr.mxu0 0.0
        %1744 = vmatpush1.msra.mxu0 0.0
        %1745 = vmatprep.subr.mxu0 0.0
        %1746 = vmatpush1.msra.mxu0 0.0
        %1747 = vmatprep.subr.mxu0 0.0
        %1748 = vmatpush1.msra.mxu0 0.0
        %1749 = vmatprep.subr.mxu0 0.0
        %1750 = vmatpush1.msra.mxu0 0.0
        %1751 = vmatprep.subr.mxu0 0.0
        %1752 = vmatpush1.msra.mxu0 0.0
        %1753 = vmatprep.subr.mxu0 0.0
        %1754 = vmatpush1.msra.mxu0 %v1718
        %1755 = vmatprep.subr.mxu0 0.0
        %1756 = vmatpush2.msra.mxu0 0.0
        %1757 = vmatprep.subr.mxu0 0.0
        %1758 = vmatpush2.msra.mxu0 0.0
        %1759 = vmatprep.subr.mxu0 0.0
        %1760 = vmatpush2.msra.mxu0 0.0
        %1761 = vmatprep.subr.mxu0 0.0
        %1762 = vmatpush2.msra.mxu0 0.0
        %1763 = vmatprep.subr.mxu0 0.0
        %1764 = vmatpush2.msra.mxu0 0.0
        %1765 = vmatprep.subr.mxu0 0.0
        %1766 = vmatpush2.msra.mxu0 0.0
        %1767 = vmatprep.subr.mxu0 0.0
        %1768 = vmatpush2.msra.mxu0 0.0
        %1769 = vmatprep.subr.mxu0 0.0
        %1770 = vmatpush2.msra.mxu0 0.0
        %1771 = vmatprep.subr.mxu0 0.0
        %1772 = vmatpush2.msra.mxu0 0.0
        %1773 = vmatprep.subr.mxu0 0.0
        %1774 = vmatpush2.msra.mxu0 0.0
        %1775 = vmatprep.subr.mxu0 0.0
        %1776 = vmatpush2.msra.mxu0 0.0
        %1777 = vmatprep.subr.mxu0 0.0
        %1778 = vmatpush2.msra.mxu0 0.0
        %1779 = vmatprep.subr.mxu0 0.0
        %1780 = vmatpush2.msra.mxu0 0.0
        %1781 = vmatprep.subr.mxu0 0.0
        %1782 = vmatpush2.msra.mxu0 0.0
        %1783 = vmatprep.subr.mxu0 0.0
        %1784 = vmatpush2.msra.mxu0 0.0
        %1785 = vmatprep.subr.mxu0 0.0
        %1786 = vmatpush2.msra.mxu0 0.0
        %1787 = vmatprep.mubr.f32.mxu0 0.0
        %1788 = vmatmul.mubr.f32.gmra.mxu0 %v1721
        %v1789 = vpop.f32.mrf.mxu0
        %v1790 = vadd.f32 0.0, %v1789
        %v1791 = vpop.f32.mrf.mxu0
        %1792 = vdwg.mxu0
        %1793 = vrot.lane.b32.xlu0 %v539, 72
        %v1794 = vpop.permute.xlu0 %1793
        %v1797 = vsel %vm547, %v1564, 0
        %1799 = vmatprep.subr.mxu0 0.0
        %1800 = vmatpush1.msra.mxu0 0.0
        %1801 = vmatprep.subr.mxu0 0.0
        %1802 = vmatpush1.msra.mxu0 0.0
        %1803 = vmatprep.subr.mxu0 0.0
        %1804 = vmatpush1.msra.mxu0 0.0
        %1805 = vmatprep.subr.mxu0 0.0
        %1806 = vmatpush1.msra.mxu0 0.0
        %1807 = vmatprep.subr.mxu0 0.0
        %1808 = vmatpush1.msra.mxu0 0.0
        %1809 = vmatprep.subr.mxu0 0.0
        %1810 = vmatpush1.msra.mxu0 0.0
        %1811 = vmatprep.subr.mxu0 0.0
        %1812 = vmatpush1.msra.mxu0 0.0
        %1813 = vmatprep.subr.mxu0 0.0
        %1814 = vmatpush1.msra.mxu0 0.0
        %1815 = vmatprep.subr.mxu0 0.0
        %1816 = vmatpush1.msra.mxu0 0.0
        %1817 = vmatprep.subr.mxu0 0.0
        %1818 = vmatpush1.msra.mxu0 0.0
        %1819 = vmatprep.subr.mxu0 0.0
        %1820 = vmatpush1.msra.mxu0 0.0
        %1821 = vmatprep.subr.mxu0 0.0
        %1822 = vmatpush1.msra.mxu0 0.0
        %1823 = vmatprep.subr.mxu0 0.0
        %1824 = vmatpush1.msra.mxu0 0.0
        %1825 = vmatprep.subr.mxu0 0.0
        %1826 = vmatpush1.msra.mxu0 0.0
        %1827 = vmatprep.subr.mxu0 0.0
        %1828 = vmatpush1.msra.mxu0 0.0
        %1829 = vmatprep.subr.mxu0 0.0
        %1830 = vmatpush1.msra.mxu0 %v1794
        %1831 = vmatprep.subr.mxu0 0.0
        %1832 = vmatpush2.msra.mxu0 0.0
        %1833 = vmatprep.subr.mxu0 0.0
        %1834 = vmatpush2.msra.mxu0 0.0
        %1835 = vmatprep.subr.mxu0 0.0
        %1836 = vmatpush2.msra.mxu0 0.0
        %1837 = vmatprep.subr.mxu0 0.0
        %1838 = vmatpush2.msra.mxu0 0.0
        %1839 = vmatprep.subr.mxu0 0.0
        %1840 = vmatpush2.msra.mxu0 0.0
        %1841 = vmatprep.subr.mxu0 0.0
        %1842 = vmatpush2.msra.mxu0 0.0
        %1843 = vmatprep.subr.mxu0 0.0
        %1844 = vmatpush2.msra.mxu0 0.0
        %1845 = vmatprep.subr.mxu0 0.0
        %1846 = vmatpush2.msra.mxu0 0.0
        %1847 = vmatprep.subr.mxu0 0.0
        %1848 = vmatpush2.msra.mxu0 0.0
        %1849 = vmatprep.subr.mxu0 0.0
        %1850 = vmatpush2.msra.mxu0 0.0
        %1851 = vmatprep.subr.mxu0 0.0
        %1852 = vmatpush2.msra.mxu0 0.0
        %1853 = vmatprep.subr.mxu0 0.0
        %1854 = vmatpush2.msra.mxu0 0.0
        %1855 = vmatprep.subr.mxu0 0.0
        %1856 = vmatpush2.msra.mxu0 0.0
        %1857 = vmatprep.subr.mxu0 0.0
        %1858 = vmatpush2.msra.mxu0 0.0
        %1859 = vmatprep.subr.mxu0 0.0
        %1860 = vmatpush2.msra.mxu0 0.0
        %1861 = vmatprep.subr.mxu0 0.0
        %1862 = vmatpush2.msra.mxu0 0.0
        %1863 = vmatprep.mubr.f32.mxu0 0.0
        %1864 = vmatmul.mubr.f32.gmra.mxu0 %v1797
        %v1865 = vpop.f32.mrf.mxu0
        %v1866 = vadd.f32 0.0, %v1865
        %v1867 = vpop.f32.mrf.mxu0
        %1868 = vdwg.mxu0
        %v1870 = vsel %vm547, %v1638, 0
        %v1873 = vsel %vm547, %v1714, 0
        %v1876 = vsel %vm547, %v1790, 0
        %v1879 = vsel %vm547, %v1866, 0
        %1881 = vmatprep.subr.mxu0 0.0
        %1882 = vmatpush1.msra.mxu0 0.0
        %1883 = vmatprep.subr.mxu0 0.0
        %1884 = vmatpush1.msra.mxu0 0.0
        %1885 = vmatprep.subr.mxu0 0.0
        %1886 = vmatpush1.msra.mxu0 0.0
        %1887 = vmatprep.subr.mxu0 0.0
        %1888 = vmatpush1.msra.mxu0 0.0
        %1889 = vmatprep.subr.mxu0 0.0
        %1890 = vmatpush1.msra.mxu0 0.0
        %1891 = vmatprep.subr.mxu0 0.0
        %1892 = vmatpush1.msra.mxu0 0.0
        %1893 = vmatprep.subr.mxu0 0.0
        %1894 = vmatpush1.msra.mxu0 0.0
        %1895 = vmatprep.subr.mxu0 0.0
        %1896 = vmatpush1.msra.mxu0 0.0
        %1897 = vmatprep.subr.mxu0 0.0
        %1898 = vmatpush1.msra.mxu0 0.0
        %1899 = vmatprep.subr.mxu0 0.0
        %1900 = vmatpush1.msra.mxu0 0.0
        %1901 = vmatprep.subr.mxu0 0.0
        %1902 = vmatpush1.msra.mxu0 0.0
        %1903 = vmatprep.subr.mxu0 0.0
        %1904 = vmatpush1.msra.mxu0 0.0
        %1905 = vmatprep.subr.mxu0 0.0
        %1906 = vmatpush1.msra.mxu0 0.0
        %1907 = vmatprep.subr.mxu0 0.0
        %1908 = vmatpush1.msra.mxu0 0.0
        %1909 = vmatprep.subr.mxu0 0.0
        %1910 = vmatpush1.msra.mxu0 0.0
        %1911 = vmatprep.subr.mxu0 0.0
        %1912 = vmatpush1.msra.mxu0 %v542
        %1913 = vmatprep.subr.mxu0 0.0
        %1914 = vmatpush2.msra.mxu0 0.0
        %1915 = vmatprep.subr.mxu0 0.0
        %1916 = vmatpush2.msra.mxu0 0.0
        %1917 = vmatprep.subr.mxu0 0.0
        %1918 = vmatpush2.msra.mxu0 0.0
        %1919 = vmatprep.subr.mxu0 0.0
        %1920 = vmatpush2.msra.mxu0 0.0
        %1921 = vmatprep.subr.mxu0 0.0
        %1922 = vmatpush2.msra.mxu0 0.0
        %1923 = vmatprep.subr.mxu0 0.0
        %1924 = vmatpush2.msra.mxu0 0.0
        %1925 = vmatprep.subr.mxu0 0.0
        %1926 = vmatpush2.msra.mxu0 0.0
        %1927 = vmatprep.subr.mxu0 0.0
        %1928 = vmatpush2.msra.mxu0 0.0
        %1929 = vmatprep.subr.mxu0 0.0
        %1930 = vmatpush2.msra.mxu0 0.0
        %1931 = vmatprep.subr.mxu0 0.0
        %1932 = vmatpush2.msra.mxu0 0.0
        %1933 = vmatprep.subr.mxu0 0.0
        %1934 = vmatpush2.msra.mxu0 0.0
        %1935 = vmatprep.subr.mxu0 0.0
        %1936 = vmatpush2.msra.mxu0 0.0
        %1937 = vmatprep.subr.mxu0 0.0
        %1938 = vmatpush2.msra.mxu0 0.0
        %1939 = vmatprep.subr.mxu0 0.0
        %1940 = vmatpush2.msra.mxu0 0.0
        %1941 = vmatprep.subr.mxu0 0.0
        %1942 = vmatpush2.msra.mxu0 0.0
        %1943 = vmatprep.subr.mxu0 0.0
        %1944 = vmatpush2.msra.mxu0 0.0
        %1945 = vmatprep.mubr.f32.mxu0 0.0
        %1946 = vmatmul.mubr.f32.gmra.mxu0 %v1870
        %v1947 = vpop.f32.mrf.mxu0
        %v1948 = vadd.f32 0.0, %v1947
        %v1949 = vpop.f32.mrf.mxu0
        %1950 = vmatprep.mubr.f32.mxu0 0.0
        %1951 = vmatmul.mubr.f32.gmra.mxu0 %v1873
        %v1952 = vpop.f32.mrf.mxu0
        %v1953 = vadd.f32 0.0, %v1952
        %v1954 = vpop.f32.mrf.mxu0
        %1955 = vmatprep.mubr.f32.mxu0 0.0
        %1956 = vmatmul.mubr.f32.gmra.mxu0 %v1876
        %v1957 = vpop.f32.mrf.mxu0
        %v1958 = vadd.f32 0.0, %v1957
        %v1959 = vpop.f32.mrf.mxu0
        %1960 = vmatprep.mubr.f32.mxu0 0.0
        %1961 = vmatmul.mubr.f32.gmra.mxu0 %v1879
        %v1962 = vpop.f32.mrf.mxu0
        %v1963 = vadd.f32 0.0, %v1962
        %v1964 = vpop.f32.mrf.mxu0
        %1965 = vdwg.mxu0
        %v1967 = vsel %vm547, %v975, 0
        %v1970 = vsel %vm547, %v1052, 0
        %v1973 = vsel %vm547, %v1129, 0
        %v1976 = vsel %vm547, %v1206, 0
        %1978 = vmatprep.subr.mxu0 0.0
        %1979 = vmatpush1.msra.mxu0 0.0
        %1980 = vmatprep.subr.mxu0 0.0
        %1981 = vmatpush1.msra.mxu0 0.0
        %1982 = vmatprep.subr.mxu0 0.0
        %1983 = vmatpush1.msra.mxu0 0.0
        %1984 = vmatprep.subr.mxu0 0.0
        %1985 = vmatpush1.msra.mxu0 0.0
        %1986 = vmatprep.subr.mxu0 0.0
        %1987 = vmatpush1.msra.mxu0 0.0
        %1988 = vmatprep.subr.mxu0 0.0
        %1989 = vmatpush1.msra.mxu0 0.0
        %1990 = vmatprep.subr.mxu0 0.0
        %1991 = vmatpush1.msra.mxu0 0.0
        %1992 = vmatprep.subr.mxu0 0.0
        %1993 = vmatpush1.msra.mxu0 0.0
        %1994 = vmatprep.subr.mxu0 0.0
        %1995 = vmatpush1.msra.mxu0 0.0
        %1996 = vmatprep.subr.mxu0 0.0
        %1997 = vmatpush1.msra.mxu0 0.0
        %1998 = vmatprep.subr.mxu0 0.0
        %1999 = vmatpush1.msra.mxu0 0.0
        %2000 = vmatprep.subr.mxu0 0.0
        %2001 = vmatpush1.msra.mxu0 0.0
        %2002 = vmatprep.subr.mxu0 0.0
        %2003 = vmatpush1.msra.mxu0 0.0
        %2004 = vmatprep.subr.mxu0 0.0
        %2005 = vmatpush1.msra.mxu0 0.0
        %2006 = vmatprep.subr.mxu0 0.0
        %2007 = vmatpush1.msra.mxu0 0.0
        %2008 = vmatprep.subr.mxu0 0.0
        %2009 = vmatpush1.msra.mxu0 %v541
        %2010 = vmatprep.subr.mxu0 0.0
        %2011 = vmatpush2.msra.mxu0 0.0
        %2012 = vmatprep.subr.mxu0 0.0
        %2013 = vmatpush2.msra.mxu0 0.0
        %2014 = vmatprep.subr.mxu0 0.0
        %2015 = vmatpush2.msra.mxu0 0.0
        %2016 = vmatprep.subr.mxu0 0.0
        %2017 = vmatpush2.msra.mxu0 0.0
        %2018 = vmatprep.subr.mxu0 0.0
        %2019 = vmatpush2.msra.mxu0 0.0
        %2020 = vmatprep.subr.mxu0 0.0
        %2021 = vmatpush2.msra.mxu0 0.0
        %2022 = vmatprep.subr.mxu0 0.0
        %2023 = vmatpush2.msra.mxu0 0.0
        %2024 = vmatprep.subr.mxu0 0.0
        %2025 = vmatpush2.msra.mxu0 0.0
        %2026 = vmatprep.subr.mxu0 0.0
        %2027 = vmatpush2.msra.mxu0 0.0
        %2028 = vmatprep.subr.mxu0 0.0
        %2029 = vmatpush2.msra.mxu0 0.0
        %2030 = vmatprep.subr.mxu0 0.0
        %2031 = vmatpush2.msra.mxu0 0.0
        %2032 = vmatprep.subr.mxu0 0.0
        %2033 = vmatpush2.msra.mxu0 0.0
        %2034 = vmatprep.subr.mxu0 0.0
        %2035 = vmatpush2.msra.mxu0 0.0
        %2036 = vmatprep.subr.mxu0 0.0
        %2037 = vmatpush2.msra.mxu0 0.0
        %2038 = vmatprep.subr.mxu0 0.0
        %2039 = vmatpush2.msra.mxu0 0.0
        %2040 = vmatprep.subr.mxu0 0.0
        %2041 = vmatpush2.msra.mxu0 0.0
        %2042 = vmatprep.mubr.f32.mxu0 0.0
        %2043 = vmatmul.mubr.f32.gmra.mxu0 %v1967
        %v2044 = vpop.f32.mrf.mxu0
        %v2045 = vadd.f32 %v1948, %v2044
        %v2046 = vpop.f32.mrf.mxu0
        %2047 = vmatprep.mubr.f32.mxu0 0.0
        %2048 = vmatmul.mubr.f32.gmra.mxu0 %v1970
        %v2049 = vpop.f32.mrf.mxu0
        %v2050 = vadd.f32 %v1953, %v2049
        %v2051 = vpop.f32.mrf.mxu0
        %2052 = vmatprep.mubr.f32.mxu0 0.0
        %2053 = vmatmul.mubr.f32.gmra.mxu0 %v1973
        %v2054 = vpop.f32.mrf.mxu0
        %v2055 = vadd.f32 %v1958, %v2054
        %v2056 = vpop.f32.mrf.mxu0
        %2057 = vmatprep.mubr.f32.mxu0 0.0
        %2058 = vmatmul.mubr.f32.gmra.mxu0 %v1976
        %v2059 = vpop.f32.mrf.mxu0
        %v2060 = vadd.f32 %v1963, %v2059
        %v2061 = vpop.f32.mrf.mxu0
        %2062 = vdwg.mxu0
        %2063 = vrot.lane.b32.xlu0 %v512, 112
        %v2064 = vpop.permute.xlu0 %2063
        %2065 = vrot.lane.b32.xlu0 %v524, 88
        %v2066 = vpop.permute.xlu0 %2065
        %v2067 = vsel %vm547, %v2064, 0
        %v2069 = vsel %vm547, %v2066, 0
        %2071 = vmatprep.subr.mxu0 0.0
        %2072 = vmatpush1.xpose.msra.mxu0 0.0
        %2073 = vmatprep.subr.mxu0 0.0
        %2074 = vmatpush1.xpose.msra.mxu0 0.0
        %2075 = vmatprep.subr.mxu0 0.0
        %2076 = vmatpush1.xpose.msra.mxu0 0.0
        %2077 = vmatprep.subr.mxu0 0.0
        %2078 = vmatpush1.xpose.msra.mxu0 0.0
        %2079 = vmatprep.subr.mxu0 0.0
        %2080 = vmatpush1.xpose.msra.mxu0 0.0
        %2081 = vmatprep.subr.mxu0 0.0
        %2082 = vmatpush1.xpose.msra.mxu0 0.0
        %2083 = vmatprep.subr.mxu0 0.0
        %2084 = vmatpush1.xpose.msra.mxu0 0.0
        %2085 = vmatprep.subr.mxu0 0.0
        %2086 = vmatpush1.xpose.msra.mxu0 0.0
        %2087 = vmatprep.subr.mxu0 0.0
        %2088 = vmatpush1.xpose.msra.mxu0 0.0
        %2089 = vmatprep.subr.mxu0 0.0
        %2090 = vmatpush1.xpose.msra.mxu0 0.0
        %2091 = vmatprep.subr.mxu0 0.0
        %2092 = vmatpush1.xpose.msra.mxu0 0.0
        %2093 = vmatprep.subr.mxu0 0.0
        %2094 = vmatpush1.xpose.msra.mxu0 0.0
        %2095 = vmatprep.subr.mxu0 0.0
        %2096 = vmatpush1.xpose.msra.mxu0 0.0
        %2097 = vmatprep.subr.mxu0 0.0
        %2098 = vmatpush1.xpose.msra.mxu0 0.0
        %2099 = vmatprep.subr.mxu0 0.0
        %2100 = vmatpush1.xpose.msra.mxu0 0.0
        %2101 = vmatprep.subr.mxu0 0.0
        %2102 = vmatpush1.xpose.msra.mxu0 %v2069
        %2103 = vmatprep.subr.mxu0 0.0
        %2104 = vmatpush2.xpose.msra.mxu0 0.0
        %2105 = vmatprep.subr.mxu0 0.0
        %2106 = vmatpush2.xpose.msra.mxu0 0.0
        %2107 = vmatprep.subr.mxu0 0.0
        %2108 = vmatpush2.xpose.msra.mxu0 0.0
        %2109 = vmatprep.subr.mxu0 0.0
        %2110 = vmatpush2.xpose.msra.mxu0 0.0
        %2111 = vmatprep.subr.mxu0 0.0
        %2112 = vmatpush2.xpose.msra.mxu0 0.0
        %2113 = vmatprep.subr.mxu0 0.0
        %2114 = vmatpush2.xpose.msra.mxu0 0.0
        %2115 = vmatprep.subr.mxu0 0.0
        %2116 = vmatpush2.xpose.msra.mxu0 0.0
        %2117 = vmatprep.subr.mxu0 0.0
        %2118 = vmatpush2.xpose.msra.mxu0 0.0
        %2119 = vmatprep.subr.mxu0 0.0
        %2120 = vmatpush2.xpose.msra.mxu0 0.0
        %2121 = vmatprep.subr.mxu0 0.0
        %2122 = vmatpush2.xpose.msra.mxu0 0.0
        %2123 = vmatprep.subr.mxu0 0.0
        %2124 = vmatpush2.xpose.msra.mxu0 0.0
        %2125 = vmatprep.subr.mxu0 0.0
        %2126 = vmatpush2.xpose.msra.mxu0 0.0
        %2127 = vmatprep.subr.mxu0 0.0
        %2128 = vmatpush2.xpose.msra.mxu0 0.0
        %2129 = vmatprep.subr.mxu0 0.0
        %2130 = vmatpush2.xpose.msra.mxu0 0.0
        %2131 = vmatprep.subr.mxu0 0.0
        %2132 = vmatpush2.xpose.msra.mxu0 0.0
        %2133 = vmatprep.subr.mxu0 0.0
        %2134 = vmatpush2.xpose.msra.mxu0 0.0
        %2135 = vmatprep.mubr.f32.mxu0 0.0
        %2136 = vmatmul.mubr.f32.gmra.mxu0 %v2067
        %v2137 = vpop.f32.mrf.mxu0
        %v2138 = vadd.f32 0.0, %v2137
        %v2139 = vpop.f32.mrf.mxu0
        %2140 = vdwg.mxu0
        %2141 = vrot.lane.b32.xlu0 %v513, 112
        %v2142 = vpop.permute.xlu0 %2141
        %2143 = vrot.lane.b32.xlu0 %v525, 88
        %v2144 = vpop.permute.xlu0 %2143
        %v2145 = vsel %vm547, %v2142, 0
        %v2147 = vsel %vm547, %v2144, 0
        %2149 = vmatprep.subr.mxu0 0.0
        %2150 = vmatpush1.xpose.msra.mxu0 0.0
        %2151 = vmatprep.subr.mxu0 0.0
        %2152 = vmatpush1.xpose.msra.mxu0 0.0
        %2153 = vmatprep.subr.mxu0 0.0
        %2154 = vmatpush1.xpose.msra.mxu0 0.0
        %2155 = vmatprep.subr.mxu0 0.0
        %2156 = vmatpush1.xpose.msra.mxu0 0.0
        %2157 = vmatprep.subr.mxu0 0.0
        %2158 = vmatpush1.xpose.msra.mxu0 0.0
        %2159 = vmatprep.subr.mxu0 0.0
        %2160 = vmatpush1.xpose.msra.mxu0 0.0
        %2161 = vmatprep.subr.mxu0 0.0
        %2162 = vmatpush1.xpose.msra.mxu0 0.0
        %2163 = vmatprep.subr.mxu0 0.0
        %2164 = vmatpush1.xpose.msra.mxu0 0.0
        %2165 = vmatprep.subr.mxu0 0.0
        %2166 = vmatpush1.xpose.msra.mxu0 0.0
        %2167 = vmatprep.subr.mxu0 0.0
        %2168 = vmatpush1.xpose.msra.mxu0 0.0
        %2169 = vmatprep.subr.mxu0 0.0
        %2170 = vmatpush1.xpose.msra.mxu0 0.0
        %2171 = vmatprep.subr.mxu0 0.0
        %2172 = vmatpush1.xpose.msra.mxu0 0.0
        %2173 = vmatprep.subr.mxu0 0.0
        %2174 = vmatpush1.xpose.msra.mxu0 0.0
        %2175 = vmatprep.subr.mxu0 0.0
        %2176 = vmatpush1.xpose.msra.mxu0 0.0
        %2177 = vmatprep.subr.mxu0 0.0
        %2178 = vmatpush1.xpose.msra.mxu0 0.0
        %2179 = vmatprep.subr.mxu0 0.0
        %2180 = vmatpush1.xpose.msra.mxu0 %v2147
        %2181 = vmatprep.subr.mxu0 0.0
        %2182 = vmatpush2.xpose.msra.mxu0 0.0
        %2183 = vmatprep.subr.mxu0 0.0
        %2184 = vmatpush2.xpose.msra.mxu0 0.0
        %2185 = vmatprep.subr.mxu0 0.0
        %2186 = vmatpush2.xpose.msra.mxu0 0.0
        %2187 = vmatprep.subr.mxu0 0.0
        %2188 = vmatpush2.xpose.msra.mxu0 0.0
        %2189 = vmatprep.subr.mxu0 0.0
        %2190 = vmatpush2.xpose.msra.mxu0 0.0
        %2191 = vmatprep.subr.mxu0 0.0
        %2192 = vmatpush2.xpose.msra.mxu0 0.0
        %2193 = vmatprep.subr.mxu0 0.0
        %2194 = vmatpush2.xpose.msra.mxu0 0.0
        %2195 = vmatprep.subr.mxu0 0.0
        %2196 = vmatpush2.xpose.msra.mxu0 0.0
        %2197 = vmatprep.subr.mxu0 0.0
        %2198 = vmatpush2.xpose.msra.mxu0 0.0
        %2199 = vmatprep.subr.mxu0 0.0
        %2200 = vmatpush2.xpose.msra.mxu0 0.0
        %2201 = vmatprep.subr.mxu0 0.0
        %2202 = vmatpush2.xpose.msra.mxu0 0.0
        %2203 = vmatprep.subr.mxu0 0.0
        %2204 = vmatpush2.xpose.msra.mxu0 0.0
        %2205 = vmatprep.subr.mxu0 0.0
        %2206 = vmatpush2.xpose.msra.mxu0 0.0
        %2207 = vmatprep.subr.mxu0 0.0
        %2208 = vmatpush2.xpose.msra.mxu0 0.0
        %2209 = vmatprep.subr.mxu0 0.0
        %2210 = vmatpush2.xpose.msra.mxu0 0.0
        %2211 = vmatprep.subr.mxu0 0.0
        %2212 = vmatpush2.xpose.msra.mxu0 0.0
        %2213 = vmatprep.mubr.f32.mxu0 0.0
        %2214 = vmatmul.mubr.f32.gmra.mxu0 %v2145
        %v2215 = vpop.f32.mrf.mxu0
        %v2216 = vadd.f32 0.0, %v2215
        %v2217 = vpop.f32.mrf.mxu0
        %2218 = vdwg.mxu0
        %2219 = vrot.lane.b32.xlu0 %v514, 112
        %v2220 = vpop.permute.xlu0 %2219
        %2221 = vrot.lane.b32.xlu0 %v526, 88
        %v2222 = vpop.permute.xlu0 %2221
        %v2223 = vsel %vm547, %v2220, 0
        %v2225 = vsel %vm547, %v2222, 0
        %2227 = vmatprep.subr.mxu0 0.0
        %2228 = vmatpush1.xpose.msra.mxu0 0.0
        %2229 = vmatprep.subr.mxu0 0.0
        %2230 = vmatpush1.xpose.msra.mxu0 0.0
        %2231 = vmatprep.subr.mxu0 0.0
        %2232 = vmatpush1.xpose.msra.mxu0 0.0
        %2233 = vmatprep.subr.mxu0 0.0
        %2234 = vmatpush1.xpose.msra.mxu0 0.0
        %2235 = vmatprep.subr.mxu0 0.0
        %2236 = vmatpush1.xpose.msra.mxu0 0.0
        %2237 = vmatprep.subr.mxu0 0.0
        %2238 = vmatpush1.xpose.msra.mxu0 0.0
        %2239 = vmatprep.subr.mxu0 0.0
        %2240 = vmatpush1.xpose.msra.mxu0 0.0
        %2241 = vmatprep.subr.mxu0 0.0
        %2242 = vmatpush1.xpose.msra.mxu0 0.0
        %2243 = vmatprep.subr.mxu0 0.0
        %2244 = vmatpush1.xpose.msra.mxu0 0.0
        %2245 = vmatprep.subr.mxu0 0.0
        %2246 = vmatpush1.xpose.msra.mxu0 0.0
        %2247 = vmatprep.subr.mxu0 0.0
        %2248 = vmatpush1.xpose.msra.mxu0 0.0
        %2249 = vmatprep.subr.mxu0 0.0
        %2250 = vmatpush1.xpose.msra.mxu0 0.0
        %2251 = vmatprep.subr.mxu0 0.0
        %2252 = vmatpush1.xpose.msra.mxu0 0.0
        %2253 = vmatprep.subr.mxu0 0.0
        %2254 = vmatpush1.xpose.msra.mxu0 0.0
        %2255 = vmatprep.subr.mxu0 0.0
        %2256 = vmatpush1.xpose.msra.mxu0 0.0
        %2257 = vmatprep.subr.mxu0 0.0
        %2258 = vmatpush1.xpose.msra.mxu0 %v2225
        %2259 = vmatprep.subr.mxu0 0.0
        %2260 = vmatpush2.xpose.msra.mxu0 0.0
        %2261 = vmatprep.subr.mxu0 0.0
        %2262 = vmatpush2.xpose.msra.mxu0 0.0
        %2263 = vmatprep.subr.mxu0 0.0
        %2264 = vmatpush2.xpose.msra.mxu0 0.0
        %2265 = vmatprep.subr.mxu0 0.0
        %2266 = vmatpush2.xpose.msra.mxu0 0.0
        %2267 = vmatprep.subr.mxu0 0.0
        %2268 = vmatpush2.xpose.msra.mxu0 0.0
        %2269 = vmatprep.subr.mxu0 0.0
        %2270 = vmatpush2.xpose.msra.mxu0 0.0
        %2271 = vmatprep.subr.mxu0 0.0
        %2272 = vmatpush2.xpose.msra.mxu0 0.0
        %2273 = vmatprep.subr.mxu0 0.0
        %2274 = vmatpush2.xpose.msra.mxu0 0.0
        %2275 = vmatprep.subr.mxu0 0.0
        %2276 = vmatpush2.xpose.msra.mxu0 0.0
        %2277 = vmatprep.subr.mxu0 0.0
        %2278 = vmatpush2.xpose.msra.mxu0 0.0
        %2279 = vmatprep.subr.mxu0 0.0
        %2280 = vmatpush2.xpose.msra.mxu0 0.0
        %2281 = vmatprep.subr.mxu0 0.0
        %2282 = vmatpush2.xpose.msra.mxu0 0.0
        %2283 = vmatprep.subr.mxu0 0.0
        %2284 = vmatpush2.xpose.msra.mxu0 0.0
        %2285 = vmatprep.subr.mxu0 0.0
        %2286 = vmatpush2.xpose.msra.mxu0 0.0
        %2287 = vmatprep.subr.mxu0 0.0
        %2288 = vmatpush2.xpose.msra.mxu0 0.0
        %2289 = vmatprep.subr.mxu0 0.0
        %2290 = vmatpush2.xpose.msra.mxu0 0.0
        %2291 = vmatprep.mubr.f32.mxu0 0.0
        %2292 = vmatmul.mubr.f32.gmra.mxu0 %v2223
        %v2293 = vpop.f32.mrf.mxu0
        %v2294 = vadd.f32 0.0, %v2293
        %v2295 = vpop.f32.mrf.mxu0
        %2296 = vdwg.mxu0
        %2297 = vrot.lane.b32.xlu0 %v515, 112
        %v2298 = vpop.permute.xlu0 %2297
        %2299 = vrot.lane.b32.xlu0 %v527, 88
        %v2300 = vpop.permute.xlu0 %2299
        %v2301 = vsel %vm547, %v2298, 0
        %v2303 = vsel %vm547, %v2300, 0
        %2305 = vmatprep.subr.mxu0 0.0
        %2306 = vmatpush1.xpose.msra.mxu0 0.0
        %2307 = vmatprep.subr.mxu0 0.0
        %2308 = vmatpush1.xpose.msra.mxu0 0.0
        %2309 = vmatprep.subr.mxu0 0.0
        %2310 = vmatpush1.xpose.msra.mxu0 0.0
        %2311 = vmatprep.subr.mxu0 0.0
        %2312 = vmatpush1.xpose.msra.mxu0 0.0
        %2313 = vmatprep.subr.mxu0 0.0
        %2314 = vmatpush1.xpose.msra.mxu0 0.0
        %2315 = vmatprep.subr.mxu0 0.0
        %2316 = vmatpush1.xpose.msra.mxu0 0.0
        %2317 = vmatprep.subr.mxu0 0.0
        %2318 = vmatpush1.xpose.msra.mxu0 0.0
        %2319 = vmatprep.subr.mxu0 0.0
        %2320 = vmatpush1.xpose.msra.mxu0 0.0
        %2321 = vmatprep.subr.mxu0 0.0
        %2322 = vmatpush1.xpose.msra.mxu0 0.0
        %2323 = vmatprep.subr.mxu0 0.0
        %2324 = vmatpush1.xpose.msra.mxu0 0.0
        %2325 = vmatprep.subr.mxu0 0.0
        %2326 = vmatpush1.xpose.msra.mxu0 0.0
        %2327 = vmatprep.subr.mxu0 0.0
        %2328 = vmatpush1.xpose.msra.mxu0 0.0
        %2329 = vmatprep.subr.mxu0 0.0
        %2330 = vmatpush1.xpose.msra.mxu0 0.0
        %2331 = vmatprep.subr.mxu0 0.0
        %2332 = vmatpush1.xpose.msra.mxu0 0.0
        %2333 = vmatprep.subr.mxu0 0.0
        %2334 = vmatpush1.xpose.msra.mxu0 0.0
        %2335 = vmatprep.subr.mxu0 0.0
        %2336 = vmatpush1.xpose.msra.mxu0 %v2303
        %2337 = vmatprep.subr.mxu0 0.0
        %2338 = vmatpush2.xpose.msra.mxu0 0.0
        %2339 = vmatprep.subr.mxu0 0.0
        %2340 = vmatpush2.xpose.msra.mxu0 0.0
        %2341 = vmatprep.subr.mxu0 0.0
        %2342 = vmatpush2.xpose.msra.mxu0 0.0
        %2343 = vmatprep.subr.mxu0 0.0
        %2344 = vmatpush2.xpose.msra.mxu0 0.0
        %2345 = vmatprep.subr.mxu0 0.0
        %2346 = vmatpush2.xpose.msra.mxu0 0.0
        %2347 = vmatprep.subr.mxu0 0.0
        %2348 = vmatpush2.xpose.msra.mxu0 0.0
        %2349 = vmatprep.subr.mxu0 0.0
        %2350 = vmatpush2.xpose.msra.mxu0 0.0
        %2351 = vmatprep.subr.mxu0 0.0
        %2352 = vmatpush2.xpose.msra.mxu0 0.0
        %2353 = vmatprep.subr.mxu0 0.0
        %2354 = vmatpush2.xpose.msra.mxu0 0.0
        %2355 = vmatprep.subr.mxu0 0.0
        %2356 = vmatpush2.xpose.msra.mxu0 0.0
        %2357 = vmatprep.subr.mxu0 0.0
        %2358 = vmatpush2.xpose.msra.mxu0 0.0
        %2359 = vmatprep.subr.mxu0 0.0
        %2360 = vmatpush2.xpose.msra.mxu0 0.0
        %2361 = vmatprep.subr.mxu0 0.0
        %2362 = vmatpush2.xpose.msra.mxu0 0.0
        %2363 = vmatprep.subr.mxu0 0.0
        %2364 = vmatpush2.xpose.msra.mxu0 0.0
        %2365 = vmatprep.subr.mxu0 0.0
        %2366 = vmatpush2.xpose.msra.mxu0 0.0
        %2367 = vmatprep.subr.mxu0 0.0
        %2368 = vmatpush2.xpose.msra.mxu0 0.0
        %2369 = vmatprep.mubr.f32.mxu0 0.0
        %2370 = vmatmul.mubr.f32.gmra.mxu0 %v2301
        %v2371 = vpop.f32.mrf.mxu0
        %v2372 = vadd.f32 0.0, %v2371
        %v2373 = vpop.f32.mrf.mxu0
        %2374 = vdwg.mxu0
        %v2375 = vsel %vm547, %v2138, -inf
        %2376 = vmax.xlane.f32.xlu0 %v2375
        %v2377 = vpop.xlane.xlu0 %2376
        %v2378 = vsel %vm547, %v2216, -inf
        %2379 = vmax.xlane.f32.xlu0 %v2378
        %v2380 = vpop.xlane.xlu0 %2379
        %v2381 = vsel %vm547, %v2294, -inf
        %2382 = vmax.xlane.f32.xlu0 %v2381
        %v2383 = vpop.xlane.xlu0 %2382
        %v2384 = vsel %vm547, %v2372, -inf
        %2385 = vmax.xlane.f32.xlu0 %v2384
        %v2386 = vpop.xlane.xlu0 %2385
        %v2387 = vsub.f32 %v2138, %v2377
        %v2388 = vsub.f32 %v2216, %v2380
        %v2389 = vsub.f32 %v2294, %v2383
        %v2390 = vsub.f32 %v2372, %v2386
        %v2391 = vmul.f32 %v2387, 1.442695
        %v2392 = vpow.pop %v2391
        %v2393 = vmul.f32 %v2388, 1.442695
        %v2394 = vpow.pop %v2393
        %v2395 = vmul.f32 %v2389, 1.442695
        %v2396 = vpow.pop %v2395
        %v2397 = vmul.f32 %v2390, 1.442695
        %v2398 = vpow.pop %v2397
        %v2399 = vsel %vm547, %v2392, 0.0
        %2400 = vadd.xlane.f32.xlu0 %v2399
        %v2401 = vpop.xlane.xlu0 %2400
        %v2402 = vsel %vm547, %v2394, 0.0
        %2403 = vadd.xlane.f32.xlu0 %v2402
        %v2404 = vpop.xlane.xlu0 %2403
        %v2405 = vsel %vm547, %v2396, 0.0
        %2406 = vadd.xlane.f32.xlu0 %v2405
        %v2407 = vpop.xlane.xlu0 %2406
        %v2408 = vsel %vm547, %v2398, 0.0
        %2409 = vadd.xlane.f32.xlu0 %v2408
        %v2410 = vpop.xlane.xlu0 %2409
        %v2411 = vrcp.pop %v2401
        %v2412 = vmul.f32 %v2392, %v2411
        %v2413 = vrcp.pop %v2404
        %v2414 = vmul.f32 %v2394, %v2413
        %v2415 = vrcp.pop %v2407
        %v2416 = vmul.f32 %v2396, %v2415
        %v2417 = vrcp.pop %v2410
        %v2418 = vmul.f32 %v2398, %v2417
        %2419 = vrot.lane.b32.xlu0 %v536, 64
        %v2420 = vpop.permute.xlu0 %2419
        %v2423 = vsel %vm547, %v2412, 0
        %2425 = vmatprep.subr.mxu0 0.0
        %2426 = vmatpush1.msra.mxu0 0.0
        %2427 = vmatprep.subr.mxu0 0.0
        %2428 = vmatpush1.msra.mxu0 0.0
        %2429 = vmatprep.subr.mxu0 0.0
        %2430 = vmatpush1.msra.mxu0 0.0
        %2431 = vmatprep.subr.mxu0 0.0
        %2432 = vmatpush1.msra.mxu0 0.0
        %2433 = vmatprep.subr.mxu0 0.0
        %2434 = vmatpush1.msra.mxu0 0.0
        %2435 = vmatprep.subr.mxu0 0.0
        %2436 = vmatpush1.msra.mxu0 0.0
        %2437 = vmatprep.subr.mxu0 0.0
        %2438 = vmatpush1.msra.mxu0 0.0
        %2439 = vmatprep.subr.mxu0 0.0
        %2440 = vmatpush1.msra.mxu0 0.0
        %2441 = vmatprep.subr.mxu0 0.0
        %2442 = vmatpush1.msra.mxu0 0.0
        %2443 = vmatprep.subr.mxu0 0.0
        %2444 = vmatpush1.msra.mxu0 0.0
        %2445 = vmatprep.subr.mxu0 0.0
        %2446 = vmatpush1.msra.mxu0 0.0
        %2447 = vmatprep.subr.mxu0 0.0
        %2448 = vmatpush1.msra.mxu0 0.0
        %2449 = vmatprep.subr.mxu0 0.0
        %2450 = vmatpush1.msra.mxu0 0.0
        %2451 = vmatprep.subr.mxu0 0.0
        %2452 = vmatpush1.msra.mxu0 0.0
        %2453 = vmatprep.subr.mxu0 0.0
        %2454 = vmatpush1.msra.mxu0 0.0
        %2455 = vmatprep.subr.mxu0 0.0
        %2456 = vmatpush1.msra.mxu0 %v2420
        %2457 = vmatprep.subr.mxu0 0.0
        %2458 = vmatpush2.msra.mxu0 0.0
        %2459 = vmatprep.subr.mxu0 0.0
        %2460 = vmatpush2.msra.mxu0 0.0
        %2461 = vmatprep.subr.mxu0 0.0
        %2462 = vmatpush2.msra.mxu0 0.0
        %2463 = vmatprep.subr.mxu0 0.0
        %2464 = vmatpush2.msra.mxu0 0.0
        %2465 = vmatprep.subr.mxu0 0.0
        %2466 = vmatpush2.msra.mxu0 0.0
        %2467 = vmatprep.subr.mxu0 0.0
        %2468 = vmatpush2.msra.mxu0 0.0
        %2469 = vmatprep.subr.mxu0 0.0
        %2470 = vmatpush2.msra.mxu0 0.0
        %2471 = vmatprep.subr.mxu0 0.0
        %2472 = vmatpush2.msra.mxu0 0.0
        %2473 = vmatprep.subr.mxu0 0.0
        %2474 = vmatpush2.msra.mxu0 0.0
        %2475 = vmatprep.subr.mxu0 0.0
        %2476 = vmatpush2.msra.mxu0 0.0
        %2477 = vmatprep.subr.mxu0 0.0
        %2478 = vmatpush2.msra.mxu0 0.0
        %2479 = vmatprep.subr.mxu0 0.0
        %2480 = vmatpush2.msra.mxu0 0.0
        %2481 = vmatprep.subr.mxu0 0.0
        %2482 = vmatpush2.msra.mxu0 0.0
        %2483 = vmatprep.subr.mxu0 0.0
        %2484 = vmatpush2.msra.mxu0 0.0
        %2485 = vmatprep.subr.mxu0 0.0
        %2486 = vmatpush2.msra.mxu0 0.0
        %2487 = vmatprep.subr.mxu0 0.0
        %2488 = vmatpush2.msra.mxu0 0.0
        %2489 = vmatprep.mubr.f32.mxu0 0.0
        %2490 = vmatmul.mubr.f32.gmra.mxu0 %v2423
        %v2491 = vpop.f32.mrf.mxu0
        %v2492 = vadd.f32 0.0, %v2491
        %v2493 = vpop.f32.mrf.mxu0
        %2494 = vdwg.mxu0
        %2495 = vrot.lane.b32.xlu0 %v537, 64
        %v2496 = vpop.permute.xlu0 %2495
        %v2499 = vsel %vm547, %v2414, 0
        %2501 = vmatprep.subr.mxu0 0.0
        %2502 = vmatpush1.msra.mxu0 0.0
        %2503 = vmatprep.subr.mxu0 0.0
        %2504 = vmatpush1.msra.mxu0 0.0
        %2505 = vmatprep.subr.mxu0 0.0
        %2506 = vmatpush1.msra.mxu0 0.0
        %2507 = vmatprep.subr.mxu0 0.0
        %2508 = vmatpush1.msra.mxu0 0.0
        %2509 = vmatprep.subr.mxu0 0.0
        %2510 = vmatpush1.msra.mxu0 0.0
        %2511 = vmatprep.subr.mxu0 0.0
        %2512 = vmatpush1.msra.mxu0 0.0
        %2513 = vmatprep.subr.mxu0 0.0
        %2514 = vmatpush1.msra.mxu0 0.0
        %2515 = vmatprep.subr.mxu0 0.0
        %2516 = vmatpush1.msra.mxu0 0.0
        %2517 = vmatprep.subr.mxu0 0.0
        %2518 = vmatpush1.msra.mxu0 0.0
        %2519 = vmatprep.subr.mxu0 0.0
        %2520 = vmatpush1.msra.mxu0 0.0
        %2521 = vmatprep.subr.mxu0 0.0
        %2522 = vmatpush1.msra.mxu0 0.0
        %2523 = vmatprep.subr.mxu0 0.0
        %2524 = vmatpush1.msra.mxu0 0.0
        %2525 = vmatprep.subr.mxu0 0.0
        %2526 = vmatpush1.msra.mxu0 0.0
        %2527 = vmatprep.subr.mxu0 0.0
        %2528 = vmatpush1.msra.mxu0 0.0
        %2529 = vmatprep.subr.mxu0 0.0
        %2530 = vmatpush1.msra.mxu0 0.0
        %2531 = vmatprep.subr.mxu0 0.0
        %2532 = vmatpush1.msra.mxu0 %v2496
        %2533 = vmatprep.subr.mxu0 0.0
        %2534 = vmatpush2.msra.mxu0 0.0
        %2535 = vmatprep.subr.mxu0 0.0
        %2536 = vmatpush2.msra.mxu0 0.0
        %2537 = vmatprep.subr.mxu0 0.0
        %2538 = vmatpush2.msra.mxu0 0.0
        %2539 = vmatprep.subr.mxu0 0.0
        %2540 = vmatpush2.msra.mxu0 0.0
        %2541 = vmatprep.subr.mxu0 0.0
        %2542 = vmatpush2.msra.mxu0 0.0
        %2543 = vmatprep.subr.mxu0 0.0
        %2544 = vmatpush2.msra.mxu0 0.0
        %2545 = vmatprep.subr.mxu0 0.0
        %2546 = vmatpush2.msra.mxu0 0.0
        %2547 = vmatprep.subr.mxu0 0.0
        %2548 = vmatpush2.msra.mxu0 0.0
        %2549 = vmatprep.subr.mxu0 0.0
        %2550 = vmatpush2.msra.mxu0 0.0
        %2551 = vmatprep.subr.mxu0 0.0
        %2552 = vmatpush2.msra.mxu0 0.0
        %2553 = vmatprep.subr.mxu0 0.0
        %2554 = vmatpush2.msra.mxu0 0.0
        %2555 = vmatprep.subr.mxu0 0.0
        %2556 = vmatpush2.msra.mxu0 0.0
        %2557 = vmatprep.subr.mxu0 0.0
        %2558 = vmatpush2.msra.mxu0 0.0
        %2559 = vmatprep.subr.mxu0 0.0
        %2560 = vmatpush2.msra.mxu0 0.0
        %2561 = vmatprep.subr.mxu0 0.0
        %2562 = vmatpush2.msra.mxu0 0.0
        %2563 = vmatprep.subr.mxu0 0.0
        %2564 = vmatpush2.msra.mxu0 0.0
        %2565 = vmatprep.mubr.f32.mxu0 0.0
        %2566 = vmatmul.mubr.f32.gmra.mxu0 %v2499
        %v2567 = vpop.f32.mrf.mxu0
        %v2568 = vadd.f32 0.0, %v2567
        %v2569 = vpop.f32.mrf.mxu0
        %2570 = vdwg.mxu0
        %2571 = vrot.lane.b32.xlu0 %v538, 64
        %v2572 = vpop.permute.xlu0 %2571
        %v2575 = vsel %vm547, %v2416, 0
        %2577 = vmatprep.subr.mxu0 0.0
        %2578 = vmatpush1.msra.mxu0 0.0
        %2579 = vmatprep.subr.mxu0 0.0
        %2580 = vmatpush1.msra.mxu0 0.0
        %2581 = vmatprep.subr.mxu0 0.0
        %2582 = vmatpush1.msra.mxu0 0.0
        %2583 = vmatprep.subr.mxu0 0.0
        %2584 = vmatpush1.msra.mxu0 0.0
        %2585 = vmatprep.subr.mxu0 0.0
        %2586 = vmatpush1.msra.mxu0 0.0
        %2587 = vmatprep.subr.mxu0 0.0
        %2588 = vmatpush1.msra.mxu0 0.0
        %2589 = vmatprep.subr.mxu0 0.0
        %2590 = vmatpush1.msra.mxu0 0.0
        %2591 = vmatprep.subr.mxu0 0.0
        %2592 = vmatpush1.msra.mxu0 0.0
        %2593 = vmatprep.subr.mxu0 0.0
        %2594 = vmatpush1.msra.mxu0 0.0
        %2595 = vmatprep.subr.mxu0 0.0
        %2596 = vmatpush1.msra.mxu0 0.0
        %2597 = vmatprep.subr.mxu0 0.0
        %2598 = vmatpush1.msra.mxu0 0.0
        %2599 = vmatprep.subr.mxu0 0.0
        %2600 = vmatpush1.msra.mxu0 0.0
        %2601 = vmatprep.subr.mxu0 0.0
        %2602 = vmatpush1.msra.mxu0 0.0
        %2603 = vmatprep.subr.mxu0 0.0
        %2604 = vmatpush1.msra.mxu0 0.0
        %2605 = vmatprep.subr.mxu0 0.0
        %2606 = vmatpush1.msra.mxu0 0.0
        %2607 = vmatprep.subr.mxu0 0.0
        %2608 = vmatpush1.msra.mxu0 %v2572
        %2609 = vmatprep.subr.mxu0 0.0
        %2610 = vmatpush2.msra.mxu0 0.0
        %2611 = vmatprep.subr.mxu0 0.0
        %2612 = vmatpush2.msra.mxu0 0.0
        %2613 = vmatprep.subr.mxu0 0.0
        %2614 = vmatpush2.msra.mxu0 0.0
        %2615 = vmatprep.subr.mxu0 0.0
        %2616 = vmatpush2.msra.mxu0 0.0
        %2617 = vmatprep.subr.mxu0 0.0
        %2618 = vmatpush2.msra.mxu0 0.0
        %2619 = vmatprep.subr.mxu0 0.0
        %2620 = vmatpush2.msra.mxu0 0.0
        %2621 = vmatprep.subr.mxu0 0.0
        %2622 = vmatpush2.msra.mxu0 0.0
        %2623 = vmatprep.subr.mxu0 0.0
        %2624 = vmatpush2.msra.mxu0 0.0
        %2625 = vmatprep.subr.mxu0 0.0
        %2626 = vmatpush2.msra.mxu0 0.0
        %2627 = vmatprep.subr.mxu0 0.0
        %2628 = vmatpush2.msra.mxu0 0.0
        %2629 = vmatprep.subr.mxu0 0.0
        %2630 = vmatpush2.msra.mxu0 0.0
        %2631 = vmatprep.subr.mxu0 0.0
        %2632 = vmatpush2.msra.mxu0 0.0
        %2633 = vmatprep.subr.mxu0 0.0
        %2634 = vmatpush2.msra.mxu0 0.0
        %2635 = vmatprep.subr.mxu0 0.0
        %2636 = vmatpush2.msra.mxu0 0.0
        %2637 = vmatprep.subr.mxu0 0.0
        %2638 = vmatpush2.msra.mxu0 0.0
        %2639 = vmatprep.subr.mxu0 0.0
        %2640 = vmatpush2.msra.mxu0 0.0
        %2641 = vmatprep.mubr.f32.mxu0 0.0
        %2642 = vmatmul.mubr.f32.gmra.mxu0 %v2575
        %v2643 = vpop.f32.mrf.mxu0
        %v2644 = vadd.f32 0.0, %v2643
        %v2645 = vpop.f32.mrf.mxu0
        %2646 = vdwg.mxu0
        %2647 = vrot.lane.b32.xlu0 %v539, 64
        %v2648 = vpop.permute.xlu0 %2647
        %v2651 = vsel %vm547, %v2418, 0
        %2653 = vmatprep.subr.mxu0 0.0
        %2654 = vmatpush1.msra.mxu0 0.0
        %2655 = vmatprep.subr.mxu0 0.0
        %2656 = vmatpush1.msra.mxu0 0.0
        %2657 = vmatprep.subr.mxu0 0.0
        %2658 = vmatpush1.msra.mxu0 0.0
        %2659 = vmatprep.subr.mxu0 0.0
        %2660 = vmatpush1.msra.mxu0 0.0
        %2661 = vmatprep.subr.mxu0 0.0
        %2662 = vmatpush1.msra.mxu0 0.0
        %2663 = vmatprep.subr.mxu0 0.0
        %2664 = vmatpush1.msra.mxu0 0.0
        %2665 = vmatprep.subr.mxu0 0.0
        %2666 = vmatpush1.msra.mxu0 0.0
        %2667 = vmatprep.subr.mxu0 0.0
        %2668 = vmatpush1.msra.mxu0 0.0
        %2669 = vmatprep.subr.mxu0 0.0
        %2670 = vmatpush1.msra.mxu0 0.0
        %2671 = vmatprep.subr.mxu0 0.0
        %2672 = vmatpush1.msra.mxu0 0.0
        %2673 = vmatprep.subr.mxu0 0.0
        %2674 = vmatpush1.msra.mxu0 0.0
        %2675 = vmatprep.subr.mxu0 0.0
        %2676 = vmatpush1.msra.mxu0 0.0
        %2677 = vmatprep.subr.mxu0 0.0
        %2678 = vmatpush1.msra.mxu0 0.0
        %2679 = vmatprep.subr.mxu0 0.0
        %2680 = vmatpush1.msra.mxu0 0.0
        %2681 = vmatprep.subr.mxu0 0.0
        %2682 = vmatpush1.msra.mxu0 0.0
        %2683 = vmatprep.subr.mxu0 0.0
        %2684 = vmatpush1.msra.mxu0 %v2648
        %2685 = vmatprep.subr.mxu0 0.0
        %2686 = vmatpush2.msra.mxu0 0.0
        %2687 = vmatprep.subr.mxu0 0.0
        %2688 = vmatpush2.msra.mxu0 0.0
        %2689 = vmatprep.subr.mxu0 0.0
        %2690 = vmatpush2.msra.mxu0 0.0
        %2691 = vmatprep.subr.mxu0 0.0
        %2692 = vmatpush2.msra.mxu0 0.0
        %2693 = vmatprep.subr.mxu0 0.0
        %2694 = vmatpush2.msra.mxu0 0.0
        %2695 = vmatprep.subr.mxu0 0.0
        %2696 = vmatpush2.msra.mxu0 0.0
        %2697 = vmatprep.subr.mxu0 0.0
        %2698 = vmatpush2.msra.mxu0 0.0
        %2699 = vmatprep.subr.mxu0 0.0
        %2700 = vmatpush2.msra.mxu0 0.0
        %2701 = vmatprep.subr.mxu0 0.0
        %2702 = vmatpush2.msra.mxu0 0.0
        %2703 = vmatprep.subr.mxu0 0.0
        %2704 = vmatpush2.msra.mxu0 0.0
        %2705 = vmatprep.subr.mxu0 0.0
        %2706 = vmatpush2.msra.mxu0 0.0
        %2707 = vmatprep.subr.mxu0 0.0
        %2708 = vmatpush2.msra.mxu0 0.0
        %2709 = vmatprep.subr.mxu0 0.0
        %2710 = vmatpush2.msra.mxu0 0.0
        %2711 = vmatprep.subr.mxu0 0.0
        %2712 = vmatpush2.msra.mxu0 0.0
        %2713 = vmatprep.subr.mxu0 0.0
        %2714 = vmatpush2.msra.mxu0 0.0
        %2715 = vmatprep.subr.mxu0 0.0
        %2716 = vmatpush2.msra.mxu0 0.0
        %2717 = vmatprep.mubr.f32.mxu0 0.0
        %2718 = vmatmul.mubr.f32.gmra.mxu0 %v2651
        %v2719 = vpop.f32.mrf.mxu0
        %v2720 = vadd.f32 0.0, %v2719
        %v2721 = vpop.f32.mrf.mxu0
        %2722 = vdwg.mxu0
        %v2724 = vsel %vm547, %v2492, 0
        %v2727 = vsel %vm547, %v2568, 0
        %v2730 = vsel %vm547, %v2644, 0
        %v2733 = vsel %vm547, %v2720, 0
        %2735 = vmatprep.subr.mxu0 0.0
        %2736 = vmatpush1.msra.mxu0 0.0
        %2737 = vmatprep.subr.mxu0 0.0
        %2738 = vmatpush1.msra.mxu0 0.0
        %2739 = vmatprep.subr.mxu0 0.0
        %2740 = vmatpush1.msra.mxu0 0.0
        %2741 = vmatprep.subr.mxu0 0.0
        %2742 = vmatpush1.msra.mxu0 0.0
        %2743 = vmatprep.subr.mxu0 0.0
        %2744 = vmatpush1.msra.mxu0 0.0
        %2745 = vmatprep.subr.mxu0 0.0
        %2746 = vmatpush1.msra.mxu0 0.0
        %2747 = vmatprep.subr.mxu0 0.0
        %2748 = vmatpush1.msra.mxu0 0.0
        %2749 = vmatprep.subr.mxu0 0.0
        %2750 = vmatpush1.msra.mxu0 0.0
        %2751 = vmatprep.subr.mxu0 0.0
        %2752 = vmatpush1.msra.mxu0 0.0
        %2753 = vmatprep.subr.mxu0 0.0
        %2754 = vmatpush1.msra.mxu0 0.0
        %2755 = vmatprep.subr.mxu0 0.0
        %2756 = vmatpush1.msra.mxu0 0.0
        %2757 = vmatprep.subr.mxu0 0.0
        %2758 = vmatpush1.msra.mxu0 0.0
        %2759 = vmatprep.subr.mxu0 0.0
        %2760 = vmatpush1.msra.mxu0 0.0
        %2761 = vmatprep.subr.mxu0 0.0
        %2762 = vmatpush1.msra.mxu0 0.0
        %2763 = vmatprep.subr.mxu0 0.0
        %2764 = vmatpush1.msra.mxu0 0.0
        %2765 = vmatprep.subr.mxu0 0.0
        %2766 = vmatpush1.msra.mxu0 %v543
        %2767 = vmatprep.subr.mxu0 0.0
        %2768 = vmatpush2.msra.mxu0 0.0
        %2769 = vmatprep.subr.mxu0 0.0
        %2770 = vmatpush2.msra.mxu0 0.0
        %2771 = vmatprep.subr.mxu0 0.0
        %2772 = vmatpush2.msra.mxu0 0.0
        %2773 = vmatprep.subr.mxu0 0.0
        %2774 = vmatpush2.msra.mxu0 0.0
        %2775 = vmatprep.subr.mxu0 0.0
        %2776 = vmatpush2.msra.mxu0 0.0
        %2777 = vmatprep.subr.mxu0 0.0
        %2778 = vmatpush2.msra.mxu0 0.0
        %2779 = vmatprep.subr.mxu0 0.0
        %2780 = vmatpush2.msra.mxu0 0.0
        %2781 = vmatprep.subr.mxu0 0.0
        %2782 = vmatpush2.msra.mxu0 0.0
        %2783 = vmatprep.subr.mxu0 0.0
        %2784 = vmatpush2.msra.mxu0 0.0
        %2785 = vmatprep.subr.mxu0 0.0
        %2786 = vmatpush2.msra.mxu0 0.0
        %2787 = vmatprep.subr.mxu0 0.0
        %2788 = vmatpush2.msra.mxu0 0.0
        %2789 = vmatprep.subr.mxu0 0.0
        %2790 = vmatpush2.msra.mxu0 0.0
        %2791 = vmatprep.subr.mxu0 0.0
        %2792 = vmatpush2.msra.mxu0 0.0
        %2793 = vmatprep.subr.mxu0 0.0
        %2794 = vmatpush2.msra.mxu0 0.0
        %2795 = vmatprep.subr.mxu0 0.0
        %2796 = vmatpush2.msra.mxu0 0.0
        %2797 = vmatprep.subr.mxu0 0.0
        %2798 = vmatpush2.msra.mxu0 0.0
        %2799 = vmatprep.mubr.f32.mxu0 0.0
        %2800 = vmatmul.mubr.f32.gmra.mxu0 %v2724
        %v2801 = vpop.f32.mrf.mxu0
        %v2802 = vadd.f32 0.0, %v2801
        %v2803 = vpop.f32.mrf.mxu0
        %2804 = vmatprep.mubr.f32.mxu0 0.0
        %2805 = vmatmul.mubr.f32.gmra.mxu0 %v2727
        %v2806 = vpop.f32.mrf.mxu0
        %v2807 = vadd.f32 0.0, %v2806
        %v2808 = vpop.f32.mrf.mxu0
        %2809 = vmatprep.mubr.f32.mxu0 0.0
        %2810 = vmatmul.mubr.f32.gmra.mxu0 %v2730
        %v2811 = vpop.f32.mrf.mxu0
        %v2812 = vadd.f32 0.0, %v2811
        %v2813 = vpop.f32.mrf.mxu0
        %2814 = vmatprep.mubr.f32.mxu0 0.0
        %2815 = vmatmul.mubr.f32.gmra.mxu0 %v2733
        %v2816 = vpop.f32.mrf.mxu0
        %v2817 = vadd.f32 0.0, %v2816
        %v2818 = vpop.f32.mrf.mxu0
        %2819 = vdwg.mxu0
        %v2820 = vadd.f32 %v2045, %v2802
        %v2821 = vadd.f32 %v2050, %v2807
        %v2822 = vadd.f32 %v2055, %v2812
        %v2823 = vadd.f32 %v2060, %v2817
        %v2824 = vlaneseq
        %v2825 = vshrl.u32 %v2824, 7
        %v2826 = vsub.s32 6, %v2825
        %v2827 = vrot.slane %v228, %v2826
        %v2828 = vadd.f32 %v2820, %v2827
        %v2829 = vadd.f32 %v2821, %v2827
        %v2830 = vadd.f32 %v2822, %v2827
        %v2831 = vadd.f32 %v2823, %v2827
        %v2832 = vadd.f32 %v226, %v2828
        %v2833 = vadd.f32 %v225, %v2829
        %v2834 = vadd.f32 %v224, %v2830
        %v2835 = vadd.f32 %v227, %v2831
        %s2836 = scalar_lea.vmem [#allocation2], 48
        %v2837 = vld [vmem:[%s2836] sm:$0xff]
        %v2838 = vld [vmem:[%s2836 + $0x8] sm:$0xff]
        %v2839 = vld [vmem:[%s2836 + $0x10] sm:$0xff]
        %v2840 = vlaneseq
        %v2841 = vshrl.u32 %v2840, 7
        %v2842 = vsub.s32 7, %v2841
        %v2843 = vrot.slane %v228, %v2842
        %v2845 = vsel %vm237, %v2832, 0
        %v2848 = vsel %vm237, %v2833, 0
        %v2851 = vsel %vm237, %v2834, 0
        %v2854 = vsel %vm237, %v2835, 0
        %2856 = vmatprep.subr.mxu0 0.0
        %2857 = vmatpush1.msra.mxu0 0.0
        %2858 = vmatprep.subr.mxu0 0.0
        %2859 = vmatpush1.msra.mxu0 0.0
        %2860 = vmatprep.subr.mxu0 0.0
        %2861 = vmatpush1.msra.mxu0 0.0
        %2862 = vmatprep.subr.mxu0 0.0
        %2863 = vmatpush1.msra.mxu0 0.0
        %2864 = vmatprep.subr.mxu0 0.0
        %2865 = vmatpush1.msra.mxu0 0.0
        %2866 = vmatprep.subr.mxu0 0.0
        %2867 = vmatpush1.msra.mxu0 0.0
        %2868 = vmatprep.subr.mxu0 0.0
        %2869 = vmatpush1.msra.mxu0 0.0
        %2870 = vmatprep.subr.mxu0 0.0
        %2871 = vmatpush1.msra.mxu0 0.0
        %2872 = vmatprep.subr.mxu0 0.0
        %2873 = vmatpush1.msra.mxu0 0.0
        %2874 = vmatprep.subr.mxu0 0.0
        %2875 = vmatpush1.msra.mxu0 0.0
        %2876 = vmatprep.subr.mxu0 0.0
        %2877 = vmatpush1.msra.mxu0 0.0
        %2878 = vmatprep.subr.mxu0 0.0
        %2879 = vmatpush1.msra.mxu0 0.0
        %2880 = vmatprep.subr.mxu0 0.0
        %2881 = vmatpush1.msra.mxu0 0.0
        %2882 = vmatprep.subr.mxu0 0.0
        %2883 = vmatpush1.msra.mxu0 %v2839
        %2884 = vmatprep.subr.mxu0 0.0
        %2885 = vmatpush1.msra.mxu0 %v2838
        %2886 = vmatprep.subr.mxu0 0.0
        %2887 = vmatpush1.msra.mxu0 %v2837
        %2888 = vmatprep.subr.mxu0 0.0
        %2889 = vmatpush2.msra.mxu0 0.0
        %2890 = vmatprep.subr.mxu0 0.0
        %2891 = vmatpush2.msra.mxu0 0.0
        %2892 = vmatprep.subr.mxu0 0.0
        %2893 = vmatpush2.msra.mxu0 0.0
        %2894 = vmatprep.subr.mxu0 0.0
        %2895 = vmatpush2.msra.mxu0 0.0
        %2896 = vmatprep.subr.mxu0 0.0
        %2897 = vmatpush2.msra.mxu0 0.0
        %2898 = vmatprep.subr.mxu0 0.0
        %2899 = vmatpush2.msra.mxu0 0.0
        %2900 = vmatprep.subr.mxu0 0.0
        %2901 = vmatpush2.msra.mxu0 0.0
        %2902 = vmatprep.subr.mxu0 0.0
        %2903 = vmatpush2.msra.mxu0 0.0
        %2904 = vmatprep.subr.mxu0 0.0
        %2905 = vmatpush2.msra.mxu0 0.0
        %2906 = vmatprep.subr.mxu0 0.0
        %2907 = vmatpush2.msra.mxu0 0.0
        %2908 = vmatprep.subr.mxu0 0.0
        %2909 = vmatpush2.msra.mxu0 0.0
        %2910 = vmatprep.subr.mxu0 0.0
        %2911 = vmatpush2.msra.mxu0 0.0
        %2912 = vmatprep.subr.mxu0 0.0
        %2913 = vmatpush2.msra.mxu0 0.0
        %2914 = vmatprep.subr.mxu0 0.0
        %2915 = vmatpush2.msra.mxu0 0.0
        %2916 = vmatprep.subr.mxu0 0.0
        %2917 = vmatpush2.msra.mxu0 0.0
        %2918 = vmatprep.subr.mxu0 0.0
        %2919 = vmatpush2.msra.mxu0 0.0
        %2920 = vmatprep.mubr.f32.mxu0 0.0
        %2921 = vmatmul.mubr.f32.gmra.mxu0 %v2845
        %v2922 = vpop.f32.mrf.mxu0
        %v2923 = vadd.f32 %v2843, %v2922
        %v2924 = vpop.f32.mrf.mxu0
        %2925 = vmatprep.mubr.f32.mxu0 0.0
        %2926 = vmatmul.mubr.f32.gmra.mxu0 %v2848
        %v2927 = vpop.f32.mrf.mxu0
        %v2928 = vadd.f32 %v2843, %v2927
        %v2929 = vpop.f32.mrf.mxu0
        %2930 = vmatprep.mubr.f32.mxu0 0.0
        %2931 = vmatmul.mubr.f32.gmra.mxu0 %v2851
        %v2932 = vpop.f32.mrf.mxu0
        %v2933 = vadd.f32 %v2843, %v2932
        %v2934 = vpop.f32.mrf.mxu0
        %2935 = vmatprep.mubr.f32.mxu0 0.0
        %2936 = vmatmul.mubr.f32.gmra.mxu0 %v2854
        %v2937 = vpop.f32.mrf.mxu0
        %v2938 = vadd.f32 %v2843, %v2937
        %v2939 = vpop.f32.mrf.mxu0
        %2940 = vdwg.mxu0
        %v2941 = vsel %vm237, %v2923, 0.0
        %2942 = vadd.xlane.f32.xlu0 %v2941
        %v2943 = vpop.xlane.xlu0 %2942
        %v2944 = vsel %vm237, %v2928, 0.0
        %2945 = vadd.xlane.f32.xlu0 %v2944
        %v2946 = vpop.xlane.xlu0 %2945
        %v2947 = vsel %vm237, %v2933, 0.0
        %2948 = vadd.xlane.f32.xlu0 %v2947
        %v2949 = vpop.xlane.xlu0 %2948
        %v2950 = vsel %vm237, %v2938, 0.0
        %2951 = vadd.xlane.f32.xlu0 %v2950
        %v2952 = vpop.xlane.xlu0 %2951
        %v2953 = vmul.f32 %v2943, %v347
        %v2954 = vmul.f32 %v2946, %v347
        %v2955 = vmul.f32 %v2949, %v347
        %v2956 = vmul.f32 %v2952, %v347
        %v2957 = vsub.f32 %v2923, %v2953
        %v2958 = vsub.f32 %v2928, %v2954
        %v2959 = vsub.f32 %v2933, %v2955
        %v2960 = vsub.f32 %v2938, %v2956
        %v2961 = vmul.f32 %v2957, %v2957
        %v2962 = vmul.f32 %v2958, %v2958
        %v2963 = vmul.f32 %v2959, %v2959
        %v2964 = vmul.f32 %v2960, %v2960
        %v2965 = vsel %vm237, %v2961, 0.0
        %2966 = vadd.xlane.f32.xlu0 %v2965
        %v2967 = vpop.xlane.xlu0 %2966
        %v2968 = vsel %vm237, %v2962, 0.0
        %2969 = vadd.xlane.f32.xlu0 %v2968
        %v2970 = vpop.xlane.xlu0 %2969
        %v2971 = vsel %vm237, %v2963, 0.0
        %2972 = vadd.xlane.f32.xlu0 %v2971
        %v2973 = vpop.xlane.xlu0 %2972
        %v2974 = vsel %vm237, %v2964, 0.0
        %2975 = vadd.xlane.f32.xlu0 %v2974
        %v2976 = vpop.xlane.xlu0 %2975
        %v2977 = vmul.f32 %v2967, %v347
        %v2978 = vmul.f32 %v2970, %v347
        %v2979 = vmul.f32 %v2973, %v347
        %v2980 = vmul.f32 %v2976, %v347
        %v2981 = vadd.f32 %v2977, 1e-05
        %v2982 = vadd.f32 %v2978, 1e-05
        %v2983 = vadd.f32 %v2979, 1e-05
        %v2984 = vadd.f32 %v2980, 1e-05
        %v2985 = vrsqrt.pop %v2981
        %v2986 = vrsqrt.pop %v2982
        %v2987 = vrsqrt.pop %v2983
        %v2988 = vrsqrt.pop %v2984
        %v2989 = vmul.f32 %v2957, %v2985
        %v2990 = vmul.f32 %v2958, %v2986
        %v2991 = vmul.f32 %v2959, %v2987
        %v2992 = vmul.f32 %v2960, %v2988
        %v2993 = vlaneseq
        %v2994 = vshrl.u32 %v2993, 7
        %v2995 = vsub.s32 0, %v2994
        %v2996 = vrot.slane %v229, %v2995
        %v2997 = vmul.f32 %v2989, %v2996
        %v2998 = vmul.f32 %v2990, %v2996
        %v2999 = vmul.f32 %v2991, %v2996
        %v3000 = vmul.f32 %v2992, %v2996
        %v3001 = vlaneseq
        %v3002 = vshrl.u32 %v3001, 7
        %v3003 = vsub.s32 1, %v3002
        %v3004 = vrot.slane %v229, %v3003
        %v3005 = vadd.f32 %v2997, %v3004
        %v3006 = vadd.f32 %v2998, %v3004
        %v3007 = vadd.f32 %v2999, %v3004
        %v3008 = vadd.f32 %v3000, %v3004
        %s3009 = scalar_lea.vmem [#allocation2], 72
        %v3010 = vld [vmem:[%s3009] sm:$0xff]
        %v3011 = vld [vmem:[%s3009 + $0x8] sm:$0xff]
        %v3012 = vld [vmem:[%s3009 + $0x10] sm:$0xff]
        %v3013 = vlaneseq
        %v3014 = vshrl.u32 %v3013, 7
        %v3015 = vsub.s32 2, %v3014
        %v3016 = vrot.slane %v229, %v3015
        %v3018 = vsel %vm237, %v3005, 0
        %v3021 = vsel %vm237, %v3006, 0
        %v3024 = vsel %vm237, %v3007, 0
        %v3027 = vsel %vm237, %v3008, 0
        %3029 = vmatprep.subr.mxu0 0.0
        %3030 = vmatpush1.msra.mxu0 0.0
        %3031 = vmatprep.subr.mxu0 0.0
        %3032 = vmatpush1.msra.mxu0 0.0
        %3033 = vmatprep.subr.mxu0 0.0
        %3034 = vmatpush1.msra.mxu0 0.0
        %3035 = vmatprep.subr.mxu0 0.0
        %3036 = vmatpush1.msra.mxu0 0.0
        %3037 = vmatprep.subr.mxu0 0.0
        %3038 = vmatpush1.msra.mxu0 0.0
        %3039 = vmatprep.subr.mxu0 0.0
        %3040 = vmatpush1.msra.mxu0 0.0
        %3041 = vmatprep.subr.mxu0 0.0
        %3042 = vmatpush1.msra.mxu0 0.0
        %3043 = vmatprep.subr.mxu0 0.0
        %3044 = vmatpush1.msra.mxu0 0.0
        %3045 = vmatprep.subr.mxu0 0.0
        %3046 = vmatpush1.msra.mxu0 0.0
        %3047 = vmatprep.subr.mxu0 0.0
        %3048 = vmatpush1.msra.mxu0 0.0
        %3049 = vmatprep.subr.mxu0 0.0
        %3050 = vmatpush1.msra.mxu0 0.0
        %3051 = vmatprep.subr.mxu0 0.0
        %3052 = vmatpush1.msra.mxu0 0.0
        %3053 = vmatprep.subr.mxu0 0.0
        %3054 = vmatpush1.msra.mxu0 0.0
        %3055 = vmatprep.subr.mxu0 0.0
        %3056 = vmatpush1.msra.mxu0 %v3012
        %3057 = vmatprep.subr.mxu0 0.0
        %3058 = vmatpush1.msra.mxu0 %v3011
        %3059 = vmatprep.subr.mxu0 0.0
        %3060 = vmatpush1.msra.mxu0 %v3010
        %3061 = vmatprep.subr.mxu0 0.0
        %3062 = vmatpush2.msra.mxu0 0.0
        %3063 = vmatprep.subr.mxu0 0.0
        %3064 = vmatpush2.msra.mxu0 0.0
        %3065 = vmatprep.subr.mxu0 0.0
        %3066 = vmatpush2.msra.mxu0 0.0
        %3067 = vmatprep.subr.mxu0 0.0
        %3068 = vmatpush2.msra.mxu0 0.0
        %3069 = vmatprep.subr.mxu0 0.0
        %3070 = vmatpush2.msra.mxu0 0.0
        %3071 = vmatprep.subr.mxu0 0.0
        %3072 = vmatpush2.msra.mxu0 0.0
        %3073 = vmatprep.subr.mxu0 0.0
        %3074 = vmatpush2.msra.mxu0 0.0
        %3075 = vmatprep.subr.mxu0 0.0
        %3076 = vmatpush2.msra.mxu0 0.0
        %3077 = vmatprep.subr.mxu0 0.0
        %3078 = vmatpush2.msra.mxu0 0.0
        %3079 = vmatprep.subr.mxu0 0.0
        %3080 = vmatpush2.msra.mxu0 0.0
        %3081 = vmatprep.subr.mxu0 0.0
        %3082 = vmatpush2.msra.mxu0 0.0
        %3083 = vmatprep.subr.mxu0 0.0
        %3084 = vmatpush2.msra.mxu0 0.0
        %3085 = vmatprep.subr.mxu0 0.0
        %3086 = vmatpush2.msra.mxu0 0.0
        %3087 = vmatprep.subr.mxu0 0.0
        %3088 = vmatpush2.msra.mxu0 0.0
        %3089 = vmatprep.subr.mxu0 0.0
        %3090 = vmatpush2.msra.mxu0 0.0
        %3091 = vmatprep.subr.mxu0 0.0
        %3092 = vmatpush2.msra.mxu0 0.0
        %3093 = vmatprep.mubr.f32.mxu0 0.0
        %3094 = vmatmul.mubr.f32.gmra.mxu0 %v3018
        %v3095 = vpop.f32.mrf.mxu0
        %v3096 = vadd.f32 %v3016, %v3095
        %v3097 = vpop.f32.mrf.mxu0
        %3098 = vmatprep.mubr.f32.mxu0 0.0
        %3099 = vmatmul.mubr.f32.gmra.mxu0 %v3021
        %v3100 = vpop.f32.mrf.mxu0
        %v3101 = vadd.f32 %v3016, %v3100
        %v3102 = vpop.f32.mrf.mxu0
        %3103 = vmatprep.mubr.f32.mxu0 0.0
        %3104 = vmatmul.mubr.f32.gmra.mxu0 %v3024
        %v3105 = vpop.f32.mrf.mxu0
        %v3106 = vadd.f32 %v3016, %v3105
        %v3107 = vpop.f32.mrf.mxu0
        %3108 = vmatprep.mubr.f32.mxu0 0.0
        %3109 = vmatmul.mubr.f32.gmra.mxu0 %v3027
        %v3110 = vpop.f32.mrf.mxu0
        %v3111 = vadd.f32 %v3016, %v3110
        %v3112 = vpop.f32.mrf.mxu0
        %3113 = vdwg.mxu0
        %v3114 = vmax.f32 %v3096, 0.0
        %v3115 = vmax.f32 %v3101, 0.0
        %v3116 = vmax.f32 %v3106, 0.0
        %v3117 = vmax.f32 %v3111, 0.0
        %s3118 = scalar_lea.vmem [#allocation2], 96
        %v3119 = vld [vmem:[%s3118] sm:$0xff]
        %v3120 = vld [vmem:[%s3118 + $0x8] sm:$0xff]
        %v3121 = vld [vmem:[%s3118 + $0x10] sm:$0xff]
        %v3122 = vlaneseq
        %v3123 = vshrl.u32 %v3122, 7
        %v3124 = vsub.s32 3, %v3123
        %v3125 = vrot.slane %v229, %v3124
        %v3127 = vsel %vm237, %v3114, 0
        %v3130 = vsel %vm237, %v3115, 0
        %v3133 = vsel %vm237, %v3116, 0
        %v3136 = vsel %vm237, %v3117, 0
        %3138 = vmatprep.subr.mxu0 0.0
        %3139 = vmatpush1.msra.mxu0 0.0
        %3140 = vmatprep.subr.mxu0 0.0
        %3141 = vmatpush1.msra.mxu0 0.0
        %3142 = vmatprep.subr.mxu0 0.0
        %3143 = vmatpush1.msra.mxu0 0.0
        %3144 = vmatprep.subr.mxu0 0.0
        %3145 = vmatpush1.msra.mxu0 0.0
        %3146 = vmatprep.subr.mxu0 0.0
        %3147 = vmatpush1.msra.mxu0 0.0
        %3148 = vmatprep.subr.mxu0 0.0
        %3149 = vmatpush1.msra.mxu0 0.0
        %3150 = vmatprep.subr.mxu0 0.0
        %3151 = vmatpush1.msra.mxu0 0.0
        %3152 = vmatprep.subr.mxu0 0.0
        %3153 = vmatpush1.msra.mxu0 0.0
        %3154 = vmatprep.subr.mxu0 0.0
        %3155 = vmatpush1.msra.mxu0 0.0
        %3156 = vmatprep.subr.mxu0 0.0
        %3157 = vmatpush1.msra.mxu0 0.0
        %3158 = vmatprep.subr.mxu0 0.0
        %3159 = vmatpush1.msra.mxu0 0.0
        %3160 = vmatprep.subr.mxu0 0.0
        %3161 = vmatpush1.msra.mxu0 0.0
        %3162 = vmatprep.subr.mxu0 0.0
        %3163 = vmatpush1.msra.mxu0 0.0
        %3164 = vmatprep.subr.mxu0 0.0
        %3165 = vmatpush1.msra.mxu0 %v3121
        %3166 = vmatprep.subr.mxu0 0.0
        %3167 = vmatpush1.msra.mxu0 %v3120
        %3168 = vmatprep.subr.mxu0 0.0
        %3169 = vmatpush1.msra.mxu0 %v3119
        %3170 = vmatprep.subr.mxu0 0.0
        %3171 = vmatpush2.msra.mxu0 0.0
        %3172 = vmatprep.subr.mxu0 0.0
        %3173 = vmatpush2.msra.mxu0 0.0
        %3174 = vmatprep.subr.mxu0 0.0
        %3175 = vmatpush2.msra.mxu0 0.0
        %3176 = vmatprep.subr.mxu0 0.0
        %3177 = vmatpush2.msra.mxu0 0.0
        %3178 = vmatprep.subr.mxu0 0.0
        %3179 = vmatpush2.msra.mxu0 0.0
        %3180 = vmatprep.subr.mxu0 0.0
        %3181 = vmatpush2.msra.mxu0 0.0
        %3182 = vmatprep.subr.mxu0 0.0
        %3183 = vmatpush2.msra.mxu0 0.0
        %3184 = vmatprep.subr.mxu0 0.0
        %3185 = vmatpush2.msra.mxu0 0.0
        %3186 = vmatprep.subr.mxu0 0.0
        %3187 = vmatpush2.msra.mxu0 0.0
        %3188 = vmatprep.subr.mxu0 0.0
        %3189 = vmatpush2.msra.mxu0 0.0
        %3190 = vmatprep.subr.mxu0 0.0
        %3191 = vmatpush2.msra.mxu0 0.0
        %3192 = vmatprep.subr.mxu0 0.0
        %3193 = vmatpush2.msra.mxu0 0.0
        %3194 = vmatprep.subr.mxu0 0.0
        %3195 = vmatpush2.msra.mxu0 0.0
        %3196 = vmatprep.subr.mxu0 0.0
        %3197 = vmatpush2.msra.mxu0 0.0
        %3198 = vmatprep.subr.mxu0 0.0
        %3199 = vmatpush2.msra.mxu0 0.0
        %3200 = vmatprep.subr.mxu0 0.0
        %3201 = vmatpush2.msra.mxu0 0.0
        %3202 = vmatprep.mubr.f32.mxu0 0.0
        %3203 = vmatmul.mubr.f32.gmra.mxu0 %v3127
        %v3204 = vpop.f32.mrf.mxu0
        %v3205 = vadd.f32 %v3125, %v3204
        %v3206 = vpop.f32.mrf.mxu0
        %3207 = vmatprep.mubr.f32.mxu0 0.0
        %3208 = vmatmul.mubr.f32.gmra.mxu0 %v3130
        %v3209 = vpop.f32.mrf.mxu0
        %v3210 = vadd.f32 %v3125, %v3209
        %v3211 = vpop.f32.mrf.mxu0
        %3212 = vmatprep.mubr.f32.mxu0 0.0
        %3213 = vmatmul.mubr.f32.gmra.mxu0 %v3133
        %v3214 = vpop.f32.mrf.mxu0
        %v3215 = vadd.f32 %v3125, %v3214
        %v3216 = vpop.f32.mrf.mxu0
        %3217 = vmatprep.mubr.f32.mxu0 0.0
        %3218 = vmatmul.mubr.f32.gmra.mxu0 %v3136
        %v3219 = vpop.f32.mrf.mxu0
        %v3220 = vadd.f32 %v3125, %v3219
        %v3221 = vpop.f32.mrf.mxu0
        %3222 = vdwg.mxu0
        %v3223 = vadd.f32 %v2832, %v3205
        %v3224 = vadd.f32 %v2833, %v3210
        %v3225 = vadd.f32 %v2834, %v3215
        %v3226 = vadd.f32 %v2835, %v3220
        %v3227 = vrot.slane %v3223, 4
        %v3228 = vrot.slane %v3224, 4
        %v3229 = vrot.slane %v3225, 4
        %v3230 = vrot.slane %v3226, 4
        %v3231 = vsel %vm223, %v3229, %v3230
        %v3232 = vsel %vm223, %v3228, %v3229
        %v3233 = vsel %vm223, %v3227, %v3228
        %v3234 = vsel %vm223, %v3230, %v3227
        %s3235 = scalar_lea.vmem %s3, 16
        %v3236 = vld [vmem:[%s3235] sm:$0xff]
        %v3237 = vld [vmem:[%s3235 + $0x8] sm:$0xf]
        %s3238 = scalar_lea.vmem [#allocation2], 120
        %v3239 = vld [vmem:[%s3238] sm:$0xff]
        %v3240 = vld [vmem:[%s3238 + $0x8] sm:$0xff]
        %v3241 = vld [vmem:[%s3238 + $0x10] sm:$0xff]
        %v3242 = vlaneseq
        %v3243 = vshrl.u32 %v3242, 7
        %v3244 = vsub.s32 0, %v3243
        %v3245 = vrot.slane %v3236, %v3244
        %v3247 = vsel %vm237, %v3234, 0
        %v3250 = vsel %vm237, %v3233, 0
        %v3253 = vsel %vm237, %v3232, 0
        %v3256 = vsel %vm237, %v3231, 0
        %3258 = vmatprep.subr.mxu0 0.0
        %3259 = vmatpush1.msra.mxu0 0.0
        %3260 = vmatprep.subr.mxu0 0.0
        %3261 = vmatpush1.msra.mxu0 0.0
        %3262 = vmatprep.subr.mxu0 0.0
        %3263 = vmatpush1.msra.mxu0 0.0
        %3264 = vmatprep.subr.mxu0 0.0
        %3265 = vmatpush1.msra.mxu0 0.0
        %3266 = vmatprep.subr.mxu0 0.0
        %3267 = vmatpush1.msra.mxu0 0.0
        %3268 = vmatprep.subr.mxu0 0.0
        %3269 = vmatpush1.msra.mxu0 0.0
        %3270 = vmatprep.subr.mxu0 0.0
        %3271 = vmatpush1.msra.mxu0 0.0
        %3272 = vmatprep.subr.mxu0 0.0
        %3273 = vmatpush1.msra.mxu0 0.0
        %3274 = vmatprep.subr.mxu0 0.0
        %3275 = vmatpush1.msra.mxu0 0.0
        %3276 = vmatprep.subr.mxu0 0.0
        %3277 = vmatpush1.msra.mxu0 0.0
        %3278 = vmatprep.subr.mxu0 0.0
        %3279 = vmatpush1.msra.mxu0 0.0
        %3280 = vmatprep.subr.mxu0 0.0
        %3281 = vmatpush1.msra.mxu0 0.0
        %3282 = vmatprep.subr.mxu0 0.0
        %3283 = vmatpush1.msra.mxu0 0.0
        %3284 = vmatprep.subr.mxu0 0.0
        %3285 = vmatpush1.msra.mxu0 %v3241
        %3286 = vmatprep.subr.mxu0 0.0
        %3287 = vmatpush1.msra.mxu0 %v3240
        %3288 = vmatprep.subr.mxu0 0.0
        %3289 = vmatpush1.msra.mxu0 %v3239
        %3290 = vmatprep.subr.mxu0 0.0
        %3291 = vmatpush2.msra.mxu0 0.0
        %3292 = vmatprep.subr.mxu0 0.0
        %3293 = vmatpush2.msra.mxu0 0.0
        %3294 = vmatprep.subr.mxu0 0.0
        %3295 = vmatpush2.msra.mxu0 0.0
        %3296 = vmatprep.subr.mxu0 0.0
        %3297 = vmatpush2.msra.mxu0 0.0
        %3298 = vmatprep.subr.mxu0 0.0
        %3299 = vmatpush2.msra.mxu0 0.0
        %3300 = vmatprep.subr.mxu0 0.0
        %3301 = vmatpush2.msra.mxu0 0.0
        %3302 = vmatprep.subr.mxu0 0.0
        %3303 = vmatpush2.msra.mxu0 0.0
        %3304 = vmatprep.subr.mxu0 0.0
        %3305 = vmatpush2.msra.mxu0 0.0
        %3306 = vmatprep.subr.mxu0 0.0
        %3307 = vmatpush2.msra.mxu0 0.0
        %3308 = vmatprep.subr.mxu0 0.0
        %3309 = vmatpush2.msra.mxu0 0.0
        %3310 = vmatprep.subr.mxu0 0.0
        %3311 = vmatpush2.msra.mxu0 0.0
        %3312 = vmatprep.subr.mxu0 0.0
        %3313 = vmatpush2.msra.mxu0 0.0
        %3314 = vmatprep.subr.mxu0 0.0
        %3315 = vmatpush2.msra.mxu0 0.0
        %3316 = vmatprep.subr.mxu0 0.0
        %3317 = vmatpush2.msra.mxu0 0.0
        %3318 = vmatprep.subr.mxu0 0.0
        %3319 = vmatpush2.msra.mxu0 0.0
        %3320 = vmatprep.subr.mxu0 0.0
        %3321 = vmatpush2.msra.mxu0 0.0
        %3322 = vmatprep.mubr.f32.mxu0 0.0
        %3323 = vmatmul.mubr.f32.gmra.mxu0 %v3247
        %v3324 = vpop.f32.mrf.mxu0
        %v3325 = vadd.f32 %v3245, %v3324
        %v3326 = vpop.f32.mrf.mxu0
        %3327 = vmatprep.mubr.f32.mxu0 0.0
        %3328 = vmatmul.mubr.f32.gmra.mxu0 %v3250
        %v3329 = vpop.f32.mrf.mxu0
        %v3330 = vadd.f32 %v3245, %v3329
        %v3331 = vpop.f32.mrf.mxu0
        %3332 = vmatprep.mubr.f32.mxu0 0.0
        %3333 = vmatmul.mubr.f32.gmra.mxu0 %v3253
        %v3334 = vpop.f32.mrf.mxu0
        %v3335 = vadd.f32 %v3245, %v3334
        %v3336 = vpop.f32.mrf.mxu0
        %3337 = vmatprep.mubr.f32.mxu0 0.0
        %3338 = vmatmul.mubr.f32.gmra.mxu0 %v3256
        %v3339 = vpop.f32.mrf.mxu0
        %v3340 = vadd.f32 %v3245, %v3339
        %v3341 = vpop.f32.mrf.mxu0
        %3342 = vdwg.mxu0
        %v3343 = vsel %vm237, %v3325, 0.0
        %3344 = vadd.xlane.f32.xlu0 %v3343
        %v3345 = vpop.xlane.xlu0 %3344
        %v3346 = vsel %vm237, %v3330, 0.0
        %3347 = vadd.xlane.f32.xlu0 %v3346
        %v3348 = vpop.xlane.xlu0 %3347
        %v3349 = vsel %vm237, %v3335, 0.0
        %3350 = vadd.xlane.f32.xlu0 %v3349
        %v3351 = vpop.xlane.xlu0 %3350
        %v3352 = vsel %vm237, %v3340, 0.0
        %3353 = vadd.xlane.f32.xlu0 %v3352
        %v3354 = vpop.xlane.xlu0 %3353
        %v3355 = vmul.f32 %v3345, %v347
        %v3356 = vmul.f32 %v3348, %v347
        %v3357 = vmul.f32 %v3351, %v347
        %v3358 = vmul.f32 %v3354, %v347
        %v3359 = vsub.f32 %v3325, %v3355
        %v3360 = vsub.f32 %v3330, %v3356
        %v3361 = vsub.f32 %v3335, %v3357
        %v3362 = vsub.f32 %v3340, %v3358
        %v3363 = vmul.f32 %v3359, %v3359
        %v3364 = vmul.f32 %v3360, %v3360
        %v3365 = vmul.f32 %v3361, %v3361
        %v3366 = vmul.f32 %v3362, %v3362
        %v3367 = vsel %vm237, %v3363, 0.0
        %3368 = vadd.xlane.f32.xlu0 %v3367
        %v3369 = vpop.xlane.xlu0 %3368
        %v3370 = vsel %vm237, %v3364, 0.0
        %3371 = vadd.xlane.f32.xlu0 %v3370
        %v3372 = vpop.xlane.xlu0 %3371
        %v3373 = vsel %vm237, %v3365, 0.0
        %3374 = vadd.xlane.f32.xlu0 %v3373
        %v3375 = vpop.xlane.xlu0 %3374
        %v3376 = vsel %vm237, %v3366, 0.0
        %3377 = vadd.xlane.f32.xlu0 %v3376
        %v3378 = vpop.xlane.xlu0 %3377
        %v3379 = vmul.f32 %v3369, %v347
        %v3380 = vmul.f32 %v3372, %v347
        %v3381 = vmul.f32 %v3375, %v347
        %v3382 = vmul.f32 %v3378, %v347
        %v3383 = vadd.f32 %v3379, 1e-05
        %v3384 = vadd.f32 %v3380, 1e-05
        %v3385 = vadd.f32 %v3381, 1e-05
        %v3386 = vadd.f32 %v3382, 1e-05
        %v3387 = vrsqrt.pop %v3383
        %v3388 = vrsqrt.pop %v3384
        %v3389 = vrsqrt.pop %v3385
        %v3390 = vrsqrt.pop %v3386
        %v3391 = vmul.f32 %v3359, %v3387
        %v3392 = vmul.f32 %v3360, %v3388
        %v3393 = vmul.f32 %v3361, %v3389
        %v3394 = vmul.f32 %v3362, %v3390
        %v3395 = vlaneseq
        %v3396 = vshrl.u32 %v3395, 7
        %v3397 = vsub.s32 1, %v3396
        %v3398 = vrot.slane %v3236, %v3397
        %v3399 = vmul.f32 %v3391, %v3398
        %v3400 = vmul.f32 %v3392, %v3398
        %v3401 = vmul.f32 %v3393, %v3398
        %v3402 = vmul.f32 %v3394, %v3398
        %v3403 = vlaneseq
        %v3404 = vshrl.u32 %v3403, 7
        %v3405 = vsub.s32 2, %v3404
        %v3406 = vrot.slane %v3236, %v3405
        %v3407 = vadd.f32 %v3399, %v3406
        %v3408 = vadd.f32 %v3400, %v3406
        %v3409 = vadd.f32 %v3401, %v3406
        %v3410 = vadd.f32 %v3402, %v3406
        %s3411 = scalar_lea.vmem %s1, 24
        %v3412 = vld [vmem:[%s3411] sm:$0xff]
        %v3413 = vld [vmem:[%s3411 + $0x8] sm:$0xff]
        %v3414 = vld [vmem:[%s3411 + $0x10] sm:$0xff]
        %v3416 = vsel %vm237, %v3407, 0
        %v3419 = vsel %vm237, %v3408, 0
        %v3422 = vsel %vm237, %v3409, 0
        %v3425 = vsel %vm237, %v3410, 0
        %3427 = vmatprep.subr.mxu0 0.0
        %3428 = vmatpush1.msra.mxu0 0.0
        %3429 = vmatprep.subr.mxu0 0.0
        %3430 = vmatpush1.msra.mxu0 0.0
        %3431 = vmatprep.subr.mxu0 0.0
        %3432 = vmatpush1.msra.mxu0 0.0
        %3433 = vmatprep.subr.mxu0 0.0
        %3434 = vmatpush1.msra.mxu0 0.0
        %3435 = vmatprep.subr.mxu0 0.0
        %3436 = vmatpush1.msra.mxu0 0.0
        %3437 = vmatprep.subr.mxu0 0.0
        %3438 = vmatpush1.msra.mxu0 0.0
        %3439 = vmatprep.subr.mxu0 0.0
        %3440 = vmatpush1.msra.mxu0 0.0
        %3441 = vmatprep.subr.mxu0 0.0
        %3442 = vmatpush1.msra.mxu0 0.0
        %3443 = vmatprep.subr.mxu0 0.0
        %3444 = vmatpush1.msra.mxu0 0.0
        %3445 = vmatprep.subr.mxu0 0.0
        %3446 = vmatpush1.msra.mxu0 0.0
        %3447 = vmatprep.subr.mxu0 0.0
        %3448 = vmatpush1.msra.mxu0 0.0
        %3449 = vmatprep.subr.mxu0 0.0
        %3450 = vmatpush1.msra.mxu0 0.0
        %3451 = vmatprep.subr.mxu0 0.0
        %3452 = vmatpush1.msra.mxu0 0.0
        %3453 = vmatprep.subr.mxu0 0.0
        %3454 = vmatpush1.msra.mxu0 %v3414
        %3455 = vmatprep.subr.mxu0 0.0
        %3456 = vmatpush1.msra.mxu0 %v3413
        %3457 = vmatprep.subr.mxu0 0.0
        %3458 = vmatpush1.msra.mxu0 %v3412
        %3459 = vmatprep.subr.mxu0 0.0
        %3460 = vmatpush2.msra.mxu0 0.0
        %3461 = vmatprep.subr.mxu0 0.0
        %3462 = vmatpush2.msra.mxu0 0.0
        %3463 = vmatprep.subr.mxu0 0.0
        %3464 = vmatpush2.msra.mxu0 0.0
        %3465 = vmatprep.subr.mxu0 0.0
        %3466 = vmatpush2.msra.mxu0 0.0
        %3467 = vmatprep.subr.mxu0 0.0
        %3468 = vmatpush2.msra.mxu0 0.0
        %3469 = vmatprep.subr.mxu0 0.0
        %3470 = vmatpush2.msra.mxu0 0.0
        %3471 = vmatprep.subr.mxu0 0.0
        %3472 = vmatpush2.msra.mxu0 0.0
        %3473 = vmatprep.subr.mxu0 0.0
        %3474 = vmatpush2.msra.mxu0 0.0
        %3475 = vmatprep.subr.mxu0 0.0
        %3476 = vmatpush2.msra.mxu0 0.0
        %3477 = vmatprep.subr.mxu0 0.0
        %3478 = vmatpush2.msra.mxu0 0.0
        %3479 = vmatprep.subr.mxu0 0.0
        %3480 = vmatpush2.msra.mxu0 0.0
        %3481 = vmatprep.subr.mxu0 0.0
        %3482 = vmatpush2.msra.mxu0 0.0
        %3483 = vmatprep.subr.mxu0 0.0
        %3484 = vmatpush2.msra.mxu0 0.0
        %3485 = vmatprep.subr.mxu0 0.0
        %3486 = vmatpush2.msra.mxu0 0.0
        %3487 = vmatprep.subr.mxu0 0.0
        %3488 = vmatpush2.msra.mxu0 0.0
        %3489 = vmatprep.subr.mxu0 0.0
        %3490 = vmatpush2.msra.mxu0 0.0
        %3491 = vmatprep.mubr.f32.mxu0 0.0
        %3492 = vmatmul.mubr.f32.gmra.mxu0 %v3416
        %v3493 = vpop.f32.mrf.mxu0
        %v3494 = vadd.f32 0.0, %v3493
        %v3495 = vpop.f32.mrf.mxu0
        %3496 = vmatprep.mubr.f32.mxu0 0.0
        %3497 = vmatmul.mubr.f32.gmra.mxu0 %v3419
        %v3498 = vpop.f32.mrf.mxu0
        %v3499 = vadd.f32 0.0, %v3498
        %v3500 = vpop.f32.mrf.mxu0
        %3501 = vmatprep.mubr.f32.mxu0 0.0
        %3502 = vmatmul.mubr.f32.gmra.mxu0 %v3422
        %v3503 = vpop.f32.mrf.mxu0
        %v3504 = vadd.f32 0.0, %v3503
        %v3505 = vpop.f32.mrf.mxu0
        %3506 = vmatprep.mubr.f32.mxu0 0.0
        %3507 = vmatmul.mubr.f32.gmra.mxu0 %v3425
        %v3508 = vpop.f32.mrf.mxu0
        %v3509 = vadd.f32 0.0, %v3508
        %v3510 = vpop.f32.mrf.mxu0
        %3511 = vdwg.mxu0
        %v3512 = vlaneseq
        %v3513 = vshrl.u32 %v3512, 7
        %v3514 = vsub.s32 3, %v3513
        %v3515 = vrot.slane %v3236, %v3514
        %v3516 = vadd.f32 %v3494, %v3515
        %v3517 = vadd.f32 %v3499, %v3515
        %v3518 = vadd.f32 %v3504, %v3515
        %v3519 = vadd.f32 %v3509, %v3515
        %v3520 = vmul.f32 %v3516, 0.35355338
        %v3521 = vmul.f32 %v3517, 0.35355338
        %v3522 = vmul.f32 %v3518, 0.35355338
        %v3523 = vmul.f32 %v3519, 0.35355338
        %v3524 = vlaneseq
        %v3525 = vshrl.u32 %v3524, 7
        %v3526 = vsub.s32 4, %v3525
        %v3527 = vrot.slane %v3236, %v3526
        %3529 = vrot.lane.b32.xlu0 %v3527, 24
        %v3530 = vpop.permute.xlu0 %3529
        %v3532 = vadd.f32 %v3494, %v3530
        %v3533 = vadd.f32 %v3499, %v3530
        %v3534 = vadd.f32 %v3504, %v3530
        %v3535 = vadd.f32 %v3509, %v3530
        %v3536 = vlaneseq
        %v3537 = vshrl.u32 %v3536, 7
        %v3538 = vsub.s32 5, %v3537
        %v3539 = vrot.slane %v3236, %v3538
        %3541 = vrot.lane.b32.xlu0 %v3539, 48
        %v3542 = vpop.permute.xlu0 %3541
        %v3544 = vadd.f32 %v3494, %v3542
        %v3545 = vadd.f32 %v3499, %v3542
        %v3546 = vadd.f32 %v3504, %v3542
        %v3547 = vadd.f32 %v3509, %v3542
        %s3548 = scalar_lea.vmem [#allocation2], 144
        %v3549 = vld [vmem:[%s3548] sm:$0xff]
        %v3550 = vld [vmem:[%s3548 + $0x8] sm:$0xff]
        %v3551 = vld [vmem:[%s3548 + $0x10] sm:$0xff]
        %3553 = vrot.lane.b32.xlu0 %v3532, 104
        %v3554 = vpop.permute.xlu0 %3553
        %v3556 = vsel %vm547, %v3520, 0
        %v3558 = vsel %vm547, %v3554, 0
        %3560 = vmatprep.subr.mxu0 0.0
        %3561 = vmatpush1.xpose.msra.mxu0 0.0
        %3562 = vmatprep.subr.mxu0 0.0
        %3563 = vmatpush1.xpose.msra.mxu0 0.0
        %3564 = vmatprep.subr.mxu0 0.0
        %3565 = vmatpush1.xpose.msra.mxu0 0.0
        %3566 = vmatprep.subr.mxu0 0.0
        %3567 = vmatpush1.xpose.msra.mxu0 0.0
        %3568 = vmatprep.subr.mxu0 0.0
        %3569 = vmatpush1.xpose.msra.mxu0 0.0
        %3570 = vmatprep.subr.mxu0 0.0
        %3571 = vmatpush1.xpose.msra.mxu0 0.0
        %3572 = vmatprep.subr.mxu0 0.0
        %3573 = vmatpush1.xpose.msra.mxu0 0.0
        %3574 = vmatprep.subr.mxu0 0.0
        %3575 = vmatpush1.xpose.msra.mxu0 0.0
        %3576 = vmatprep.subr.mxu0 0.0
        %3577 = vmatpush1.xpose.msra.mxu0 0.0
        %3578 = vmatprep.subr.mxu0 0.0
        %3579 = vmatpush1.xpose.msra.mxu0 0.0
        %3580 = vmatprep.subr.mxu0 0.0
        %3581 = vmatpush1.xpose.msra.mxu0 0.0
        %3582 = vmatprep.subr.mxu0 0.0
        %3583 = vmatpush1.xpose.msra.mxu0 0.0
        %3584 = vmatprep.subr.mxu0 0.0
        %3585 = vmatpush1.xpose.msra.mxu0 0.0
        %3586 = vmatprep.subr.mxu0 0.0
        %3587 = vmatpush1.xpose.msra.mxu0 0.0
        %3588 = vmatprep.subr.mxu0 0.0
        %3589 = vmatpush1.xpose.msra.mxu0 0.0
        %3590 = vmatprep.subr.mxu0 0.0
        %3591 = vmatpush1.xpose.msra.mxu0 %v3558
        %3592 = vmatprep.subr.mxu0 0.0
        %3593 = vmatpush2.xpose.msra.mxu0 0.0
        %3594 = vmatprep.subr.mxu0 0.0
        %3595 = vmatpush2.xpose.msra.mxu0 0.0
        %3596 = vmatprep.subr.mxu0 0.0
        %3597 = vmatpush2.xpose.msra.mxu0 0.0
        %3598 = vmatprep.subr.mxu0 0.0
        %3599 = vmatpush2.xpose.msra.mxu0 0.0
        %3600 = vmatprep.subr.mxu0 0.0
        %3601 = vmatpush2.xpose.msra.mxu0 0.0
        %3602 = vmatprep.subr.mxu0 0.0
        %3603 = vmatpush2.xpose.msra.mxu0 0.0
        %3604 = vmatprep.subr.mxu0 0.0
        %3605 = vmatpush2.xpose.msra.mxu0 0.0
        %3606 = vmatprep.subr.mxu0 0.0
        %3607 = vmatpush2.xpose.msra.mxu0 0.0
        %3608 = vmatprep.subr.mxu0 0.0
        %3609 = vmatpush2.xpose.msra.mxu0 0.0
        %3610 = vmatprep.subr.mxu0 0.0
        %3611 = vmatpush2.xpose.msra.mxu0 0.0
        %3612 = vmatprep.subr.mxu0 0.0
        %3613 = vmatpush2.xpose.msra.mxu0 0.0
        %3614 = vmatprep.subr.mxu0 0.0
        %3615 = vmatpush2.xpose.msra.mxu0 0.0
        %3616 = vmatprep.subr.mxu0 0.0
        %3617 = vmatpush2.xpose.msra.mxu0 0.0
        %3618 = vmatprep.subr.mxu0 0.0
        %3619 = vmatpush2.xpose.msra.mxu0 0.0
        %3620 = vmatprep.subr.mxu0 0.0
        %3621 = vmatpush2.xpose.msra.mxu0 0.0
        %3622 = vmatprep.subr.mxu0 0.0
        %3623 = vmatpush2.xpose.msra.mxu0 0.0
        %3624 = vmatprep.mubr.f32.mxu0 0.0
        %3625 = vmatmul.mubr.f32.gmra.mxu0 %v3556
        %v3626 = vpop.f32.mrf.mxu0
        %v3627 = vadd.f32 0.0, %v3626
        %v3628 = vpop.f32.mrf.mxu0
        %3629 = vdwg.mxu0
        %3631 = vrot.lane.b32.xlu0 %v3533, 104
        %v3632 = vpop.permute.xlu0 %3631
        %v3634 = vsel %vm547, %v3521, 0
        %v3636 = vsel %vm547, %v3632, 0
        %3638 = vmatprep.subr.mxu0 0.0
        %3639 = vmatpush1.xpose.msra.mxu0 0.0
        %3640 = vmatprep.subr.mxu0 0.0
        %3641 = vmatpush1.xpose.msra.mxu0 0.0
        %3642 = vmatprep.subr.mxu0 0.0
        %3643 = vmatpush1.xpose.msra.mxu0 0.0
        %3644 = vmatprep.subr.mxu0 0.0
        %3645 = vmatpush1.xpose.msra.mxu0 0.0
        %3646 = vmatprep.subr.mxu0 0.0
        %3647 = vmatpush1.xpose.msra.mxu0 0.0
        %3648 = vmatprep.subr.mxu0 0.0
        %3649 = vmatpush1.xpose.msra.mxu0 0.0
        %3650 = vmatprep.subr.mxu0 0.0
        %3651 = vmatpush1.xpose.msra.mxu0 0.0
        %3652 = vmatprep.subr.mxu0 0.0
        %3653 = vmatpush1.xpose.msra.mxu0 0.0
        %3654 = vmatprep.subr.mxu0 0.0
        %3655 = vmatpush1.xpose.msra.mxu0 0.0
        %3656 = vmatprep.subr.mxu0 0.0
        %3657 = vmatpush1.xpose.msra.mxu0 0.0
        %3658 = vmatprep.subr.mxu0 0.0
        %3659 = vmatpush1.xpose.msra.mxu0 0.0
        %3660 = vmatprep.subr.mxu0 0.0
        %3661 = vmatpush1.xpose.msra.mxu0 0.0
        %3662 = vmatprep.subr.mxu0 0.0
        %3663 = vmatpush1.xpose.msra.mxu0 0.0
        %3664 = vmatprep.subr.mxu0 0.0
        %3665 = vmatpush1.xpose.msra.mxu0 0.0
        %3666 = vmatprep.subr.mxu0 0.0
        %3667 = vmatpush1.xpose.msra.mxu0 0.0
        %3668 = vmatprep.subr.mxu0 0.0
        %3669 = vmatpush1.xpose.msra.mxu0 %v3636
        %3670 = vmatprep.subr.mxu0 0.0
        %3671 = vmatpush2.xpose.msra.mxu0 0.0
        %3672 = vmatprep.subr.mxu0 0.0
        %3673 = vmatpush2.xpose.msra.mxu0 0.0
        %3674 = vmatprep.subr.mxu0 0.0
        %3675 = vmatpush2.xpose.msra.mxu0 0.0
        %3676 = vmatprep.subr.mxu0 0.0
        %3677 = vmatpush2.xpose.msra.mxu0 0.0
        %3678 = vmatprep.subr.mxu0 0.0
        %3679 = vmatpush2.xpose.msra.mxu0 0.0
        %3680 = vmatprep.subr.mxu0 0.0
        %3681 = vmatpush2.xpose.msra.mxu0 0.0
        %3682 = vmatprep.subr.mxu0 0.0
        %3683 = vmatpush2.xpose.msra.mxu0 0.0
        %3684 = vmatprep.subr.mxu0 0.0
        %3685 = vmatpush2.xpose.msra.mxu0 0.0
        %3686 = vmatprep.subr.mxu0 0.0
        %3687 = vmatpush2.xpose.msra.mxu0 0.0
        %3688 = vmatprep.subr.mxu0 0.0
        %3689 = vmatpush2.xpose.msra.mxu0 0.0
        %3690 = vmatprep.subr.mxu0 0.0
        %3691 = vmatpush2.xpose.msra.mxu0 0.0
        %3692 = vmatprep.subr.mxu0 0.0
        %3693 = vmatpush2.xpose.msra.mxu0 0.0
        %3694 = vmatprep.subr.mxu0 0.0
        %3695 = vmatpush2.xpose.msra.mxu0 0.0
        %3696 = vmatprep.subr.mxu0 0.0
        %3697 = vmatpush2.xpose.msra.mxu0 0.0
        %3698 = vmatprep.subr.mxu0 0.0
        %3699 = vmatpush2.xpose.msra.mxu0 0.0
        %3700 = vmatprep.subr.mxu0 0.0
        %3701 = vmatpush2.xpose.msra.mxu0 0.0
        %3702 = vmatprep.mubr.f32.mxu0 0.0
        %3703 = vmatmul.mubr.f32.gmra.mxu0 %v3634
        %v3704 = vpop.f32.mrf.mxu0
        %v3705 = vadd.f32 0.0, %v3704
        %v3706 = vpop.f32.mrf.mxu0
        %3707 = vdwg.mxu0
        %3709 = vrot.lane.b32.xlu0 %v3534, 104
        %v3710 = vpop.permute.xlu0 %3709
        %v3712 = vsel %vm547, %v3522, 0
        %v3714 = vsel %vm547, %v3710, 0
        %3716 = vmatprep.subr.mxu0 0.0
        %3717 = vmatpush1.xpose.msra.mxu0 0.0
        %3718 = vmatprep.subr.mxu0 0.0
        %3719 = vmatpush1.xpose.msra.mxu0 0.0
        %3720 = vmatprep.subr.mxu0 0.0
        %3721 = vmatpush1.xpose.msra.mxu0 0.0
        %3722 = vmatprep.subr.mxu0 0.0
        %3723 = vmatpush1.xpose.msra.mxu0 0.0
        %3724 = vmatprep.subr.mxu0 0.0
        %3725 = vmatpush1.xpose.msra.mxu0 0.0
        %3726 = vmatprep.subr.mxu0 0.0
        %3727 = vmatpush1.xpose.msra.mxu0 0.0
        %3728 = vmatprep.subr.mxu0 0.0
        %3729 = vmatpush1.xpose.msra.mxu0 0.0
        %3730 = vmatprep.subr.mxu0 0.0
        %3731 = vmatpush1.xpose.msra.mxu0 0.0
        %3732 = vmatprep.subr.mxu0 0.0
        %3733 = vmatpush1.xpose.msra.mxu0 0.0
        %3734 = vmatprep.subr.mxu0 0.0
        %3735 = vmatpush1.xpose.msra.mxu0 0.0
        %3736 = vmatprep.subr.mxu0 0.0
        %3737 = vmatpush1.xpose.msra.mxu0 0.0
        %3738 = vmatprep.subr.mxu0 0.0
        %3739 = vmatpush1.xpose.msra.mxu0 0.0
        %3740 = vmatprep.subr.mxu0 0.0
        %3741 = vmatpush1.xpose.msra.mxu0 0.0
        %3742 = vmatprep.subr.mxu0 0.0
        %3743 = vmatpush1.xpose.msra.mxu0 0.0
        %3744 = vmatprep.subr.mxu0 0.0
        %3745 = vmatpush1.xpose.msra.mxu0 0.0
        %3746 = vmatprep.subr.mxu0 0.0
        %3747 = vmatpush1.xpose.msra.mxu0 %v3714
        %3748 = vmatprep.subr.mxu0 0.0
        %3749 = vmatpush2.xpose.msra.mxu0 0.0
        %3750 = vmatprep.subr.mxu0 0.0
        %3751 = vmatpush2.xpose.msra.mxu0 0.0
        %3752 = vmatprep.subr.mxu0 0.0
        %3753 = vmatpush2.xpose.msra.mxu0 0.0
        %3754 = vmatprep.subr.mxu0 0.0
        %3755 = vmatpush2.xpose.msra.mxu0 0.0
        %3756 = vmatprep.subr.mxu0 0.0
        %3757 = vmatpush2.xpose.msra.mxu0 0.0
        %3758 = vmatprep.subr.mxu0 0.0
        %3759 = vmatpush2.xpose.msra.mxu0 0.0
        %3760 = vmatprep.subr.mxu0 0.0
        %3761 = vmatpush2.xpose.msra.mxu0 0.0
        %3762 = vmatprep.subr.mxu0 0.0
        %3763 = vmatpush2.xpose.msra.mxu0 0.0
        %3764 = vmatprep.subr.mxu0 0.0
        %3765 = vmatpush2.xpose.msra.mxu0 0.0
        %3766 = vmatprep.subr.mxu0 0.0
        %3767 = vmatpush2.xpose.msra.mxu0 0.0
        %3768 = vmatprep.subr.mxu0 0.0
        %3769 = vmatpush2.xpose.msra.mxu0 0.0
        %3770 = vmatprep.subr.mxu0 0.0
        %3771 = vmatpush2.xpose.msra.mxu0 0.0
        %3772 = vmatprep.subr.mxu0 0.0
        %3773 = vmatpush2.xpose.msra.mxu0 0.0
        %3774 = vmatprep.subr.mxu0 0.0
        %3775 = vmatpush2.xpose.msra.mxu0 0.0
        %3776 = vmatprep.subr.mxu0 0.0
        %3777 = vmatpush2.xpose.msra.mxu0 0.0
        %3778 = vmatprep.subr.mxu0 0.0
        %3779 = vmatpush2.xpose.msra.mxu0 0.0
        %3780 = vmatprep.mubr.f32.mxu0 0.0
        %3781 = vmatmul.mubr.f32.gmra.mxu0 %v3712
        %v3782 = vpop.f32.mrf.mxu0
        %v3783 = vadd.f32 0.0, %v3782
        %v3784 = vpop.f32.mrf.mxu0
        %3785 = vdwg.mxu0
        %3787 = vrot.lane.b32.xlu0 %v3535, 104
        %v3788 = vpop.permute.xlu0 %3787
        %v3790 = vsel %vm547, %v3523, 0
        %v3792 = vsel %vm547, %v3788, 0
        %3794 = vmatprep.subr.mxu0 0.0
        %3795 = vmatpush1.xpose.msra.mxu0 0.0
        %3796 = vmatprep.subr.mxu0 0.0
        %3797 = vmatpush1.xpose.msra.mxu0 0.0
        %3798 = vmatprep.subr.mxu0 0.0
        %3799 = vmatpush1.xpose.msra.mxu0 0.0
        %3800 = vmatprep.subr.mxu0 0.0
        %3801 = vmatpush1.xpose.msra.mxu0 0.0
        %3802 = vmatprep.subr.mxu0 0.0
        %3803 = vmatpush1.xpose.msra.mxu0 0.0
        %3804 = vmatprep.subr.mxu0 0.0
        %3805 = vmatpush1.xpose.msra.mxu0 0.0
        %3806 = vmatprep.subr.mxu0 0.0
        %3807 = vmatpush1.xpose.msra.mxu0 0.0
        %3808 = vmatprep.subr.mxu0 0.0
        %3809 = vmatpush1.xpose.msra.mxu0 0.0
        %3810 = vmatprep.subr.mxu0 0.0
        %3811 = vmatpush1.xpose.msra.mxu0 0.0
        %3812 = vmatprep.subr.mxu0 0.0
        %3813 = vmatpush1.xpose.msra.mxu0 0.0
        %3814 = vmatprep.subr.mxu0 0.0
        %3815 = vmatpush1.xpose.msra.mxu0 0.0
        %3816 = vmatprep.subr.mxu0 0.0
        %3817 = vmatpush1.xpose.msra.mxu0 0.0
        %3818 = vmatprep.subr.mxu0 0.0
        %3819 = vmatpush1.xpose.msra.mxu0 0.0
        %3820 = vmatprep.subr.mxu0 0.0
        %3821 = vmatpush1.xpose.msra.mxu0 0.0
        %3822 = vmatprep.subr.mxu0 0.0
        %3823 = vmatpush1.xpose.msra.mxu0 0.0
        %3824 = vmatprep.subr.mxu0 0.0
        %3825 = vmatpush1.xpose.msra.mxu0 %v3792
        %3826 = vmatprep.subr.mxu0 0.0
        %3827 = vmatpush2.xpose.msra.mxu0 0.0
        %3828 = vmatprep.subr.mxu0 0.0
        %3829 = vmatpush2.xpose.msra.mxu0 0.0
        %3830 = vmatprep.subr.mxu0 0.0
        %3831 = vmatpush2.xpose.msra.mxu0 0.0
        %3832 = vmatprep.subr.mxu0 0.0
        %3833 = vmatpush2.xpose.msra.mxu0 0.0
        %3834 = vmatprep.subr.mxu0 0.0
        %3835 = vmatpush2.xpose.msra.mxu0 0.0
        %3836 = vmatprep.subr.mxu0 0.0
        %3837 = vmatpush2.xpose.msra.mxu0 0.0
        %3838 = vmatprep.subr.mxu0 0.0
        %3839 = vmatpush2.xpose.msra.mxu0 0.0
        %3840 = vmatprep.subr.mxu0 0.0
        %3841 = vmatpush2.xpose.msra.mxu0 0.0
        %3842 = vmatprep.subr.mxu0 0.0
        %3843 = vmatpush2.xpose.msra.mxu0 0.0
        %3844 = vmatprep.subr.mxu0 0.0
        %3845 = vmatpush2.xpose.msra.mxu0 0.0
        %3846 = vmatprep.subr.mxu0 0.0
        %3847 = vmatpush2.xpose.msra.mxu0 0.0
        %3848 = vmatprep.subr.mxu0 0.0
        %3849 = vmatpush2.xpose.msra.mxu0 0.0
        %3850 = vmatprep.subr.mxu0 0.0
        %3851 = vmatpush2.xpose.msra.mxu0 0.0
        %3852 = vmatprep.subr.mxu0 0.0
        %3853 = vmatpush2.xpose.msra.mxu0 0.0
        %3854 = vmatprep.subr.mxu0 0.0
        %3855 = vmatpush2.xpose.msra.mxu0 0.0
        %3856 = vmatprep.subr.mxu0 0.0
        %3857 = vmatpush2.xpose.msra.mxu0 0.0
        %3858 = vmatprep.mubr.f32.mxu0 0.0
        %3859 = vmatmul.mubr.f32.gmra.mxu0 %v3790
        %v3860 = vpop.f32.mrf.mxu0
        %v3861 = vadd.f32 0.0, %v3860
        %v3862 = vpop.f32.mrf.mxu0
        %3863 = vdwg.mxu0
        %v3864 = vsel %vm547, %v3627, -inf
        %3865 = vmax.xlane.f32.xlu0 %v3864
        %v3866 = vpop.xlane.xlu0 %3865
        %v3867 = vsel %vm547, %v3705, -inf
        %3868 = vmax.xlane.f32.xlu0 %v3867
        %v3869 = vpop.xlane.xlu0 %3868
        %v3870 = vsel %vm547, %v3783, -inf
        %3871 = vmax.xlane.f32.xlu0 %v3870
        %v3872 = vpop.xlane.xlu0 %3871
        %v3873 = vsel %vm547, %v3861, -inf
        %3874 = vmax.xlane.f32.xlu0 %v3873
        %v3875 = vpop.xlane.xlu0 %3874
        %v3876 = vsub.f32 %v3627, %v3866
        %v3877 = vsub.f32 %v3705, %v3869
        %v3878 = vsub.f32 %v3783, %v3872
        %v3879 = vsub.f32 %v3861, %v3875
        %v3880 = vmul.f32 %v3876, 1.442695
        %v3881 = vpow.pop %v3880
        %v3882 = vmul.f32 %v3877, 1.442695
        %v3883 = vpow.pop %v3882
        %v3884 = vmul.f32 %v3878, 1.442695
        %v3885 = vpow.pop %v3884
        %v3886 = vmul.f32 %v3879, 1.442695
        %v3887 = vpow.pop %v3886
        %v3888 = vsel %vm547, %v3881, 0.0
        %3889 = vadd.xlane.f32.xlu0 %v3888
        %v3890 = vpop.xlane.xlu0 %3889
        %v3891 = vsel %vm547, %v3883, 0.0
        %3892 = vadd.xlane.f32.xlu0 %v3891
        %v3893 = vpop.xlane.xlu0 %3892
        %v3894 = vsel %vm547, %v3885, 0.0
        %3895 = vadd.xlane.f32.xlu0 %v3894
        %v3896 = vpop.xlane.xlu0 %3895
        %v3897 = vsel %vm547, %v3887, 0.0
        %3898 = vadd.xlane.f32.xlu0 %v3897
        %v3899 = vpop.xlane.xlu0 %3898
        %v3900 = vrcp.pop %v3890
        %v3901 = vmul.f32 %v3881, %v3900
        %v3902 = vrcp.pop %v3893
        %v3903 = vmul.f32 %v3883, %v3902
        %v3904 = vrcp.pop %v3896
        %v3905 = vmul.f32 %v3885, %v3904
        %v3906 = vrcp.pop %v3899
        %v3907 = vmul.f32 %v3887, %v3906
        %3909 = vrot.lane.b32.xlu0 %v3544, 80
        %v3910 = vpop.permute.xlu0 %3909
        %v3913 = vsel %vm547, %v3901, 0
        %3915 = vmatprep.subr.mxu0 0.0
        %3916 = vmatpush1.msra.mxu0 0.0
        %3917 = vmatprep.subr.mxu0 0.0
        %3918 = vmatpush1.msra.mxu0 0.0
        %3919 = vmatprep.subr.mxu0 0.0
        %3920 = vmatpush1.msra.mxu0 0.0
        %3921 = vmatprep.subr.mxu0 0.0
        %3922 = vmatpush1.msra.mxu0 0.0
        %3923 = vmatprep.subr.mxu0 0.0
        %3924 = vmatpush1.msra.mxu0 0.0
        %3925 = vmatprep.subr.mxu0 0.0
        %3926 = vmatpush1.msra.mxu0 0.0
        %3927 = vmatprep.subr.mxu0 0.0
        %3928 = vmatpush1.msra.mxu0 0.0
        %3929 = vmatprep.subr.mxu0 0.0
        %3930 = vmatpush1.msra.mxu0 0.0
        %3931 = vmatprep.subr.mxu0 0.0
        %3932 = vmatpush1.msra.mxu0 0.0
        %3933 = vmatprep.subr.mxu0 0.0
        %3934 = vmatpush1.msra.mxu0 0.0
        %3935 = vmatprep.subr.mxu0 0.0
        %3936 = vmatpush1.msra.mxu0 0.0
        %3937 = vmatprep.subr.mxu0 0.0
        %3938 = vmatpush1.msra.mxu0 0.0
        %3939 = vmatprep.subr.mxu0 0.0
        %3940 = vmatpush1.msra.mxu0 0.0
        %3941 = vmatprep.subr.mxu0 0.0
        %3942 = vmatpush1.msra.mxu0 0.0
        %3943 = vmatprep.subr.mxu0 0.0
        %3944 = vmatpush1.msra.mxu0 0.0
        %3945 = vmatprep.subr.mxu0 0.0
        %3946 = vmatpush1.msra.mxu0 %v3910
        %3947 = vmatprep.subr.mxu0 0.0
        %3948 = vmatpush2.msra.mxu0 0.0
        %3949 = vmatprep.subr.mxu0 0.0
        %3950 = vmatpush2.msra.mxu0 0.0
        %3951 = vmatprep.subr.mxu0 0.0
        %3952 = vmatpush2.msra.mxu0 0.0
        %3953 = vmatprep.subr.mxu0 0.0
        %3954 = vmatpush2.msra.mxu0 0.0
        %3955 = vmatprep.subr.mxu0 0.0
        %3956 = vmatpush2.msra.mxu0 0.0
        %3957 = vmatprep.subr.mxu0 0.0
        %3958 = vmatpush2.msra.mxu0 0.0
        %3959 = vmatprep.subr.mxu0 0.0
        %3960 = vmatpush2.msra.mxu0 0.0
        %3961 = vmatprep.subr.mxu0 0.0
        %3962 = vmatpush2.msra.mxu0 0.0
        %3963 = vmatprep.subr.mxu0 0.0
        %3964 = vmatpush2.msra.mxu0 0.0
        %3965 = vmatprep.subr.mxu0 0.0
        %3966 = vmatpush2.msra.mxu0 0.0
        %3967 = vmatprep.subr.mxu0 0.0
        %3968 = vmatpush2.msra.mxu0 0.0
        %3969 = vmatprep.subr.mxu0 0.0
        %3970 = vmatpush2.msra.mxu0 0.0
        %3971 = vmatprep.subr.mxu0 0.0
        %3972 = vmatpush2.msra.mxu0 0.0
        %3973 = vmatprep.subr.mxu0 0.0
        %3974 = vmatpush2.msra.mxu0 0.0
        %3975 = vmatprep.subr.mxu0 0.0
        %3976 = vmatpush2.msra.mxu0 0.0
        %3977 = vmatprep.subr.mxu0 0.0
        %3978 = vmatpush2.msra.mxu0 0.0
        %3979 = vmatprep.mubr.f32.mxu0 0.0
        %3980 = vmatmul.mubr.f32.gmra.mxu0 %v3913
        %v3981 = vpop.f32.mrf.mxu0
        %v3982 = vadd.f32 0.0, %v3981
        %v3983 = vpop.f32.mrf.mxu0
        %3984 = vdwg.mxu0
        %3986 = vrot.lane.b32.xlu0 %v3545, 80
        %v3987 = vpop.permute.xlu0 %3986
        %v3990 = vsel %vm547, %v3903, 0
        %3992 = vmatprep.subr.mxu0 0.0
        %3993 = vmatpush1.msra.mxu0 0.0
        %3994 = vmatprep.subr.mxu0 0.0
        %3995 = vmatpush1.msra.mxu0 0.0
        %3996 = vmatprep.subr.mxu0 0.0
        %3997 = vmatpush1.msra.mxu0 0.0
        %3998 = vmatprep.subr.mxu0 0.0
        %3999 = vmatpush1.msra.mxu0 0.0
        %4000 = vmatprep.subr.mxu0 0.0
        %4001 = vmatpush1.msra.mxu0 0.0
        %4002 = vmatprep.subr.mxu0 0.0
        %4003 = vmatpush1.msra.mxu0 0.0
        %4004 = vmatprep.subr.mxu0 0.0
        %4005 = vmatpush1.msra.mxu0 0.0
        %4006 = vmatprep.subr.mxu0 0.0
        %4007 = vmatpush1.msra.mxu0 0.0
        %4008 = vmatprep.subr.mxu0 0.0
        %4009 = vmatpush1.msra.mxu0 0.0
        %4010 = vmatprep.subr.mxu0 0.0
        %4011 = vmatpush1.msra.mxu0 0.0
        %4012 = vmatprep.subr.mxu0 0.0
        %4013 = vmatpush1.msra.mxu0 0.0
        %4014 = vmatprep.subr.mxu0 0.0
        %4015 = vmatpush1.msra.mxu0 0.0
        %4016 = vmatprep.subr.mxu0 0.0
        %4017 = vmatpush1.msra.mxu0 0.0
        %4018 = vmatprep.subr.mxu0 0.0
        %4019 = vmatpush1.msra.mxu0 0.0
        %4020 = vmatprep.subr.mxu0 0.0
        %4021 = vmatpush1.msra.mxu0 0.0
        %4022 = vmatprep.subr.mxu0 0.0
        %4023 = vmatpush1.msra.mxu0 %v3987
        %4024 = vmatprep.subr.mxu0 0.0
        %4025 = vmatpush2.msra.mxu0 0.0
        %4026 = vmatprep.subr.mxu0 0.0
        %4027 = vmatpush2.msra.mxu0 0.0
        %4028 = vmatprep.subr.mxu0 0.0
        %4029 = vmatpush2.msra.mxu0 0.0
        %4030 = vmatprep.subr.mxu0 0.0
        %4031 = vmatpush2.msra.mxu0 0.0
        %4032 = vmatprep.subr.mxu0 0.0
        %4033 = vmatpush2.msra.mxu0 0.0
        %4034 = vmatprep.subr.mxu0 0.0
        %4035 = vmatpush2.msra.mxu0 0.0
        %4036 = vmatprep.subr.mxu0 0.0
        %4037 = vmatpush2.msra.mxu0 0.0
        %4038 = vmatprep.subr.mxu0 0.0
        %4039 = vmatpush2.msra.mxu0 0.0
        %4040 = vmatprep.subr.mxu0 0.0
        %4041 = vmatpush2.msra.mxu0 0.0
        %4042 = vmatprep.subr.mxu0 0.0
        %4043 = vmatpush2.msra.mxu0 0.0
        %4044 = vmatprep.subr.mxu0 0.0
        %4045 = vmatpush2.msra.mxu0 0.0
        %4046 = vmatprep.subr.mxu0 0.0
        %4047 = vmatpush2.msra.mxu0 0.0
        %4048 = vmatprep.subr.mxu0 0.0
        %4049 = vmatpush2.msra.mxu0 0.0
        %4050 = vmatprep.subr.mxu0 0.0
        %4051 = vmatpush2.msra.mxu0 0.0
        %4052 = vmatprep.subr.mxu0 0.0
        %4053 = vmatpush2.msra.mxu0 0.0
        %4054 = vmatprep.subr.mxu0 0.0
        %4055 = vmatpush2.msra.mxu0 0.0
        %4056 = vmatprep.mubr.f32.mxu0 0.0
        %4057 = vmatmul.mubr.f32.gmra.mxu0 %v3990
        %v4058 = vpop.f32.mrf.mxu0
        %v4059 = vadd.f32 0.0, %v4058
        %v4060 = vpop.f32.mrf.mxu0
        %4061 = vdwg.mxu0
        %4063 = vrot.lane.b32.xlu0 %v3546, 80
        %v4064 = vpop.permute.xlu0 %4063
        %v4067 = vsel %vm547, %v3905, 0
        %4069 = vmatprep.subr.mxu0 0.0
        %4070 = vmatpush1.msra.mxu0 0.0
        %4071 = vmatprep.subr.mxu0 0.0
        %4072 = vmatpush1.msra.mxu0 0.0
        %4073 = vmatprep.subr.mxu0 0.0
        %4074 = vmatpush1.msra.mxu0 0.0
        %4075 = vmatprep.subr.mxu0 0.0
        %4076 = vmatpush1.msra.mxu0 0.0
        %4077 = vmatprep.subr.mxu0 0.0
        %4078 = vmatpush1.msra.mxu0 0.0
        %4079 = vmatprep.subr.mxu0 0.0
        %4080 = vmatpush1.msra.mxu0 0.0
        %4081 = vmatprep.subr.mxu0 0.0
        %4082 = vmatpush1.msra.mxu0 0.0
        %4083 = vmatprep.subr.mxu0 0.0
        %4084 = vmatpush1.msra.mxu0 0.0
        %4085 = vmatprep.subr.mxu0 0.0
        %4086 = vmatpush1.msra.mxu0 0.0
        %4087 = vmatprep.subr.mxu0 0.0
        %4088 = vmatpush1.msra.mxu0 0.0
        %4089 = vmatprep.subr.mxu0 0.0
        %4090 = vmatpush1.msra.mxu0 0.0
        %4091 = vmatprep.subr.mxu0 0.0
        %4092 = vmatpush1.msra.mxu0 0.0
        %4093 = vmatprep.subr.mxu0 0.0
        %4094 = vmatpush1.msra.mxu0 0.0
        %4095 = vmatprep.subr.mxu0 0.0
        %4096 = vmatpush1.msra.mxu0 0.0
        %4097 = vmatprep.subr.mxu0 0.0
        %4098 = vmatpush1.msra.mxu0 0.0
        %4099 = vmatprep.subr.mxu0 0.0
        %4100 = vmatpush1.msra.mxu0 %v4064
        %4101 = vmatprep.subr.mxu0 0.0
        %4102 = vmatpush2.msra.mxu0 0.0
        %4103 = vmatprep.subr.mxu0 0.0
        %4104 = vmatpush2.msra.mxu0 0.0
        %4105 = vmatprep.subr.mxu0 0.0
        %4106 = vmatpush2.msra.mxu0 0.0
        %4107 = vmatprep.subr.mxu0 0.0
        %4108 = vmatpush2.msra.mxu0 0.0
        %4109 = vmatprep.subr.mxu0 0.0
        %4110 = vmatpush2.msra.mxu0 0.0
        %4111 = vmatprep.subr.mxu0 0.0
        %4112 = vmatpush2.msra.mxu0 0.0
        %4113 = vmatprep.subr.mxu0 0.0
        %4114 = vmatpush2.msra.mxu0 0.0
        %4115 = vmatprep.subr.mxu0 0.0
        %4116 = vmatpush2.msra.mxu0 0.0
        %4117 = vmatprep.subr.mxu0 0.0
        %4118 = vmatpush2.msra.mxu0 0.0
        %4119 = vmatprep.subr.mxu0 0.0
        %4120 = vmatpush2.msra.mxu0 0.0
        %4121 = vmatprep.subr.mxu0 0.0
        %4122 = vmatpush2.msra.mxu0 0.0
        %4123 = vmatprep.subr.mxu0 0.0
        %4124 = vmatpush2.msra.mxu0 0.0
        %4125 = vmatprep.subr.mxu0 0.0
        %4126 = vmatpush2.msra.mxu0 0.0
        %4127 = vmatprep.subr.mxu0 0.0
        %4128 = vmatpush2.msra.mxu0 0.0
        %4129 = vmatprep.subr.mxu0 0.0
        %4130 = vmatpush2.msra.mxu0 0.0
        %4131 = vmatprep.subr.mxu0 0.0
        %4132 = vmatpush2.msra.mxu0 0.0
        %4133 = vmatprep.mubr.f32.mxu0 0.0
        %4134 = vmatmul.mubr.f32.gmra.mxu0 %v4067
        %v4135 = vpop.f32.mrf.mxu0
        %v4136 = vadd.f32 0.0, %v4135
        %v4137 = vpop.f32.mrf.mxu0
        %4138 = vdwg.mxu0
        %4140 = vrot.lane.b32.xlu0 %v3547, 80
        %v4141 = vpop.permute.xlu0 %4140
        %v4144 = vsel %vm547, %v3907, 0
        %4146 = vmatprep.subr.mxu0 0.0
        %4147 = vmatpush1.msra.mxu0 0.0
        %4148 = vmatprep.subr.mxu0 0.0
        %4149 = vmatpush1.msra.mxu0 0.0
        %4150 = vmatprep.subr.mxu0 0.0
        %4151 = vmatpush1.msra.mxu0 0.0
        %4152 = vmatprep.subr.mxu0 0.0
        %4153 = vmatpush1.msra.mxu0 0.0
        %4154 = vmatprep.subr.mxu0 0.0
        %4155 = vmatpush1.msra.mxu0 0.0
        %4156 = vmatprep.subr.mxu0 0.0
        %4157 = vmatpush1.msra.mxu0 0.0
        %4158 = vmatprep.subr.mxu0 0.0
        %4159 = vmatpush1.msra.mxu0 0.0
        %4160 = vmatprep.subr.mxu0 0.0
        %4161 = vmatpush1.msra.mxu0 0.0
        %4162 = vmatprep.subr.mxu0 0.0
        %4163 = vmatpush1.msra.mxu0 0.0
        %4164 = vmatprep.subr.mxu0 0.0
        %4165 = vmatpush1.msra.mxu0 0.0
        %4166 = vmatprep.subr.mxu0 0.0
        %4167 = vmatpush1.msra.mxu0 0.0
        %4168 = vmatprep.subr.mxu0 0.0
        %4169 = vmatpush1.msra.mxu0 0.0
        %4170 = vmatprep.subr.mxu0 0.0
        %4171 = vmatpush1.msra.mxu0 0.0
        %4172 = vmatprep.subr.mxu0 0.0
        %4173 = vmatpush1.msra.mxu0 0.0
        %4174 = vmatprep.subr.mxu0 0.0
        %4175 = vmatpush1.msra.mxu0 0.0
        %4176 = vmatprep.subr.mxu0 0.0
        %4177 = vmatpush1.msra.mxu0 %v4141
        %4178 = vmatprep.subr.mxu0 0.0
        %4179 = vmatpush2.msra.mxu0 0.0
        %4180 = vmatprep.subr.mxu0 0.0
        %4181 = vmatpush2.msra.mxu0 0.0
        %4182 = vmatprep.subr.mxu0 0.0
        %4183 = vmatpush2.msra.mxu0 0.0
        %4184 = vmatprep.subr.mxu0 0.0
        %4185 = vmatpush2.msra.mxu0 0.0
        %4186 = vmatprep.subr.mxu0 0.0
        %4187 = vmatpush2.msra.mxu0 0.0
        %4188 = vmatprep.subr.mxu0 0.0
        %4189 = vmatpush2.msra.mxu0 0.0
        %4190 = vmatprep.subr.mxu0 0.0
        %4191 = vmatpush2.msra.mxu0 0.0
        %4192 = vmatprep.subr.mxu0 0.0
        %4193 = vmatpush2.msra.mxu0 0.0
        %4194 = vmatprep.subr.mxu0 0.0
        %4195 = vmatpush2.msra.mxu0 0.0
        %4196 = vmatprep.subr.mxu0 0.0
        %4197 = vmatpush2.msra.mxu0 0.0
        %4198 = vmatprep.subr.mxu0 0.0
        %4199 = vmatpush2.msra.mxu0 0.0
        %4200 = vmatprep.subr.mxu0 0.0
        %4201 = vmatpush2.msra.mxu0 0.0
        %4202 = vmatprep.subr.mxu0 0.0
        %4203 = vmatpush2.msra.mxu0 0.0
        %4204 = vmatprep.subr.mxu0 0.0
        %4205 = vmatpush2.msra.mxu0 0.0
        %4206 = vmatprep.subr.mxu0 0.0
        %4207 = vmatpush2.msra.mxu0 0.0
        %4208 = vmatprep.subr.mxu0 0.0
        %4209 = vmatpush2.msra.mxu0 0.0
        %4210 = vmatprep.mubr.f32.mxu0 0.0
        %4211 = vmatmul.mubr.f32.gmra.mxu0 %v4144
        %v4212 = vpop.f32.mrf.mxu0
        %v4213 = vadd.f32 0.0, %v4212
        %v4214 = vpop.f32.mrf.mxu0
        %4215 = vdwg.mxu0
        %4216 = vrot.lane.b32.xlu0 %v3520, 120
        %v4217 = vpop.permute.xlu0 %4216
        %4218 = vrot.lane.b32.xlu0 %v3532, 96
        %v4219 = vpop.permute.xlu0 %4218
        %v4220 = vsel %vm547, %v4217, 0
        %v4222 = vsel %vm547, %v4219, 0
        %4224 = vmatprep.subr.mxu0 0.0
        %4225 = vmatpush1.xpose.msra.mxu0 0.0
        %4226 = vmatprep.subr.mxu0 0.0
        %4227 = vmatpush1.xpose.msra.mxu0 0.0
        %4228 = vmatprep.subr.mxu0 0.0
        %4229 = vmatpush1.xpose.msra.mxu0 0.0
        %4230 = vmatprep.subr.mxu0 0.0
        %4231 = vmatpush1.xpose.msra.mxu0 0.0
        %4232 = vmatprep.subr.mxu0 0.0
        %4233 = vmatpush1.xpose.msra.mxu0 0.0
        %4234 = vmatprep.subr.mxu0 0.0
        %4235 = vmatpush1.xpose.msra.mxu0 0.0
        %4236 = vmatprep.subr.mxu0 0.0
        %4237 = vmatpush1.xpose.msra.mxu0 0.0
        %4238 = vmatprep.subr.mxu0 0.0
        %4239 = vmatpush1.xpose.msra.mxu0 0.0
        %4240 = vmatprep.subr.mxu0 0.0
        %4241 = vmatpush1.xpose.msra.mxu0 0.0
        %4242 = vmatprep.subr.mxu0 0.0
        %4243 = vmatpush1.xpose.msra.mxu0 0.0
        %4244 = vmatprep.subr.mxu0 0.0
        %4245 = vmatpush1.xpose.msra.mxu0 0.0
        %4246 = vmatprep.subr.mxu0 0.0
        %4247 = vmatpush1.xpose.msra.mxu0 0.0
        %4248 = vmatprep.subr.mxu0 0.0
        %4249 = vmatpush1.xpose.msra.mxu0 0.0
        %4250 = vmatprep.subr.mxu0 0.0
        %4251 = vmatpush1.xpose.msra.mxu0 0.0
        %4252 = vmatprep.subr.mxu0 0.0
        %4253 = vmatpush1.xpose.msra.mxu0 0.0
        %4254 = vmatprep.subr.mxu0 0.0
        %4255 = vmatpush1.xpose.msra.mxu0 %v4222
        %4256 = vmatprep.subr.mxu0 0.0
        %4257 = vmatpush2.xpose.msra.mxu0 0.0
        %4258 = vmatprep.subr.mxu0 0.0
        %4259 = vmatpush2.xpose.msra.mxu0 0.0
        %4260 = vmatprep.subr.mxu0 0.0
        %4261 = vmatpush2.xpose.msra.mxu0 0.0
        %4262 = vmatprep.subr.mxu0 0.0
        %4263 = vmatpush2.xpose.msra.mxu0 0.0
        %4264 = vmatprep.subr.mxu0 0.0
        %4265 = vmatpush2.xpose.msra.mxu0 0.0
        %4266 = vmatprep.subr.mxu0 0.0
        %4267 = vmatpush2.xpose.msra.mxu0 0.0
        %4268 = vmatprep.subr.mxu0 0.0
        %4269 = vmatpush2.xpose.msra.mxu0 0.0
        %4270 = vmatprep.subr.mxu0 0.0
        %4271 = vmatpush2.xpose.msra.mxu0 0.0
        %4272 = vmatprep.subr.mxu0 0.0
        %4273 = vmatpush2.xpose.msra.mxu0 0.0
        %4274 = vmatprep.subr.mxu0 0.0
        %4275 = vmatpush2.xpose.msra.mxu0 0.0
        %4276 = vmatprep.subr.mxu0 0.0
        %4277 = vmatpush2.xpose.msra.mxu0 0.0
        %4278 = vmatprep.subr.mxu0 0.0
        %4279 = vmatpush2.xpose.msra.mxu0 0.0
        %4280 = vmatprep.subr.mxu0 0.0
        %4281 = vmatpush2.xpose.msra.mxu0 0.0
        %4282 = vmatprep.subr.mxu0 0.0
        %4283 = vmatpush2.xpose.msra.mxu0 0.0
        %4284 = vmatprep.subr.mxu0 0.0
        %4285 = vmatpush2.xpose.msra.mxu0 0.0
        %4286 = vmatprep.subr.mxu0 0.0
        %4287 = vmatpush2.xpose.msra.mxu0 0.0
        %4288 = vmatprep.mubr.f32.mxu0 0.0
        %4289 = vmatmul.mubr.f32.gmra.mxu0 %v4220
        %v4290 = vpop.f32.mrf.mxu0
        %v4291 = vadd.f32 0.0, %v4290
        %v4292 = vpop.f32.mrf.mxu0
        %4293 = vdwg.mxu0
        %4294 = vrot.lane.b32.xlu0 %v3521, 120
        %v4295 = vpop.permute.xlu0 %4294
        %4296 = vrot.lane.b32.xlu0 %v3533, 96
        %v4297 = vpop.permute.xlu0 %4296
        %v4298 = vsel %vm547, %v4295, 0
        %v4300 = vsel %vm547, %v4297, 0
        %4302 = vmatprep.subr.mxu0 0.0
        %4303 = vmatpush1.xpose.msra.mxu0 0.0
        %4304 = vmatprep.subr.mxu0 0.0
        %4305 = vmatpush1.xpose.msra.mxu0 0.0
        %4306 = vmatprep.subr.mxu0 0.0
        %4307 = vmatpush1.xpose.msra.mxu0 0.0
        %4308 = vmatprep.subr.mxu0 0.0
        %4309 = vmatpush1.xpose.msra.mxu0 0.0
        %4310 = vmatprep.subr.mxu0 0.0
        %4311 = vmatpush1.xpose.msra.mxu0 0.0
        %4312 = vmatprep.subr.mxu0 0.0
        %4313 = vmatpush1.xpose.msra.mxu0 0.0
        %4314 = vmatprep.subr.mxu0 0.0
        %4315 = vmatpush1.xpose.msra.mxu0 0.0
        %4316 = vmatprep.subr.mxu0 0.0
        %4317 = vmatpush1.xpose.msra.mxu0 0.0
        %4318 = vmatprep.subr.mxu0 0.0
        %4319 = vmatpush1.xpose.msra.mxu0 0.0
        %4320 = vmatprep.subr.mxu0 0.0
        %4321 = vmatpush1.xpose.msra.mxu0 0.0
        %4322 = vmatprep.subr.mxu0 0.0
        %4323 = vmatpush1.xpose.msra.mxu0 0.0
        %4324 = vmatprep.subr.mxu0 0.0
        %4325 = vmatpush1.xpose.msra.mxu0 0.0
        %4326 = vmatprep.subr.mxu0 0.0
        %4327 = vmatpush1.xpose.msra.mxu0 0.0
        %4328 = vmatprep.subr.mxu0 0.0
        %4329 = vmatpush1.xpose.msra.mxu0 0.0
        %4330 = vmatprep.subr.mxu0 0.0
        %4331 = vmatpush1.xpose.msra.mxu0 0.0
        %4332 = vmatprep.subr.mxu0 0.0
        %4333 = vmatpush1.xpose.msra.mxu0 %v4300
        %4334 = vmatprep.subr.mxu0 0.0
        %4335 = vmatpush2.xpose.msra.mxu0 0.0
        %4336 = vmatprep.subr.mxu0 0.0
        %4337 = vmatpush2.xpose.msra.mxu0 0.0
        %4338 = vmatprep.subr.mxu0 0.0
        %4339 = vmatpush2.xpose.msra.mxu0 0.0
        %4340 = vmatprep.subr.mxu0 0.0
        %4341 = vmatpush2.xpose.msra.mxu0 0.0
        %4342 = vmatprep.subr.mxu0 0.0
        %4343 = vmatpush2.xpose.msra.mxu0 0.0
        %4344 = vmatprep.subr.mxu0 0.0
        %4345 = vmatpush2.xpose.msra.mxu0 0.0
        %4346 = vmatprep.subr.mxu0 0.0
        %4347 = vmatpush2.xpose.msra.mxu0 0.0
        %4348 = vmatprep.subr.mxu0 0.0
        %4349 = vmatpush2.xpose.msra.mxu0 0.0
        %4350 = vmatprep.subr.mxu0 0.0
        %4351 = vmatpush2.xpose.msra.mxu0 0.0
        %4352 = vmatprep.subr.mxu0 0.0
        %4353 = vmatpush2.xpose.msra.mxu0 0.0
        %4354 = vmatprep.subr.mxu0 0.0
        %4355 = vmatpush2.xpose.msra.mxu0 0.0
        %4356 = vmatprep.subr.mxu0 0.0
        %4357 = vmatpush2.xpose.msra.mxu0 0.0
        %4358 = vmatprep.subr.mxu0 0.0
        %4359 = vmatpush2.xpose.msra.mxu0 0.0
        %4360 = vmatprep.subr.mxu0 0.0
        %4361 = vmatpush2.xpose.msra.mxu0 0.0
        %4362 = vmatprep.subr.mxu0 0.0
        %4363 = vmatpush2.xpose.msra.mxu0 0.0
        %4364 = vmatprep.subr.mxu0 0.0
        %4365 = vmatpush2.xpose.msra.mxu0 0.0
        %4366 = vmatprep.mubr.f32.mxu0 0.0
        %4367 = vmatmul.mubr.f32.gmra.mxu0 %v4298
        %v4368 = vpop.f32.mrf.mxu0
        %v4369 = vadd.f32 0.0, %v4368
        %v4370 = vpop.f32.mrf.mxu0
        %4371 = vdwg.mxu0
        %4372 = vrot.lane.b32.xlu0 %v3522, 120
        %v4373 = vpop.permute.xlu0 %4372
        %4374 = vrot.lane.b32.xlu0 %v3534, 96
        %v4375 = vpop.permute.xlu0 %4374
        %v4376 = vsel %vm547, %v4373, 0
        %v4378 = vsel %vm547, %v4375, 0
        %4380 = vmatprep.subr.mxu0 0.0
        %4381 = vmatpush1.xpose.msra.mxu0 0.0
        %4382 = vmatprep.subr.mxu0 0.0
        %4383 = vmatpush1.xpose.msra.mxu0 0.0
        %4384 = vmatprep.subr.mxu0 0.0
        %4385 = vmatpush1.xpose.msra.mxu0 0.0
        %4386 = vmatprep.subr.mxu0 0.0
        %4387 = vmatpush1.xpose.msra.mxu0 0.0
        %4388 = vmatprep.subr.mxu0 0.0
        %4389 = vmatpush1.xpose.msra.mxu0 0.0
        %4390 = vmatprep.subr.mxu0 0.0
        %4391 = vmatpush1.xpose.msra.mxu0 0.0
        %4392 = vmatprep.subr.mxu0 0.0
        %4393 = vmatpush1.xpose.msra.mxu0 0.0
        %4394 = vmatprep.subr.mxu0 0.0
        %4395 = vmatpush1.xpose.msra.mxu0 0.0
        %4396 = vmatprep.subr.mxu0 0.0
        %4397 = vmatpush1.xpose.msra.mxu0 0.0
        %4398 = vmatprep.subr.mxu0 0.0
        %4399 = vmatpush1.xpose.msra.mxu0 0.0
        %4400 = vmatprep.subr.mxu0 0.0
        %4401 = vmatpush1.xpose.msra.mxu0 0.0
        %4402 = vmatprep.subr.mxu0 0.0
        %4403 = vmatpush1.xpose.msra.mxu0 0.0
        %4404 = vmatprep.subr.mxu0 0.0
        %4405 = vmatpush1.xpose.msra.mxu0 0.0
        %4406 = vmatprep.subr.mxu0 0.0
        %4407 = vmatpush1.xpose.msra.mxu0 0.0
        %4408 = vmatprep.subr.mxu0 0.0
        %4409 = vmatpush1.xpose.msra.mxu0 0.0
        %4410 = vmatprep.subr.mxu0 0.0
        %4411 = vmatpush1.xpose.msra.mxu0 %v4378
        %4412 = vmatprep.subr.mxu0 0.0
        %4413 = vmatpush2.xpose.msra.mxu0 0.0
        %4414 = vmatprep.subr.mxu0 0.0
        %4415 = vmatpush2.xpose.msra.mxu0 0.0
        %4416 = vmatprep.subr.mxu0 0.0
        %4417 = vmatpush2.xpose.msra.mxu0 0.0
        %4418 = vmatprep.subr.mxu0 0.0
        %4419 = vmatpush2.xpose.msra.mxu0 0.0
        %4420 = vmatprep.subr.mxu0 0.0
        %4421 = vmatpush2.xpose.msra.mxu0 0.0
        %4422 = vmatprep.subr.mxu0 0.0
        %4423 = vmatpush2.xpose.msra.mxu0 0.0
        %4424 = vmatprep.subr.mxu0 0.0
        %4425 = vmatpush2.xpose.msra.mxu0 0.0
        %4426 = vmatprep.subr.mxu0 0.0
        %4427 = vmatpush2.xpose.msra.mxu0 0.0
        %4428 = vmatprep.subr.mxu0 0.0
        %4429 = vmatpush2.xpose.msra.mxu0 0.0
        %4430 = vmatprep.subr.mxu0 0.0
        %4431 = vmatpush2.xpose.msra.mxu0 0.0
        %4432 = vmatprep.subr.mxu0 0.0
        %4433 = vmatpush2.xpose.msra.mxu0 0.0
        %4434 = vmatprep.subr.mxu0 0.0
        %4435 = vmatpush2.xpose.msra.mxu0 0.0
        %4436 = vmatprep.subr.mxu0 0.0
        %4437 = vmatpush2.xpose.msra.mxu0 0.0
        %4438 = vmatprep.subr.mxu0 0.0
        %4439 = vmatpush2.xpose.msra.mxu0 0.0
        %4440 = vmatprep.subr.mxu0 0.0
        %4441 = vmatpush2.xpose.msra.mxu0 0.0
        %4442 = vmatprep.subr.mxu0 0.0
        %4443 = vmatpush2.xpose.msra.mxu0 0.0
        %4444 = vmatprep.mubr.f32.mxu0 0.0
        %4445 = vmatmul.mubr.f32.gmra.mxu0 %v4376
        %v4446 = vpop.f32.mrf.mxu0
        %v4447 = vadd.f32 0.0, %v4446
        %v4448 = vpop.f32.mrf.mxu0
        %4449 = vdwg.mxu0
        %4450 = vrot.lane.b32.xlu0 %v3523, 120
        %v4451 = vpop.permute.xlu0 %4450
        %4452 = vrot.lane.b32.xlu0 %v3535, 96
        %v4453 = vpop.permute.xlu0 %4452
        %v4454 = vsel %vm547, %v4451, 0
        %v4456 = vsel %vm547, %v4453, 0
        %4458 = vmatprep.subr.mxu0 0.0
        %4459 = vmatpush1.xpose.msra.mxu0 0.0
        %4460 = vmatprep.subr.mxu0 0.0
        %4461 = vmatpush1.xpose.msra.mxu0 0.0
        %4462 = vmatprep.subr.mxu0 0.0
        %4463 = vmatpush1.xpose.msra.mxu0 0.0
        %4464 = vmatprep.subr.mxu0 0.0
        %4465 = vmatpush1.xpose.msra.mxu0 0.0
        %4466 = vmatprep.subr.mxu0 0.0
        %4467 = vmatpush1.xpose.msra.mxu0 0.0
        %4468 = vmatprep.subr.mxu0 0.0
        %4469 = vmatpush1.xpose.msra.mxu0 0.0
        %4470 = vmatprep.subr.mxu0 0.0
        %4471 = vmatpush1.xpose.msra.mxu0 0.0
        %4472 = vmatprep.subr.mxu0 0.0
        %4473 = vmatpush1.xpose.msra.mxu0 0.0
        %4474 = vmatprep.subr.mxu0 0.0
        %4475 = vmatpush1.xpose.msra.mxu0 0.0
        %4476 = vmatprep.subr.mxu0 0.0
        %4477 = vmatpush1.xpose.msra.mxu0 0.0
        %4478 = vmatprep.subr.mxu0 0.0
        %4479 = vmatpush1.xpose.msra.mxu0 0.0
        %4480 = vmatprep.subr.mxu0 0.0
        %4481 = vmatpush1.xpose.msra.mxu0 0.0
        %4482 = vmatprep.subr.mxu0 0.0
        %4483 = vmatpush1.xpose.msra.mxu0 0.0
        %4484 = vmatprep.subr.mxu0 0.0
        %4485 = vmatpush1.xpose.msra.mxu0 0.0
        %4486 = vmatprep.subr.mxu0 0.0
        %4487 = vmatpush1.xpose.msra.mxu0 0.0
        %4488 = vmatprep.subr.mxu0 0.0
        %4489 = vmatpush1.xpose.msra.mxu0 %v4456
        %4490 = vmatprep.subr.mxu0 0.0
        %4491 = vmatpush2.xpose.msra.mxu0 0.0
        %4492 = vmatprep.subr.mxu0 0.0
        %4493 = vmatpush2.xpose.msra.mxu0 0.0
        %4494 = vmatprep.subr.mxu0 0.0
        %4495 = vmatpush2.xpose.msra.mxu0 0.0
        %4496 = vmatprep.subr.mxu0 0.0
        %4497 = vmatpush2.xpose.msra.mxu0 0.0
        %4498 = vmatprep.subr.mxu0 0.0
        %4499 = vmatpush2.xpose.msra.mxu0 0.0
        %4500 = vmatprep.subr.mxu0 0.0
        %4501 = vmatpush2.xpose.msra.mxu0 0.0
        %4502 = vmatprep.subr.mxu0 0.0
        %4503 = vmatpush2.xpose.msra.mxu0 0.0
        %4504 = vmatprep.subr.mxu0 0.0
        %4505 = vmatpush2.xpose.msra.mxu0 0.0
        %4506 = vmatprep.subr.mxu0 0.0
        %4507 = vmatpush2.xpose.msra.mxu0 0.0
        %4508 = vmatprep.subr.mxu0 0.0
        %4509 = vmatpush2.xpose.msra.mxu0 0.0
        %4510 = vmatprep.subr.mxu0 0.0
        %4511 = vmatpush2.xpose.msra.mxu0 0.0
        %4512 = vmatprep.subr.mxu0 0.0
        %4513 = vmatpush2.xpose.msra.mxu0 0.0
        %4514 = vmatprep.subr.mxu0 0.0
        %4515 = vmatpush2.xpose.msra.mxu0 0.0
        %4516 = vmatprep.subr.mxu0 0.0
        %4517 = vmatpush2.xpose.msra.mxu0 0.0
        %4518 = vmatprep.subr.mxu0 0.0
        %4519 = vmatpush2.xpose.msra.mxu0 0.0
        %4520 = vmatprep.subr.mxu0 0.0
        %4521 = vmatpush2.xpose.msra.mxu0 0.0
        %4522 = vmatprep.mubr.f32.mxu0 0.0
        %4523 = vmatmul.mubr.f32.gmra.mxu0 %v4454
        %v4524 = vpop.f32.mrf.mxu0
        %v4525 = vadd.f32 0.0, %v4524
        %v4526 = vpop.f32.mrf.mxu0
        %4527 = vdwg.mxu0
        %v4528 = vsel %vm547, %v4291, -inf
        %4529 = vmax.xlane.f32.xlu0 %v4528
        %v4530 = vpop.xlane.xlu0 %4529
        %v4531 = vsel %vm547, %v4369, -inf
        %4532 = vmax.xlane.f32.xlu0 %v4531
        %v4533 = vpop.xlane.xlu0 %4532
        %v4534 = vsel %vm547, %v4447, -inf
        %4535 = vmax.xlane.f32.xlu0 %v4534
        %v4536 = vpop.xlane.xlu0 %4535
        %v4537 = vsel %vm547, %v4525, -inf
        %4538 = vmax.xlane.f32.xlu0 %v4537
        %v4539 = vpop.xlane.xlu0 %4538
        %v4540 = vsub.f32 %v4291, %v4530
        %v4541 = vsub.f32 %v4369, %v4533
        %v4542 = vsub.f32 %v4447, %v4536
        %v4543 = vsub.f32 %v4525, %v4539
        %v4544 = vmul.f32 %v4540, 1.442695
        %v4545 = vpow.pop %v4544
        %v4546 = vmul.f32 %v4541, 1.442695
        %v4547 = vpow.pop %v4546
        %v4548 = vmul.f32 %v4542, 1.442695
        %v4549 = vpow.pop %v4548
        %v4550 = vmul.f32 %v4543, 1.442695
        %v4551 = vpow.pop %v4550
        %v4552 = vsel %vm547, %v4545, 0.0
        %4553 = vadd.xlane.f32.xlu0 %v4552
        %v4554 = vpop.xlane.xlu0 %4553
        %v4555 = vsel %vm547, %v4547, 0.0
        %4556 = vadd.xlane.f32.xlu0 %v4555
        %v4557 = vpop.xlane.xlu0 %4556
        %v4558 = vsel %vm547, %v4549, 0.0
        %4559 = vadd.xlane.f32.xlu0 %v4558
        %v4560 = vpop.xlane.xlu0 %4559
        %v4561 = vsel %vm547, %v4551, 0.0
        %4562 = vadd.xlane.f32.xlu0 %v4561
        %v4563 = vpop.xlane.xlu0 %4562
        %v4564 = vrcp.pop %v4554
        %v4565 = vmul.f32 %v4545, %v4564
        %v4566 = vrcp.pop %v4557
        %v4567 = vmul.f32 %v4547, %v4566
        %v4568 = vrcp.pop %v4560
        %v4569 = vmul.f32 %v4549, %v4568
        %v4570 = vrcp.pop %v4563
        %v4571 = vmul.f32 %v4551, %v4570
        %4572 = vrot.lane.b32.xlu0 %v3544, 72
        %v4573 = vpop.permute.xlu0 %4572
        %v4576 = vsel %vm547, %v4565, 0
        %4578 = vmatprep.subr.mxu0 0.0
        %4579 = vmatpush1.msra.mxu0 0.0
        %4580 = vmatprep.subr.mxu0 0.0
        %4581 = vmatpush1.msra.mxu0 0.0
        %4582 = vmatprep.subr.mxu0 0.0
        %4583 = vmatpush1.msra.mxu0 0.0
        %4584 = vmatprep.subr.mxu0 0.0
        %4585 = vmatpush1.msra.mxu0 0.0
        %4586 = vmatprep.subr.mxu0 0.0
        %4587 = vmatpush1.msra.mxu0 0.0
        %4588 = vmatprep.subr.mxu0 0.0
        %4589 = vmatpush1.msra.mxu0 0.0
        %4590 = vmatprep.subr.mxu0 0.0
        %4591 = vmatpush1.msra.mxu0 0.0
        %4592 = vmatprep.subr.mxu0 0.0
        %4593 = vmatpush1.msra.mxu0 0.0
        %4594 = vmatprep.subr.mxu0 0.0
        %4595 = vmatpush1.msra.mxu0 0.0
        %4596 = vmatprep.subr.mxu0 0.0
        %4597 = vmatpush1.msra.mxu0 0.0
        %4598 = vmatprep.subr.mxu0 0.0
        %4599 = vmatpush1.msra.mxu0 0.0
        %4600 = vmatprep.subr.mxu0 0.0
        %4601 = vmatpush1.msra.mxu0 0.0
        %4602 = vmatprep.subr.mxu0 0.0
        %4603 = vmatpush1.msra.mxu0 0.0
        %4604 = vmatprep.subr.mxu0 0.0
        %4605 = vmatpush1.msra.mxu0 0.0
        %4606 = vmatprep.subr.mxu0 0.0
        %4607 = vmatpush1.msra.mxu0 0.0
        %4608 = vmatprep.subr.mxu0 0.0
        %4609 = vmatpush1.msra.mxu0 %v4573
        %4610 = vmatprep.subr.mxu0 0.0
        %4611 = vmatpush2.msra.mxu0 0.0
        %4612 = vmatprep.subr.mxu0 0.0
        %4613 = vmatpush2.msra.mxu0 0.0
        %4614 = vmatprep.subr.mxu0 0.0
        %4615 = vmatpush2.msra.mxu0 0.0
        %4616 = vmatprep.subr.mxu0 0.0
        %4617 = vmatpush2.msra.mxu0 0.0
        %4618 = vmatprep.subr.mxu0 0.0
        %4619 = vmatpush2.msra.mxu0 0.0
        %4620 = vmatprep.subr.mxu0 0.0
        %4621 = vmatpush2.msra.mxu0 0.0
        %4622 = vmatprep.subr.mxu0 0.0
        %4623 = vmatpush2.msra.mxu0 0.0
        %4624 = vmatprep.subr.mxu0 0.0
        %4625 = vmatpush2.msra.mxu0 0.0
        %4626 = vmatprep.subr.mxu0 0.0
        %4627 = vmatpush2.msra.mxu0 0.0
        %4628 = vmatprep.subr.mxu0 0.0
        %4629 = vmatpush2.msra.mxu0 0.0
        %4630 = vmatprep.subr.mxu0 0.0
        %4631 = vmatpush2.msra.mxu0 0.0
        %4632 = vmatprep.subr.mxu0 0.0
        %4633 = vmatpush2.msra.mxu0 0.0
        %4634 = vmatprep.subr.mxu0 0.0
        %4635 = vmatpush2.msra.mxu0 0.0
        %4636 = vmatprep.subr.mxu0 0.0
        %4637 = vmatpush2.msra.mxu0 0.0
        %4638 = vmatprep.subr.mxu0 0.0
        %4639 = vmatpush2.msra.mxu0 0.0
        %4640 = vmatprep.subr.mxu0 0.0
        %4641 = vmatpush2.msra.mxu0 0.0
        %4642 = vmatprep.mubr.f32.mxu0 0.0
        %4643 = vmatmul.mubr.f32.gmra.mxu0 %v4576
        %v4644 = vpop.f32.mrf.mxu0
        %v4645 = vadd.f32 0.0, %v4644
        %v4646 = vpop.f32.mrf.mxu0
        %4647 = vdwg.mxu0
        %4648 = vrot.lane.b32.xlu0 %v3545, 72
        %v4649 = vpop.permute.xlu0 %4648
        %v4652 = vsel %vm547, %v4567, 0
        %4654 = vmatprep.subr.mxu0 0.0
        %4655 = vmatpush1.msra.mxu0 0.0
        %4656 = vmatprep.subr.mxu0 0.0
        %4657 = vmatpush1.msra.mxu0 0.0
        %4658 = vmatprep.subr.mxu0 0.0
        %4659 = vmatpush1.msra.mxu0 0.0
        %4660 = vmatprep.subr.mxu0 0.0
        %4661 = vmatpush1.msra.mxu0 0.0
        %4662 = vmatprep.subr.mxu0 0.0
        %4663 = vmatpush1.msra.mxu0 0.0
        %4664 = vmatprep.subr.mxu0 0.0
        %4665 = vmatpush1.msra.mxu0 0.0
        %4666 = vmatprep.subr.mxu0 0.0
        %4667 = vmatpush1.msra.mxu0 0.0
        %4668 = vmatprep.subr.mxu0 0.0
        %4669 = vmatpush1.msra.mxu0 0.0
        %4670 = vmatprep.subr.mxu0 0.0
        %4671 = vmatpush1.msra.mxu0 0.0
        %4672 = vmatprep.subr.mxu0 0.0
        %4673 = vmatpush1.msra.mxu0 0.0
        %4674 = vmatprep.subr.mxu0 0.0
        %4675 = vmatpush1.msra.mxu0 0.0
        %4676 = vmatprep.subr.mxu0 0.0
        %4677 = vmatpush1.msra.mxu0 0.0
        %4678 = vmatprep.subr.mxu0 0.0
        %4679 = vmatpush1.msra.mxu0 0.0
        %4680 = vmatprep.subr.mxu0 0.0
        %4681 = vmatpush1.msra.mxu0 0.0
        %4682 = vmatprep.subr.mxu0 0.0
        %4683 = vmatpush1.msra.mxu0 0.0
        %4684 = vmatprep.subr.mxu0 0.0
        %4685 = vmatpush1.msra.mxu0 %v4649
        %4686 = vmatprep.subr.mxu0 0.0
        %4687 = vmatpush2.msra.mxu0 0.0
        %4688 = vmatprep.subr.mxu0 0.0
        %4689 = vmatpush2.msra.mxu0 0.0
        %4690 = vmatprep.subr.mxu0 0.0
        %4691 = vmatpush2.msra.mxu0 0.0
        %4692 = vmatprep.subr.mxu0 0.0
        %4693 = vmatpush2.msra.mxu0 0.0
        %4694 = vmatprep.subr.mxu0 0.0
        %4695 = vmatpush2.msra.mxu0 0.0
        %4696 = vmatprep.subr.mxu0 0.0
        %4697 = vmatpush2.msra.mxu0 0.0
        %4698 = vmatprep.subr.mxu0 0.0
        %4699 = vmatpush2.msra.mxu0 0.0
        %4700 = vmatprep.subr.mxu0 0.0
        %4701 = vmatpush2.msra.mxu0 0.0
        %4702 = vmatprep.subr.mxu0 0.0
        %4703 = vmatpush2.msra.mxu0 0.0
        %4704 = vmatprep.subr.mxu0 0.0
        %4705 = vmatpush2.msra.mxu0 0.0
        %4706 = vmatprep.subr.mxu0 0.0
        %4707 = vmatpush2.msra.mxu0 0.0
        %4708 = vmatprep.subr.mxu0 0.0
        %4709 = vmatpush2.msra.mxu0 0.0
        %4710 = vmatprep.subr.mxu0 0.0
        %4711 = vmatpush2.msra.mxu0 0.0
        %4712 = vmatprep.subr.mxu0 0.0
        %4713 = vmatpush2.msra.mxu0 0.0
        %4714 = vmatprep.subr.mxu0 0.0
        %4715 = vmatpush2.msra.mxu0 0.0
        %4716 = vmatprep.subr.mxu0 0.0
        %4717 = vmatpush2.msra.mxu0 0.0
        %4718 = vmatprep.mubr.f32.mxu0 0.0
        %4719 = vmatmul.mubr.f32.gmra.mxu0 %v4652
        %v4720 = vpop.f32.mrf.mxu0
        %v4721 = vadd.f32 0.0, %v4720
        %v4722 = vpop.f32.mrf.mxu0
        %4723 = vdwg.mxu0
        %4724 = vrot.lane.b32.xlu0 %v3546, 72
        %v4725 = vpop.permute.xlu0 %4724
        %v4728 = vsel %vm547, %v4569, 0
        %4730 = vmatprep.subr.mxu0 0.0
        %4731 = vmatpush1.msra.mxu0 0.0
        %4732 = vmatprep.subr.mxu0 0.0
        %4733 = vmatpush1.msra.mxu0 0.0
        %4734 = vmatprep.subr.mxu0 0.0
        %4735 = vmatpush1.msra.mxu0 0.0
        %4736 = vmatprep.subr.mxu0 0.0
        %4737 = vmatpush1.msra.mxu0 0.0
        %4738 = vmatprep.subr.mxu0 0.0
        %4739 = vmatpush1.msra.mxu0 0.0
        %4740 = vmatprep.subr.mxu0 0.0
        %4741 = vmatpush1.msra.mxu0 0.0
        %4742 = vmatprep.subr.mxu0 0.0
        %4743 = vmatpush1.msra.mxu0 0.0
        %4744 = vmatprep.subr.mxu0 0.0
        %4745 = vmatpush1.msra.mxu0 0.0
        %4746 = vmatprep.subr.mxu0 0.0
        %4747 = vmatpush1.msra.mxu0 0.0
        %4748 = vmatprep.subr.mxu0 0.0
        %4749 = vmatpush1.msra.mxu0 0.0
        %4750 = vmatprep.subr.mxu0 0.0
        %4751 = vmatpush1.msra.mxu0 0.0
        %4752 = vmatprep.subr.mxu0 0.0
        %4753 = vmatpush1.msra.mxu0 0.0
        %4754 = vmatprep.subr.mxu0 0.0
        %4755 = vmatpush1.msra.mxu0 0.0
        %4756 = vmatprep.subr.mxu0 0.0
        %4757 = vmatpush1.msra.mxu0 0.0
        %4758 = vmatprep.subr.mxu0 0.0
        %4759 = vmatpush1.msra.mxu0 0.0
        %4760 = vmatprep.subr.mxu0 0.0
        %4761 = vmatpush1.msra.mxu0 %v4725
        %4762 = vmatprep.subr.mxu0 0.0
        %4763 = vmatpush2.msra.mxu0 0.0
        %4764 = vmatprep.subr.mxu0 0.0
        %4765 = vmatpush2.msra.mxu0 0.0
        %4766 = vmatprep.subr.mxu0 0.0
        %4767 = vmatpush2.msra.mxu0 0.0
        %4768 = vmatprep.subr.mxu0 0.0
        %4769 = vmatpush2.msra.mxu0 0.0
        %4770 = vmatprep.subr.mxu0 0.0
        %4771 = vmatpush2.msra.mxu0 0.0
        %4772 = vmatprep.subr.mxu0 0.0
        %4773 = vmatpush2.msra.mxu0 0.0
        %4774 = vmatprep.subr.mxu0 0.0
        %4775 = vmatpush2.msra.mxu0 0.0
        %4776 = vmatprep.subr.mxu0 0.0
        %4777 = vmatpush2.msra.mxu0 0.0
        %4778 = vmatprep.subr.mxu0 0.0
        %4779 = vmatpush2.msra.mxu0 0.0
        %4780 = vmatprep.subr.mxu0 0.0
        %4781 = vmatpush2.msra.mxu0 0.0
        %4782 = vmatprep.subr.mxu0 0.0
        %4783 = vmatpush2.msra.mxu0 0.0
        %4784 = vmatprep.subr.mxu0 0.0
        %4785 = vmatpush2.msra.mxu0 0.0
        %4786 = vmatprep.subr.mxu0 0.0
        %4787 = vmatpush2.msra.mxu0 0.0
        %4788 = vmatprep.subr.mxu0 0.0
        %4789 = vmatpush2.msra.mxu0 0.0
        %4790 = vmatprep.subr.mxu0 0.0
        %4791 = vmatpush2.msra.mxu0 0.0
        %4792 = vmatprep.subr.mxu0 0.0
        %4793 = vmatpush2.msra.mxu0 0.0
        %4794 = vmatprep.mubr.f32.mxu0 0.0
        %4795 = vmatmul.mubr.f32.gmra.mxu0 %v4728
        %v4796 = vpop.f32.mrf.mxu0
        %v4797 = vadd.f32 0.0, %v4796
        %v4798 = vpop.f32.mrf.mxu0
        %4799 = vdwg.mxu0
        %4800 = vrot.lane.b32.xlu0 %v3547, 72
        %v4801 = vpop.permute.xlu0 %4800
        %v4804 = vsel %vm547, %v4571, 0
        %4806 = vmatprep.subr.mxu0 0.0
        %4807 = vmatpush1.msra.mxu0 0.0
        %4808 = vmatprep.subr.mxu0 0.0
        %4809 = vmatpush1.msra.mxu0 0.0
        %4810 = vmatprep.subr.mxu0 0.0
        %4811 = vmatpush1.msra.mxu0 0.0
        %4812 = vmatprep.subr.mxu0 0.0
        %4813 = vmatpush1.msra.mxu0 0.0
        %4814 = vmatprep.subr.mxu0 0.0
        %4815 = vmatpush1.msra.mxu0 0.0
        %4816 = vmatprep.subr.mxu0 0.0
        %4817 = vmatpush1.msra.mxu0 0.0
        %4818 = vmatprep.subr.mxu0 0.0
        %4819 = vmatpush1.msra.mxu0 0.0
        %4820 = vmatprep.subr.mxu0 0.0
        %4821 = vmatpush1.msra.mxu0 0.0
        %4822 = vmatprep.subr.mxu0 0.0
        %4823 = vmatpush1.msra.mxu0 0.0
        %4824 = vmatprep.subr.mxu0 0.0
        %4825 = vmatpush1.msra.mxu0 0.0
        %4826 = vmatprep.subr.mxu0 0.0
        %4827 = vmatpush1.msra.mxu0 0.0
        %4828 = vmatprep.subr.mxu0 0.0
        %4829 = vmatpush1.msra.mxu0 0.0
        %4830 = vmatprep.subr.mxu0 0.0
        %4831 = vmatpush1.msra.mxu0 0.0
        %4832 = vmatprep.subr.mxu0 0.0
        %4833 = vmatpush1.msra.mxu0 0.0
        %4834 = vmatprep.subr.mxu0 0.0
        %4835 = vmatpush1.msra.mxu0 0.0
        %4836 = vmatprep.subr.mxu0 0.0
        %4837 = vmatpush1.msra.mxu0 %v4801
        %4838 = vmatprep.subr.mxu0 0.0
        %4839 = vmatpush2.msra.mxu0 0.0
        %4840 = vmatprep.subr.mxu0 0.0
        %4841 = vmatpush2.msra.mxu0 0.0
        %4842 = vmatprep.subr.mxu0 0.0
        %4843 = vmatpush2.msra.mxu0 0.0
        %4844 = vmatprep.subr.mxu0 0.0
        %4845 = vmatpush2.msra.mxu0 0.0
        %4846 = vmatprep.subr.mxu0 0.0
        %4847 = vmatpush2.msra.mxu0 0.0
        %4848 = vmatprep.subr.mxu0 0.0
        %4849 = vmatpush2.msra.mxu0 0.0
        %4850 = vmatprep.subr.mxu0 0.0
        %4851 = vmatpush2.msra.mxu0 0.0
        %4852 = vmatprep.subr.mxu0 0.0
        %4853 = vmatpush2.msra.mxu0 0.0
        %4854 = vmatprep.subr.mxu0 0.0
        %4855 = vmatpush2.msra.mxu0 0.0
        %4856 = vmatprep.subr.mxu0 0.0
        %4857 = vmatpush2.msra.mxu0 0.0
        %4858 = vmatprep.subr.mxu0 0.0
        %4859 = vmatpush2.msra.mxu0 0.0
        %4860 = vmatprep.subr.mxu0 0.0
        %4861 = vmatpush2.msra.mxu0 0.0
        %4862 = vmatprep.subr.mxu0 0.0
        %4863 = vmatpush2.msra.mxu0 0.0
        %4864 = vmatprep.subr.mxu0 0.0
        %4865 = vmatpush2.msra.mxu0 0.0
        %4866 = vmatprep.subr.mxu0 0.0
        %4867 = vmatpush2.msra.mxu0 0.0
        %4868 = vmatprep.subr.mxu0 0.0
        %4869 = vmatpush2.msra.mxu0 0.0
        %4870 = vmatprep.mubr.f32.mxu0 0.0
        %4871 = vmatmul.mubr.f32.gmra.mxu0 %v4804
        %v4872 = vpop.f32.mrf.mxu0
        %v4873 = vadd.f32 0.0, %v4872
        %v4874 = vpop.f32.mrf.mxu0
        %4875 = vdwg.mxu0
        %v4877 = vsel %vm547, %v4645, 0
        %v4880 = vsel %vm547, %v4721, 0
        %v4883 = vsel %vm547, %v4797, 0
        %v4886 = vsel %vm547, %v4873, 0
        %4888 = vmatprep.subr.mxu0 0.0
        %4889 = vmatpush1.msra.mxu0 0.0
        %4890 = vmatprep.subr.mxu0 0.0
        %4891 = vmatpush1.msra.mxu0 0.0
        %4892 = vmatprep.subr.mxu0 0.0
        %4893 = vmatpush1.msra.mxu0 0.0
        %4894 = vmatprep.subr.mxu0 0.0
        %4895 = vmatpush1.msra.mxu0 0.0
        %4896 = vmatprep.subr.mxu0 0.0
        %4897 = vmatpush1.msra.mxu0 0.0
        %4898 = vmatprep.subr.mxu0 0.0
        %4899 = vmatpush1.msra.mxu0 0.0
        %4900 = vmatprep.subr.mxu0 0.0
        %4901 = vmatpush1.msra.mxu0 0.0
        %4902 = vmatprep.subr.mxu0 0.0
        %4903 = vmatpush1.msra.mxu0 0.0
        %4904 = vmatprep.subr.mxu0 0.0
        %4905 = vmatpush1.msra.mxu0 0.0
        %4906 = vmatprep.subr.mxu0 0.0
        %4907 = vmatpush1.msra.mxu0 0.0
        %4908 = vmatprep.subr.mxu0 0.0
        %4909 = vmatpush1.msra.mxu0 0.0
        %4910 = vmatprep.subr.mxu0 0.0
        %4911 = vmatpush1.msra.mxu0 0.0
        %4912 = vmatprep.subr.mxu0 0.0
        %4913 = vmatpush1.msra.mxu0 0.0
        %4914 = vmatprep.subr.mxu0 0.0
        %4915 = vmatpush1.msra.mxu0 0.0
        %4916 = vmatprep.subr.mxu0 0.0
        %4917 = vmatpush1.msra.mxu0 0.0
        %4918 = vmatprep.subr.mxu0 0.0
        %4919 = vmatpush1.msra.mxu0 %v3550
        %4920 = vmatprep.subr.mxu0 0.0
        %4921 = vmatpush2.msra.mxu0 0.0
        %4922 = vmatprep.subr.mxu0 0.0
        %4923 = vmatpush2.msra.mxu0 0.0
        %4924 = vmatprep.subr.mxu0 0.0
        %4925 = vmatpush2.msra.mxu0 0.0
        %4926 = vmatprep.subr.mxu0 0.0
        %4927 = vmatpush2.msra.mxu0 0.0
        %4928 = vmatprep.subr.mxu0 0.0
        %4929 = vmatpush2.msra.mxu0 0.0
        %4930 = vmatprep.subr.mxu0 0.0
        %4931 = vmatpush2.msra.mxu0 0.0
        %4932 = vmatprep.subr.mxu0 0.0
        %4933 = vmatpush2.msra.mxu0 0.0
        %4934 = vmatprep.subr.mxu0 0.0
        %4935 = vmatpush2.msra.mxu0 0.0
        %4936 = vmatprep.subr.mxu0 0.0
        %4937 = vmatpush2.msra.mxu0 0.0
        %4938 = vmatprep.subr.mxu0 0.0
        %4939 = vmatpush2.msra.mxu0 0.0
        %4940 = vmatprep.subr.mxu0 0.0
        %4941 = vmatpush2.msra.mxu0 0.0
        %4942 = vmatprep.subr.mxu0 0.0
        %4943 = vmatpush2.msra.mxu0 0.0
        %4944 = vmatprep.subr.mxu0 0.0
        %4945 = vmatpush2.msra.mxu0 0.0
        %4946 = vmatprep.subr.mxu0 0.0
        %4947 = vmatpush2.msra.mxu0 0.0
        %4948 = vmatprep.subr.mxu0 0.0
        %4949 = vmatpush2.msra.mxu0 0.0
        %4950 = vmatprep.subr.mxu0 0.0
        %4951 = vmatpush2.msra.mxu0 0.0
        %4952 = vmatprep.mubr.f32.mxu0 0.0
        %4953 = vmatmul.mubr.f32.gmra.mxu0 %v4877
        %v4954 = vpop.f32.mrf.mxu0
        %v4955 = vadd.f32 0.0, %v4954
        %v4956 = vpop.f32.mrf.mxu0
        %4957 = vmatprep.mubr.f32.mxu0 0.0
        %4958 = vmatmul.mubr.f32.gmra.mxu0 %v4880
        %v4959 = vpop.f32.mrf.mxu0
        %v4960 = vadd.f32 0.0, %v4959
        %v4961 = vpop.f32.mrf.mxu0
        %4962 = vmatprep.mubr.f32.mxu0 0.0
        %4963 = vmatmul.mubr.f32.gmra.mxu0 %v4883
        %v4964 = vpop.f32.mrf.mxu0
        %v4965 = vadd.f32 0.0, %v4964
        %v4966 = vpop.f32.mrf.mxu0
        %4967 = vmatprep.mubr.f32.mxu0 0.0
        %4968 = vmatmul.mubr.f32.gmra.mxu0 %v4886
        %v4969 = vpop.f32.mrf.mxu0
        %v4970 = vadd.f32 0.0, %v4969
        %v4971 = vpop.f32.mrf.mxu0
        %4972 = vdwg.mxu0
        %v4974 = vsel %vm547, %v3982, 0
        %v4977 = vsel %vm547, %v4059, 0
        %v4980 = vsel %vm547, %v4136, 0
        %v4983 = vsel %vm547, %v4213, 0
        %4985 = vmatprep.subr.mxu0 0.0
        %4986 = vmatpush1.msra.mxu0 0.0
        %4987 = vmatprep.subr.mxu0 0.0
        %4988 = vmatpush1.msra.mxu0 0.0
        %4989 = vmatprep.subr.mxu0 0.0
        %4990 = vmatpush1.msra.mxu0 0.0
        %4991 = vmatprep.subr.mxu0 0.0
        %4992 = vmatpush1.msra.mxu0 0.0
        %4993 = vmatprep.subr.mxu0 0.0
        %4994 = vmatpush1.msra.mxu0 0.0
        %4995 = vmatprep.subr.mxu0 0.0
        %4996 = vmatpush1.msra.mxu0 0.0
        %4997 = vmatprep.subr.mxu0 0.0
        %4998 = vmatpush1.msra.mxu0 0.0
        %4999 = vmatprep.subr.mxu0 0.0
        %5000 = vmatpush1.msra.mxu0 0.0
        %5001 = vmatprep.subr.mxu0 0.0
        %5002 = vmatpush1.msra.mxu0 0.0
        %5003 = vmatprep.subr.mxu0 0.0
        %5004 = vmatpush1.msra.mxu0 0.0
        %5005 = vmatprep.subr.mxu0 0.0
        %5006 = vmatpush1.msra.mxu0 0.0
        %5007 = vmatprep.subr.mxu0 0.0
        %5008 = vmatpush1.msra.mxu0 0.0
        %5009 = vmatprep.subr.mxu0 0.0
        %5010 = vmatpush1.msra.mxu0 0.0
        %5011 = vmatprep.subr.mxu0 0.0
        %5012 = vmatpush1.msra.mxu0 0.0
        %5013 = vmatprep.subr.mxu0 0.0
        %5014 = vmatpush1.msra.mxu0 0.0
        %5015 = vmatprep.subr.mxu0 0.0
        %5016 = vmatpush1.msra.mxu0 %v3549
        %5017 = vmatprep.subr.mxu0 0.0
        %5018 = vmatpush2.msra.mxu0 0.0
        %5019 = vmatprep.subr.mxu0 0.0
        %5020 = vmatpush2.msra.mxu0 0.0
        %5021 = vmatprep.subr.mxu0 0.0
        %5022 = vmatpush2.msra.mxu0 0.0
        %5023 = vmatprep.subr.mxu0 0.0
        %5024 = vmatpush2.msra.mxu0 0.0
        %5025 = vmatprep.subr.mxu0 0.0
        %5026 = vmatpush2.msra.mxu0 0.0
        %5027 = vmatprep.subr.mxu0 0.0
        %5028 = vmatpush2.msra.mxu0 0.0
        %5029 = vmatprep.subr.mxu0 0.0
        %5030 = vmatpush2.msra.mxu0 0.0
        %5031 = vmatprep.subr.mxu0 0.0
        %5032 = vmatpush2.msra.mxu0 0.0
        %5033 = vmatprep.subr.mxu0 0.0
        %5034 = vmatpush2.msra.mxu0 0.0
        %5035 = vmatprep.subr.mxu0 0.0
        %5036 = vmatpush2.msra.mxu0 0.0
        %5037 = vmatprep.subr.mxu0 0.0
        %5038 = vmatpush2.msra.mxu0 0.0
        %5039 = vmatprep.subr.mxu0 0.0
        %5040 = vmatpush2.msra.mxu0 0.0
        %5041 = vmatprep.subr.mxu0 0.0
        %5042 = vmatpush2.msra.mxu0 0.0
        %5043 = vmatprep.subr.mxu0 0.0
        %5044 = vmatpush2.msra.mxu0 0.0
        %5045 = vmatprep.subr.mxu0 0.0
        %5046 = vmatpush2.msra.mxu0 0.0
        %5047 = vmatprep.subr.mxu0 0.0
        %5048 = vmatpush2.msra.mxu0 0.0
        %5049 = vmatprep.mubr.f32.mxu0 0.0
        %5050 = vmatmul.mubr.f32.gmra.mxu0 %v4974
        %v5051 = vpop.f32.mrf.mxu0
        %v5052 = vadd.f32 %v4955, %v5051
        %v5053 = vpop.f32.mrf.mxu0
        %5054 = vmatprep.mubr.f32.mxu0 0.0
        %5055 = vmatmul.mubr.f32.gmra.mxu0 %v4977
        %v5056 = vpop.f32.mrf.mxu0
        %v5057 = vadd.f32 %v4960, %v5056
        %v5058 = vpop.f32.mrf.mxu0
        %5059 = vmatprep.mubr.f32.mxu0 0.0
        %5060 = vmatmul.mubr.f32.gmra.mxu0 %v4980
        %v5061 = vpop.f32.mrf.mxu0
        %v5062 = vadd.f32 %v4965, %v5061
        %v5063 = vpop.f32.mrf.mxu0
        %5064 = vmatprep.mubr.f32.mxu0 0.0
        %5065 = vmatmul.mubr.f32.gmra.mxu0 %v4983
        %v5066 = vpop.f32.mrf.mxu0
        %v5067 = vadd.f32 %v4970, %v5066
        %v5068 = vpop.f32.mrf.mxu0
        %5069 = vdwg.mxu0
        %5070 = vrot.lane.b32.xlu0 %v3520, 112
        %v5071 = vpop.permute.xlu0 %5070
        %5072 = vrot.lane.b32.xlu0 %v3532, 88
        %v5073 = vpop.permute.xlu0 %5072
        %v5074 = vsel %vm547, %v5071, 0
        %v5076 = vsel %vm547, %v5073, 0
        %5078 = vmatprep.subr.mxu0 0.0
        %5079 = vmatpush1.xpose.msra.mxu0 0.0
        %5080 = vmatprep.subr.mxu0 0.0
        %5081 = vmatpush1.xpose.msra.mxu0 0.0
        %5082 = vmatprep.subr.mxu0 0.0
        %5083 = vmatpush1.xpose.msra.mxu0 0.0
        %5084 = vmatprep.subr.mxu0 0.0
        %5085 = vmatpush1.xpose.msra.mxu0 0.0
        %5086 = vmatprep.subr.mxu0 0.0
        %5087 = vmatpush1.xpose.msra.mxu0 0.0
        %5088 = vmatprep.subr.mxu0 0.0
        %5089 = vmatpush1.xpose.msra.mxu0 0.0
        %5090 = vmatprep.subr.mxu0 0.0
        %5091 = vmatpush1.xpose.msra.mxu0 0.0
        %5092 = vmatprep.subr.mxu0 0.0
        %5093 = vmatpush1.xpose.msra.mxu0 0.0
        %5094 = vmatprep.subr.mxu0 0.0
        %5095 = vmatpush1.xpose.msra.mxu0 0.0
        %5096 = vmatprep.subr.mxu0 0.0
        %5097 = vmatpush1.xpose.msra.mxu0 0.0
        %5098 = vmatprep.subr.mxu0 0.0
        %5099 = vmatpush1.xpose.msra.mxu0 0.0
        %5100 = vmatprep.subr.mxu0 0.0
        %5101 = vmatpush1.xpose.msra.mxu0 0.0
        %5102 = vmatprep.subr.mxu0 0.0
        %5103 = vmatpush1.xpose.msra.mxu0 0.0
        %5104 = vmatprep.subr.mxu0 0.0
        %5105 = vmatpush1.xpose.msra.mxu0 0.0
        %5106 = vmatprep.subr.mxu0 0.0
        %5107 = vmatpush1.xpose.msra.mxu0 0.0
        %5108 = vmatprep.subr.mxu0 0.0
        %5109 = vmatpush1.xpose.msra.mxu0 %v5076
        %5110 = vmatprep.subr.mxu0 0.0
        %5111 = vmatpush2.xpose.msra.mxu0 0.0
        %5112 = vmatprep.subr.mxu0 0.0
        %5113 = vmatpush2.xpose.msra.mxu0 0.0
        %5114 = vmatprep.subr.mxu0 0.0
        %5115 = vmatpush2.xpose.msra.mxu0 0.0
        %5116 = vmatprep.subr.mxu0 0.0
        %5117 = vmatpush2.xpose.msra.mxu0 0.0
        %5118 = vmatprep.subr.mxu0 0.0
        %5119 = vmatpush2.xpose.msra.mxu0 0.0
        %5120 = vmatprep.subr.mxu0 0.0
        %5121 = vmatpush2.xpose.msra.mxu0 0.0
        %5122 = vmatprep.subr.mxu0 0.0
        %5123 = vmatpush2.xpose.msra.mxu0 0.0
        %5124 = vmatprep.subr.mxu0 0.0
        %5125 = vmatpush2.xpose.msra.mxu0 0.0
        %5126 = vmatprep.subr.mxu0 0.0
        %5127 = vmatpush2.xpose.msra.mxu0 0.0
        %5128 = vmatprep.subr.mxu0 0.0
        %5129 = vmatpush2.xpose.msra.mxu0 0.0
        %5130 = vmatprep.subr.mxu0 0.0
        %5131 = vmatpush2.xpose.msra.mxu0 0.0
        %5132 = vmatprep.subr.mxu0 0.0
        %5133 = vmatpush2.xpose.msra.mxu0 0.0
        %5134 = vmatprep.subr.mxu0 0.0
        %5135 = vmatpush2.xpose.msra.mxu0 0.0
        %5136 = vmatprep.subr.mxu0 0.0
        %5137 = vmatpush2.xpose.msra.mxu0 0.0
        %5138 = vmatprep.subr.mxu0 0.0
        %5139 = vmatpush2.xpose.msra.mxu0 0.0
        %5140 = vmatprep.subr.mxu0 0.0
        %5141 = vmatpush2.xpose.msra.mxu0 0.0
        %5142 = vmatprep.mubr.f32.mxu0 0.0
        %5143 = vmatmul.mubr.f32.gmra.mxu0 %v5074
        %v5144 = vpop.f32.mrf.mxu0
        %v5145 = vadd.f32 0.0, %v5144
        %v5146 = vpop.f32.mrf.mxu0
        %5147 = vdwg.mxu0
        %5148 = vrot.lane.b32.xlu0 %v3521, 112
        %v5149 = vpop.permute.xlu0 %5148
        %5150 = vrot.lane.b32.xlu0 %v3533, 88
        %v5151 = vpop.permute.xlu0 %5150
        %v5152 = vsel %vm547, %v5149, 0
        %v5154 = vsel %vm547, %v5151, 0
        %5156 = vmatprep.subr.mxu0 0.0
        %5157 = vmatpush1.xpose.msra.mxu0 0.0
        %5158 = vmatprep.subr.mxu0 0.0
        %5159 = vmatpush1.xpose.msra.mxu0 0.0
        %5160 = vmatprep.subr.mxu0 0.0
        %5161 = vmatpush1.xpose.msra.mxu0 0.0
        %5162 = vmatprep.subr.mxu0 0.0
        %5163 = vmatpush1.xpose.msra.mxu0 0.0
        %5164 = vmatprep.subr.mxu0 0.0
        %5165 = vmatpush1.xpose.msra.mxu0 0.0
        %5166 = vmatprep.subr.mxu0 0.0
        %5167 = vmatpush1.xpose.msra.mxu0 0.0
        %5168 = vmatprep.subr.mxu0 0.0
        %5169 = vmatpush1.xpose.msra.mxu0 0.0
        %5170 = vmatprep.subr.mxu0 0.0
        %5171 = vmatpush1.xpose.msra.mxu0 0.0
        %5172 = vmatprep.subr.mxu0 0.0
        %5173 = vmatpush1.xpose.msra.mxu0 0.0
        %5174 = vmatprep.subr.mxu0 0.0
        %5175 = vmatpush1.xpose.msra.mxu0 0.0
        %5176 = vmatprep.subr.mxu0 0.0
        %5177 = vmatpush1.xpose.msra.mxu0 0.0
        %5178 = vmatprep.subr.mxu0 0.0
        %5179 = vmatpush1.xpose.msra.mxu0 0.0
        %5180 = vmatprep.subr.mxu0 0.0
        %5181 = vmatpush1.xpose.msra.mxu0 0.0
        %5182 = vmatprep.subr.mxu0 0.0
        %5183 = vmatpush1.xpose.msra.mxu0 0.0
        %5184 = vmatprep.subr.mxu0 0.0
        %5185 = vmatpush1.xpose.msra.mxu0 0.0
        %5186 = vmatprep.subr.mxu0 0.0
        %5187 = vmatpush1.xpose.msra.mxu0 %v5154
        %5188 = vmatprep.subr.mxu0 0.0
        %5189 = vmatpush2.xpose.msra.mxu0 0.0
        %5190 = vmatprep.subr.mxu0 0.0
        %5191 = vmatpush2.xpose.msra.mxu0 0.0
        %5192 = vmatprep.subr.mxu0 0.0
        %5193 = vmatpush2.xpose.msra.mxu0 0.0
        %5194 = vmatprep.subr.mxu0 0.0
        %5195 = vmatpush2.xpose.msra.mxu0 0.0
        %5196 = vmatprep.subr.mxu0 0.0
        %5197 = vmatpush2.xpose.msra.mxu0 0.0
        %5198 = vmatprep.subr.mxu0 0.0
        %5199 = vmatpush2.xpose.msra.mxu0 0.0
        %5200 = vmatprep.subr.mxu0 0.0
        %5201 = vmatpush2.xpose.msra.mxu0 0.0
        %5202 = vmatprep.subr.mxu0 0.0
        %5203 = vmatpush2.xpose.msra.mxu0 0.0
        %5204 = vmatprep.subr.mxu0 0.0
        %5205 = vmatpush2.xpose.msra.mxu0 0.0
        %5206 = vmatprep.subr.mxu0 0.0
        %5207 = vmatpush2.xpose.msra.mxu0 0.0
        %5208 = vmatprep.subr.mxu0 0.0
        %5209 = vmatpush2.xpose.msra.mxu0 0.0
        %5210 = vmatprep.subr.mxu0 0.0
        %5211 = vmatpush2.xpose.msra.mxu0 0.0
        %5212 = vmatprep.subr.mxu0 0.0
        %5213 = vmatpush2.xpose.msra.mxu0 0.0
        %5214 = vmatprep.subr.mxu0 0.0
        %5215 = vmatpush2.xpose.msra.mxu0 0.0
        %5216 = vmatprep.subr.mxu0 0.0
        %5217 = vmatpush2.xpose.msra.mxu0 0.0
        %5218 = vmatprep.subr.mxu0 0.0
        %5219 = vmatpush2.xpose.msra.mxu0 0.0
        %5220 = vmatprep.mubr.f32.mxu0 0.0
        %5221 = vmatmul.mubr.f32.gmra.mxu0 %v5152
        %v5222 = vpop.f32.mrf.mxu0
        %v5223 = vadd.f32 0.0, %v5222
        %v5224 = vpop.f32.mrf.mxu0
        %5225 = vdwg.mxu0
        %5226 = vrot.lane.b32.xlu0 %v3522, 112
        %v5227 = vpop.permute.xlu0 %5226
        %5228 = vrot.lane.b32.xlu0 %v3534, 88
        %v5229 = vpop.permute.xlu0 %5228
        %v5230 = vsel %vm547, %v5227, 0
        %v5232 = vsel %vm547, %v5229, 0
        %5234 = vmatprep.subr.mxu0 0.0
        %5235 = vmatpush1.xpose.msra.mxu0 0.0
        %5236 = vmatprep.subr.mxu0 0.0
        %5237 = vmatpush1.xpose.msra.mxu0 0.0
        %5238 = vmatprep.subr.mxu0 0.0
        %5239 = vmatpush1.xpose.msra.mxu0 0.0
        %5240 = vmatprep.subr.mxu0 0.0
        %5241 = vmatpush1.xpose.msra.mxu0 0.0
        %5242 = vmatprep.subr.mxu0 0.0
        %5243 = vmatpush1.xpose.msra.mxu0 0.0
        %5244 = vmatprep.subr.mxu0 0.0
        %5245 = vmatpush1.xpose.msra.mxu0 0.0
        %5246 = vmatprep.subr.mxu0 0.0
        %5247 = vmatpush1.xpose.msra.mxu0 0.0
        %5248 = vmatprep.subr.mxu0 0.0
        %5249 = vmatpush1.xpose.msra.mxu0 0.0
        %5250 = vmatprep.subr.mxu0 0.0
        %5251 = vmatpush1.xpose.msra.mxu0 0.0
        %5252 = vmatprep.subr.mxu0 0.0
        %5253 = vmatpush1.xpose.msra.mxu0 0.0
        %5254 = vmatprep.subr.mxu0 0.0
        %5255 = vmatpush1.xpose.msra.mxu0 0.0
        %5256 = vmatprep.subr.mxu0 0.0
        %5257 = vmatpush1.xpose.msra.mxu0 0.0
        %5258 = vmatprep.subr.mxu0 0.0
        %5259 = vmatpush1.xpose.msra.mxu0 0.0
        %5260 = vmatprep.subr.mxu0 0.0
        %5261 = vmatpush1.xpose.msra.mxu0 0.0
        %5262 = vmatprep.subr.mxu0 0.0
        %5263 = vmatpush1.xpose.msra.mxu0 0.0
        %5264 = vmatprep.subr.mxu0 0.0
        %5265 = vmatpush1.xpose.msra.mxu0 %v5232
        %5266 = vmatprep.subr.mxu0 0.0
        %5267 = vmatpush2.xpose.msra.mxu0 0.0
        %5268 = vmatprep.subr.mxu0 0.0
        %5269 = vmatpush2.xpose.msra.mxu0 0.0
        %5270 = vmatprep.subr.mxu0 0.0
        %5271 = vmatpush2.xpose.msra.mxu0 0.0
        %5272 = vmatprep.subr.mxu0 0.0
        %5273 = vmatpush2.xpose.msra.mxu0 0.0
        %5274 = vmatprep.subr.mxu0 0.0
        %5275 = vmatpush2.xpose.msra.mxu0 0.0
        %5276 = vmatprep.subr.mxu0 0.0
        %5277 = vmatpush2.xpose.msra.mxu0 0.0
        %5278 = vmatprep.subr.mxu0 0.0
        %5279 = vmatpush2.xpose.msra.mxu0 0.0
        %5280 = vmatprep.subr.mxu0 0.0
        %5281 = vmatpush2.xpose.msra.mxu0 0.0
        %5282 = vmatprep.subr.mxu0 0.0
        %5283 = vmatpush2.xpose.msra.mxu0 0.0
        %5284 = vmatprep.subr.mxu0 0.0
        %5285 = vmatpush2.xpose.msra.mxu0 0.0
        %5286 = vmatprep.subr.mxu0 0.0
        %5287 = vmatpush2.xpose.msra.mxu0 0.0
        %5288 = vmatprep.subr.mxu0 0.0
        %5289 = vmatpush2.xpose.msra.mxu0 0.0
        %5290 = vmatprep.subr.mxu0 0.0
        %5291 = vmatpush2.xpose.msra.mxu0 0.0
        %5292 = vmatprep.subr.mxu0 0.0
        %5293 = vmatpush2.xpose.msra.mxu0 0.0
        %5294 = vmatprep.subr.mxu0 0.0
        %5295 = vmatpush2.xpose.msra.mxu0 0.0
        %5296 = vmatprep.subr.mxu0 0.0
        %5297 = vmatpush2.xpose.msra.mxu0 0.0
        %5298 = vmatprep.mubr.f32.mxu0 0.0
        %5299 = vmatmul.mubr.f32.gmra.mxu0 %v5230
        %v5300 = vpop.f32.mrf.mxu0
        %v5301 = vadd.f32 0.0, %v5300
        %v5302 = vpop.f32.mrf.mxu0
        %5303 = vdwg.mxu0
        %5304 = vrot.lane.b32.xlu0 %v3523, 112
        %v5305 = vpop.permute.xlu0 %5304
        %5306 = vrot.lane.b32.xlu0 %v3535, 88
        %v5307 = vpop.permute.xlu0 %5306
        %v5308 = vsel %vm547, %v5305, 0
        %v5310 = vsel %vm547, %v5307, 0
        %5312 = vmatprep.subr.mxu0 0.0
        %5313 = vmatpush1.xpose.msra.mxu0 0.0
        %5314 = vmatprep.subr.mxu0 0.0
        %5315 = vmatpush1.xpose.msra.mxu0 0.0
        %5316 = vmatprep.subr.mxu0 0.0
        %5317 = vmatpush1.xpose.msra.mxu0 0.0
        %5318 = vmatprep.subr.mxu0 0.0
        %5319 = vmatpush1.xpose.msra.mxu0 0.0
        %5320 = vmatprep.subr.mxu0 0.0
        %5321 = vmatpush1.xpose.msra.mxu0 0.0
        %5322 = vmatprep.subr.mxu0 0.0
        %5323 = vmatpush1.xpose.msra.mxu0 0.0
        %5324 = vmatprep.subr.mxu0 0.0
        %5325 = vmatpush1.xpose.msra.mxu0 0.0
        %5326 = vmatprep.subr.mxu0 0.0
        %5327 = vmatpush1.xpose.msra.mxu0 0.0
        %5328 = vmatprep.subr.mxu0 0.0
        %5329 = vmatpush1.xpose.msra.mxu0 0.0
        %5330 = vmatprep.subr.mxu0 0.0
        %5331 = vmatpush1.xpose.msra.mxu0 0.0
        %5332 = vmatprep.subr.mxu0 0.0
        %5333 = vmatpush1.xpose.msra.mxu0 0.0
        %5334 = vmatprep.subr.mxu0 0.0
        %5335 = vmatpush1.xpose.msra.mxu0 0.0
        %5336 = vmatprep.subr.mxu0 0.0
        %5337 = vmatpush1.xpose.msra.mxu0 0.0
        %5338 = vmatprep.subr.mxu0 0.0
        %5339 = vmatpush1.xpose.msra.mxu0 0.0
        %5340 = vmatprep.subr.mxu0 0.0
        %5341 = vmatpush1.xpose.msra.mxu0 0.0
        %5342 = vmatprep.subr.mxu0 0.0
        %5343 = vmatpush1.xpose.msra.mxu0 %v5310
        %5344 = vmatprep.subr.mxu0 0.0
        %5345 = vmatpush2.xpose.msra.mxu0 0.0
        %5346 = vmatprep.subr.mxu0 0.0
        %5347 = vmatpush2.xpose.msra.mxu0 0.0
        %5348 = vmatprep.subr.mxu0 0.0
        %5349 = vmatpush2.xpose.msra.mxu0 0.0
        %5350 = vmatprep.subr.mxu0 0.0
        %5351 = vmatpush2.xpose.msra.mxu0 0.0
        %5352 = vmatprep.subr.mxu0 0.0
        %5353 = vmatpush2.xpose.msra.mxu0 0.0
        %5354 = vmatprep.subr.mxu0 0.0
        %5355 = vmatpush2.xpose.msra.mxu0 0.0
        %5356 = vmatprep.subr.mxu0 0.0
        %5357 = vmatpush2.xpose.msra.mxu0 0.0
        %5358 = vmatprep.subr.mxu0 0.0
        %5359 = vmatpush2.xpose.msra.mxu0 0.0
        %5360 = vmatprep.subr.mxu0 0.0
        %5361 = vmatpush2.xpose.msra.mxu0 0.0
        %5362 = vmatprep.subr.mxu0 0.0
        %5363 = vmatpush2.xpose.msra.mxu0 0.0
        %5364 = vmatprep.subr.mxu0 0.0
        %5365 = vmatpush2.xpose.msra.mxu0 0.0
        %5366 = vmatprep.subr.mxu0 0.0
        %5367 = vmatpush2.xpose.msra.mxu0 0.0
        %5368 = vmatprep.subr.mxu0 0.0
        %5369 = vmatpush2.xpose.msra.mxu0 0.0
        %5370 = vmatprep.subr.mxu0 0.0
        %5371 = vmatpush2.xpose.msra.mxu0 0.0
        %5372 = vmatprep.subr.mxu0 0.0
        %5373 = vmatpush2.xpose.msra.mxu0 0.0
        %5374 = vmatprep.subr.mxu0 0.0
        %5375 = vmatpush2.xpose.msra.mxu0 0.0
        %5376 = vmatprep.mubr.f32.mxu0 0.0
        %5377 = vmatmul.mubr.f32.gmra.mxu0 %v5308
        %v5378 = vpop.f32.mrf.mxu0
        %v5379 = vadd.f32 0.0, %v5378
        %v5380 = vpop.f32.mrf.mxu0
        %5381 = vdwg.mxu0
        %v5382 = vsel %vm547, %v5145, -inf
        %5383 = vmax.xlane.f32.xlu0 %v5382
        %v5384 = vpop.xlane.xlu0 %5383
        %v5385 = vsel %vm547, %v5223, -inf
        %5386 = vmax.xlane.f32.xlu0 %v5385
        %v5387 = vpop.xlane.xlu0 %5386
        %v5388 = vsel %vm547, %v5301, -inf
        %5389 = vmax.xlane.f32.xlu0 %v5388
        %v5390 = vpop.xlane.xlu0 %5389
        %v5391 = vsel %vm547, %v5379, -inf
        %5392 = vmax.xlane.f32.xlu0 %v5391
        %v5393 = vpop.xlane.xlu0 %5392
        %v5394 = vsub.f32 %v5145, %v5384
        %v5395 = vsub.f32 %v5223, %v5387
        %v5396 = vsub.f32 %v5301, %v5390
        %v5397 = vsub.f32 %v5379, %v5393
        %v5398 = vmul.f32 %v5394, 1.442695
        %v5399 = vpow.pop %v5398
        %v5400 = vmul.f32 %v5395, 1.442695
        %v5401 = vpow.pop %v5400
        %v5402 = vmul.f32 %v5396, 1.442695
        %v5403 = vpow.pop %v5402
        %v5404 = vmul.f32 %v5397, 1.442695
        %v5405 = vpow.pop %v5404
        %v5406 = vsel %vm547, %v5399, 0.0
        %5407 = vadd.xlane.f32.xlu0 %v5406
        %v5408 = vpop.xlane.xlu0 %5407
        %v5409 = vsel %vm547, %v5401, 0.0
        %5410 = vadd.xlane.f32.xlu0 %v5409
        %v5411 = vpop.xlane.xlu0 %5410
        %v5412 = vsel %vm547, %v5403, 0.0
        %5413 = vadd.xlane.f32.xlu0 %v5412
        %v5414 = vpop.xlane.xlu0 %5413
        %v5415 = vsel %vm547, %v5405, 0.0
        %5416 = vadd.xlane.f32.xlu0 %v5415
        %v5417 = vpop.xlane.xlu0 %5416
        %v5418 = vrcp.pop %v5408
        %v5419 = vmul.f32 %v5399, %v5418
        %v5420 = vrcp.pop %v5411
        %v5421 = vmul.f32 %v5401, %v5420
        %v5422 = vrcp.pop %v5414
        %v5423 = vmul.f32 %v5403, %v5422
        %v5424 = vrcp.pop %v5417
        %v5425 = vmul.f32 %v5405, %v5424
        %5426 = vrot.lane.b32.xlu0 %v3544, 64
        %v5427 = vpop.permute.xlu0 %5426
        %v5430 = vsel %vm547, %v5419, 0
        %5432 = vmatprep.subr.mxu0 0.0
        %5433 = vmatpush1.msra.mxu0 0.0
        %5434 = vmatprep.subr.mxu0 0.0
        %5435 = vmatpush1.msra.mxu0 0.0
        %5436 = vmatprep.subr.mxu0 0.0
        %5437 = vmatpush1.msra.mxu0 0.0
        %5438 = vmatprep.subr.mxu0 0.0
        %5439 = vmatpush1.msra.mxu0 0.0
        %5440 = vmatprep.subr.mxu0 0.0
        %5441 = vmatpush1.msra.mxu0 0.0
        %5442 = vmatprep.subr.mxu0 0.0
        %5443 = vmatpush1.msra.mxu0 0.0
        %5444 = vmatprep.subr.mxu0 0.0
        %5445 = vmatpush1.msra.mxu0 0.0
        %5446 = vmatprep.subr.mxu0 0.0
        %5447 = vmatpush1.msra.mxu0 0.0
        %5448 = vmatprep.subr.mxu0 0.0
        %5449 = vmatpush1.msra.mxu0 0.0
        %5450 = vmatprep.subr.mxu0 0.0
        %5451 = vmatpush1.msra.mxu0 0.0
        %5452 = vmatprep.subr.mxu0 0.0
        %5453 = vmatpush1.msra.mxu0 0.0
        %5454 = vmatprep.subr.mxu0 0.0
        %5455 = vmatpush1.msra.mxu0 0.0
        %5456 = vmatprep.subr.mxu0 0.0
        %5457 = vmatpush1.msra.mxu0 0.0
        %5458 = vmatprep.subr.mxu0 0.0
        %5459 = vmatpush1.msra.mxu0 0.0
        %5460 = vmatprep.subr.mxu0 0.0
        %5461 = vmatpush1.msra.mxu0 0.0
        %5462 = vmatprep.subr.mxu0 0.0
        %5463 = vmatpush1.msra.mxu0 %v5427
        %5464 = vmatprep.subr.mxu0 0.0
        %5465 = vmatpush2.msra.mxu0 0.0
        %5466 = vmatprep.subr.mxu0 0.0
        %5467 = vmatpush2.msra.mxu0 0.0
        %5468 = vmatprep.subr.mxu0 0.0
        %5469 = vmatpush2.msra.mxu0 0.0
        %5470 = vmatprep.subr.mxu0 0.0
        %5471 = vmatpush2.msra.mxu0 0.0
        %5472 = vmatprep.subr.mxu0 0.0
        %5473 = vmatpush2.msra.mxu0 0.0
        %5474 = vmatprep.subr.mxu0 0.0
        %5475 = vmatpush2.msra.mxu0 0.0
        %5476 = vmatprep.subr.mxu0 0.0
        %5477 = vmatpush2.msra.mxu0 0.0
        %5478 = vmatprep.subr.mxu0 0.0
        %5479 = vmatpush2.msra.mxu0 0.0
        %5480 = vmatprep.subr.mxu0 0.0
        %5481 = vmatpush2.msra.mxu0 0.0
        %5482 = vmatprep.subr.mxu0 0.0
        %5483 = vmatpush2.msra.mxu0 0.0
        %5484 = vmatprep.subr.mxu0 0.0
        %5485 = vmatpush2.msra.mxu0 0.0
        %5486 = vmatprep.subr.mxu0 0.0
        %5487 = vmatpush2.msra.mxu0 0.0
        %5488 = vmatprep.subr.mxu0 0.0
        %5489 = vmatpush2.msra.mxu0 0.0
        %5490 = vmatprep.subr.mxu0 0.0
        %5491 = vmatpush2.msra.mxu0 0.0
        %5492 = vmatprep.subr.mxu0 0.0
        %5493 = vmatpush2.msra.mxu0 0.0
        %5494 = vmatprep.subr.mxu0 0.0
        %5495 = vmatpush2.msra.mxu0 0.0
        %5496 = vmatprep.mubr.f32.mxu0 0.0
        %5497 = vmatmul.mubr.f32.gmra.mxu0 %v5430
        %v5498 = vpop.f32.mrf.mxu0
        %v5499 = vadd.f32 0.0, %v5498
        %v5500 = vpop.f32.mrf.mxu0
        %5501 = vdwg.mxu0
        %5502 = vrot.lane.b32.xlu0 %v3545, 64
        %v5503 = vpop.permute.xlu0 %5502
        %v5506 = vsel %vm547, %v5421, 0
        %5508 = vmatprep.subr.mxu0 0.0
        %5509 = vmatpush1.msra.mxu0 0.0
        %5510 = vmatprep.subr.mxu0 0.0
        %5511 = vmatpush1.msra.mxu0 0.0
        %5512 = vmatprep.subr.mxu0 0.0
        %5513 = vmatpush1.msra.mxu0 0.0
        %5514 = vmatprep.subr.mxu0 0.0
        %5515 = vmatpush1.msra.mxu0 0.0
        %5516 = vmatprep.subr.mxu0 0.0
        %5517 = vmatpush1.msra.mxu0 0.0
        %5518 = vmatprep.subr.mxu0 0.0
        %5519 = vmatpush1.msra.mxu0 0.0
        %5520 = vmatprep.subr.mxu0 0.0
        %5521 = vmatpush1.msra.mxu0 0.0
        %5522 = vmatprep.subr.mxu0 0.0
        %5523 = vmatpush1.msra.mxu0 0.0
        %5524 = vmatprep.subr.mxu0 0.0
        %5525 = vmatpush1.msra.mxu0 0.0
        %5526 = vmatprep.subr.mxu0 0.0
        %5527 = vmatpush1.msra.mxu0 0.0
        %5528 = vmatprep.subr.mxu0 0.0
        %5529 = vmatpush1.msra.mxu0 0.0
        %5530 = vmatprep.subr.mxu0 0.0
        %5531 = vmatpush1.msra.mxu0 0.0
        %5532 = vmatprep.subr.mxu0 0.0
        %5533 = vmatpush1.msra.mxu0 0.0
        %5534 = vmatprep.subr.mxu0 0.0
        %5535 = vmatpush1.msra.mxu0 0.0
        %5536 = vmatprep.subr.mxu0 0.0
        %5537 = vmatpush1.msra.mxu0 0.0
        %5538 = vmatprep.subr.mxu0 0.0
        %5539 = vmatpush1.msra.mxu0 %v5503
        %5540 = vmatprep.subr.mxu0 0.0
        %5541 = vmatpush2.msra.mxu0 0.0
        %5542 = vmatprep.subr.mxu0 0.0
        %5543 = vmatpush2.msra.mxu0 0.0
        %5544 = vmatprep.subr.mxu0 0.0
        %5545 = vmatpush2.msra.mxu0 0.0
        %5546 = vmatprep.subr.mxu0 0.0
        %5547 = vmatpush2.msra.mxu0 0.0
        %5548 = vmatprep.subr.mxu0 0.0
        %5549 = vmatpush2.msra.mxu0 0.0
        %5550 = vmatprep.subr.mxu0 0.0
        %5551 = vmatpush2.msra.mxu0 0.0
        %5552 = vmatprep.subr.mxu0 0.0
        %5553 = vmatpush2.msra.mxu0 0.0
        %5554 = vmatprep.subr.mxu0 0.0
        %5555 = vmatpush2.msra.mxu0 0.0
        %5556 = vmatprep.subr.mxu0 0.0
        %5557 = vmatpush2.msra.mxu0 0.0
        %5558 = vmatprep.subr.mxu0 0.0
        %5559 = vmatpush2.msra.mxu0 0.0
        %5560 = vmatprep.subr.mxu0 0.0
        %5561 = vmatpush2.msra.mxu0 0.0
        %5562 = vmatprep.subr.mxu0 0.0
        %5563 = vmatpush2.msra.mxu0 0.0
        %5564 = vmatprep.subr.mxu0 0.0
        %5565 = vmatpush2.msra.mxu0 0.0
        %5566 = vmatprep.subr.mxu0 0.0
        %5567 = vmatpush2.msra.mxu0 0.0
        %5568 = vmatprep.subr.mxu0 0.0
        %5569 = vmatpush2.msra.mxu0 0.0
        %5570 = vmatprep.subr.mxu0 0.0
        %5571 = vmatpush2.msra.mxu0 0.0
        %5572 = vmatprep.mubr.f32.mxu0 0.0
        %5573 = vmatmul.mubr.f32.gmra.mxu0 %v5506
        %v5574 = vpop.f32.mrf.mxu0
        %v5575 = vadd.f32 0.0, %v5574
        %v5576 = vpop.f32.mrf.mxu0
        %5577 = vdwg.mxu0
        %5578 = vrot.lane.b32.xlu0 %v3546, 64
        %v5579 = vpop.permute.xlu0 %5578
        %v5582 = vsel %vm547, %v5423, 0
        %5584 = vmatprep.subr.mxu0 0.0
        %5585 = vmatpush1.msra.mxu0 0.0
        %5586 = vmatprep.subr.mxu0 0.0
        %5587 = vmatpush1.msra.mxu0 0.0
        %5588 = vmatprep.subr.mxu0 0.0
        %5589 = vmatpush1.msra.mxu0 0.0
        %5590 = vmatprep.subr.mxu0 0.0
        %5591 = vmatpush1.msra.mxu0 0.0
        %5592 = vmatprep.subr.mxu0 0.0
        %5593 = vmatpush1.msra.mxu0 0.0
        %5594 = vmatprep.subr.mxu0 0.0
        %5595 = vmatpush1.msra.mxu0 0.0
        %5596 = vmatprep.subr.mxu0 0.0
        %5597 = vmatpush1.msra.mxu0 0.0
        %5598 = vmatprep.subr.mxu0 0.0
        %5599 = vmatpush1.msra.mxu0 0.0
        %5600 = vmatprep.subr.mxu0 0.0
        %5601 = vmatpush1.msra.mxu0 0.0
        %5602 = vmatprep.subr.mxu0 0.0
        %5603 = vmatpush1.msra.mxu0 0.0
        %5604 = vmatprep.subr.mxu0 0.0
        %5605 = vmatpush1.msra.mxu0 0.0
        %5606 = vmatprep.subr.mxu0 0.0
        %5607 = vmatpush1.msra.mxu0 0.0
        %5608 = vmatprep.subr.mxu0 0.0
        %5609 = vmatpush1.msra.mxu0 0.0
        %5610 = vmatprep.subr.mxu0 0.0
        %5611 = vmatpush1.msra.mxu0 0.0
        %5612 = vmatprep.subr.mxu0 0.0
        %5613 = vmatpush1.msra.mxu0 0.0
        %5614 = vmatprep.subr.mxu0 0.0
        %5615 = vmatpush1.msra.mxu0 %v5579
        %5616 = vmatprep.subr.mxu0 0.0
        %5617 = vmatpush2.msra.mxu0 0.0
        %5618 = vmatprep.subr.mxu0 0.0
        %5619 = vmatpush2.msra.mxu0 0.0
        %5620 = vmatprep.subr.mxu0 0.0
        %5621 = vmatpush2.msra.mxu0 0.0
        %5622 = vmatprep.subr.mxu0 0.0
        %5623 = vmatpush2.msra.mxu0 0.0
        %5624 = vmatprep.subr.mxu0 0.0
        %5625 = vmatpush2.msra.mxu0 0.0
        %5626 = vmatprep.subr.mxu0 0.0
        %5627 = vmatpush2.msra.mxu0 0.0
        %5628 = vmatprep.subr.mxu0 0.0
        %5629 = vmatpush2.msra.mxu0 0.0
        %5630 = vmatprep.subr.mxu0 0.0
        %5631 = vmatpush2.msra.mxu0 0.0
        %5632 = vmatprep.subr.mxu0 0.0
        %5633 = vmatpush2.msra.mxu0 0.0
        %5634 = vmatprep.subr.mxu0 0.0
        %5635 = vmatpush2.msra.mxu0 0.0
        %5636 = vmatprep.subr.mxu0 0.0
        %5637 = vmatpush2.msra.mxu0 0.0
        %5638 = vmatprep.subr.mxu0 0.0
        %5639 = vmatpush2.msra.mxu0 0.0
        %5640 = vmatprep.subr.mxu0 0.0
        %5641 = vmatpush2.msra.mxu0 0.0
        %5642 = vmatprep.subr.mxu0 0.0
        %5643 = vmatpush2.msra.mxu0 0.0
        %5644 = vmatprep.subr.mxu0 0.0
        %5645 = vmatpush2.msra.mxu0 0.0
        %5646 = vmatprep.subr.mxu0 0.0
        %5647 = vmatpush2.msra.mxu0 0.0
        %5648 = vmatprep.mubr.f32.mxu0 0.0
        %5649 = vmatmul.mubr.f32.gmra.mxu0 %v5582
        %v5650 = vpop.f32.mrf.mxu0
        %v5651 = vadd.f32 0.0, %v5650
        %v5652 = vpop.f32.mrf.mxu0
        %5653 = vdwg.mxu0
        %5654 = vrot.lane.b32.xlu0 %v3547, 64
        %v5655 = vpop.permute.xlu0 %5654
        %v5658 = vsel %vm547, %v5425, 0
        %5660 = vmatprep.subr.mxu0 0.0
        %5661 = vmatpush1.msra.mxu0 0.0
        %5662 = vmatprep.subr.mxu0 0.0
        %5663 = vmatpush1.msra.mxu0 0.0
        %5664 = vmatprep.subr.mxu0 0.0
        %5665 = vmatpush1.msra.mxu0 0.0
        %5666 = vmatprep.subr.mxu0 0.0
        %5667 = vmatpush1.msra.mxu0 0.0
        %5668 = vmatprep.subr.mxu0 0.0
        %5669 = vmatpush1.msra.mxu0 0.0
        %5670 = vmatprep.subr.mxu0 0.0
        %5671 = vmatpush1.msra.mxu0 0.0
        %5672 = vmatprep.subr.mxu0 0.0
        %5673 = vmatpush1.msra.mxu0 0.0
        %5674 = vmatprep.subr.mxu0 0.0
        %5675 = vmatpush1.msra.mxu0 0.0
        %5676 = vmatprep.subr.mxu0 0.0
        %5677 = vmatpush1.msra.mxu0 0.0
        %5678 = vmatprep.subr.mxu0 0.0
        %5679 = vmatpush1.msra.mxu0 0.0
        %5680 = vmatprep.subr.mxu0 0.0
        %5681 = vmatpush1.msra.mxu0 0.0
        %5682 = vmatprep.subr.mxu0 0.0
        %5683 = vmatpush1.msra.mxu0 0.0
        %5684 = vmatprep.subr.mxu0 0.0
        %5685 = vmatpush1.msra.mxu0 0.0
        %5686 = vmatprep.subr.mxu0 0.0
        %5687 = vmatpush1.msra.mxu0 0.0
        %5688 = vmatprep.subr.mxu0 0.0
        %5689 = vmatpush1.msra.mxu0 0.0
        %5690 = vmatprep.subr.mxu0 0.0
        %5691 = vmatpush1.msra.mxu0 %v5655
        %5692 = vmatprep.subr.mxu0 0.0
        %5693 = vmatpush2.msra.mxu0 0.0
        %5694 = vmatprep.subr.mxu0 0.0
        %5695 = vmatpush2.msra.mxu0 0.0
        %5696 = vmatprep.subr.mxu0 0.0
        %5697 = vmatpush2.msra.mxu0 0.0
        %5698 = vmatprep.subr.mxu0 0.0
        %5699 = vmatpush2.msra.mxu0 0.0
        %5700 = vmatprep.subr.mxu0 0.0
        %5701 = vmatpush2.msra.mxu0 0.0
        %5702 = vmatprep.subr.mxu0 0.0
        %5703 = vmatpush2.msra.mxu0 0.0
        %5704 = vmatprep.subr.mxu0 0.0
        %5705 = vmatpush2.msra.mxu0 0.0
        %5706 = vmatprep.subr.mxu0 0.0
        %5707 = vmatpush2.msra.mxu0 0.0
        %5708 = vmatprep.subr.mxu0 0.0
        %5709 = vmatpush2.msra.mxu0 0.0
        %5710 = vmatprep.subr.mxu0 0.0
        %5711 = vmatpush2.msra.mxu0 0.0
        %5712 = vmatprep.subr.mxu0 0.0
        %5713 = vmatpush2.msra.mxu0 0.0
        %5714 = vmatprep.subr.mxu0 0.0
        %5715 = vmatpush2.msra.mxu0 0.0
        %5716 = vmatprep.subr.mxu0 0.0
        %5717 = vmatpush2.msra.mxu0 0.0
        %5718 = vmatprep.subr.mxu0 0.0
        %5719 = vmatpush2.msra.mxu0 0.0
        %5720 = vmatprep.subr.mxu0 0.0
        %5721 = vmatpush2.msra.mxu0 0.0
        %5722 = vmatprep.subr.mxu0 0.0
        %5723 = vmatpush2.msra.mxu0 0.0
        %5724 = vmatprep.mubr.f32.mxu0 0.0
        %5725 = vmatmul.mubr.f32.gmra.mxu0 %v5658
        %v5726 = vpop.f32.mrf.mxu0
        %v5727 = vadd.f32 0.0, %v5726
        %v5728 = vpop.f32.mrf.mxu0
        %5729 = vdwg.mxu0
        %v5731 = vsel %vm547, %v5499, 0
        %v5734 = vsel %vm547, %v5575, 0
        %v5737 = vsel %vm547, %v5651, 0
        %v5740 = vsel %vm547, %v5727, 0
        %5742 = vmatprep.subr.mxu0 0.0
        %5743 = vmatpush1.msra.mxu0 0.0
        %5744 = vmatprep.subr.mxu0 0.0
        %5745 = vmatpush1.msra.mxu0 0.0
        %5746 = vmatprep.subr.mxu0 0.0
        %5747 = vmatpush1.msra.mxu0 0.0
        %5748 = vmatprep.subr.mxu0 0.0
        %5749 = vmatpush1.msra.mxu0 0.0
        %5750 = vmatprep.subr.mxu0 0.0
        %5751 = vmatpush1.msra.mxu0 0.0
        %5752 = vmatprep.subr.mxu0 0.0
        %5753 = vmatpush1.msra.mxu0 0.0
        %5754 = vmatprep.subr.mxu0 0.0
        %5755 = vmatpush1.msra.mxu0 0.0
        %5756 = vmatprep.subr.mxu0 0.0
        %5757 = vmatpush1.msra.mxu0 0.0
        %5758 = vmatprep.subr.mxu0 0.0
        %5759 = vmatpush1.msra.mxu0 0.0
        %5760 = vmatprep.subr.mxu0 0.0
        %5761 = vmatpush1.msra.mxu0 0.0
        %5762 = vmatprep.subr.mxu0 0.0
        %5763 = vmatpush1.msra.mxu0 0.0
        %5764 = vmatprep.subr.mxu0 0.0
        %5765 = vmatpush1.msra.mxu0 0.0
        %5766 = vmatprep.subr.mxu0 0.0
        %5767 = vmatpush1.msra.mxu0 0.0
        %5768 = vmatprep.subr.mxu0 0.0
        %5769 = vmatpush1.msra.mxu0 0.0
        %5770 = vmatprep.subr.mxu0 0.0
        %5771 = vmatpush1.msra.mxu0 0.0
        %5772 = vmatprep.subr.mxu0 0.0
        %5773 = vmatpush1.msra.mxu0 %v3551
        %5774 = vmatprep.subr.mxu0 0.0
        %5775 = vmatpush2.msra.mxu0 0.0
        %5776 = vmatprep.subr.mxu0 0.0
        %5777 = vmatpush2.msra.mxu0 0.0
        %5778 = vmatprep.subr.mxu0 0.0
        %5779 = vmatpush2.msra.mxu0 0.0
        %5780 = vmatprep.subr.mxu0 0.0
        %5781 = vmatpush2.msra.mxu0 0.0
        %5782 = vmatprep.subr.mxu0 0.0
        %5783 = vmatpush2.msra.mxu0 0.0
        %5784 = vmatprep.subr.mxu0 0.0
        %5785 = vmatpush2.msra.mxu0 0.0
        %5786 = vmatprep.subr.mxu0 0.0
        %5787 = vmatpush2.msra.mxu0 0.0
        %5788 = vmatprep.subr.mxu0 0.0
        %5789 = vmatpush2.msra.mxu0 0.0
        %5790 = vmatprep.subr.mxu0 0.0
        %5791 = vmatpush2.msra.mxu0 0.0
        %5792 = vmatprep.subr.mxu0 0.0
        %5793 = vmatpush2.msra.mxu0 0.0
        %5794 = vmatprep.subr.mxu0 0.0
        %5795 = vmatpush2.msra.mxu0 0.0
        %5796 = vmatprep.subr.mxu0 0.0
        %5797 = vmatpush2.msra.mxu0 0.0
        %5798 = vmatprep.subr.mxu0 0.0
        %5799 = vmatpush2.msra.mxu0 0.0
        %5800 = vmatprep.subr.mxu0 0.0
        %5801 = vmatpush2.msra.mxu0 0.0
        %5802 = vmatprep.subr.mxu0 0.0
        %5803 = vmatpush2.msra.mxu0 0.0
        %5804 = vmatprep.subr.mxu0 0.0
        %5805 = vmatpush2.msra.mxu0 0.0
        %5806 = vmatprep.mubr.f32.mxu0 0.0
        %5807 = vmatmul.mubr.f32.gmra.mxu0 %v5731
        %v5808 = vpop.f32.mrf.mxu0
        %v5809 = vadd.f32 0.0, %v5808
        %v5810 = vpop.f32.mrf.mxu0
        %5811 = vmatprep.mubr.f32.mxu0 0.0
        %5812 = vmatmul.mubr.f32.gmra.mxu0 %v5734
        %v5813 = vpop.f32.mrf.mxu0
        %v5814 = vadd.f32 0.0, %v5813
        %v5815 = vpop.f32.mrf.mxu0
        %5816 = vmatprep.mubr.f32.mxu0 0.0
        %5817 = vmatmul.mubr.f32.gmra.mxu0 %v5737
        %v5818 = vpop.f32.mrf.mxu0
        %v5819 = vadd.f32 0.0, %v5818
        %v5820 = vpop.f32.mrf.mxu0
        %5821 = vmatprep.mubr.f32.mxu0 0.0
        %5822 = vmatmul.mubr.f32.gmra.mxu0 %v5740
        %v5823 = vpop.f32.mrf.mxu0
        %v5824 = vadd.f32 0.0, %v5823
        %v5825 = vpop.f32.mrf.mxu0
        %5826 = vdwg.mxu0
        %v5827 = vadd.f32 %v5052, %v5809
        %v5828 = vadd.f32 %v5057, %v5814
        %v5829 = vadd.f32 %v5062, %v5819
        %v5830 = vadd.f32 %v5067, %v5824
        %v5831 = vlaneseq
        %v5832 = vshrl.u32 %v5831, 7
        %v5833 = vsub.s32 6, %v5832
        %v5834 = vrot.slane %v3236, %v5833
        %v5835 = vadd.f32 %v5827, %v5834
        %v5836 = vadd.f32 %v5828, %v5834
        %v5837 = vadd.f32 %v5829, %v5834
        %v5838 = vadd.f32 %v5830, %v5834
        %v5839 = vadd.f32 %v3234, %v5835
        %v5840 = vadd.f32 %v3233, %v5836
        %v5841 = vadd.f32 %v3232, %v5837
        %v5842 = vadd.f32 %v3231, %v5838
        %s5843 = scalar_lea.vmem [#allocation2], 168
        %v5844 = vld [vmem:[%s5843] sm:$0xff]
        %v5845 = vld [vmem:[%s5843 + $0x8] sm:$0xff]
        %v5846 = vld [vmem:[%s5843 + $0x10] sm:$0xff]
        %v5847 = vlaneseq
        %v5848 = vshrl.u32 %v5847, 7
        %v5849 = vsub.s32 7, %v5848
        %v5850 = vrot.slane %v3236, %v5849
        %v5852 = vsel %vm237, %v5839, 0
        %v5855 = vsel %vm237, %v5840, 0
        %v5858 = vsel %vm237, %v5841, 0
        %v5861 = vsel %vm237, %v5842, 0
        %5863 = vmatprep.subr.mxu0 0.0
        %5864 = vmatpush1.msra.mxu0 0.0
        %5865 = vmatprep.subr.mxu0 0.0
        %5866 = vmatpush1.msra.mxu0 0.0
        %5867 = vmatprep.subr.mxu0 0.0
        %5868 = vmatpush1.msra.mxu0 0.0
        %5869 = vmatprep.subr.mxu0 0.0
        %5870 = vmatpush1.msra.mxu0 0.0
        %5871 = vmatprep.subr.mxu0 0.0
        %5872 = vmatpush1.msra.mxu0 0.0
        %5873 = vmatprep.subr.mxu0 0.0
        %5874 = vmatpush1.msra.mxu0 0.0
        %5875 = vmatprep.subr.mxu0 0.0
        %5876 = vmatpush1.msra.mxu0 0.0
        %5877 = vmatprep.subr.mxu0 0.0
        %5878 = vmatpush1.msra.mxu0 0.0
        %5879 = vmatprep.subr.mxu0 0.0
        %5880 = vmatpush1.msra.mxu0 0.0
        %5881 = vmatprep.subr.mxu0 0.0
        %5882 = vmatpush1.msra.mxu0 0.0
        %5883 = vmatprep.subr.mxu0 0.0
        %5884 = vmatpush1.msra.mxu0 0.0
        %5885 = vmatprep.subr.mxu0 0.0
        %5886 = vmatpush1.msra.mxu0 0.0
        %5887 = vmatprep.subr.mxu0 0.0
        %5888 = vmatpush1.msra.mxu0 0.0
        %5889 = vmatprep.subr.mxu0 0.0
        %5890 = vmatpush1.msra.mxu0 %v5846
        %5891 = vmatprep.subr.mxu0 0.0
        %5892 = vmatpush1.msra.mxu0 %v5845
        %5893 = vmatprep.subr.mxu0 0.0
        %5894 = vmatpush1.msra.mxu0 %v5844
        %5895 = vmatprep.subr.mxu0 0.0
        %5896 = vmatpush2.msra.mxu0 0.0
        %5897 = vmatprep.subr.mxu0 0.0
        %5898 = vmatpush2.msra.mxu0 0.0
        %5899 = vmatprep.subr.mxu0 0.0
        %5900 = vmatpush2.msra.mxu0 0.0
        %5901 = vmatprep.subr.mxu0 0.0
        %5902 = vmatpush2.msra.mxu0 0.0
        %5903 = vmatprep.subr.mxu0 0.0
        %5904 = vmatpush2.msra.mxu0 0.0
        %5905 = vmatprep.subr.mxu0 0.0
        %5906 = vmatpush2.msra.mxu0 0.0
        %5907 = vmatprep.subr.mxu0 0.0
        %5908 = vmatpush2.msra.mxu0 0.0
        %5909 = vmatprep.subr.mxu0 0.0
        %5910 = vmatpush2.msra.mxu0 0.0
        %5911 = vmatprep.subr.mxu0 0.0
        %5912 = vmatpush2.msra.mxu0 0.0
        %5913 = vmatprep.subr.mxu0 0.0
        %5914 = vmatpush2.msra.mxu0 0.0
        %5915 = vmatprep.subr.mxu0 0.0
        %5916 = vmatpush2.msra.mxu0 0.0
        %5917 = vmatprep.subr.mxu0 0.0
        %5918 = vmatpush2.msra.mxu0 0.0
        %5919 = vmatprep.subr.mxu0 0.0
        %5920 = vmatpush2.msra.mxu0 0.0
        %5921 = vmatprep.subr.mxu0 0.0
        %5922 = vmatpush2.msra.mxu0 0.0
        %5923 = vmatprep.subr.mxu0 0.0
        %5924 = vmatpush2.msra.mxu0 0.0
        %5925 = vmatprep.subr.mxu0 0.0
        %5926 = vmatpush2.msra.mxu0 0.0
        %5927 = vmatprep.mubr.f32.mxu0 0.0
        %5928 = vmatmul.mubr.f32.gmra.mxu0 %v5852
        %v5929 = vpop.f32.mrf.mxu0
        %v5930 = vadd.f32 %v5850, %v5929
        %v5931 = vpop.f32.mrf.mxu0
        %5932 = vmatprep.mubr.f32.mxu0 0.0
        %5933 = vmatmul.mubr.f32.gmra.mxu0 %v5855
        %v5934 = vpop.f32.mrf.mxu0
        %v5935 = vadd.f32 %v5850, %v5934
        %v5936 = vpop.f32.mrf.mxu0
        %5937 = vmatprep.mubr.f32.mxu0 0.0
        %5938 = vmatmul.mubr.f32.gmra.mxu0 %v5858
        %v5939 = vpop.f32.mrf.mxu0
        %v5940 = vadd.f32 %v5850, %v5939
        %v5941 = vpop.f32.mrf.mxu0
        %5942 = vmatprep.mubr.f32.mxu0 0.0
        %5943 = vmatmul.mubr.f32.gmra.mxu0 %v5861
        %v5944 = vpop.f32.mrf.mxu0
        %v5945 = vadd.f32 %v5850, %v5944
        %v5946 = vpop.f32.mrf.mxu0
        %5947 = vdwg.mxu0
        %v5948 = vsel %vm237, %v5930, 0.0
        %5949 = vadd.xlane.f32.xlu0 %v5948
        %v5950 = vpop.xlane.xlu0 %5949
        %v5951 = vsel %vm237, %v5935, 0.0
        %5952 = vadd.xlane.f32.xlu0 %v5951
        %v5953 = vpop.xlane.xlu0 %5952
        %v5954 = vsel %vm237, %v5940, 0.0
        %5955 = vadd.xlane.f32.xlu0 %v5954
        %v5956 = vpop.xlane.xlu0 %5955
        %v5957 = vsel %vm237, %v5945, 0.0
        %5958 = vadd.xlane.f32.xlu0 %v5957
        %v5959 = vpop.xlane.xlu0 %5958
        %v5960 = vmul.f32 %v5950, %v347
        %v5961 = vmul.f32 %v5953, %v347
        %v5962 = vmul.f32 %v5956, %v347
        %v5963 = vmul.f32 %v5959, %v347
        %v5964 = vsub.f32 %v5930, %v5960
        %v5965 = vsub.f32 %v5935, %v5961
        %v5966 = vsub.f32 %v5940, %v5962
        %v5967 = vsub.f32 %v5945, %v5963
        %v5968 = vmul.f32 %v5964, %v5964
        %v5969 = vmul.f32 %v5965, %v5965
        %v5970 = vmul.f32 %v5966, %v5966
        %v5971 = vmul.f32 %v5967, %v5967
        %v5972 = vsel %vm237, %v5968, 0.0
        %5973 = vadd.xlane.f32.xlu0 %v5972
        %v5974 = vpop.xlane.xlu0 %5973
        %v5975 = vsel %vm237, %v5969, 0.0
        %5976 = vadd.xlane.f32.xlu0 %v5975
        %v5977 = vpop.xlane.xlu0 %5976
        %v5978 = vsel %vm237, %v5970, 0.0
        %5979 = vadd.xlane.f32.xlu0 %v5978
        %v5980 = vpop.xlane.xlu0 %5979
        %v5981 = vsel %vm237, %v5971, 0.0
        %5982 = vadd.xlane.f32.xlu0 %v5981
        %v5983 = vpop.xlane.xlu0 %5982
        %v5984 = vmul.f32 %v5974, %v347
        %v5985 = vmul.f32 %v5977, %v347
        %v5986 = vmul.f32 %v5980, %v347
        %v5987 = vmul.f32 %v5983, %v347
        %v5988 = vadd.f32 %v5984, 1e-05
        %v5989 = vadd.f32 %v5985, 1e-05
        %v5990 = vadd.f32 %v5986, 1e-05
        %v5991 = vadd.f32 %v5987, 1e-05
        %v5992 = vrsqrt.pop %v5988
        %v5993 = vrsqrt.pop %v5989
        %v5994 = vrsqrt.pop %v5990
        %v5995 = vrsqrt.pop %v5991
        %v5996 = vmul.f32 %v5964, %v5992
        %v5997 = vmul.f32 %v5965, %v5993
        %v5998 = vmul.f32 %v5966, %v5994
        %v5999 = vmul.f32 %v5967, %v5995
        %v6000 = vlaneseq
        %v6001 = vshrl.u32 %v6000, 7
        %v6002 = vsub.s32 0, %v6001
        %v6003 = vrot.slane %v3237, %v6002
        %v6004 = vmul.f32 %v5996, %v6003
        %v6005 = vmul.f32 %v5997, %v6003
        %v6006 = vmul.f32 %v5998, %v6003
        %v6007 = vmul.f32 %v5999, %v6003
        %v6008 = vlaneseq
        %v6009 = vshrl.u32 %v6008, 7
        %v6010 = vsub.s32 1, %v6009
        %v6011 = vrot.slane %v3237, %v6010
        %v6012 = vadd.f32 %v6004, %v6011
        %v6013 = vadd.f32 %v6005, %v6011
        %v6014 = vadd.f32 %v6006, %v6011
        %v6015 = vadd.f32 %v6007, %v6011
        %s6016 = scalar_lea.vmem [#allocation2], 192
        %v6017 = vld [vmem:[%s6016] sm:$0xff]
        %v6018 = vld [vmem:[%s6016 + $0x8] sm:$0xff]
        %v6019 = vld [vmem:[%s6016 + $0x10] sm:$0xff]
        %v6020 = vlaneseq
        %v6021 = vshrl.u32 %v6020, 7
        %v6022 = vsub.s32 2, %v6021
        %v6023 = vrot.slane %v3237, %v6022
        %v6025 = vsel %vm237, %v6012, 0
        %v6028 = vsel %vm237, %v6013, 0
        %v6031 = vsel %vm237, %v6014, 0
        %v6034 = vsel %vm237, %v6015, 0
        %6036 = vmatprep.subr.mxu0 0.0
        %6037 = vmatpush1.msra.mxu0 0.0
        %6038 = vmatprep.subr.mxu0 0.0
        %6039 = vmatpush1.msra.mxu0 0.0
        %6040 = vmatprep.subr.mxu0 0.0
        %6041 = vmatpush1.msra.mxu0 0.0
        %6042 = vmatprep.subr.mxu0 0.0
        %6043 = vmatpush1.msra.mxu0 0.0
        %6044 = vmatprep.subr.mxu0 0.0
        %6045 = vmatpush1.msra.mxu0 0.0
        %6046 = vmatprep.subr.mxu0 0.0
        %6047 = vmatpush1.msra.mxu0 0.0
        %6048 = vmatprep.subr.mxu0 0.0
        %6049 = vmatpush1.msra.mxu0 0.0
        %6050 = vmatprep.subr.mxu0 0.0
        %6051 = vmatpush1.msra.mxu0 0.0
        %6052 = vmatprep.subr.mxu0 0.0
        %6053 = vmatpush1.msra.mxu0 0.0
        %6054 = vmatprep.subr.mxu0 0.0
        %6055 = vmatpush1.msra.mxu0 0.0
        %6056 = vmatprep.subr.mxu0 0.0
        %6057 = vmatpush1.msra.mxu0 0.0
        %6058 = vmatprep.subr.mxu0 0.0
        %6059 = vmatpush1.msra.mxu0 0.0
        %6060 = vmatprep.subr.mxu0 0.0
        %6061 = vmatpush1.msra.mxu0 0.0
        %6062 = vmatprep.subr.mxu0 0.0
        %6063 = vmatpush1.msra.mxu0 %v6019
        %6064 = vmatprep.subr.mxu0 0.0
        %6065 = vmatpush1.msra.mxu0 %v6018
        %6066 = vmatprep.subr.mxu0 0.0
        %6067 = vmatpush1.msra.mxu0 %v6017
        %6068 = vmatprep.subr.mxu0 0.0
        %6069 = vmatpush2.msra.mxu0 0.0
        %6070 = vmatprep.subr.mxu0 0.0
        %6071 = vmatpush2.msra.mxu0 0.0
        %6072 = vmatprep.subr.mxu0 0.0
        %6073 = vmatpush2.msra.mxu0 0.0
        %6074 = vmatprep.subr.mxu0 0.0
        %6075 = vmatpush2.msra.mxu0 0.0
        %6076 = vmatprep.subr.mxu0 0.0
        %6077 = vmatpush2.msra.mxu0 0.0
        %6078 = vmatprep.subr.mxu0 0.0
        %6079 = vmatpush2.msra.mxu0 0.0
        %6080 = vmatprep.subr.mxu0 0.0
        %6081 = vmatpush2.msra.mxu0 0.0
        %6082 = vmatprep.subr.mxu0 0.0
        %6083 = vmatpush2.msra.mxu0 0.0
        %6084 = vmatprep.subr.mxu0 0.0
        %6085 = vmatpush2.msra.mxu0 0.0
        %6086 = vmatprep.subr.mxu0 0.0
        %6087 = vmatpush2.msra.mxu0 0.0
        %6088 = vmatprep.subr.mxu0 0.0
        %6089 = vmatpush2.msra.mxu0 0.0
        %6090 = vmatprep.subr.mxu0 0.0
        %6091 = vmatpush2.msra.mxu0 0.0
        %6092 = vmatprep.subr.mxu0 0.0
        %6093 = vmatpush2.msra.mxu0 0.0
        %6094 = vmatprep.subr.mxu0 0.0
        %6095 = vmatpush2.msra.mxu0 0.0
        %6096 = vmatprep.subr.mxu0 0.0
        %6097 = vmatpush2.msra.mxu0 0.0
        %6098 = vmatprep.subr.mxu0 0.0
        %6099 = vmatpush2.msra.mxu0 0.0
        %6100 = vmatprep.mubr.f32.mxu0 0.0
        %6101 = vmatmul.mubr.f32.gmra.mxu0 %v6025
        %v6102 = vpop.f32.mrf.mxu0
        %v6103 = vadd.f32 %v6023, %v6102
        %v6104 = vpop.f32.mrf.mxu0
        %6105 = vmatprep.mubr.f32.mxu0 0.0
        %6106 = vmatmul.mubr.f32.gmra.mxu0 %v6028
        %v6107 = vpop.f32.mrf.mxu0
        %v6108 = vadd.f32 %v6023, %v6107
        %v6109 = vpop.f32.mrf.mxu0
        %6110 = vmatprep.mubr.f32.mxu0 0.0
        %6111 = vmatmul.mubr.f32.gmra.mxu0 %v6031
        %v6112 = vpop.f32.mrf.mxu0
        %v6113 = vadd.f32 %v6023, %v6112
        %v6114 = vpop.f32.mrf.mxu0
        %6115 = vmatprep.mubr.f32.mxu0 0.0
        %6116 = vmatmul.mubr.f32.gmra.mxu0 %v6034
        %v6117 = vpop.f32.mrf.mxu0
        %v6118 = vadd.f32 %v6023, %v6117
        %v6119 = vpop.f32.mrf.mxu0
        %6120 = vdwg.mxu0
        %v6121 = vmax.f32 %v6103, 0.0
        %v6122 = vmax.f32 %v6108, 0.0
        %v6123 = vmax.f32 %v6113, 0.0
        %v6124 = vmax.f32 %v6118, 0.0
        %s6125 = scalar_lea.vmem [#allocation2], 216
        %v6126 = vld [vmem:[%s6125] sm:$0xff]
        %v6127 = vld [vmem:[%s6125 + $0x8] sm:$0xff]
        %v6128 = vld [vmem:[%s6125 + $0x10] sm:$0xff]
        %v6129 = vlaneseq
        %v6130 = vshrl.u32 %v6129, 7
        %v6131 = vsub.s32 3, %v6130
        %v6132 = vrot.slane %v3237, %v6131
        %v6134 = vsel %vm237, %v6121, 0
        %v6137 = vsel %vm237, %v6122, 0
        %v6140 = vsel %vm237, %v6123, 0
        %v6143 = vsel %vm237, %v6124, 0
        %6145 = vmatprep.subr.mxu0 0.0
        %6146 = vmatpush1.msra.mxu0 0.0
        %6147 = vmatprep.subr.mxu0 0.0
        %6148 = vmatpush1.msra.mxu0 0.0
        %6149 = vmatprep.subr.mxu0 0.0
        %6150 = vmatpush1.msra.mxu0 0.0
        %6151 = vmatprep.subr.mxu0 0.0
        %6152 = vmatpush1.msra.mxu0 0.0
        %6153 = vmatprep.subr.mxu0 0.0
        %6154 = vmatpush1.msra.mxu0 0.0
        %6155 = vmatprep.subr.mxu0 0.0
        %6156 = vmatpush1.msra.mxu0 0.0
        %6157 = vmatprep.subr.mxu0 0.0
        %6158 = vmatpush1.msra.mxu0 0.0
        %6159 = vmatprep.subr.mxu0 0.0
        %6160 = vmatpush1.msra.mxu0 0.0
        %6161 = vmatprep.subr.mxu0 0.0
        %6162 = vmatpush1.msra.mxu0 0.0
        %6163 = vmatprep.subr.mxu0 0.0
        %6164 = vmatpush1.msra.mxu0 0.0
        %6165 = vmatprep.subr.mxu0 0.0
        %6166 = vmatpush1.msra.mxu0 0.0
        %6167 = vmatprep.subr.mxu0 0.0
        %6168 = vmatpush1.msra.mxu0 0.0
        %6169 = vmatprep.subr.mxu0 0.0
        %6170 = vmatpush1.msra.mxu0 0.0
        %6171 = vmatprep.subr.mxu0 0.0
        %6172 = vmatpush1.msra.mxu0 %v6128
        %6173 = vmatprep.subr.mxu0 0.0
        %6174 = vmatpush1.msra.mxu0 %v6127
        %6175 = vmatprep.subr.mxu0 0.0
        %6176 = vmatpush1.msra.mxu0 %v6126
        %6177 = vmatprep.subr.mxu0 0.0
        %6178 = vmatpush2.msra.mxu0 0.0
        %6179 = vmatprep.subr.mxu0 0.0
        %6180 = vmatpush2.msra.mxu0 0.0
        %6181 = vmatprep.subr.mxu0 0.0
        %6182 = vmatpush2.msra.mxu0 0.0
        %6183 = vmatprep.subr.mxu0 0.0
        %6184 = vmatpush2.msra.mxu0 0.0
        %6185 = vmatprep.subr.mxu0 0.0
        %6186 = vmatpush2.msra.mxu0 0.0
        %6187 = vmatprep.subr.mxu0 0.0
        %6188 = vmatpush2.msra.mxu0 0.0
        %6189 = vmatprep.subr.mxu0 0.0
        %6190 = vmatpush2.msra.mxu0 0.0
        %6191 = vmatprep.subr.mxu0 0.0
        %6192 = vmatpush2.msra.mxu0 0.0
        %6193 = vmatprep.subr.mxu0 0.0
        %6194 = vmatpush2.msra.mxu0 0.0
        %6195 = vmatprep.subr.mxu0 0.0
        %6196 = vmatpush2.msra.mxu0 0.0
        %6197 = vmatprep.subr.mxu0 0.0
        %6198 = vmatpush2.msra.mxu0 0.0
        %6199 = vmatprep.subr.mxu0 0.0
        %6200 = vmatpush2.msra.mxu0 0.0
        %6201 = vmatprep.subr.mxu0 0.0
        %6202 = vmatpush2.msra.mxu0 0.0
        %6203 = vmatprep.subr.mxu0 0.0
        %6204 = vmatpush2.msra.mxu0 0.0
        %6205 = vmatprep.subr.mxu0 0.0
        %6206 = vmatpush2.msra.mxu0 0.0
        %6207 = vmatprep.subr.mxu0 0.0
        %6208 = vmatpush2.msra.mxu0 0.0
        %6209 = vmatprep.mubr.f32.mxu0 0.0
        %6210 = vmatmul.mubr.f32.gmra.mxu0 %v6134
        %v6211 = vpop.f32.mrf.mxu0
        %v6212 = vadd.f32 %v6132, %v6211
        %v6213 = vpop.f32.mrf.mxu0
        %6214 = vmatprep.mubr.f32.mxu0 0.0
        %6215 = vmatmul.mubr.f32.gmra.mxu0 %v6137
        %v6216 = vpop.f32.mrf.mxu0
        %v6217 = vadd.f32 %v6132, %v6216
        %v6218 = vpop.f32.mrf.mxu0
        %6219 = vmatprep.mubr.f32.mxu0 0.0
        %6220 = vmatmul.mubr.f32.gmra.mxu0 %v6140
        %v6221 = vpop.f32.mrf.mxu0
        %v6222 = vadd.f32 %v6132, %v6221
        %v6223 = vpop.f32.mrf.mxu0
        %6224 = vmatprep.mubr.f32.mxu0 0.0
        %6225 = vmatmul.mubr.f32.gmra.mxu0 %v6143
        %v6226 = vpop.f32.mrf.mxu0
        %v6227 = vadd.f32 %v6132, %v6226
        %v6228 = vpop.f32.mrf.mxu0
        %6229 = vdwg.mxu0
        %v6230 = vadd.f32 %v5839, %v6212
        %v6231 = vadd.f32 %v5840, %v6217
        %v6232 = vadd.f32 %v5841, %v6222
        %v6233 = vadd.f32 %v5842, %v6227
        %6234 = vst.msk [vmem:[%s212] sm:$0xff] %vm237, %v6230
        %6235 = vst.msk [vmem:[%s212 + $0x8] sm:$0xff] %vm237, %v6231
        %6236 = vst.msk [vmem:[%s212 + $0x10] sm:$0xff] %vm237, %v6232
        %6237 = vst.msk [vmem:[%s212 + $0x18] sm:$0xff] %vm237, %v6233
        %p6238 = scmp.lt.s32.totalorder %s16, 1
        %s6239 = scalar_select %p6238, %s16, 1
        %s6240 = smul.addr %s6239, 4
        %s6241 = smul.addr %s6240, 8
        %s6242 = scalar_lea.vmem %s4, %s6241
        // Predicated region
        $region41: #{tpu_custom_call.1} parent=35 // pred_check
          %p6243 = pneg %p123
        $region42: #{tpu_custom_call.1} parent=35 // pred_check_branch
          %6245 = sbr.rel (%p6243) target = $region44
        $region43: #{tpu_custom_call.1} parent=35 // pred_region
          _
        $region44: #{tpu_custom_call.1} parent=35 // pred_fallthru
          _
      $region36: #{tpu_custom_call.1} parent=5 // pred_fallthru
        _
      %p6246 = scmp.le.s32.totalorder 2, %s11
      // Predicated region
      $region45: #{tpu_custom_call.1} parent=5 // pred_check
        %p6247 = pneg %p6246
      $region46: #{tpu_custom_call.1} parent=5 // pred_check_branch
        %6249 = sbr.rel (%p6247) target = $region48
      $region47: #{tpu_custom_call.1} parent=5 // pred_region
        %s6250 = ssub.s32 %s11, 2
        // Predicated region
        $region49: #{tpu_custom_call.1} parent=47 // pred_check
          %p6251 = pneg %p129
        $region50: #{tpu_custom_call.1} parent=47 // pred_check_branch
          %6253 = sbr.rel (%p6251) target = $region52
        $region51: #{tpu_custom_call.1} parent=47 // pred_region
          %p6254 = scmp.lt.s32.totalorder %s17, 1
          %s6255 = scalar_select %p6254, %s17, 1
          %s6256 = smul.addr %s6255, 4
          %s6257 = smul.addr %s6256, 8
          %s6258 = scalar_lea.vmem %s4, %s6257
        $region52: #{tpu_custom_call.1} parent=47 // pred_fallthru
          _
      $region48: #{tpu_custom_call.1} parent=5 // pred_fallthru
        _
    $region6: #{tpu_custom_call.1} parent=1 // loop_footer
      %s15 = sadd.s32 1, %s11
    $region7: #{tpu_custom_call.1} parent=1 // loop_footer_branch
      %10 = sbr.rel target = $region3
    $region8: #{tpu_custom_call.1} parent=1 // loop_exit
      _
    %6259 = vsyncpa [#allocation3], 1
    %s6260 = scalar_lea.sflag [#allocation3], 1
    %6261 = vsyncpa %s6260, 1

</llo_original>
